<compile_context>
chip_gen: v6e
topology: v6e:2x2x1
jax: 0.10.0
libtpu: 0.0.40
codegen_flags: <defaults>
</compile_context>

<pallas_src>
import functools

import jax
import jax.numpy as jnp
from jax import lax
from jax.experimental import pallas as pl
from jax.experimental.pallas import tpu as pltpu

# conv geometry (from LKA.__init__)
K0, P0 = 5, 2          # conv0:        5x5 depthwise, padding 2
K1, P1, D1 = 7, 9, 3   # conv_spatial: 7x7 depthwise, padding 9, dilation 3

# Scratch column (sublane-axis) padding is over-allocated on the left so the
# interior store lands on a sublane-tile-aligned offset.
PL0 = 8     # >= P0, multiple of 8
PL1 = 16    # >= P1, multiple of 8 (and 16 for bf16 scratch)

_REG_BUDGET = 192 * 1024   # rough live-value budget (vreg file is 256 KiB)


def _zero_halo(ref, pad, col0, h, w):
    """Zero only the halo ring the tap loads actually read (width = pad)."""
    c = ref.shape[2]
    dt = ref.dtype
    cl, cr = col0 - pad, col0 + w + pad
    ref[0:pad, cl:cr, :] = jnp.zeros((pad, cr - cl, c), dt)
    ref[pad + h:pad + h + pad, cl:cr, :] = jnp.zeros((pad, cr - cl, c), dt)
    ref[pad:pad + h, cl:col0, :] = jnp.zeros((h, pad, c), dt)
    ref[pad:pad + h, col0 + w:cr, :] = jnp.zeros((h, pad, c), dt)


def lka_kernel(x_ref, w0_ref, b0_ref, w1_ref, b1_ref, w2_ref, b2_ref,
               out_ref, pad0_ref, pad1_ref, *,
               strip, reuse_band1, mm_dtype, zero_every_step):
    # x_ref / out_ref: (H, W, C)  one (lane-packed) batch group, C = Nb*C_orig
    # w0_ref: (5,5,C)  w1_ref: (7,7,C)  w2_ref: (C,C)  b*_ref: (1,C)
    # pad0_ref: (H+2*P0, PL0+W+P0, C)   pad1_ref: (H+2*P1, PL1+W+P1, C)
    H, W, C = x_ref.shape
    sd = pad0_ref.dtype
    S = strip
    n_strips = H // S

    def init_halos():
        _zero_halo(pad0_ref, P0, PL0, H, W)
        _zero_halo(pad1_ref, P1, PL1, H, W)

    if zero_every_step:
        # "parallel" batch axis (e.g. v7x 2 TCs): scratch per core is
        # uninitialized at an arbitrary grid step -> zero the thin ring per step.
        init_halos()
    else:
        # single-core sequenced grid: scratch persists, zero once.
        @pl.when(pl.program_id(0) == 0)
        def _():
            init_halos()

    w0 = w0_ref[...].astype(jnp.float32)
    w1 = w1_ref[...].astype(jnp.float32)
    w2m = w2_ref[...].astype(mm_dtype)
    b0 = b0_ref[0, :]
    b1 = b1_ref[0, :]
    b2 = b2_ref[0, :]

    # ---- stage x into the conv0 halo scratch, strip by strip ------------
    @pl.loop(0, n_strips)
    def _(s):
        r = pl.multiple_of(s * S, S)
        pad0_ref[pl.ds(P0 + r, S), pl.ds(PL0, W), :] = (
            x_ref[pl.ds(r, S), :, :].astype(sd))

    # ---- conv0: depthwise 5x5, padding 2 (strip accumulator in vregs) ---
    @pl.loop(0, n_strips)
    def _(s):
        r = pl.multiple_of(s * S, S)
        acc = jnp.zeros((S, W, C), jnp.float32)
        for kx in range(K0):
            c0 = PL0 - P0 + kx
            # one W-shifted row band per kx, reused across all ky (H slices
            # on the leading axis of a live value are free).
            band = pad0_ref[pl.ds(r, S + K0 - 1), pl.ds(c0, W), :].astype(jnp.float32)
            for ky in range(K0):
                acc = acc + band[ky:ky + S] * w0[ky, kx]
        pad1_ref[pl.ds(P1 + r, S), pl.ds(PL1, W), :] = (acc + b0).astype(sd)

    # ---- conv_spatial 7x7 dil 3 pad 9 + 1x1 conv + gating, fused per strip
    @pl.loop(0, n_strips)
    def _(s):
        r = pl.multiple_of(s * S, S)
        acc = jnp.zeros((S, W, C), jnp.float32)
        for kx in range(K1):
            c1 = PL1 - P1 + kx * D1
            if reuse_band1:
                band = pad1_ref[pl.ds(r, S + (K1 - 1) * D1),
                                pl.ds(c1, W), :].astype(jnp.float32)
                for ky in range(K1):
                    acc = acc + band[ky * D1:ky * D1 + S] * w1[ky, kx]
            else:
                # per-tap ref loads keep register pressure to acc + one tap
                for ky in range(K1):
                    tap = pad1_ref[pl.ds(r + ky * D1, S),
                                   pl.ds(c1, W), :].astype(jnp.float32)
                    acc = acc + tap * w1[ky, kx]
        acc = acc + b1

        # pointwise 1x1 conv on the MXU (block-diagonal weight handles the
        # lane-packed batch groups); bf16 operands, f32 accumulation.
        attn = jnp.dot(acc.reshape(S * W, C).astype(mm_dtype), w2m,
                       preferred_element_type=jnp.float32)
        attn = attn.reshape(S, W, C) + b2

        u = x_ref[pl.ds(r, S), :, :].astype(jnp.float32)
        out_ref[pl.ds(r, S), :, :] = (u * attn).astype(out_ref.dtype)


def _pick_strip(H, W, C):
    """Largest H-strip whose conv0 band + accumulator stay register-friendly."""
    for S in (32, 16, 8, 4, 2, 1):
        if H % S:
            continue
        live = (2 * S + K0 - 1) * W * C * 4
        if live <= _REG_BUDGET:
            return S
    return 1


def _tile_bytes(shape, dtype):
    """VMEM footprint of `shape` after (sublane, lane) tile padding."""
    dt = jnp.dtype(dtype)
    sub = 8 * (4 // dt.itemsize) if dt.itemsize < 4 else 8
    *lead, s, l = shape
    n = 1
    for d in lead:
        n *= d
    return n * (-(-s // sub) * sub) * (-(-l // 128) * 128) * dt.itemsize


def _vmem_cap_bytes():
    try:
        info = pltpu.get_tpu_info()
        cap = int(getattr(info, "vmem_capacity_bytes"))
        return max(16 * 2**20, cap // 2)      # e.g. 32 MiB on v7x (64 MiB / TC)
    except Exception:
        return 32 * 2**20


def lka_forward_nhwc(x, params, *, scratch_dtype=jnp.float32,
                     mm_dtype=jnp.bfloat16, lane_pack=True, multicore=False):
    """Fused LKA forward, NHWC in / NHWC out (output dtype == input dtype)."""
    w0, b0, w1, b1, w2, b2 = params
    B, H, W, C = x.shape
    scratch_dtype = jnp.dtype(scratch_dtype)

    # --- lane packing: fold Nb images into the minor (lane) axis ----------
    Nb = 1
    if lane_pack and C < 128:
        for n in range(min(B, max(1, 128 // C)), 0, -1):
            if B % n == 0:
                Nb = n
                break
    if Nb > 1:
        xp = (x.reshape(B // Nb, Nb, H, W, C)
               .transpose(0, 2, 3, 1, 4)
               .reshape(B // Nb, H, W, Nb * C))
        w0p = jnp.tile(w0, (1, 1, Nb))
        w1p = jnp.tile(w1, (1, 1, Nb))
        b0p = jnp.tile(b0, (1, Nb))
        b1p = jnp.tile(b1, (1, Nb))
        b2p = jnp.tile(b2, (1, Nb))
        w2p = jnp.kron(jnp.eye(Nb, dtype=w2.dtype), w2)   # block-diagonal 1x1
    else:
        xp, w0p, b0p, w1p, b1p, w2p, b2p = x, w0, b0, w1, b1, w2, b2
    Bg, Cp = B // Nb, Nb * C

    S = _pick_strip(H, W, Cp)
    reuse1 = (2 * S + (K1 - 1) * D1) * W * Cp * 4 <= _REG_BUDGET

    pad0_shape = (H + 2 * P0, PL0 + W + P0, Cp)
    pad1_shape = (H + 2 * P1, PL1 + W + P1, Cp)

    est = (4 * _tile_bytes((1, H, W, Cp), x.dtype)            # in+out, dbl-buffered
           + _tile_bytes(pad0_shape, scratch_dtype)
           + _tile_bytes(pad1_shape, scratch_dtype)
           + 2 * (_tile_bytes((K0, K0, Cp), jnp.float32)
                  + _tile_bytes((K1, K1, Cp), jnp.float32)
                  + _tile_bytes((Cp, Cp), jnp.float32)
                  + 3 * _tile_bytes((1, Cp), jnp.float32))
           + 6 * (S + (K1 - 1) * D1) * W * max(Cp, 128) * 4)  # live strip values
    vmem_limit = int(min(_vmem_cap_bytes(), max(16 * 2**20, 2 * est)))

    kern = functools.partial(
        lka_kernel, strip=S, reuse_band1=reuse1,
        mm_dtype=jnp.dtype(mm_dtype), zero_every_step=bool(multicore))

    out_p = pl.pallas_call(
        kern,
        out_shape=jax.ShapeDtypeStruct((Bg, H, W, Cp), x.dtype),
        grid_spec=pltpu.PrefetchScalarGridSpec(
            num_scalar_prefetch=0,
            grid=(Bg,),
            in_specs=[
                pl.BlockSpec((None, H, W, Cp), lambda b: (b, 0, 0, 0)),
                # weights / biases: constant index maps -> resident for the grid
                pl.BlockSpec((K0, K0, Cp), lambda b: (0, 0, 0)),
                pl.BlockSpec((1, Cp), lambda b: (0, 0)),
                pl.BlockSpec((K1, K1, Cp), lambda b: (0, 0, 0)),
                pl.BlockSpec((1, Cp), lambda b: (0, 0)),
                pl.BlockSpec((Cp, Cp), lambda b: (0, 0)),
                pl.BlockSpec((1, Cp), lambda b: (0, 0)),
            ],
            out_specs=pl.BlockSpec((None, H, W, Cp), lambda b: (b, 0, 0, 0)),
            scratch_shapes=[
                pltpu.VMEM(pad0_shape, scratch_dtype),
                pltpu.VMEM(pad1_shape, scratch_dtype),
            ],
        ),
        compiler_params=pltpu.CompilerParams(
            dimension_semantics=(("parallel",) if multicore else ("arbitrary",)),
            vmem_limit_bytes=vmem_limit,
        ),
    )(xp, w0p, b0p, w1p, b1p, w2p, b2p)

    if Nb > 1:
        out = (out_p.reshape(Bg, H, W, Nb, C)
                    .transpose(0, 3, 1, 2, 4)
                    .reshape(B, H, W, C))
    else:
        out = out_p
    return out


def lka_forward(x_nchw, params, **kwargs):
    """NCHW adapter matching the PyTorch module interface (verification only)."""
    x = jnp.transpose(x_nchw, (0, 2, 3, 1))
    out = lka_forward_nhwc(x, params, **kwargs)
    return jnp.transpose(out, (0, 3, 1, 2))


def init_params(key, dim):
    """Deterministic synthetic params matching LKA(dim).__init__ shapes."""
    ks = jax.random.split(key, 6)
    w0 = 0.1 * jax.random.normal(ks[0], (K0, K0, dim), jnp.float32)   # (5,5,C)
    b0 = 0.1 * jax.random.normal(ks[1], (1, dim), jnp.float32)
    w1 = 0.1 * jax.random.normal(ks[2], (K1, K1, dim), jnp.float32)   # (7,7,C)
    b1 = 0.1 * jax.random.normal(ks[3], (1, dim), jnp.float32)
    w2 = 0.1 * jax.random.normal(ks[4], (dim, dim), jnp.float32)      # [Cin,Cout]
    b2 = 0.1 * jax.random.normal(ks[5], (1, dim), jnp.float32)
    return (w0, b0, w1, b1, w2, b2)


def lka_reference(x_nchw, params):
    """Pure-JAX NCHW reference mirroring the PyTorch module exactly."""
    w0, b0, w1, b1, w2, b2 = params
    C = x_nchw.shape[1]
    dn = ("NCHW", "OIHW", "NCHW")
    w0_oihw = jnp.transpose(w0, (2, 0, 1))[:, None, :, :]
    w1_oihw = jnp.transpose(w1, (2, 0, 1))[:, None, :, :]
    w2_oihw = jnp.transpose(w2, (1, 0))[:, :, None, None]

    a = lax.conv_general_dilated(x_nchw, w0_oihw, (1, 1),
                                 ((P0, P0), (P0, P0)),
                                 feature_group_count=C, dimension_numbers=dn)
    a = a + b0[0][None, :, None, None]
    a = lax.conv_general_dilated(a, w1_oihw, (1, 1),
                                 ((P1, P1), (P1, P1)),
                                 rhs_dilation=(D1, D1),
                                 feature_group_count=C, dimension_numbers=dn)
    a = a + b1[0][None, :, None, None]
    a = lax.conv_general_dilated(a, w2_oihw, (1, 1), ((0, 0), (0, 0)),
                                 dimension_numbers=dn)
    a = a + b2[0][None, :, None, None]
    return x_nchw * a


if __name__ == "__main__":
    key = jax.random.PRNGKey(0)
    k_x, k_p = jax.random.split(key)

    B, C, H, W = 2, 4, 16, 16
    x = jax.random.normal(k_x, (B, C, H, W), jnp.float32)
    params = init_params(k_p, C)

    ref = lka_reference(x, params)

    # f32 everywhere: tight check.
    out = jax.block_until_ready(lka_forward(x, params, mm_dtype=jnp.float32))
    assert out.shape == (B, C, H, W)
    assert jnp.allclose(out, ref, atol=1e-4, rtol=1e-4), "f32 kernel mismatch"

    # Default production setting: bf16 operands for the 1x1-conv MXU matmul
    # (f32 accumulation), f32 depthwise taps/scratch. Looser tolerance.
    out_bf = jax.block_until_ready(lka_forward(x, params, mm_dtype=jnp.bfloat16))
    assert jnp.allclose(out_bf, ref, atol=1e-1, rtol=0.0), "bf16 1x1 path mismatch"

    print("KERNEL_OK")
</pallas_src>

<mosaic_0001>
module attributes {stable_mosaic.version = 11 : i64} {
  func.func @lka_kernel(%arg0: i32, %arg1: memref<1x16x16x8xf32, #tpu.memory_space<vmem>>, %arg2: memref<5x5x8xf32, #tpu.memory_space<vmem>>, %arg3: memref<1x8xf32, #tpu.memory_space<vmem>>, %arg4: memref<7x7x8xf32, #tpu.memory_space<vmem>>, %arg5: memref<1x8xf32, #tpu.memory_space<vmem>>, %arg6: memref<8x8xf32, #tpu.memory_space<vmem>>, %arg7: memref<1x8xf32, #tpu.memory_space<vmem>>, %arg8: memref<1x16x16x8xf32, #tpu.memory_space<vmem>>, %arg9: memref<20x26x8xf32, #tpu.memory_space<vmem>>, %arg10: memref<34x41x8xf32, #tpu.memory_space<vmem>>) attributes {dimension_semantics = [#tpu.dimension_semantics<arbitrary>], iteration_bounds = array<i64: 1>, scalar_prefetch = 0 : i64, scratch_operands = 2 : i64, tpu.core_type = #tpu.core_type<tc>, window_params = [{transform_indices = @transform_0, window_bounds = array<i64: 1, 16, 16, 8>}, {pipeline_mode = #tpu.pipeline_mode<synchronous>, transform_indices = @transform_1, window_bounds = array<i64: 5, 5, 8>}, {pipeline_mode = #tpu.pipeline_mode<synchronous>, transform_indices = @transform_2, window_bounds = array<i64: 1, 8>}, {pipeline_mode = #tpu.pipeline_mode<synchronous>, transform_indices = @transform_3, window_bounds = array<i64: 7, 7, 8>}, {pipeline_mode = #tpu.pipeline_mode<synchronous>, transform_indices = @transform_4, window_bounds = array<i64: 1, 8>}, {pipeline_mode = #tpu.pipeline_mode<synchronous>, transform_indices = @transform_5, window_bounds = array<i64: 8, 8>}, {pipeline_mode = #tpu.pipeline_mode<synchronous>, transform_indices = @transform_6, window_bounds = array<i64: 1, 8>}, {transform_indices = @transform_7, window_bounds = array<i64: 1, 16, 16, 8>}]} {
    %c0_i32 = arith.constant 0 : i32
    %0 = arith.cmpi eq, %arg0, %c0_i32 : i32
    %1 = arith.extui %0 : i1 to i32
    %c0_i32_0 = arith.constant 0 : i32
    %2 = arith.cmpi ne, %1, %c0_i32_0 : i32
    scf.if %2 {
      %cst_56 = arith.constant 0.000000e+00 : f32
      %597 = vector.broadcast %cst_56 : f32 to vector<2x20x8xf32>
      %c0_57 = arith.constant 0 : index
      %c6_58 = arith.constant 6 : index
      %c0_59 = arith.constant 0 : index
      %598 = vector.load %arg9[%c0_57, %c6_58, %c0_59] : memref<20x26x8xf32, #tpu.memory_space<vmem>>, vector<2x20x8xf32>
      tpu.vector_store %arg9[%c0_57, %c6_58, %c0_59], %597 {strides = array<i32>} : memref<20x26x8xf32, #tpu.memory_space<vmem>>, vector<2x20x8xf32>,
      %cst_60 = arith.constant 0.000000e+00 : f32
      %599 = vector.broadcast %cst_60 : f32 to vector<2x20x8xf32>
      %c18 = arith.constant 18 : index
      %c6_61 = arith.constant 6 : index
      %c0_62 = arith.constant 0 : index
      %600 = vector.load %arg9[%c18, %c6_61, %c0_62] : memref<20x26x8xf32, #tpu.memory_space<vmem>>, vector<2x20x8xf32>
      tpu.vector_store %arg9[%c18, %c6_61, %c0_62], %599 {strides = array<i32>} : memref<20x26x8xf32, #tpu.memory_space<vmem>>, vector<2x20x8xf32>,
      %cst_63 = arith.constant 0.000000e+00 : f32
      %601 = vector.broadcast %cst_63 : f32 to vector<16x2x8xf32>
      %c2 = arith.constant 2 : index
      %c6_64 = arith.constant 6 : index
      %c0_65 = arith.constant 0 : index
      %602 = vector.load %arg9[%c2, %c6_64, %c0_65] : memref<20x26x8xf32, #tpu.memory_space<vmem>>, vector<16x2x8xf32>
      tpu.vector_store %arg9[%c2, %c6_64, %c0_65], %601 {strides = array<i32>} : memref<20x26x8xf32, #tpu.memory_space<vmem>>, vector<16x2x8xf32>,
      %cst_66 = arith.constant 0.000000e+00 : f32
      %603 = vector.broadcast %cst_66 : f32 to vector<16x2x8xf32>
      %c2_67 = arith.constant 2 : index
      %c24 = arith.constant 24 : index
      %c0_68 = arith.constant 0 : index
      %604 = vector.load %arg9[%c2_67, %c24, %c0_68] : memref<20x26x8xf32, #tpu.memory_space<vmem>>, vector<16x2x8xf32>
      tpu.vector_store %arg9[%c2_67, %c24, %c0_68], %603 {strides = array<i32>} : memref<20x26x8xf32, #tpu.memory_space<vmem>>, vector<16x2x8xf32>,
      %cst_69 = arith.constant 0.000000e+00 : f32
      %605 = vector.broadcast %cst_69 : f32 to vector<9x34x8xf32>
      %c0_70 = arith.constant 0 : index
      %c7_71 = arith.constant 7 : index
      %c0_72 = arith.constant 0 : index
      %606 = vector.load %arg10[%c0_70, %c7_71, %c0_72] : memref<34x41x8xf32, #tpu.memory_space<vmem>>, vector<9x34x8xf32>
      tpu.vector_store %arg10[%c0_70, %c7_71, %c0_72], %605 {strides = array<i32>} : memref<34x41x8xf32, #tpu.memory_space<vmem>>, vector<9x34x8xf32>,
      %cst_73 = arith.constant 0.000000e+00 : f32
      %607 = vector.broadcast %cst_73 : f32 to vector<9x34x8xf32>
      %c25_74 = arith.constant 25 : index
      %c7_75 = arith.constant 7 : index
      %c0_76 = arith.constant 0 : index
      %608 = vector.load %arg10[%c25_74, %c7_75, %c0_76] : memref<34x41x8xf32, #tpu.memory_space<vmem>>, vector<9x34x8xf32>
      tpu.vector_store %arg10[%c25_74, %c7_75, %c0_76], %607 {strides = array<i32>} : memref<34x41x8xf32, #tpu.memory_space<vmem>>, vector<9x34x8xf32>,
      %cst_77 = arith.constant 0.000000e+00 : f32
      %609 = vector.broadcast %cst_77 : f32 to vector<16x9x8xf32>
      %c9_78 = arith.constant 9 : index
      %c7_79 = arith.constant 7 : index
      %c0_80 = arith.constant 0 : index
      %610 = vector.load %arg10[%c9_78, %c7_79, %c0_80] : memref<34x41x8xf32, #tpu.memory_space<vmem>>, vector<16x9x8xf32>
      tpu.vector_store %arg10[%c9_78, %c7_79, %c0_80], %609 {strides = array<i32>} : memref<34x41x8xf32, #tpu.memory_space<vmem>>, vector<16x9x8xf32>,
      %cst_81 = arith.constant 0.000000e+00 : f32
      %611 = vector.broadcast %cst_81 : f32 to vector<16x9x8xf32>
      %c9_82 = arith.constant 9 : index
      %c32 = arith.constant 32 : index
      %c0_83 = arith.constant 0 : index
      %612 = vector.load %arg10[%c9_82, %c32, %c0_83] : memref<34x41x8xf32, #tpu.memory_space<vmem>>, vector<16x9x8xf32>
      tpu.vector_store %arg10[%c9_82, %c32, %c0_83], %611 {strides = array<i32>} : memref<34x41x8xf32, #tpu.memory_space<vmem>>, vector<16x9x8xf32>,
    } else {
    }
    %c0 = arith.constant 0 : index
    %c0_1 = arith.constant 0 : index
    %c0_2 = arith.constant 0 : index
    %3 = vector.load %arg2[%c0, %c0_1, %c0_2] : memref<5x5x8xf32, #tpu.memory_space<vmem>>, vector<5x5x8xf32>
    %c0_3 = arith.constant 0 : index
    %c0_4 = arith.constant 0 : index
    %c0_5 = arith.constant 0 : index
    %4 = vector.load %arg4[%c0_3, %c0_4, %c0_5] : memref<7x7x8xf32, #tpu.memory_space<vmem>>, vector<7x7x8xf32>
    %c0_6 = arith.constant 0 : index
    %c0_7 = arith.constant 0 : index
    %5 = vector.load %arg6[%c0_6, %c0_7] : memref<8x8xf32, #tpu.memory_space<vmem>>, vector<8x8xf32>
    %c0_8 = arith.constant 0 : index
    %c0_9 = arith.constant 0 : index
    %6 = vector.load %arg3[%c0_8, %c0_9] : memref<1x8xf32, #tpu.memory_space<vmem>>, vector<1x8xf32>
    %7 = vector.shape_cast %6 : vector<1x8xf32> to vector<8xf32>
    %c0_10 = arith.constant 0 : index
    %c0_11 = arith.constant 0 : index
    %8 = vector.load %arg5[%c0_10, %c0_11] : memref<1x8xf32, #tpu.memory_space<vmem>>, vector<1x8xf32>
    %9 = vector.shape_cast %8 : vector<1x8xf32> to vector<8xf32>
    %c0_12 = arith.constant 0 : index
    %c0_13 = arith.constant 0 : index
    %10 = vector.load %arg7[%c0_12, %c0_13] : memref<1x8xf32, #tpu.memory_space<vmem>>, vector<1x8xf32>
    %11 = vector.shape_cast %10 : vector<1x8xf32> to vector<8xf32>
    %c0_i32_14 = arith.constant 0 : i32
    %c1_i32 = arith.constant 1 : i32
    %12 = arith.muli %c0_i32_14, %c1_i32 : i32
    %c0_i32_15 = arith.constant 0 : i32
    %13 = arith.addi %c0_i32_15, %12 : i32
    %c16_i32 = arith.constant 16 : i32
    %14 = arith.muli %13, %c16_i32 : i32
    %15 = tpu.assume_multiple %14, 16 : i32
    %c0_16 = arith.constant 0 : index
    %16 = arith.index_cast %15 : i32 to index
    %c0_17 = arith.constant 0 : index
    %c0_18 = arith.constant 0 : index
    %17 = vector.load %arg1[%c0_16, %16, %c0_17, %c0_18] : memref<1x16x16x8xf32, #tpu.memory_space<vmem>>, vector<1x16x16x8xf32>
    %18 = vector.shape_cast %17 : vector<1x16x16x8xf32> to vector<16x16x8xf32>
    %c2_i32 = arith.constant 2 : i32
    %19 = arith.addi %c2_i32, %15 : i32
    %20 = arith.index_cast %19 : i32 to index
    %c8 = arith.constant 8 : index
    %c0_19 = arith.constant 0 : index
    %21 = vector.load %arg9[%20, %c8, %c0_19] : memref<20x26x8xf32, #tpu.memory_space<vmem>>, vector<16x16x8xf32>
    tpu.vector_store %arg9[%20, %c8, %c0_19], %18 {strides = array<i32>} : memref<20x26x8xf32, #tpu.memory_space<vmem>>, vector<16x16x8xf32>,
    %c1_i32_20 = arith.constant 1 : i32
    %c0_i32_21 = arith.constant 0 : i32
    %c1_i32_22 = arith.constant 1 : i32
    %22 = arith.muli %c0_i32_21, %c1_i32_22 : i32
    %c0_i32_23 = arith.constant 0 : i32
    %23 = arith.addi %c0_i32_23, %22 : i32
    %c16_i32_24 = arith.constant 16 : i32
    %24 = arith.muli %23, %c16_i32_24 : i32
    %25 = tpu.assume_multiple %24, 16 : i32
    %cst = arith.constant 0.000000e+00 : f32
    %26 = vector.broadcast %cst : f32 to vector<16x16x8xf32>
    %27 = arith.index_cast %25 : i32 to index
    %c6 = arith.constant 6 : index
    %c0_25 = arith.constant 0 : index
    %28 = vector.load %arg9[%27, %c6, %c0_25] : memref<20x26x8xf32, #tpu.memory_space<vmem>>, vector<20x16x8xf32>
    %29 = vector.extract_strided_slice %28 {offsets = [0, 0, 0], sizes = [16, 16, 8], strides = [1, 1, 1]} : vector<20x16x8xf32> to vector<16x16x8xf32>
    %30 = vector.extract_strided_slice %3 {offsets = [0, 0, 0], sizes = [1, 1, 8], strides = [1, 1, 1]} : vector<5x5x8xf32> to vector<1x1x8xf32>
    %31 = vector.shape_cast %30 : vector<1x1x8xf32> to vector<8xf32>
    %32 = vector.shape_cast %31 : vector<8xf32> to vector<1x1x8xf32>
    %33 = vector.broadcast %32 : vector<1x1x8xf32> to vector<16x16x8xf32>
    %34 = arith.mulf %29, %33 : vector<16x16x8xf32>
    %35 = arith.addf %26, %34 : vector<16x16x8xf32>
    %36 = vector.extract_strided_slice %28 {offsets = [1, 0, 0], sizes = [16, 16, 8], strides = [1, 1, 1]} : vector<20x16x8xf32> to vector<16x16x8xf32>
    %37 = vector.extract_strided_slice %3 {offsets = [1, 0, 0], sizes = [1, 1, 8], strides = [1, 1, 1]} : vector<5x5x8xf32> to vector<1x1x8xf32>
    %38 = vector.shape_cast %37 : vector<1x1x8xf32> to vector<8xf32>
    %39 = vector.shape_cast %38 : vector<8xf32> to vector<1x1x8xf32>
    %40 = vector.broadcast %39 : vector<1x1x8xf32> to vector<16x16x8xf32>
    %41 = arith.mulf %36, %40 : vector<16x16x8xf32>
    %42 = arith.addf %35, %41 : vector<16x16x8xf32>
    %43 = vector.extract_strided_slice %28 {offsets = [2, 0, 0], sizes = [16, 16, 8], strides = [1, 1, 1]} : vector<20x16x8xf32> to vector<16x16x8xf32>
    %44 = vector.extract_strided_slice %3 {offsets = [2, 0, 0], sizes = [1, 1, 8], strides = [1, 1, 1]} : vector<5x5x8xf32> to vector<1x1x8xf32>
    %45 = vector.shape_cast %44 : vector<1x1x8xf32> to vector<8xf32>
    %46 = vector.shape_cast %45 : vector<8xf32> to vector<1x1x8xf32>
    %47 = vector.broadcast %46 : vector<1x1x8xf32> to vector<16x16x8xf32>
    %48 = arith.mulf %43, %47 : vector<16x16x8xf32>
    %49 = arith.addf %42, %48 : vector<16x16x8xf32>
    %50 = vector.extract_strided_slice %28 {offsets = [3, 0, 0], sizes = [16, 16, 8], strides = [1, 1, 1]} : vector<20x16x8xf32> to vector<16x16x8xf32>
    %51 = vector.extract_strided_slice %3 {offsets = [3, 0, 0], sizes = [1, 1, 8], strides = [1, 1, 1]} : vector<5x5x8xf32> to vector<1x1x8xf32>
    %52 = vector.shape_cast %51 : vector<1x1x8xf32> to vector<8xf32>
    %53 = vector.shape_cast %52 : vector<8xf32> to vector<1x1x8xf32>
    %54 = vector.broadcast %53 : vector<1x1x8xf32> to vector<16x16x8xf32>
    %55 = arith.mulf %50, %54 : vector<16x16x8xf32>
    %56 = arith.addf %49, %55 : vector<16x16x8xf32>
    %57 = vector.extract_strided_slice %28 {offsets = [4, 0, 0], sizes = [16, 16, 8], strides = [1, 1, 1]} : vector<20x16x8xf32> to vector<16x16x8xf32>
    %58 = vector.extract_strided_slice %3 {offsets = [4, 0, 0], sizes = [1, 1, 8], strides = [1, 1, 1]} : vector<5x5x8xf32> to vector<1x1x8xf32>
    %59 = vector.shape_cast %58 : vector<1x1x8xf32> to vector<8xf32>
    %60 = vector.shape_cast %59 : vector<8xf32> to vector<1x1x8xf32>
    %61 = vector.broadcast %60 : vector<1x1x8xf32> to vector<16x16x8xf32>
    %62 = arith.mulf %57, %61 : vector<16x16x8xf32>
    %63 = arith.addf %56, %62 : vector<16x16x8xf32>
    %64 = arith.index_cast %25 : i32 to index
    %c7 = arith.constant 7 : index
    %c0_26 = arith.constant 0 : index
    %65 = vector.load %arg9[%64, %c7, %c0_26] : memref<20x26x8xf32, #tpu.memory_space<vmem>>, vector<20x16x8xf32>
    %66 = vector.extract_strided_slice %65 {offsets = [0, 0, 0], sizes = [16, 16, 8], strides = [1, 1, 1]} : vector<20x16x8xf32> to vector<16x16x8xf32>
    %67 = vector.extract_strided_slice %3 {offsets = [0, 1, 0], sizes = [1, 1, 8], strides = [1, 1, 1]} : vector<5x5x8xf32> to vector<1x1x8xf32>
    %68 = vector.shape_cast %67 : vector<1x1x8xf32> to vector<8xf32>
    %69 = vector.shape_cast %68 : vector<8xf32> to vector<1x1x8xf32>
    %70 = vector.broadcast %69 : vector<1x1x8xf32> to vector<16x16x8xf32>
    %71 = arith.mulf %66, %70 : vector<16x16x8xf32>
    %72 = arith.addf %63, %71 : vector<16x16x8xf32>
    %73 = vector.extract_strided_slice %65 {offsets = [1, 0, 0], sizes = [16, 16, 8], strides = [1, 1, 1]} : vector<20x16x8xf32> to vector<16x16x8xf32>
    %74 = vector.extract_strided_slice %3 {offsets = [1, 1, 0], sizes = [1, 1, 8], strides = [1, 1, 1]} : vector<5x5x8xf32> to vector<1x1x8xf32>
    %75 = vector.shape_cast %74 : vector<1x1x8xf32> to vector<8xf32>
    %76 = vector.shape_cast %75 : vector<8xf32> to vector<1x1x8xf32>
    %77 = vector.broadcast %76 : vector<1x1x8xf32> to vector<16x16x8xf32>
    %78 = arith.mulf %73, %77 : vector<16x16x8xf32>
    %79 = arith.addf %72, %78 : vector<16x16x8xf32>
    %80 = vector.extract_strided_slice %65 {offsets = [2, 0, 0], sizes = [16, 16, 8], strides = [1, 1, 1]} : vector<20x16x8xf32> to vector<16x16x8xf32>
    %81 = vector.extract_strided_slice %3 {offsets = [2, 1, 0], sizes = [1, 1, 8], strides = [1, 1, 1]} : vector<5x5x8xf32> to vector<1x1x8xf32>
    %82 = vector.shape_cast %81 : vector<1x1x8xf32> to vector<8xf32>
    %83 = vector.shape_cast %82 : vector<8xf32> to vector<1x1x8xf32>
    %84 = vector.broadcast %83 : vector<1x1x8xf32> to vector<16x16x8xf32>
    %85 = arith.mulf %80, %84 : vector<16x16x8xf32>
    %86 = arith.addf %79, %85 : vector<16x16x8xf32>
    %87 = vector.extract_strided_slice %65 {offsets = [3, 0, 0], sizes = [16, 16, 8], strides = [1, 1, 1]} : vector<20x16x8xf32> to vector<16x16x8xf32>
    %88 = vector.extract_strided_slice %3 {offsets = [3, 1, 0], sizes = [1, 1, 8], strides = [1, 1, 1]} : vector<5x5x8xf32> to vector<1x1x8xf32>
    %89 = vector.shape_cast %88 : vector<1x1x8xf32> to vector<8xf32>
    %90 = vector.shape_cast %89 : vector<8xf32> to vector<1x1x8xf32>
    %91 = vector.broadcast %90 : vector<1x1x8xf32> to vector<16x16x8xf32>
    %92 = arith.mulf %87, %91 : vector<16x16x8xf32>
    %93 = arith.addf %86, %92 : vector<16x16x8xf32>
    %94 = vector.extract_strided_slice %65 {offsets = [4, 0, 0], sizes = [16, 16, 8], strides = [1, 1, 1]} : vector<20x16x8xf32> to vector<16x16x8xf32>
    %95 = vector.extract_strided_slice %3 {offsets = [4, 1, 0], sizes = [1, 1, 8], strides = [1, 1, 1]} : vector<5x5x8xf32> to vector<1x1x8xf32>
    %96 = vector.shape_cast %95 : vector<1x1x8xf32> to vector<8xf32>
    %97 = vector.shape_cast %96 : vector<8xf32> to vector<1x1x8xf32>
    %98 = vector.broadcast %97 : vector<1x1x8xf32> to vector<16x16x8xf32>
    %99 = arith.mulf %94, %98 : vector<16x16x8xf32>
    %100 = arith.addf %93, %99 : vector<16x16x8xf32>
    %101 = arith.index_cast %25 : i32 to index
    %c8_27 = arith.constant 8 : index
    %c0_28 = arith.constant 0 : index
    %102 = vector.load %arg9[%101, %c8_27, %c0_28] : memref<20x26x8xf32, #tpu.memory_space<vmem>>, vector<20x16x8xf32>
    %103 = vector.extract_strided_slice %102 {offsets = [0, 0, 0], sizes = [16, 16, 8], strides = [1, 1, 1]} : vector<20x16x8xf32> to vector<16x16x8xf32>
    %104 = vector.extract_strided_slice %3 {offsets = [0, 2, 0], sizes = [1, 1, 8], strides = [1, 1, 1]} : vector<5x5x8xf32> to vector<1x1x8xf32>
    %105 = vector.shape_cast %104 : vector<1x1x8xf32> to vector<8xf32>
    %106 = vector.shape_cast %105 : vector<8xf32> to vector<1x1x8xf32>
    %107 = vector.broadcast %106 : vector<1x1x8xf32> to vector<16x16x8xf32>
    %108 = arith.mulf %103, %107 : vector<16x16x8xf32>
    %109 = arith.addf %100, %108 : vector<16x16x8xf32>
    %110 = vector.extract_strided_slice %102 {offsets = [1, 0, 0], sizes = [16, 16, 8], strides = [1, 1, 1]} : vector<20x16x8xf32> to vector<16x16x8xf32>
    %111 = vector.extract_strided_slice %3 {offsets = [1, 2, 0], sizes = [1, 1, 8], strides = [1, 1, 1]} : vector<5x5x8xf32> to vector<1x1x8xf32>
    %112 = vector.shape_cast %111 : vector<1x1x8xf32> to vector<8xf32>
    %113 = vector.shape_cast %112 : vector<8xf32> to vector<1x1x8xf32>
    %114 = vector.broadcast %113 : vector<1x1x8xf32> to vector<16x16x8xf32>
    %115 = arith.mulf %110, %114 : vector<16x16x8xf32>
    %116 = arith.addf %109, %115 : vector<16x16x8xf32>
    %117 = vector.extract_strided_slice %102 {offsets = [2, 0, 0], sizes = [16, 16, 8], strides = [1, 1, 1]} : vector<20x16x8xf32> to vector<16x16x8xf32>
    %118 = vector.extract_strided_slice %3 {offsets = [2, 2, 0], sizes = [1, 1, 8], strides = [1, 1, 1]} : vector<5x5x8xf32> to vector<1x1x8xf32>
    %119 = vector.shape_cast %118 : vector<1x1x8xf32> to vector<8xf32>
    %120 = vector.shape_cast %119 : vector<8xf32> to vector<1x1x8xf32>
    %121 = vector.broadcast %120 : vector<1x1x8xf32> to vector<16x16x8xf32>
    %122 = arith.mulf %117, %121 : vector<16x16x8xf32>
    %123 = arith.addf %116, %122 : vector<16x16x8xf32>
    %124 = vector.extract_strided_slice %102 {offsets = [3, 0, 0], sizes = [16, 16, 8], strides = [1, 1, 1]} : vector<20x16x8xf32> to vector<16x16x8xf32>
    %125 = vector.extract_strided_slice %3 {offsets = [3, 2, 0], sizes = [1, 1, 8], strides = [1, 1, 1]} : vector<5x5x8xf32> to vector<1x1x8xf32>
    %126 = vector.shape_cast %125 : vector<1x1x8xf32> to vector<8xf32>
    %127 = vector.shape_cast %126 : vector<8xf32> to vector<1x1x8xf32>
    %128 = vector.broadcast %127 : vector<1x1x8xf32> to vector<16x16x8xf32>
    %129 = arith.mulf %124, %128 : vector<16x16x8xf32>
    %130 = arith.addf %123, %129 : vector<16x16x8xf32>
    %131 = vector.extract_strided_slice %102 {offsets = [4, 0, 0], sizes = [16, 16, 8], strides = [1, 1, 1]} : vector<20x16x8xf32> to vector<16x16x8xf32>
    %132 = vector.extract_strided_slice %3 {offsets = [4, 2, 0], sizes = [1, 1, 8], strides = [1, 1, 1]} : vector<5x5x8xf32> to vector<1x1x8xf32>
    %133 = vector.shape_cast %132 : vector<1x1x8xf32> to vector<8xf32>
    %134 = vector.shape_cast %133 : vector<8xf32> to vector<1x1x8xf32>
    %135 = vector.broadcast %134 : vector<1x1x8xf32> to vector<16x16x8xf32>
    %136 = arith.mulf %131, %135 : vector<16x16x8xf32>
    %137 = arith.addf %130, %136 : vector<16x16x8xf32>
    %138 = arith.index_cast %25 : i32 to index
    %c9 = arith.constant 9 : index
    %c0_29 = arith.constant 0 : index
    %139 = vector.load %arg9[%138, %c9, %c0_29] : memref<20x26x8xf32, #tpu.memory_space<vmem>>, vector<20x16x8xf32>
    %140 = vector.extract_strided_slice %139 {offsets = [0, 0, 0], sizes = [16, 16, 8], strides = [1, 1, 1]} : vector<20x16x8xf32> to vector<16x16x8xf32>
    %141 = vector.extract_strided_slice %3 {offsets = [0, 3, 0], sizes = [1, 1, 8], strides = [1, 1, 1]} : vector<5x5x8xf32> to vector<1x1x8xf32>
    %142 = vector.shape_cast %141 : vector<1x1x8xf32> to vector<8xf32>
    %143 = vector.shape_cast %142 : vector<8xf32> to vector<1x1x8xf32>
    %144 = vector.broadcast %143 : vector<1x1x8xf32> to vector<16x16x8xf32>
    %145 = arith.mulf %140, %144 : vector<16x16x8xf32>
    %146 = arith.addf %137, %145 : vector<16x16x8xf32>
    %147 = vector.extract_strided_slice %139 {offsets = [1, 0, 0], sizes = [16, 16, 8], strides = [1, 1, 1]} : vector<20x16x8xf32> to vector<16x16x8xf32>
    %148 = vector.extract_strided_slice %3 {offsets = [1, 3, 0], sizes = [1, 1, 8], strides = [1, 1, 1]} : vector<5x5x8xf32> to vector<1x1x8xf32>
    %149 = vector.shape_cast %148 : vector<1x1x8xf32> to vector<8xf32>
    %150 = vector.shape_cast %149 : vector<8xf32> to vector<1x1x8xf32>
    %151 = vector.broadcast %150 : vector<1x1x8xf32> to vector<16x16x8xf32>
    %152 = arith.mulf %147, %151 : vector<16x16x8xf32>
    %153 = arith.addf %146, %152 : vector<16x16x8xf32>
    %154 = vector.extract_strided_slice %139 {offsets = [2, 0, 0], sizes = [16, 16, 8], strides = [1, 1, 1]} : vector<20x16x8xf32> to vector<16x16x8xf32>
    %155 = vector.extract_strided_slice %3 {offsets = [2, 3, 0], sizes = [1, 1, 8], strides = [1, 1, 1]} : vector<5x5x8xf32> to vector<1x1x8xf32>
    %156 = vector.shape_cast %155 : vector<1x1x8xf32> to vector<8xf32>
    %157 = vector.shape_cast %156 : vector<8xf32> to vector<1x1x8xf32>
    %158 = vector.broadcast %157 : vector<1x1x8xf32> to vector<16x16x8xf32>
    %159 = arith.mulf %154, %158 : vector<16x16x8xf32>
    %160 = arith.addf %153, %159 : vector<16x16x8xf32>
    %161 = vector.extract_strided_slice %139 {offsets = [3, 0, 0], sizes = [16, 16, 8], strides = [1, 1, 1]} : vector<20x16x8xf32> to vector<16x16x8xf32>
    %162 = vector.extract_strided_slice %3 {offsets = [3, 3, 0], sizes = [1, 1, 8], strides = [1, 1, 1]} : vector<5x5x8xf32> to vector<1x1x8xf32>
    %163 = vector.shape_cast %162 : vector<1x1x8xf32> to vector<8xf32>
    %164 = vector.shape_cast %163 : vector<8xf32> to vector<1x1x8xf32>
    %165 = vector.broadcast %164 : vector<1x1x8xf32> to vector<16x16x8xf32>
    %166 = arith.mulf %161, %165 : vector<16x16x8xf32>
    %167 = arith.addf %160, %166 : vector<16x16x8xf32>
    %168 = vector.extract_strided_slice %139 {offsets = [4, 0, 0], sizes = [16, 16, 8], strides = [1, 1, 1]} : vector<20x16x8xf32> to vector<16x16x8xf32>
    %169 = vector.extract_strided_slice %3 {offsets = [4, 3, 0], sizes = [1, 1, 8], strides = [1, 1, 1]} : vector<5x5x8xf32> to vector<1x1x8xf32>
    %170 = vector.shape_cast %169 : vector<1x1x8xf32> to vector<8xf32>
    %171 = vector.shape_cast %170 : vector<8xf32> to vector<1x1x8xf32>
    %172 = vector.broadcast %171 : vector<1x1x8xf32> to vector<16x16x8xf32>
    %173 = arith.mulf %168, %172 : vector<16x16x8xf32>
    %174 = arith.addf %167, %173 : vector<16x16x8xf32>
    %175 = arith.index_cast %25 : i32 to index
    %c10 = arith.constant 10 : index
    %c0_30 = arith.constant 0 : index
    %176 = vector.load %arg9[%175, %c10, %c0_30] : memref<20x26x8xf32, #tpu.memory_space<vmem>>, vector<20x16x8xf32>
    %177 = vector.extract_strided_slice %176 {offsets = [0, 0, 0], sizes = [16, 16, 8], strides = [1, 1, 1]} : vector<20x16x8xf32> to vector<16x16x8xf32>
    %178 = vector.extract_strided_slice %3 {offsets = [0, 4, 0], sizes = [1, 1, 8], strides = [1, 1, 1]} : vector<5x5x8xf32> to vector<1x1x8xf32>
    %179 = vector.shape_cast %178 : vector<1x1x8xf32> to vector<8xf32>
    %180 = vector.shape_cast %179 : vector<8xf32> to vector<1x1x8xf32>
    %181 = vector.broadcast %180 : vector<1x1x8xf32> to vector<16x16x8xf32>
    %182 = arith.mulf %177, %181 : vector<16x16x8xf32>
    %183 = arith.addf %174, %182 : vector<16x16x8xf32>
    %184 = vector.extract_strided_slice %176 {offsets = [1, 0, 0], sizes = [16, 16, 8], strides = [1, 1, 1]} : vector<20x16x8xf32> to vector<16x16x8xf32>
    %185 = vector.extract_strided_slice %3 {offsets = [1, 4, 0], sizes = [1, 1, 8], strides = [1, 1, 1]} : vector<5x5x8xf32> to vector<1x1x8xf32>
    %186 = vector.shape_cast %185 : vector<1x1x8xf32> to vector<8xf32>
    %187 = vector.shape_cast %186 : vector<8xf32> to vector<1x1x8xf32>
    %188 = vector.broadcast %187 : vector<1x1x8xf32> to vector<16x16x8xf32>
    %189 = arith.mulf %184, %188 : vector<16x16x8xf32>
    %190 = arith.addf %183, %189 : vector<16x16x8xf32>
    %191 = vector.extract_strided_slice %176 {offsets = [2, 0, 0], sizes = [16, 16, 8], strides = [1, 1, 1]} : vector<20x16x8xf32> to vector<16x16x8xf32>
    %192 = vector.extract_strided_slice %3 {offsets = [2, 4, 0], sizes = [1, 1, 8], strides = [1, 1, 1]} : vector<5x5x8xf32> to vector<1x1x8xf32>
    %193 = vector.shape_cast %192 : vector<1x1x8xf32> to vector<8xf32>
    %194 = vector.shape_cast %193 : vector<8xf32> to vector<1x1x8xf32>
    %195 = vector.broadcast %194 : vector<1x1x8xf32> to vector<16x16x8xf32>
    %196 = arith.mulf %191, %195 : vector<16x16x8xf32>
    %197 = arith.addf %190, %196 : vector<16x16x8xf32>
    %198 = vector.extract_strided_slice %176 {offsets = [3, 0, 0], sizes = [16, 16, 8], strides = [1, 1, 1]} : vector<20x16x8xf32> to vector<16x16x8xf32>
    %199 = vector.extract_strided_slice %3 {offsets = [3, 4, 0], sizes = [1, 1, 8], strides = [1, 1, 1]} : vector<5x5x8xf32> to vector<1x1x8xf32>
    %200 = vector.shape_cast %199 : vector<1x1x8xf32> to vector<8xf32>
    %201 = vector.shape_cast %200 : vector<8xf32> to vector<1x1x8xf32>
    %202 = vector.broadcast %201 : vector<1x1x8xf32> to vector<16x16x8xf32>
    %203 = arith.mulf %198, %202 : vector<16x16x8xf32>
    %204 = arith.addf %197, %203 : vector<16x16x8xf32>
    %205 = vector.extract_strided_slice %176 {offsets = [4, 0, 0], sizes = [16, 16, 8], strides = [1, 1, 1]} : vector<20x16x8xf32> to vector<16x16x8xf32>
    %206 = vector.extract_strided_slice %3 {offsets = [4, 4, 0], sizes = [1, 1, 8], strides = [1, 1, 1]} : vector<5x5x8xf32> to vector<1x1x8xf32>
    %207 = vector.shape_cast %206 : vector<1x1x8xf32> to vector<8xf32>
    %208 = vector.shape_cast %207 : vector<8xf32> to vector<1x1x8xf32>
    %209 = vector.broadcast %208 : vector<1x1x8xf32> to vector<16x16x8xf32>
    %210 = arith.mulf %205, %209 : vector<16x16x8xf32>
    %211 = arith.addf %204, %210 : vector<16x16x8xf32>
    %212 = vector.shape_cast %7 : vector<8xf32> to vector<1x1x8xf32>
    %213 = vector.broadcast %212 : vector<1x1x8xf32> to vector<16x16x8xf32>
    %214 = arith.addf %211, %213 : vector<16x16x8xf32>
    %c9_i32 = arith.constant 9 : i32
    %215 = arith.addi %c9_i32, %25 : i32
    %216 = arith.index_cast %215 : i32 to index
    %c16 = arith.constant 16 : index
    %c0_31 = arith.constant 0 : index
    %217 = vector.load %arg10[%216, %c16, %c0_31] : memref<34x41x8xf32, #tpu.memory_space<vmem>>, vector<16x16x8xf32>
    tpu.vector_store %arg10[%216, %c16, %c0_31], %214 {strides = array<i32>} : memref<34x41x8xf32, #tpu.memory_space<vmem>>, vector<16x16x8xf32>,
    %c1_i32_32 = arith.constant 1 : i32
    %c0_i32_33 = arith.constant 0 : i32
    %c1_i32_34 = arith.constant 1 : i32
    %218 = arith.muli %c0_i32_33, %c1_i32_34 : i32
    %c0_i32_35 = arith.constant 0 : i32
    %219 = arith.addi %c0_i32_35, %218 : i32
    %c16_i32_36 = arith.constant 16 : i32
    %220 = arith.muli %219, %c16_i32_36 : i32
    %221 = tpu.assume_multiple %220, 16 : i32
    %cst_37 = arith.constant 0.000000e+00 : f32
    %222 = vector.broadcast %cst_37 : f32 to vector<16x16x8xf32>
    %223 = arith.index_cast %221 : i32 to index
    %c7_38 = arith.constant 7 : index
    %c0_39 = arith.constant 0 : index
    %224 = vector.load %arg10[%223, %c7_38, %c0_39] : memref<34x41x8xf32, #tpu.memory_space<vmem>>, vector<34x16x8xf32>
    %225 = vector.extract_strided_slice %224 {offsets = [0, 0, 0], sizes = [16, 16, 8], strides = [1, 1, 1]} : vector<34x16x8xf32> to vector<16x16x8xf32>
    %226 = vector.extract_strided_slice %4 {offsets = [0, 0, 0], sizes = [1, 1, 8], strides = [1, 1, 1]} : vector<7x7x8xf32> to vector<1x1x8xf32>
    %227 = vector.shape_cast %226 : vector<1x1x8xf32> to vector<8xf32>
    %228 = vector.shape_cast %227 : vector<8xf32> to vector<1x1x8xf32>
    %229 = vector.broadcast %228 : vector<1x1x8xf32> to vector<16x16x8xf32>
    %230 = arith.mulf %225, %229 : vector<16x16x8xf32>
    %231 = arith.addf %222, %230 : vector<16x16x8xf32>
    %232 = vector.extract_strided_slice %224 {offsets = [3, 0, 0], sizes = [16, 16, 8], strides = [1, 1, 1]} : vector<34x16x8xf32> to vector<16x16x8xf32>
    %233 = vector.extract_strided_slice %4 {offsets = [1, 0, 0], sizes = [1, 1, 8], strides = [1, 1, 1]} : vector<7x7x8xf32> to vector<1x1x8xf32>
    %234 = vector.shape_cast %233 : vector<1x1x8xf32> to vector<8xf32>
    %235 = vector.shape_cast %234 : vector<8xf32> to vector<1x1x8xf32>
    %236 = vector.broadcast %235 : vector<1x1x8xf32> to vector<16x16x8xf32>
    %237 = arith.mulf %232, %236 : vector<16x16x8xf32>
    %238 = arith.addf %231, %237 : vector<16x16x8xf32>
    %239 = vector.extract_strided_slice %224 {offsets = [6, 0, 0], sizes = [16, 16, 8], strides = [1, 1, 1]} : vector<34x16x8xf32> to vector<16x16x8xf32>
    %240 = vector.extract_strided_slice %4 {offsets = [2, 0, 0], sizes = [1, 1, 8], strides = [1, 1, 1]} : vector<7x7x8xf32> to vector<1x1x8xf32>
    %241 = vector.shape_cast %240 : vector<1x1x8xf32> to vector<8xf32>
    %242 = vector.shape_cast %241 : vector<8xf32> to vector<1x1x8xf32>
    %243 = vector.broadcast %242 : vector<1x1x8xf32> to vector<16x16x8xf32>
    %244 = arith.mulf %239, %243 : vector<16x16x8xf32>
    %245 = arith.addf %238, %244 : vector<16x16x8xf32>
    %246 = vector.extract_strided_slice %224 {offsets = [9, 0, 0], sizes = [16, 16, 8], strides = [1, 1, 1]} : vector<34x16x8xf32> to vector<16x16x8xf32>
    %247 = vector.extract_strided_slice %4 {offsets = [3, 0, 0], sizes = [1, 1, 8], strides = [1, 1, 1]} : vector<7x7x8xf32> to vector<1x1x8xf32>
    %248 = vector.shape_cast %247 : vector<1x1x8xf32> to vector<8xf32>
    %249 = vector.shape_cast %248 : vector<8xf32> to vector<1x1x8xf32>
    %250 = vector.broadcast %249 : vector<1x1x8xf32> to vector<16x16x8xf32>
    %251 = arith.mulf %246, %250 : vector<16x16x8xf32>
    %252 = arith.addf %245, %251 : vector<16x16x8xf32>
    %253 = vector.extract_strided_slice %224 {offsets = [12, 0, 0], sizes = [16, 16, 8], strides = [1, 1, 1]} : vector<34x16x8xf32> to vector<16x16x8xf32>
    %254 = vector.extract_strided_slice %4 {offsets = [4, 0, 0], sizes = [1, 1, 8], strides = [1, 1, 1]} : vector<7x7x8xf32> to vector<1x1x8xf32>
    %255 = vector.shape_cast %254 : vector<1x1x8xf32> to vector<8xf32>
    %256 = vector.shape_cast %255 : vector<8xf32> to vector<1x1x8xf32>
    %257 = vector.broadcast %256 : vector<1x1x8xf32> to vector<16x16x8xf32>
    %258 = arith.mulf %253, %257 : vector<16x16x8xf32>
    %259 = arith.addf %252, %258 : vector<16x16x8xf32>
    %260 = vector.extract_strided_slice %224 {offsets = [15, 0, 0], sizes = [16, 16, 8], strides = [1, 1, 1]} : vector<34x16x8xf32> to vector<16x16x8xf32>
    %261 = vector.extract_strided_slice %4 {offsets = [5, 0, 0], sizes = [1, 1, 8], strides = [1, 1, 1]} : vector<7x7x8xf32> to vector<1x1x8xf32>
    %262 = vector.shape_cast %261 : vector<1x1x8xf32> to vector<8xf32>
    %263 = vector.shape_cast %262 : vector<8xf32> to vector<1x1x8xf32>
    %264 = vector.broadcast %263 : vector<1x1x8xf32> to vector<16x16x8xf32>
    %265 = arith.mulf %260, %264 : vector<16x16x8xf32>
    %266 = arith.addf %259, %265 : vector<16x16x8xf32>
    %267 = vector.extract_strided_slice %224 {offsets = [18, 0, 0], sizes = [16, 16, 8], strides = [1, 1, 1]} : vector<34x16x8xf32> to vector<16x16x8xf32>
    %268 = vector.extract_strided_slice %4 {offsets = [6, 0, 0], sizes = [1, 1, 8], strides = [1, 1, 1]} : vector<7x7x8xf32> to vector<1x1x8xf32>
    %269 = vector.shape_cast %268 : vector<1x1x8xf32> to vector<8xf32>
    %270 = vector.shape_cast %269 : vector<8xf32> to vector<1x1x8xf32>
    %271 = vector.broadcast %270 : vector<1x1x8xf32> to vector<16x16x8xf32>
    %272 = arith.mulf %267, %271 : vector<16x16x8xf32>
    %273 = arith.addf %266, %272 : vector<16x16x8xf32>
    %274 = arith.index_cast %221 : i32 to index
    %c10_40 = arith.constant 10 : index
    %c0_41 = arith.constant 0 : index
    %275 = vector.load %arg10[%274, %c10_40, %c0_41] : memref<34x41x8xf32, #tpu.memory_space<vmem>>, vector<34x16x8xf32>
    %276 = vector.extract_strided_slice %275 {offsets = [0, 0, 0], sizes = [16, 16, 8], strides = [1, 1, 1]} : vector<34x16x8xf32> to vector<16x16x8xf32>
    %277 = vector.extract_strided_slice %4 {offsets = [0, 1, 0], sizes = [1, 1, 8], strides = [1, 1, 1]} : vector<7x7x8xf32> to vector<1x1x8xf32>
    %278 = vector.shape_cast %277 : vector<1x1x8xf32> to vector<8xf32>
    %279 = vector.shape_cast %278 : vector<8xf32> to vector<1x1x8xf32>
    %280 = vector.broadcast %279 : vector<1x1x8xf32> to vector<16x16x8xf32>
    %281 = arith.mulf %276, %280 : vector<16x16x8xf32>
    %282 = arith.addf %273, %281 : vector<16x16x8xf32>
    %283 = vector.extract_strided_slice %275 {offsets = [3, 0, 0], sizes = [16, 16, 8], strides = [1, 1, 1]} : vector<34x16x8xf32> to vector<16x16x8xf32>
    %284 = vector.extract_strided_slice %4 {offsets = [1, 1, 0], sizes = [1, 1, 8], strides = [1, 1, 1]} : vector<7x7x8xf32> to vector<1x1x8xf32>
    %285 = vector.shape_cast %284 : vector<1x1x8xf32> to vector<8xf32>
    %286 = vector.shape_cast %285 : vector<8xf32> to vector<1x1x8xf32>
    %287 = vector.broadcast %286 : vector<1x1x8xf32> to vector<16x16x8xf32>
    %288 = arith.mulf %283, %287 : vector<16x16x8xf32>
    %289 = arith.addf %282, %288 : vector<16x16x8xf32>
    %290 = vector.extract_strided_slice %275 {offsets = [6, 0, 0], sizes = [16, 16, 8], strides = [1, 1, 1]} : vector<34x16x8xf32> to vector<16x16x8xf32>
    %291 = vector.extract_strided_slice %4 {offsets = [2, 1, 0], sizes = [1, 1, 8], strides = [1, 1, 1]} : vector<7x7x8xf32> to vector<1x1x8xf32>
    %292 = vector.shape_cast %291 : vector<1x1x8xf32> to vector<8xf32>
    %293 = vector.shape_cast %292 : vector<8xf32> to vector<1x1x8xf32>
    %294 = vector.broadcast %293 : vector<1x1x8xf32> to vector<16x16x8xf32>
    %295 = arith.mulf %290, %294 : vector<16x16x8xf32>
    %296 = arith.addf %289, %295 : vector<16x16x8xf32>
    %297 = vector.extract_strided_slice %275 {offsets = [9, 0, 0], sizes = [16, 16, 8], strides = [1, 1, 1]} : vector<34x16x8xf32> to vector<16x16x8xf32>
    %298 = vector.extract_strided_slice %4 {offsets = [3, 1, 0], sizes = [1, 1, 8], strides = [1, 1, 1]} : vector<7x7x8xf32> to vector<1x1x8xf32>
    %299 = vector.shape_cast %298 : vector<1x1x8xf32> to vector<8xf32>
    %300 = vector.shape_cast %299 : vector<8xf32> to vector<1x1x8xf32>
    %301 = vector.broadcast %300 : vector<1x1x8xf32> to vector<16x16x8xf32>
    %302 = arith.mulf %297, %301 : vector<16x16x8xf32>
    %303 = arith.addf %296, %302 : vector<16x16x8xf32>
    %304 = vector.extract_strided_slice %275 {offsets = [12, 0, 0], sizes = [16, 16, 8], strides = [1, 1, 1]} : vector<34x16x8xf32> to vector<16x16x8xf32>
    %305 = vector.extract_strided_slice %4 {offsets = [4, 1, 0], sizes = [1, 1, 8], strides = [1, 1, 1]} : vector<7x7x8xf32> to vector<1x1x8xf32>
    %306 = vector.shape_cast %305 : vector<1x1x8xf32> to vector<8xf32>
    %307 = vector.shape_cast %306 : vector<8xf32> to vector<1x1x8xf32>
    %308 = vector.broadcast %307 : vector<1x1x8xf32> to vector<16x16x8xf32>
    %309 = arith.mulf %304, %308 : vector<16x16x8xf32>
    %310 = arith.addf %303, %309 : vector<16x16x8xf32>
    %311 = vector.extract_strided_slice %275 {offsets = [15, 0, 0], sizes = [16, 16, 8], strides = [1, 1, 1]} : vector<34x16x8xf32> to vector<16x16x8xf32>
    %312 = vector.extract_strided_slice %4 {offsets = [5, 1, 0], sizes = [1, 1, 8], strides = [1, 1, 1]} : vector<7x7x8xf32> to vector<1x1x8xf32>
    %313 = vector.shape_cast %312 : vector<1x1x8xf32> to vector<8xf32>
    %314 = vector.shape_cast %313 : vector<8xf32> to vector<1x1x8xf32>
    %315 = vector.broadcast %314 : vector<1x1x8xf32> to vector<16x16x8xf32>
    %316 = arith.mulf %311, %315 : vector<16x16x8xf32>
    %317 = arith.addf %310, %316 : vector<16x16x8xf32>
    %318 = vector.extract_strided_slice %275 {offsets = [18, 0, 0], sizes = [16, 16, 8], strides = [1, 1, 1]} : vector<34x16x8xf32> to vector<16x16x8xf32>
    %319 = vector.extract_strided_slice %4 {offsets = [6, 1, 0], sizes = [1, 1, 8], strides = [1, 1, 1]} : vector<7x7x8xf32> to vector<1x1x8xf32>
    %320 = vector.shape_cast %319 : vector<1x1x8xf32> to vector<8xf32>
    %321 = vector.shape_cast %320 : vector<8xf32> to vector<1x1x8xf32>
    %322 = vector.broadcast %321 : vector<1x1x8xf32> to vector<16x16x8xf32>
    %323 = arith.mulf %318, %322 : vector<16x16x8xf32>
    %324 = arith.addf %317, %323 : vector<16x16x8xf32>
    %325 = arith.index_cast %221 : i32 to index
    %c13 = arith.constant 13 : index
    %c0_42 = arith.constant 0 : index
    %326 = vector.load %arg10[%325, %c13, %c0_42] : memref<34x41x8xf32, #tpu.memory_space<vmem>>, vector<34x16x8xf32>
    %327 = vector.extract_strided_slice %326 {offsets = [0, 0, 0], sizes = [16, 16, 8], strides = [1, 1, 1]} : vector<34x16x8xf32> to vector<16x16x8xf32>
    %328 = vector.extract_strided_slice %4 {offsets = [0, 2, 0], sizes = [1, 1, 8], strides = [1, 1, 1]} : vector<7x7x8xf32> to vector<1x1x8xf32>
    %329 = vector.shape_cast %328 : vector<1x1x8xf32> to vector<8xf32>
    %330 = vector.shape_cast %329 : vector<8xf32> to vector<1x1x8xf32>
    %331 = vector.broadcast %330 : vector<1x1x8xf32> to vector<16x16x8xf32>
    %332 = arith.mulf %327, %331 : vector<16x16x8xf32>
    %333 = arith.addf %324, %332 : vector<16x16x8xf32>
    %334 = vector.extract_strided_slice %326 {offsets = [3, 0, 0], sizes = [16, 16, 8], strides = [1, 1, 1]} : vector<34x16x8xf32> to vector<16x16x8xf32>
    %335 = vector.extract_strided_slice %4 {offsets = [1, 2, 0], sizes = [1, 1, 8], strides = [1, 1, 1]} : vector<7x7x8xf32> to vector<1x1x8xf32>
    %336 = vector.shape_cast %335 : vector<1x1x8xf32> to vector<8xf32>
    %337 = vector.shape_cast %336 : vector<8xf32> to vector<1x1x8xf32>
    %338 = vector.broadcast %337 : vector<1x1x8xf32> to vector<16x16x8xf32>
    %339 = arith.mulf %334, %338 : vector<16x16x8xf32>
    %340 = arith.addf %333, %339 : vector<16x16x8xf32>
    %341 = vector.extract_strided_slice %326 {offsets = [6, 0, 0], sizes = [16, 16, 8], strides = [1, 1, 1]} : vector<34x16x8xf32> to vector<16x16x8xf32>
    %342 = vector.extract_strided_slice %4 {offsets = [2, 2, 0], sizes = [1, 1, 8], strides = [1, 1, 1]} : vector<7x7x8xf32> to vector<1x1x8xf32>
    %343 = vector.shape_cast %342 : vector<1x1x8xf32> to vector<8xf32>
    %344 = vector.shape_cast %343 : vector<8xf32> to vector<1x1x8xf32>
    %345 = vector.broadcast %344 : vector<1x1x8xf32> to vector<16x16x8xf32>
    %346 = arith.mulf %341, %345 : vector<16x16x8xf32>
    %347 = arith.addf %340, %346 : vector<16x16x8xf32>
    %348 = vector.extract_strided_slice %326 {offsets = [9, 0, 0], sizes = [16, 16, 8], strides = [1, 1, 1]} : vector<34x16x8xf32> to vector<16x16x8xf32>
    %349 = vector.extract_strided_slice %4 {offsets = [3, 2, 0], sizes = [1, 1, 8], strides = [1, 1, 1]} : vector<7x7x8xf32> to vector<1x1x8xf32>
    %350 = vector.shape_cast %349 : vector<1x1x8xf32> to vector<8xf32>
    %351 = vector.shape_cast %350 : vector<8xf32> to vector<1x1x8xf32>
    %352 = vector.broadcast %351 : vector<1x1x8xf32> to vector<16x16x8xf32>
    %353 = arith.mulf %348, %352 : vector<16x16x8xf32>
    %354 = arith.addf %347, %353 : vector<16x16x8xf32>
    %355 = vector.extract_strided_slice %326 {offsets = [12, 0, 0], sizes = [16, 16, 8], strides = [1, 1, 1]} : vector<34x16x8xf32> to vector<16x16x8xf32>
    %356 = vector.extract_strided_slice %4 {offsets = [4, 2, 0], sizes = [1, 1, 8], strides = [1, 1, 1]} : vector<7x7x8xf32> to vector<1x1x8xf32>
    %357 = vector.shape_cast %356 : vector<1x1x8xf32> to vector<8xf32>
    %358 = vector.shape_cast %357 : vector<8xf32> to vector<1x1x8xf32>
    %359 = vector.broadcast %358 : vector<1x1x8xf32> to vector<16x16x8xf32>
    %360 = arith.mulf %355, %359 : vector<16x16x8xf32>
    %361 = arith.addf %354, %360 : vector<16x16x8xf32>
    %362 = vector.extract_strided_slice %326 {offsets = [15, 0, 0], sizes = [16, 16, 8], strides = [1, 1, 1]} : vector<34x16x8xf32> to vector<16x16x8xf32>
    %363 = vector.extract_strided_slice %4 {offsets = [5, 2, 0], sizes = [1, 1, 8], strides = [1, 1, 1]} : vector<7x7x8xf32> to vector<1x1x8xf32>
    %364 = vector.shape_cast %363 : vector<1x1x8xf32> to vector<8xf32>
    %365 = vector.shape_cast %364 : vector<8xf32> to vector<1x1x8xf32>
    %366 = vector.broadcast %365 : vector<1x1x8xf32> to vector<16x16x8xf32>
    %367 = arith.mulf %362, %366 : vector<16x16x8xf32>
    %368 = arith.addf %361, %367 : vector<16x16x8xf32>
    %369 = vector.extract_strided_slice %326 {offsets = [18, 0, 0], sizes = [16, 16, 8], strides = [1, 1, 1]} : vector<34x16x8xf32> to vector<16x16x8xf32>
    %370 = vector.extract_strided_slice %4 {offsets = [6, 2, 0], sizes = [1, 1, 8], strides = [1, 1, 1]} : vector<7x7x8xf32> to vector<1x1x8xf32>
    %371 = vector.shape_cast %370 : vector<1x1x8xf32> to vector<8xf32>
    %372 = vector.shape_cast %371 : vector<8xf32> to vector<1x1x8xf32>
    %373 = vector.broadcast %372 : vector<1x1x8xf32> to vector<16x16x8xf32>
    %374 = arith.mulf %369, %373 : vector<16x16x8xf32>
    %375 = arith.addf %368, %374 : vector<16x16x8xf32>
    %376 = arith.index_cast %221 : i32 to index
    %c16_43 = arith.constant 16 : index
    %c0_44 = arith.constant 0 : index
    %377 = vector.load %arg10[%376, %c16_43, %c0_44] : memref<34x41x8xf32, #tpu.memory_space<vmem>>, vector<34x16x8xf32>
    %378 = vector.extract_strided_slice %377 {offsets = [0, 0, 0], sizes = [16, 16, 8], strides = [1, 1, 1]} : vector<34x16x8xf32> to vector<16x16x8xf32>
    %379 = vector.extract_strided_slice %4 {offsets = [0, 3, 0], sizes = [1, 1, 8], strides = [1, 1, 1]} : vector<7x7x8xf32> to vector<1x1x8xf32>
    %380 = vector.shape_cast %379 : vector<1x1x8xf32> to vector<8xf32>
    %381 = vector.shape_cast %380 : vector<8xf32> to vector<1x1x8xf32>
    %382 = vector.broadcast %381 : vector<1x1x8xf32> to vector<16x16x8xf32>
    %383 = arith.mulf %378, %382 : vector<16x16x8xf32>
    %384 = arith.addf %375, %383 : vector<16x16x8xf32>
    %385 = vector.extract_strided_slice %377 {offsets = [3, 0, 0], sizes = [16, 16, 8], strides = [1, 1, 1]} : vector<34x16x8xf32> to vector<16x16x8xf32>
    %386 = vector.extract_strided_slice %4 {offsets = [1, 3, 0], sizes = [1, 1, 8], strides = [1, 1, 1]} : vector<7x7x8xf32> to vector<1x1x8xf32>
    %387 = vector.shape_cast %386 : vector<1x1x8xf32> to vector<8xf32>
    %388 = vector.shape_cast %387 : vector<8xf32> to vector<1x1x8xf32>
    %389 = vector.broadcast %388 : vector<1x1x8xf32> to vector<16x16x8xf32>
    %390 = arith.mulf %385, %389 : vector<16x16x8xf32>
    %391 = arith.addf %384, %390 : vector<16x16x8xf32>
    %392 = vector.extract_strided_slice %377 {offsets = [6, 0, 0], sizes = [16, 16, 8], strides = [1, 1, 1]} : vector<34x16x8xf32> to vector<16x16x8xf32>
    %393 = vector.extract_strided_slice %4 {offsets = [2, 3, 0], sizes = [1, 1, 8], strides = [1, 1, 1]} : vector<7x7x8xf32> to vector<1x1x8xf32>
    %394 = vector.shape_cast %393 : vector<1x1x8xf32> to vector<8xf32>
    %395 = vector.shape_cast %394 : vector<8xf32> to vector<1x1x8xf32>
    %396 = vector.broadcast %395 : vector<1x1x8xf32> to vector<16x16x8xf32>
    %397 = arith.mulf %392, %396 : vector<16x16x8xf32>
    %398 = arith.addf %391, %397 : vector<16x16x8xf32>
    %399 = vector.extract_strided_slice %377 {offsets = [9, 0, 0], sizes = [16, 16, 8], strides = [1, 1, 1]} : vector<34x16x8xf32> to vector<16x16x8xf32>
    %400 = vector.extract_strided_slice %4 {offsets = [3, 3, 0], sizes = [1, 1, 8], strides = [1, 1, 1]} : vector<7x7x8xf32> to vector<1x1x8xf32>
    %401 = vector.shape_cast %400 : vector<1x1x8xf32> to vector<8xf32>
    %402 = vector.shape_cast %401 : vector<8xf32> to vector<1x1x8xf32>
    %403 = vector.broadcast %402 : vector<1x1x8xf32> to vector<16x16x8xf32>
    %404 = arith.mulf %399, %403 : vector<16x16x8xf32>
    %405 = arith.addf %398, %404 : vector<16x16x8xf32>
    %406 = vector.extract_strided_slice %377 {offsets = [12, 0, 0], sizes = [16, 16, 8], strides = [1, 1, 1]} : vector<34x16x8xf32> to vector<16x16x8xf32>
    %407 = vector.extract_strided_slice %4 {offsets = [4, 3, 0], sizes = [1, 1, 8], strides = [1, 1, 1]} : vector<7x7x8xf32> to vector<1x1x8xf32>
    %408 = vector.shape_cast %407 : vector<1x1x8xf32> to vector<8xf32>
    %409 = vector.shape_cast %408 : vector<8xf32> to vector<1x1x8xf32>
    %410 = vector.broadcast %409 : vector<1x1x8xf32> to vector<16x16x8xf32>
    %411 = arith.mulf %406, %410 : vector<16x16x8xf32>
    %412 = arith.addf %405, %411 : vector<16x16x8xf32>
    %413 = vector.extract_strided_slice %377 {offsets = [15, 0, 0], sizes = [16, 16, 8], strides = [1, 1, 1]} : vector<34x16x8xf32> to vector<16x16x8xf32>
    %414 = vector.extract_strided_slice %4 {offsets = [5, 3, 0], sizes = [1, 1, 8], strides = [1, 1, 1]} : vector<7x7x8xf32> to vector<1x1x8xf32>
    %415 = vector.shape_cast %414 : vector<1x1x8xf32> to vector<8xf32>
    %416 = vector.shape_cast %415 : vector<8xf32> to vector<1x1x8xf32>
    %417 = vector.broadcast %416 : vector<1x1x8xf32> to vector<16x16x8xf32>
    %418 = arith.mulf %413, %417 : vector<16x16x8xf32>
    %419 = arith.addf %412, %418 : vector<16x16x8xf32>
    %420 = vector.extract_strided_slice %377 {offsets = [18, 0, 0], sizes = [16, 16, 8], strides = [1, 1, 1]} : vector<34x16x8xf32> to vector<16x16x8xf32>
    %421 = vector.extract_strided_slice %4 {offsets = [6, 3, 0], sizes = [1, 1, 8], strides = [1, 1, 1]} : vector<7x7x8xf32> to vector<1x1x8xf32>
    %422 = vector.shape_cast %421 : vector<1x1x8xf32> to vector<8xf32>
    %423 = vector.shape_cast %422 : vector<8xf32> to vector<1x1x8xf32>
    %424 = vector.broadcast %423 : vector<1x1x8xf32> to vector<16x16x8xf32>
    %425 = arith.mulf %420, %424 : vector<16x16x8xf32>
    %426 = arith.addf %419, %425 : vector<16x16x8xf32>
    %427 = arith.index_cast %221 : i32 to index
    %c19 = arith.constant 19 : index
    %c0_45 = arith.constant 0 : index
    %428 = vector.load %arg10[%427, %c19, %c0_45] : memref<34x41x8xf32, #tpu.memory_space<vmem>>, vector<34x16x8xf32>
    %429 = vector.extract_strided_slice %428 {offsets = [0, 0, 0], sizes = [16, 16, 8], strides = [1, 1, 1]} : vector<34x16x8xf32> to vector<16x16x8xf32>
    %430 = vector.extract_strided_slice %4 {offsets = [0, 4, 0], sizes = [1, 1, 8], strides = [1, 1, 1]} : vector<7x7x8xf32> to vector<1x1x8xf32>
    %431 = vector.shape_cast %430 : vector<1x1x8xf32> to vector<8xf32>
    %432 = vector.shape_cast %431 : vector<8xf32> to vector<1x1x8xf32>
    %433 = vector.broadcast %432 : vector<1x1x8xf32> to vector<16x16x8xf32>
    %434 = arith.mulf %429, %433 : vector<16x16x8xf32>
    %435 = arith.addf %426, %434 : vector<16x16x8xf32>
    %436 = vector.extract_strided_slice %428 {offsets = [3, 0, 0], sizes = [16, 16, 8], strides = [1, 1, 1]} : vector<34x16x8xf32> to vector<16x16x8xf32>
    %437 = vector.extract_strided_slice %4 {offsets = [1, 4, 0], sizes = [1, 1, 8], strides = [1, 1, 1]} : vector<7x7x8xf32> to vector<1x1x8xf32>
    %438 = vector.shape_cast %437 : vector<1x1x8xf32> to vector<8xf32>
    %439 = vector.shape_cast %438 : vector<8xf32> to vector<1x1x8xf32>
    %440 = vector.broadcast %439 : vector<1x1x8xf32> to vector<16x16x8xf32>
    %441 = arith.mulf %436, %440 : vector<16x16x8xf32>
    %442 = arith.addf %435, %441 : vector<16x16x8xf32>
    %443 = vector.extract_strided_slice %428 {offsets = [6, 0, 0], sizes = [16, 16, 8], strides = [1, 1, 1]} : vector<34x16x8xf32> to vector<16x16x8xf32>
    %444 = vector.extract_strided_slice %4 {offsets = [2, 4, 0], sizes = [1, 1, 8], strides = [1, 1, 1]} : vector<7x7x8xf32> to vector<1x1x8xf32>
    %445 = vector.shape_cast %444 : vector<1x1x8xf32> to vector<8xf32>
    %446 = vector.shape_cast %445 : vector<8xf32> to vector<1x1x8xf32>
    %447 = vector.broadcast %446 : vector<1x1x8xf32> to vector<16x16x8xf32>
    %448 = arith.mulf %443, %447 : vector<16x16x8xf32>
    %449 = arith.addf %442, %448 : vector<16x16x8xf32>
    %450 = vector.extract_strided_slice %428 {offsets = [9, 0, 0], sizes = [16, 16, 8], strides = [1, 1, 1]} : vector<34x16x8xf32> to vector<16x16x8xf32>
    %451 = vector.extract_strided_slice %4 {offsets = [3, 4, 0], sizes = [1, 1, 8], strides = [1, 1, 1]} : vector<7x7x8xf32> to vector<1x1x8xf32>
    %452 = vector.shape_cast %451 : vector<1x1x8xf32> to vector<8xf32>
    %453 = vector.shape_cast %452 : vector<8xf32> to vector<1x1x8xf32>
    %454 = vector.broadcast %453 : vector<1x1x8xf32> to vector<16x16x8xf32>
    %455 = arith.mulf %450, %454 : vector<16x16x8xf32>
    %456 = arith.addf %449, %455 : vector<16x16x8xf32>
    %457 = vector.extract_strided_slice %428 {offsets = [12, 0, 0], sizes = [16, 16, 8], strides = [1, 1, 1]} : vector<34x16x8xf32> to vector<16x16x8xf32>
    %458 = vector.extract_strided_slice %4 {offsets = [4, 4, 0], sizes = [1, 1, 8], strides = [1, 1, 1]} : vector<7x7x8xf32> to vector<1x1x8xf32>
    %459 = vector.shape_cast %458 : vector<1x1x8xf32> to vector<8xf32>
    %460 = vector.shape_cast %459 : vector<8xf32> to vector<1x1x8xf32>
    %461 = vector.broadcast %460 : vector<1x1x8xf32> to vector<16x16x8xf32>
    %462 = arith.mulf %457, %461 : vector<16x16x8xf32>
    %463 = arith.addf %456, %462 : vector<16x16x8xf32>
    %464 = vector.extract_strided_slice %428 {offsets = [15, 0, 0], sizes = [16, 16, 8], strides = [1, 1, 1]} : vector<34x16x8xf32> to vector<16x16x8xf32>
    %465 = vector.extract_strided_slice %4 {offsets = [5, 4, 0], sizes = [1, 1, 8], strides = [1, 1, 1]} : vector<7x7x8xf32> to vector<1x1x8xf32>
    %466 = vector.shape_cast %465 : vector<1x1x8xf32> to vector<8xf32>
    %467 = vector.shape_cast %466 : vector<8xf32> to vector<1x1x8xf32>
    %468 = vector.broadcast %467 : vector<1x1x8xf32> to vector<16x16x8xf32>
    %469 = arith.mulf %464, %468 : vector<16x16x8xf32>
    %470 = arith.addf %463, %469 : vector<16x16x8xf32>
    %471 = vector.extract_strided_slice %428 {offsets = [18, 0, 0], sizes = [16, 16, 8], strides = [1, 1, 1]} : vector<34x16x8xf32> to vector<16x16x8xf32>
    %472 = vector.extract_strided_slice %4 {offsets = [6, 4, 0], sizes = [1, 1, 8], strides = [1, 1, 1]} : vector<7x7x8xf32> to vector<1x1x8xf32>
    %473 = vector.shape_cast %472 : vector<1x1x8xf32> to vector<8xf32>
    %474 = vector.shape_cast %473 : vector<8xf32> to vector<1x1x8xf32>
    %475 = vector.broadcast %474 : vector<1x1x8xf32> to vector<16x16x8xf32>
    %476 = arith.mulf %471, %475 : vector<16x16x8xf32>
    %477 = arith.addf %470, %476 : vector<16x16x8xf32>
    %478 = arith.index_cast %221 : i32 to index
    %c22 = arith.constant 22 : index
    %c0_46 = arith.constant 0 : index
    %479 = vector.load %arg10[%478, %c22, %c0_46] : memref<34x41x8xf32, #tpu.memory_space<vmem>>, vector<34x16x8xf32>
    %480 = vector.extract_strided_slice %479 {offsets = [0, 0, 0], sizes = [16, 16, 8], strides = [1, 1, 1]} : vector<34x16x8xf32> to vector<16x16x8xf32>
    %481 = vector.extract_strided_slice %4 {offsets = [0, 5, 0], sizes = [1, 1, 8], strides = [1, 1, 1]} : vector<7x7x8xf32> to vector<1x1x8xf32>
    %482 = vector.shape_cast %481 : vector<1x1x8xf32> to vector<8xf32>
    %483 = vector.shape_cast %482 : vector<8xf32> to vector<1x1x8xf32>
    %484 = vector.broadcast %483 : vector<1x1x8xf32> to vector<16x16x8xf32>
    %485 = arith.mulf %480, %484 : vector<16x16x8xf32>
    %486 = arith.addf %477, %485 : vector<16x16x8xf32>
    %487 = vector.extract_strided_slice %479 {offsets = [3, 0, 0], sizes = [16, 16, 8], strides = [1, 1, 1]} : vector<34x16x8xf32> to vector<16x16x8xf32>
    %488 = vector.extract_strided_slice %4 {offsets = [1, 5, 0], sizes = [1, 1, 8], strides = [1, 1, 1]} : vector<7x7x8xf32> to vector<1x1x8xf32>
    %489 = vector.shape_cast %488 : vector<1x1x8xf32> to vector<8xf32>
    %490 = vector.shape_cast %489 : vector<8xf32> to vector<1x1x8xf32>
    %491 = vector.broadcast %490 : vector<1x1x8xf32> to vector<16x16x8xf32>
    %492 = arith.mulf %487, %491 : vector<16x16x8xf32>
    %493 = arith.addf %486, %492 : vector<16x16x8xf32>
    %494 = vector.extract_strided_slice %479 {offsets = [6, 0, 0], sizes = [16, 16, 8], strides = [1, 1, 1]} : vector<34x16x8xf32> to vector<16x16x8xf32>
    %495 = vector.extract_strided_slice %4 {offsets = [2, 5, 0], sizes = [1, 1, 8], strides = [1, 1, 1]} : vector<7x7x8xf32> to vector<1x1x8xf32>
    %496 = vector.shape_cast %495 : vector<1x1x8xf32> to vector<8xf32>
    %497 = vector.shape_cast %496 : vector<8xf32> to vector<1x1x8xf32>
    %498 = vector.broadcast %497 : vector<1x1x8xf32> to vector<16x16x8xf32>
    %499 = arith.mulf %494, %498 : vector<16x16x8xf32>
    %500 = arith.addf %493, %499 : vector<16x16x8xf32>
    %501 = vector.extract_strided_slice %479 {offsets = [9, 0, 0], sizes = [16, 16, 8], strides = [1, 1, 1]} : vector<34x16x8xf32> to vector<16x16x8xf32>
    %502 = vector.extract_strided_slice %4 {offsets = [3, 5, 0], sizes = [1, 1, 8], strides = [1, 1, 1]} : vector<7x7x8xf32> to vector<1x1x8xf32>
    %503 = vector.shape_cast %502 : vector<1x1x8xf32> to vector<8xf32>
    %504 = vector.shape_cast %503 : vector<8xf32> to vector<1x1x8xf32>
    %505 = vector.broadcast %504 : vector<1x1x8xf32> to vector<16x16x8xf32>
    %506 = arith.mulf %501, %505 : vector<16x16x8xf32>
    %507 = arith.addf %500, %506 : vector<16x16x8xf32>
    %508 = vector.extract_strided_slice %479 {offsets = [12, 0, 0], sizes = [16, 16, 8], strides = [1, 1, 1]} : vector<34x16x8xf32> to vector<16x16x8xf32>
    %509 = vector.extract_strided_slice %4 {offsets = [4, 5, 0], sizes = [1, 1, 8], strides = [1, 1, 1]} : vector<7x7x8xf32> to vector<1x1x8xf32>
    %510 = vector.shape_cast %509 : vector<1x1x8xf32> to vector<8xf32>
    %511 = vector.shape_cast %510 : vector<8xf32> to vector<1x1x8xf32>
    %512 = vector.broadcast %511 : vector<1x1x8xf32> to vector<16x16x8xf32>
    %513 = arith.mulf %508, %512 : vector<16x16x8xf32>
    %514 = arith.addf %507, %513 : vector<16x16x8xf32>
    %515 = vector.extract_strided_slice %479 {offsets = [15, 0, 0], sizes = [16, 16, 8], strides = [1, 1, 1]} : vector<34x16x8xf32> to vector<16x16x8xf32>
    %516 = vector.extract_strided_slice %4 {offsets = [5, 5, 0], sizes = [1, 1, 8], strides = [1, 1, 1]} : vector<7x7x8xf32> to vector<1x1x8xf32>
    %517 = vector.shape_cast %516 : vector<1x1x8xf32> to vector<8xf32>
    %518 = vector.shape_cast %517 : vector<8xf32> to vector<1x1x8xf32>
    %519 = vector.broadcast %518 : vector<1x1x8xf32> to vector<16x16x8xf32>
    %520 = arith.mulf %515, %519 : vector<16x16x8xf32>
    %521 = arith.addf %514, %520 : vector<16x16x8xf32>
    %522 = vector.extract_strided_slice %479 {offsets = [18, 0, 0], sizes = [16, 16, 8], strides = [1, 1, 1]} : vector<34x16x8xf32> to vector<16x16x8xf32>
    %523 = vector.extract_strided_slice %4 {offsets = [6, 5, 0], sizes = [1, 1, 8], strides = [1, 1, 1]} : vector<7x7x8xf32> to vector<1x1x8xf32>
    %524 = vector.shape_cast %523 : vector<1x1x8xf32> to vector<8xf32>
    %525 = vector.shape_cast %524 : vector<8xf32> to vector<1x1x8xf32>
    %526 = vector.broadcast %525 : vector<1x1x8xf32> to vector<16x16x8xf32>
    %527 = arith.mulf %522, %526 : vector<16x16x8xf32>
    %528 = arith.addf %521, %527 : vector<16x16x8xf32>
    %529 = arith.index_cast %221 : i32 to index
    %c25 = arith.constant 25 : index
    %c0_47 = arith.constant 0 : index
    %530 = vector.load %arg10[%529, %c25, %c0_47] : memref<34x41x8xf32, #tpu.memory_space<vmem>>, vector<34x16x8xf32>
    %531 = vector.extract_strided_slice %530 {offsets = [0, 0, 0], sizes = [16, 16, 8], strides = [1, 1, 1]} : vector<34x16x8xf32> to vector<16x16x8xf32>
    %532 = vector.extract_strided_slice %4 {offsets = [0, 6, 0], sizes = [1, 1, 8], strides = [1, 1, 1]} : vector<7x7x8xf32> to vector<1x1x8xf32>
    %533 = vector.shape_cast %532 : vector<1x1x8xf32> to vector<8xf32>
    %534 = vector.shape_cast %533 : vector<8xf32> to vector<1x1x8xf32>
    %535 = vector.broadcast %534 : vector<1x1x8xf32> to vector<16x16x8xf32>
    %536 = arith.mulf %531, %535 : vector<16x16x8xf32>
    %537 = arith.addf %528, %536 : vector<16x16x8xf32>
    %538 = vector.extract_strided_slice %530 {offsets = [3, 0, 0], sizes = [16, 16, 8], strides = [1, 1, 1]} : vector<34x16x8xf32> to vector<16x16x8xf32>
    %539 = vector.extract_strided_slice %4 {offsets = [1, 6, 0], sizes = [1, 1, 8], strides = [1, 1, 1]} : vector<7x7x8xf32> to vector<1x1x8xf32>
    %540 = vector.shape_cast %539 : vector<1x1x8xf32> to vector<8xf32>
    %541 = vector.shape_cast %540 : vector<8xf32> to vector<1x1x8xf32>
    %542 = vector.broadcast %541 : vector<1x1x8xf32> to vector<16x16x8xf32>
    %543 = arith.mulf %538, %542 : vector<16x16x8xf32>
    %544 = arith.addf %537, %543 : vector<16x16x8xf32>
    %545 = vector.extract_strided_slice %530 {offsets = [6, 0, 0], sizes = [16, 16, 8], strides = [1, 1, 1]} : vector<34x16x8xf32> to vector<16x16x8xf32>
    %546 = vector.extract_strided_slice %4 {offsets = [2, 6, 0], sizes = [1, 1, 8], strides = [1, 1, 1]} : vector<7x7x8xf32> to vector<1x1x8xf32>
    %547 = vector.shape_cast %546 : vector<1x1x8xf32> to vector<8xf32>
    %548 = vector.shape_cast %547 : vector<8xf32> to vector<1x1x8xf32>
    %549 = vector.broadcast %548 : vector<1x1x8xf32> to vector<16x16x8xf32>
    %550 = arith.mulf %545, %549 : vector<16x16x8xf32>
    %551 = arith.addf %544, %550 : vector<16x16x8xf32>
    %552 = vector.extract_strided_slice %530 {offsets = [9, 0, 0], sizes = [16, 16, 8], strides = [1, 1, 1]} : vector<34x16x8xf32> to vector<16x16x8xf32>
    %553 = vector.extract_strided_slice %4 {offsets = [3, 6, 0], sizes = [1, 1, 8], strides = [1, 1, 1]} : vector<7x7x8xf32> to vector<1x1x8xf32>
    %554 = vector.shape_cast %553 : vector<1x1x8xf32> to vector<8xf32>
    %555 = vector.shape_cast %554 : vector<8xf32> to vector<1x1x8xf32>
    %556 = vector.broadcast %555 : vector<1x1x8xf32> to vector<16x16x8xf32>
    %557 = arith.mulf %552, %556 : vector<16x16x8xf32>
    %558 = arith.addf %551, %557 : vector<16x16x8xf32>
    %559 = vector.extract_strided_slice %530 {offsets = [12, 0, 0], sizes = [16, 16, 8], strides = [1, 1, 1]} : vector<34x16x8xf32> to vector<16x16x8xf32>
    %560 = vector.extract_strided_slice %4 {offsets = [4, 6, 0], sizes = [1, 1, 8], strides = [1, 1, 1]} : vector<7x7x8xf32> to vector<1x1x8xf32>
    %561 = vector.shape_cast %560 : vector<1x1x8xf32> to vector<8xf32>
    %562 = vector.shape_cast %561 : vector<8xf32> to vector<1x1x8xf32>
    %563 = vector.broadcast %562 : vector<1x1x8xf32> to vector<16x16x8xf32>
    %564 = arith.mulf %559, %563 : vector<16x16x8xf32>
    %565 = arith.addf %558, %564 : vector<16x16x8xf32>
    %566 = vector.extract_strided_slice %530 {offsets = [15, 0, 0], sizes = [16, 16, 8], strides = [1, 1, 1]} : vector<34x16x8xf32> to vector<16x16x8xf32>
    %567 = vector.extract_strided_slice %4 {offsets = [5, 6, 0], sizes = [1, 1, 8], strides = [1, 1, 1]} : vector<7x7x8xf32> to vector<1x1x8xf32>
    %568 = vector.shape_cast %567 : vector<1x1x8xf32> to vector<8xf32>
    %569 = vector.shape_cast %568 : vector<8xf32> to vector<1x1x8xf32>
    %570 = vector.broadcast %569 : vector<1x1x8xf32> to vector<16x16x8xf32>
    %571 = arith.mulf %566, %570 : vector<16x16x8xf32>
    %572 = arith.addf %565, %571 : vector<16x16x8xf32>
    %573 = vector.extract_strided_slice %530 {offsets = [18, 0, 0], sizes = [16, 16, 8], strides = [1, 1, 1]} : vector<34x16x8xf32> to vector<16x16x8xf32>
    %574 = vector.extract_strided_slice %4 {offsets = [6, 6, 0], sizes = [1, 1, 8], strides = [1, 1, 1]} : vector<7x7x8xf32> to vector<1x1x8xf32>
    %575 = vector.shape_cast %574 : vector<1x1x8xf32> to vector<8xf32>
    %576 = vector.shape_cast %575 : vector<8xf32> to vector<1x1x8xf32>
    %577 = vector.broadcast %576 : vector<1x1x8xf32> to vector<16x16x8xf32>
    %578 = arith.mulf %573, %577 : vector<16x16x8xf32>
    %579 = arith.addf %572, %578 : vector<16x16x8xf32>
    %580 = vector.shape_cast %9 : vector<8xf32> to vector<1x1x8xf32>
    %581 = vector.broadcast %580 : vector<1x1x8xf32> to vector<16x16x8xf32>
    %582 = arith.addf %579, %581 : vector<16x16x8xf32>
    %583 = vector.shape_cast %582 : vector<16x16x8xf32> to vector<256x8xf32>
    %cst_48 = arith.constant dense<0.000000e+00> : vector<256x8xf32>
    %584 = tpu.matmul %583, %5, %cst_48 {dimension_numbers = #tpu.dot_dimension_numbers<[1], [0], [0], [1], [0, 0, 1, 1], [], []>} : vector<256x8xf32>, vector<8x8xf32>, vector<256x8xf32> -> vector<256x8xf32>
    %585 = vector.shape_cast %584 : vector<256x8xf32> to vector<16x16x8xf32>
    %586 = vector.shape_cast %11 : vector<8xf32> to vector<1x1x8xf32>
    %587 = vector.broadcast %586 : vector<1x1x8xf32> to vector<16x16x8xf32>
    %588 = arith.addf %585, %587 : vector<16x16x8xf32>
    %c0_49 = arith.constant 0 : index
    %589 = arith.index_cast %221 : i32 to index
    %c0_50 = arith.constant 0 : index
    %c0_51 = arith.constant 0 : index
    %590 = vector.load %arg1[%c0_49, %589, %c0_50, %c0_51] : memref<1x16x16x8xf32, #tpu.memory_space<vmem>>, vector<1x16x16x8xf32>
    %591 = vector.shape_cast %590 : vector<1x16x16x8xf32> to vector<16x16x8xf32>
    %592 = arith.mulf %591, %588 : vector<16x16x8xf32>
    %c0_52 = arith.constant 0 : index
    %593 = arith.index_cast %221 : i32 to index
    %c0_53 = arith.constant 0 : index
    %c0_54 = arith.constant 0 : index
    %594 = vector.load %arg8[%c0_52, %593, %c0_53, %c0_54] : memref<1x16x16x8xf32, #tpu.memory_space<vmem>>, vector<1x16x16x8xf32>
    %595 = vector.shape_cast %594 : vector<1x16x16x8xf32> to vector<16x16x8xf32>
    %596 = vector.shape_cast %592 : vector<16x16x8xf32> to vector<1x16x16x8xf32>
    tpu.vector_store %arg8[%c0_52, %593, %c0_53, %c0_54], %596 {strides = array<i32>} : memref<1x16x16x8xf32, #tpu.memory_space<vmem>>, vector<1x16x16x8xf32>,
    %c1_i32_55 = arith.constant 1 : i32
    return
  }
  func.func @transform_0(%arg0: i32) -> (i32, i32, i32, i32) {
    %c0_i32 = arith.constant 0 : i32
    %c0_i32_0 = arith.constant 0 : i32
    %c0_i32_1 = arith.constant 0 : i32
    %c0_i32_2 = arith.constant 0 : i32
    return %arg0, %c0_i32, %c0_i32_0, %c0_i32_1 : i32, i32, i32, i32
  }
  func.func @transform_1(%arg0: i32) -> (i32, i32, i32) {
    %c0_i32 = arith.constant 0 : i32
    %c0_i32_0 = arith.constant 0 : i32
    %c0_i32_1 = arith.constant 0 : i32
    %c0_i32_2 = arith.constant 0 : i32
    return %c0_i32, %c0_i32_0, %c0_i32_1 : i32, i32, i32
  }
  func.func @transform_2(%arg0: i32) -> (i32, i32) {
    %c0_i32 = arith.constant 0 : i32
    %c0_i32_0 = arith.constant 0 : i32
    %c0_i32_1 = arith.constant 0 : i32
    return %c0_i32, %c0_i32_0 : i32, i32
  }
  func.func @transform_3(%arg0: i32) -> (i32, i32, i32) {
    %c0_i32 = arith.constant 0 : i32
    %c0_i32_0 = arith.constant 0 : i32
    %c0_i32_1 = arith.constant 0 : i32
    %c0_i32_2 = arith.constant 0 : i32
    return %c0_i32, %c0_i32_0, %c0_i32_1 : i32, i32, i32
  }
  func.func @transform_4(%arg0: i32) -> (i32, i32) {
    %c0_i32 = arith.constant 0 : i32
    %c0_i32_0 = arith.constant 0 : i32
    %c0_i32_1 = arith.constant 0 : i32
    return %c0_i32, %c0_i32_0 : i32, i32
  }
  func.func @transform_5(%arg0: i32) -> (i32, i32) {
    %c0_i32 = arith.constant 0 : i32
    %c0_i32_0 = arith.constant 0 : i32
    %c0_i32_1 = arith.constant 0 : i32
    return %c0_i32, %c0_i32_0 : i32, i32
  }
  func.func @transform_6(%arg0: i32) -> (i32, i32) {
    %c0_i32 = arith.constant 0 : i32
    %c0_i32_0 = arith.constant 0 : i32
    %c0_i32_1 = arith.constant 0 : i32
    return %c0_i32, %c0_i32_0 : i32, i32
  }
  func.func @transform_7(%arg0: i32) -> (i32, i32, i32, i32) {
    %c0_i32 = arith.constant 0 : i32
    %c0_i32_0 = arith.constant 0 : i32
    %c0_i32_1 = arith.constant 0 : i32
    %c0_i32_2 = arith.constant 0 : i32
    return %arg0, %c0_i32, %c0_i32_0, %c0_i32_1 : i32, i32, i32, i32
  }
}

</mosaic_0001>

<llo_original>
// kernel: tpu_custom_call.1
$region0: #{tpu_custom_call.1}
  #allocation0 [shape = 'u32[]', space=smem, size = 0x4, offset = 0x4, fixed_abs, tag = 'smem constant byte address 0x4 - core index']
  #allocation1 [shape = 'u32[144,128]{1,0:T(1,128)}', space=vmem, size = 0x12000, scoped, tag = 'internal scratch']
  #allocation2 [shape = 'f32[20,26,8]{2,1,0:T(8,128)}', space=vmem, size = 0x50000, scoped, tag = 'scratch operand']
  #allocation3 [shape = 'f32[34,41,8]{2,1,0:T(8,128)}', space=vmem, size = 0xcc000, scoped, tag = 'scratch operand']
  %s0 = inlined_call_operand.vmem [shape: f32[1,16,16,8], index: 0, kind: input, shape index: {}]
  %s1 = inlined_call_operand.vmem [shape: f32[5,5,8], index: 1, kind: input, shape index: {}]
  %s2 = inlined_call_operand.vmem [shape: f32[1,8], index: 2, kind: input, shape index: {}]
  %s3 = inlined_call_operand.vmem [shape: f32[7,7,8], index: 3, kind: input, shape index: {}]
  %s4 = inlined_call_operand.vmem [shape: f32[1,8], index: 4, kind: input, shape index: {}]
  %s5 = inlined_call_operand.vmem [shape: f32[8,8], index: 5, kind: input, shape index: {}]
  %s6 = inlined_call_operand.vmem [shape: f32[1,8], index: 6, kind: input, shape index: {}]
  %s7 = inlined_call_operand.vmem [shape: f32[1,16,16,8], index: 7, kind: output, shape index: {}]
  %s8 = sld [smem:[#allocation0]]
  $region42: #{tpu_custom_call.1} parent=0
    _
  %s10 = ssub.s32 1, %s8
  %s11 = scalar_select 0, %s10, %s8
  // Predicated region
  $region2: #{tpu_custom_call.1} parent=0 // pred_check
    _
  $region3: #{tpu_custom_call.1} parent=0 // pred_check_branch
    %13 = sbr.rel (0) target = $region5
  $region4: #{tpu_custom_call.1} parent=0 // pred_region
    _
  $region5: #{tpu_custom_call.1} parent=0 // pred_fallthru
    _
  // Predicated region
  $region6: #{tpu_custom_call.1} parent=0 // pred_check
    _
  $region7: #{tpu_custom_call.1} parent=0 // pred_check_branch
    %15 = sbr.rel (0) target = $region9
  $region8: #{tpu_custom_call.1} parent=0 // pred_region
    _
  $region9: #{tpu_custom_call.1} parent=0 // pred_fallthru
    _
  // Predicated region
  $region10: #{tpu_custom_call.1} parent=0 // pred_check
    _
  $region11: #{tpu_custom_call.1} parent=0 // pred_check_branch
    %17 = sbr.rel (0) target = $region13
  $region12: #{tpu_custom_call.1} parent=0 // pred_region
    _
  $region13: #{tpu_custom_call.1} parent=0 // pred_fallthru
    _
  // Predicated region
  $region14: #{tpu_custom_call.1} parent=0 // pred_check
    _
  $region15: #{tpu_custom_call.1} parent=0 // pred_check_branch
    %19 = sbr.rel (0) target = $region17
  $region16: #{tpu_custom_call.1} parent=0 // pred_region
    _
  $region17: #{tpu_custom_call.1} parent=0 // pred_fallthru
    _
  // Predicated region
  $region18: #{tpu_custom_call.1} parent=0 // pred_check
    _
  $region19: #{tpu_custom_call.1} parent=0 // pred_check_branch
    %21 = sbr.rel (0) target = $region21
  $region20: #{tpu_custom_call.1} parent=0 // pred_region
    _
  $region21: #{tpu_custom_call.1} parent=0 // pred_fallthru
    _
  // Predicated region
  $region22: #{tpu_custom_call.1} parent=0 // pred_check
    _
  $region23: #{tpu_custom_call.1} parent=0 // pred_check_branch
    %23 = sbr.rel (0) target = $region25
  $region24: #{tpu_custom_call.1} parent=0 // pred_region
    _
  $region25: #{tpu_custom_call.1} parent=0 // pred_fallthru
    _
  // Predicated region
  $region26: #{tpu_custom_call.1} parent=0 // pred_check
    _
  $region27: #{tpu_custom_call.1} parent=0 // pred_check_branch
    %25 = sbr.rel (0) target = $region29
  $region28: #{tpu_custom_call.1} parent=0 // pred_region
    _
  $region29: #{tpu_custom_call.1} parent=0 // pred_fallthru
    _
  %p26 = scmp.eq.s32.totalorder 0, 0
  // Predicated region
  $region30: #{tpu_custom_call.1} parent=0 // pred_check
    %p27 = pneg %p26
  $region31: #{tpu_custom_call.1} parent=0 // pred_check_branch
    %29 = sbr.rel (%p27) target = $region33
  $region32: #{tpu_custom_call.1} parent=0 // pred_region
    %vm30 = vcmask 64512
    %31 = vst.msk [vmem:[#allocation2 + $0x6] sm:$0xff] %vm30, 0.0
    %32 = vst.msk [vmem:[#allocation2 + $0xe] sm:$0xff] %vm30, 0.0
    %vm33 = vcmask 60416
    %34 = vst.msk [vmem:[#allocation2 + $0x16] sm:$0xf] %vm33, 0.0
    %35 = vst.msk [vmem:[#allocation2 + $0x26] sm:$0xff] %vm30, 0.0
    %36 = vst.msk [vmem:[#allocation2 + $0x2e] sm:$0xff] %vm30, 0.0
    %37 = vst.msk [vmem:[#allocation2 + $0x36] sm:$0xf] %vm33, 0.0
    %s38 = scalar_lea.vmem [#allocation2], 576
    %39 = vst.msk [vmem:[%s38 + $0x6] sm:$0xff] %vm30, 0.0
    %40 = vst.msk [vmem:[%s38 + $0xe] sm:$0xff] %vm30, 0.0
    %41 = vst.msk [vmem:[%s38 + $0x16] sm:$0xf] %vm33, 0.0
    %42 = vst.msk [vmem:[%s38 + $0x26] sm:$0xff] %vm30, 0.0
    %43 = vst.msk [vmem:[%s38 + $0x2e] sm:$0xff] %vm30, 0.0
    %44 = vst.msk [vmem:[%s38 + $0x36] sm:$0xf] %vm33, 0.0
    %s45 = scalar_lea.vmem [#allocation2], 64
    %vm46 = vcmask 58368
    %47 = vst.msk [vmem:[%s45 + $0x6] sm:$0x3] %vm46, 0.0
    %48 = vst.msk [vmem:[%s45 + $0x26] sm:$0x3] %vm46, 0.0
    %49 = vst.msk [vmem:[%s45 + $0x46] sm:$0x3] %vm46, 0.0
    %50 = vst.msk [vmem:[%s45 + $0x66] sm:$0x3] %vm46, 0.0
    %51 = vst.msk [vmem:[%s45 + $0x86] sm:$0x3] %vm46, 0.0
    %52 = vst.msk [vmem:[%s45 + $0xa6] sm:$0x3] %vm46, 0.0
    %53 = vst.msk [vmem:[%s45 + $0xc6] sm:$0x3] %vm46, 0.0
    %54 = vst.msk [vmem:[%s45 + $0xe6] sm:$0x3] %vm46, 0.0
    %55 = vst.msk [vmem:[%s45 + $0x106] sm:$0x3] %vm46, 0.0
    %56 = vst.msk [vmem:[%s45 + $0x126] sm:$0x3] %vm46, 0.0
    %57 = vst.msk [vmem:[%s45 + $0x146] sm:$0x3] %vm46, 0.0
    %58 = vst.msk [vmem:[%s45 + $0x166] sm:$0x3] %vm46, 0.0
    %59 = vst.msk [vmem:[%s45 + $0x186] sm:$0x3] %vm46, 0.0
    %60 = vst.msk [vmem:[%s45 + $0x1a6] sm:$0x3] %vm46, 0.0
    %61 = vst.msk [vmem:[%s45 + $0x1c6] sm:$0x3] %vm46, 0.0
    %62 = vst.msk [vmem:[%s45 + $0x1e6] sm:$0x3] %vm46, 0.0
    %63 = vst.msk [vmem:[%s45 + $0x18] sm:$0x3] %vm46, 0.0
    %64 = vst.msk [vmem:[%s45 + $0x38] sm:$0x3] %vm46, 0.0
    %65 = vst.msk [vmem:[%s45 + $0x58] sm:$0x3] %vm46, 0.0
    %66 = vst.msk [vmem:[%s45 + $0x78] sm:$0x3] %vm46, 0.0
    %67 = vst.msk [vmem:[%s45 + $0x98] sm:$0x3] %vm46, 0.0
    %68 = vst.msk [vmem:[%s45 + $0xb8] sm:$0x3] %vm46, 0.0
    %69 = vst.msk [vmem:[%s45 + $0xd8] sm:$0x3] %vm46, 0.0
    %70 = vst.msk [vmem:[%s45 + $0xf8] sm:$0x3] %vm46, 0.0
    %71 = vst.msk [vmem:[%s45 + $0x118] sm:$0x3] %vm46, 0.0
    %72 = vst.msk [vmem:[%s45 + $0x138] sm:$0x3] %vm46, 0.0
    %73 = vst.msk [vmem:[%s45 + $0x158] sm:$0x3] %vm46, 0.0
    %74 = vst.msk [vmem:[%s45 + $0x178] sm:$0x3] %vm46, 0.0
    %75 = vst.msk [vmem:[%s45 + $0x198] sm:$0x3] %vm46, 0.0
    %76 = vst.msk [vmem:[%s45 + $0x1b8] sm:$0x3] %vm46, 0.0
    %77 = vst.msk [vmem:[%s45 + $0x1d8] sm:$0x3] %vm46, 0.0
    %78 = vst.msk [vmem:[%s45 + $0x1f8] sm:$0x3] %vm46, 0.0
    %79 = vst.msk [vmem:[#allocation3 + $0x7] sm:$0xff] %vm30, 0.0
    %80 = vst.msk [vmem:[#allocation3 + $0xf] sm:$0xff] %vm30, 0.0
    %81 = vst.msk [vmem:[#allocation3 + $0x17] sm:$0xff] %vm30, 0.0
    %82 = vst.msk [vmem:[#allocation3 + $0x1f] sm:$0xff] %vm30, 0.0
    %83 = vst.msk [vmem:[#allocation3 + $0x27] sm:$0x3] %vm46, 0.0
    %84 = vst.msk [vmem:[#allocation3 + $0x37] sm:$0xff] %vm30, 0.0
    %85 = vst.msk [vmem:[#allocation3 + $0x3f] sm:$0xff] %vm30, 0.0
    %86 = vst.msk [vmem:[#allocation3 + $0x47] sm:$0xff] %vm30, 0.0
    %87 = vst.msk [vmem:[#allocation3 + $0x4f] sm:$0xff] %vm30, 0.0
    %88 = vst.msk [vmem:[#allocation3 + $0x57] sm:$0x3] %vm46, 0.0
    %89 = vst.msk [vmem:[#allocation3 + $0x67] sm:$0xff] %vm30, 0.0
    %90 = vst.msk [vmem:[#allocation3 + $0x6f] sm:$0xff] %vm30, 0.0
    %91 = vst.msk [vmem:[#allocation3 + $0x77] sm:$0xff] %vm30, 0.0
    %92 = vst.msk [vmem:[#allocation3 + $0x7f] sm:$0xff] %vm30, 0.0
    %93 = vst.msk [vmem:[#allocation3 + $0x87] sm:$0x3] %vm46, 0.0
    %94 = vst.msk [vmem:[#allocation3 + $0x97] sm:$0xff] %vm30, 0.0
    %95 = vst.msk [vmem:[#allocation3 + $0x9f] sm:$0xff] %vm30, 0.0
    %96 = vst.msk [vmem:[#allocation3 + $0xa7] sm:$0xff] %vm30, 0.0
    %97 = vst.msk [vmem:[#allocation3 + $0xaf] sm:$0xff] %vm30, 0.0
    %98 = vst.msk [vmem:[#allocation3 + $0xb7] sm:$0x3] %vm46, 0.0
    %99 = vst.msk [vmem:[#allocation3 + $0xc7] sm:$0xff] %vm30, 0.0
    %100 = vst.msk [vmem:[#allocation3 + $0xcf] sm:$0xff] %vm30, 0.0
    %101 = vst.msk [vmem:[#allocation3 + $0xd7] sm:$0xff] %vm30, 0.0
    %102 = vst.msk [vmem:[#allocation3 + $0xdf] sm:$0xff] %vm30, 0.0
    %103 = vst.msk [vmem:[#allocation3 + $0xe7] sm:$0x3] %vm46, 0.0
    %104 = vst.msk [vmem:[#allocation3 + $0xf7] sm:$0xff] %vm30, 0.0
    %105 = vst.msk [vmem:[#allocation3 + $0xff] sm:$0xff] %vm30, 0.0
    %106 = vst.msk [vmem:[#allocation3 + $0x107] sm:$0xff] %vm30, 0.0
    %107 = vst.msk [vmem:[#allocation3 + $0x10f] sm:$0xff] %vm30, 0.0
    %108 = vst.msk [vmem:[#allocation3 + $0x117] sm:$0x3] %vm46, 0.0
    %109 = vst.msk [vmem:[#allocation3 + $0x127] sm:$0xff] %vm30, 0.0
    %110 = vst.msk [vmem:[#allocation3 + $0x12f] sm:$0xff] %vm30, 0.0
    %111 = vst.msk [vmem:[#allocation3 + $0x137] sm:$0xff] %vm30, 0.0
    %112 = vst.msk [vmem:[#allocation3 + $0x13f] sm:$0xff] %vm30, 0.0
    %113 = vst.msk [vmem:[#allocation3 + $0x147] sm:$0x3] %vm46, 0.0
    %114 = vst.msk [vmem:[#allocation3 + $0x157] sm:$0xff] %vm30, 0.0
    %115 = vst.msk [vmem:[#allocation3 + $0x15f] sm:$0xff] %vm30, 0.0
    %116 = vst.msk [vmem:[#allocation3 + $0x167] sm:$0xff] %vm30, 0.0
    %117 = vst.msk [vmem:[#allocation3 + $0x16f] sm:$0xff] %vm30, 0.0
    %118 = vst.msk [vmem:[#allocation3 + $0x177] sm:$0x3] %vm46, 0.0
    %119 = vst.msk [vmem:[#allocation3 + $0x187] sm:$0xff] %vm30, 0.0
    %120 = vst.msk [vmem:[#allocation3 + $0x18f] sm:$0xff] %vm30, 0.0
    %121 = vst.msk [vmem:[#allocation3 + $0x197] sm:$0xff] %vm30, 0.0
    %122 = vst.msk [vmem:[#allocation3 + $0x19f] sm:$0xff] %vm30, 0.0
    %123 = vst.msk [vmem:[#allocation3 + $0x1a7] sm:$0x3] %vm46, 0.0
    %s124 = scalar_lea.vmem [#allocation3], 1200
    %125 = vst.msk [vmem:[%s124 + $0x7] sm:$0xff] %vm30, 0.0
    %126 = vst.msk [vmem:[%s124 + $0xf] sm:$0xff] %vm30, 0.0
    %127 = vst.msk [vmem:[%s124 + $0x17] sm:$0xff] %vm30, 0.0
    %128 = vst.msk [vmem:[%s124 + $0x1f] sm:$0xff] %vm30, 0.0
    %129 = vst.msk [vmem:[%s124 + $0x27] sm:$0x3] %vm46, 0.0
    %130 = vst.msk [vmem:[%s124 + $0x37] sm:$0xff] %vm30, 0.0
    %131 = vst.msk [vmem:[%s124 + $0x3f] sm:$0xff] %vm30, 0.0
    %132 = vst.msk [vmem:[%s124 + $0x47] sm:$0xff] %vm30, 0.0
    %133 = vst.msk [vmem:[%s124 + $0x4f] sm:$0xff] %vm30, 0.0
    %134 = vst.msk [vmem:[%s124 + $0x57] sm:$0x3] %vm46, 0.0
    %135 = vst.msk [vmem:[%s124 + $0x67] sm:$0xff] %vm30, 0.0
    %136 = vst.msk [vmem:[%s124 + $0x6f] sm:$0xff] %vm30, 0.0
    %137 = vst.msk [vmem:[%s124 + $0x77] sm:$0xff] %vm30, 0.0
    %138 = vst.msk [vmem:[%s124 + $0x7f] sm:$0xff] %vm30, 0.0
    %139 = vst.msk [vmem:[%s124 + $0x87] sm:$0x3] %vm46, 0.0
    %140 = vst.msk [vmem:[%s124 + $0x97] sm:$0xff] %vm30, 0.0
    %141 = vst.msk [vmem:[%s124 + $0x9f] sm:$0xff] %vm30, 0.0
    %142 = vst.msk [vmem:[%s124 + $0xa7] sm:$0xff] %vm30, 0.0
    %143 = vst.msk [vmem:[%s124 + $0xaf] sm:$0xff] %vm30, 0.0
    %144 = vst.msk [vmem:[%s124 + $0xb7] sm:$0x3] %vm46, 0.0
    %145 = vst.msk [vmem:[%s124 + $0xc7] sm:$0xff] %vm30, 0.0
    %146 = vst.msk [vmem:[%s124 + $0xcf] sm:$0xff] %vm30, 0.0
    %147 = vst.msk [vmem:[%s124 + $0xd7] sm:$0xff] %vm30, 0.0
    %148 = vst.msk [vmem:[%s124 + $0xdf] sm:$0xff] %vm30, 0.0
    %149 = vst.msk [vmem:[%s124 + $0xe7] sm:$0x3] %vm46, 0.0
    %150 = vst.msk [vmem:[%s124 + $0xf7] sm:$0xff] %vm30, 0.0
    %151 = vst.msk [vmem:[%s124 + $0xff] sm:$0xff] %vm30, 0.0
    %152 = vst.msk [vmem:[%s124 + $0x107] sm:$0xff] %vm30, 0.0
    %153 = vst.msk [vmem:[%s124 + $0x10f] sm:$0xff] %vm30, 0.0
    %154 = vst.msk [vmem:[%s124 + $0x117] sm:$0x3] %vm46, 0.0
    %155 = vst.msk [vmem:[%s124 + $0x127] sm:$0xff] %vm30, 0.0
    %156 = vst.msk [vmem:[%s124 + $0x12f] sm:$0xff] %vm30, 0.0
    %157 = vst.msk [vmem:[%s124 + $0x137] sm:$0xff] %vm30, 0.0
    %158 = vst.msk [vmem:[%s124 + $0x13f] sm:$0xff] %vm30, 0.0
    %159 = vst.msk [vmem:[%s124 + $0x147] sm:$0x3] %vm46, 0.0
    %160 = vst.msk [vmem:[%s124 + $0x157] sm:$0xff] %vm30, 0.0
    %161 = vst.msk [vmem:[%s124 + $0x15f] sm:$0xff] %vm30, 0.0
    %162 = vst.msk [vmem:[%s124 + $0x167] sm:$0xff] %vm30, 0.0
    %163 = vst.msk [vmem:[%s124 + $0x16f] sm:$0xff] %vm30, 0.0
    %164 = vst.msk [vmem:[%s124 + $0x177] sm:$0x3] %vm46, 0.0
    %165 = vst.msk [vmem:[%s124 + $0x187] sm:$0xff] %vm30, 0.0
    %166 = vst.msk [vmem:[%s124 + $0x18f] sm:$0xff] %vm30, 0.0
    %167 = vst.msk [vmem:[%s124 + $0x197] sm:$0xff] %vm30, 0.0
    %168 = vst.msk [vmem:[%s124 + $0x19f] sm:$0xff] %vm30, 0.0
    %169 = vst.msk [vmem:[%s124 + $0x1a7] sm:$0x3] %vm46, 0.0
    %s170 = scalar_lea.vmem [#allocation3], 432
    %171 = vst.msk [vmem:[%s170 + $0x7] sm:$0xff] %vm30, 0.0
    %vm172 = vcmask 57344
    %173 = vst.msk [vmem:[%s170 + $0xf] sm:$0x1] %vm172, 0.0
    %174 = vst.msk [vmem:[%s170 + $0x37] sm:$0xff] %vm30, 0.0
    %175 = vst.msk [vmem:[%s170 + $0x3f] sm:$0x1] %vm172, 0.0
    %176 = vst.msk [vmem:[%s170 + $0x67] sm:$0xff] %vm30, 0.0
    %177 = vst.msk [vmem:[%s170 + $0x6f] sm:$0x1] %vm172, 0.0
    %178 = vst.msk [vmem:[%s170 + $0x97] sm:$0xff] %vm30, 0.0
    %179 = vst.msk [vmem:[%s170 + $0x9f] sm:$0x1] %vm172, 0.0
    %180 = vst.msk [vmem:[%s170 + $0xc7] sm:$0xff] %vm30, 0.0
    %181 = vst.msk [vmem:[%s170 + $0xcf] sm:$0x1] %vm172, 0.0
    %182 = vst.msk [vmem:[%s170 + $0xf7] sm:$0xff] %vm30, 0.0
    %183 = vst.msk [vmem:[%s170 + $0xff] sm:$0x1] %vm172, 0.0
    %184 = vst.msk [vmem:[%s170 + $0x127] sm:$0xff] %vm30, 0.0
    %185 = vst.msk [vmem:[%s170 + $0x12f] sm:$0x1] %vm172, 0.0
    %186 = vst.msk [vmem:[%s170 + $0x157] sm:$0xff] %vm30, 0.0
    %187 = vst.msk [vmem:[%s170 + $0x15f] sm:$0x1] %vm172, 0.0
    %188 = vst.msk [vmem:[%s170 + $0x187] sm:$0xff] %vm30, 0.0
    %189 = vst.msk [vmem:[%s170 + $0x18f] sm:$0x1] %vm172, 0.0
    %190 = vst.msk [vmem:[%s170 + $0x1b7] sm:$0xff] %vm30, 0.0
    %191 = vst.msk [vmem:[%s170 + $0x1bf] sm:$0x1] %vm172, 0.0
    %192 = vst.msk [vmem:[%s170 + $0x1e7] sm:$0xff] %vm30, 0.0
    %193 = vst.msk [vmem:[%s170 + $0x1ef] sm:$0x1] %vm172, 0.0
    %194 = vst.msk [vmem:[%s170 + $0x217] sm:$0xff] %vm30, 0.0
    %195 = vst.msk [vmem:[%s170 + $0x21f] sm:$0x1] %vm172, 0.0
    %196 = vst.msk [vmem:[%s170 + $0x247] sm:$0xff] %vm30, 0.0
    %197 = vst.msk [vmem:[%s170 + $0x24f] sm:$0x1] %vm172, 0.0
    %198 = vst.msk [vmem:[%s170 + $0x277] sm:$0xff] %vm30, 0.0
    %199 = vst.msk [vmem:[%s170 + $0x27f] sm:$0x1] %vm172, 0.0
    %200 = vst.msk [vmem:[%s170 + $0x2a7] sm:$0xff] %vm30, 0.0
    %201 = vst.msk [vmem:[%s170 + $0x2af] sm:$0x1] %vm172, 0.0
    %202 = vst.msk [vmem:[%s170 + $0x2d7] sm:$0xff] %vm30, 0.0
    %203 = vst.msk [vmem:[%s170 + $0x2df] sm:$0x1] %vm172, 0.0
    %204 = vst.msk [vmem:[%s170 + $0x20] sm:$0xff] %vm30, 0.0
    %205 = vst.msk [vmem:[%s170 + $0x28] sm:$0x1] %vm172, 0.0
    %206 = vst.msk [vmem:[%s170 + $0x50] sm:$0xff] %vm30, 0.0
    %207 = vst.msk [vmem:[%s170 + $0x58] sm:$0x1] %vm172, 0.0
    %208 = vst.msk [vmem:[%s170 + $0x80] sm:$0xff] %vm30, 0.0
    %209 = vst.msk [vmem:[%s170 + $0x88] sm:$0x1] %vm172, 0.0
    %210 = vst.msk [vmem:[%s170 + $0xb0] sm:$0xff] %vm30, 0.0
    %211 = vst.msk [vmem:[%s170 + $0xb8] sm:$0x1] %vm172, 0.0
    %212 = vst.msk [vmem:[%s170 + $0xe0] sm:$0xff] %vm30, 0.0
    %213 = vst.msk [vmem:[%s170 + $0xe8] sm:$0x1] %vm172, 0.0
    %214 = vst.msk [vmem:[%s170 + $0x110] sm:$0xff] %vm30, 0.0
    %215 = vst.msk [vmem:[%s170 + $0x118] sm:$0x1] %vm172, 0.0
    %216 = vst.msk [vmem:[%s170 + $0x140] sm:$0xff] %vm30, 0.0
    %217 = vst.msk [vmem:[%s170 + $0x148] sm:$0x1] %vm172, 0.0
    %218 = vst.msk [vmem:[%s170 + $0x170] sm:$0xff] %vm30, 0.0
    %219 = vst.msk [vmem:[%s170 + $0x178] sm:$0x1] %vm172, 0.0
    %220 = vst.msk [vmem:[%s170 + $0x1a0] sm:$0xff] %vm30, 0.0
    %221 = vst.msk [vmem:[%s170 + $0x1a8] sm:$0x1] %vm172, 0.0
    %222 = vst.msk [vmem:[%s170 + $0x1d0] sm:$0xff] %vm30, 0.0
    %223 = vst.msk [vmem:[%s170 + $0x1d8] sm:$0x1] %vm172, 0.0
    %224 = vst.msk [vmem:[%s170 + $0x200] sm:$0xff] %vm30, 0.0
    %225 = vst.msk [vmem:[%s170 + $0x208] sm:$0x1] %vm172, 0.0
    %226 = vst.msk [vmem:[%s170 + $0x230] sm:$0xff] %vm30, 0.0
    %227 = vst.msk [vmem:[%s170 + $0x238] sm:$0x1] %vm172, 0.0
    %228 = vst.msk [vmem:[%s170 + $0x260] sm:$0xff] %vm30, 0.0
    %229 = vst.msk [vmem:[%s170 + $0x268] sm:$0x1] %vm172, 0.0
    %230 = vst.msk [vmem:[%s170 + $0x290] sm:$0xff] %vm30, 0.0
    %231 = vst.msk [vmem:[%s170 + $0x298] sm:$0x1] %vm172, 0.0
    %232 = vst.msk [vmem:[%s170 + $0x2c0] sm:$0xff] %vm30, 0.0
    %233 = vst.msk [vmem:[%s170 + $0x2c8] sm:$0x1] %vm172, 0.0
    %234 = vst.msk [vmem:[%s170 + $0x2f0] sm:$0xff] %vm30, 0.0
    %235 = vst.msk [vmem:[%s170 + $0x2f8] sm:$0x1] %vm172, 0.0
  $region33: #{tpu_custom_call.1} parent=0 // pred_fallthru
    _
  %v236 = vld [vmem:[%s1] sm:$0x1f]
  %v237 = vld [vmem:[%s1 + $0x8] sm:$0x1f]
  %v238 = vld [vmem:[%s1 + $0x10] sm:$0x1f]
  %v239 = vld [vmem:[%s1 + $0x18] sm:$0x1f]
  %v240 = vld [vmem:[%s1 + $0x20] sm:$0x1f]
  %v241 = vld [vmem:[%s3] sm:$0x7f]
  %v242 = vld [vmem:[%s3 + $0x8] sm:$0x7f]
  %v243 = vld [vmem:[%s3 + $0x10] sm:$0x7f]
  %v244 = vld [vmem:[%s3 + $0x18] sm:$0x7f]
  %v245 = vld [vmem:[%s3 + $0x20] sm:$0x7f]
  %v246 = vld [vmem:[%s3 + $0x28] sm:$0x7f]
  %v247 = vld [vmem:[%s3 + $0x30] sm:$0x7f]
  %v248 = vld [vmem:[%s5] sm:$0xff]
  %v249 = vld [vmem:[%s2] sm:$0x1]
  %v250 = vld [vmem:[%s4] sm:$0x1]
  %v251 = vld [vmem:[%s6] sm:$0x1]
  %s252 = smul.u32 0, 16
  %s253 = scalar_lea.vmem %s0, %s252
  %v254 = vld [vmem:[%s253] sm:$0xff]
  %v255 = vld [vmem:[%s253 + $0x8] sm:$0xff]
  %v256 = vld [vmem:[%s253 + $0x10] sm:$0xff]
  %v257 = vld [vmem:[%s253 + $0x18] sm:$0xff]
  %v258 = vld [vmem:[%s253 + $0x20] sm:$0xff]
  %v259 = vld [vmem:[%s253 + $0x28] sm:$0xff]
  %v260 = vld [vmem:[%s253 + $0x30] sm:$0xff]
  %v261 = vld [vmem:[%s253 + $0x38] sm:$0xff]
  %v262 = vld [vmem:[%s253 + $0x40] sm:$0xff]
  %v263 = vld [vmem:[%s253 + $0x48] sm:$0xff]
  %v264 = vld [vmem:[%s253 + $0x50] sm:$0xff]
  %v265 = vld [vmem:[%s253 + $0x58] sm:$0xff]
  %v266 = vld [vmem:[%s253 + $0x60] sm:$0xff]
  %v267 = vld [vmem:[%s253 + $0x68] sm:$0xff]
  %v268 = vld [vmem:[%s253 + $0x70] sm:$0xff]
  %v269 = vld [vmem:[%s253 + $0x78] sm:$0xff]
  %v270 = vld [vmem:[%s253 + $0x80] sm:$0xff]
  %v271 = vld [vmem:[%s253 + $0x88] sm:$0xff]
  %v272 = vld [vmem:[%s253 + $0x90] sm:$0xff]
  %v273 = vld [vmem:[%s253 + $0x98] sm:$0xff]
  %v274 = vld [vmem:[%s253 + $0xa0] sm:$0xff]
  %v275 = vld [vmem:[%s253 + $0xa8] sm:$0xff]
  %v276 = vld [vmem:[%s253 + $0xb0] sm:$0xff]
  %v277 = vld [vmem:[%s253 + $0xb8] sm:$0xff]
  %v278 = vld [vmem:[%s253 + $0xc0] sm:$0xff]
  %v279 = vld [vmem:[%s253 + $0xc8] sm:$0xff]
  %v280 = vld [vmem:[%s253 + $0xd0] sm:$0xff]
  %v281 = vld [vmem:[%s253 + $0xd8] sm:$0xff]
  %v282 = vld [vmem:[%s253 + $0xe0] sm:$0xff]
  %v283 = vld [vmem:[%s253 + $0xe8] sm:$0xff]
  %v284 = vld [vmem:[%s253 + $0xf0] sm:$0xff]
  %v285 = vld [vmem:[%s253 + $0xf8] sm:$0xff]
  %s286 = sadd.s32 0, 2
  %s287 = smul.u32 %s286, 32
  %s288 = scalar_lea.vmem [#allocation2], %s287
  %vm289 = vcmask 64512
  %290 = vst.msk [vmem:[%s288 + $0x8] sm:$0xff] %vm289, %v254
  %291 = vst.msk [vmem:[%s288 + $0x10] sm:$0xff] %vm289, %v255
  %292 = vst.msk [vmem:[%s288 + $0x28] sm:$0xff] %vm289, %v256
  %293 = vst.msk [vmem:[%s288 + $0x30] sm:$0xff] %vm289, %v257
  %294 = vst.msk [vmem:[%s288 + $0x48] sm:$0xff] %vm289, %v258
  %295 = vst.msk [vmem:[%s288 + $0x50] sm:$0xff] %vm289, %v259
  %296 = vst.msk [vmem:[%s288 + $0x68] sm:$0xff] %vm289, %v260
  %297 = vst.msk [vmem:[%s288 + $0x70] sm:$0xff] %vm289, %v261
  %298 = vst.msk [vmem:[%s288 + $0x88] sm:$0xff] %vm289, %v262
  %299 = vst.msk [vmem:[%s288 + $0x90] sm:$0xff] %vm289, %v263
  %300 = vst.msk [vmem:[%s288 + $0xa8] sm:$0xff] %vm289, %v264
  %301 = vst.msk [vmem:[%s288 + $0xb0] sm:$0xff] %vm289, %v265
  %302 = vst.msk [vmem:[%s288 + $0xc8] sm:$0xff] %vm289, %v266
  %303 = vst.msk [vmem:[%s288 + $0xd0] sm:$0xff] %vm289, %v267
  %304 = vst.msk [vmem:[%s288 + $0xe8] sm:$0xff] %vm289, %v268
  %305 = vst.msk [vmem:[%s288 + $0xf0] sm:$0xff] %vm289, %v269
  %306 = vst.msk [vmem:[%s288 + $0x108] sm:$0xff] %vm289, %v270
  %307 = vst.msk [vmem:[%s288 + $0x110] sm:$0xff] %vm289, %v271
  %308 = vst.msk [vmem:[%s288 + $0x128] sm:$0xff] %vm289, %v272
  %309 = vst.msk [vmem:[%s288 + $0x130] sm:$0xff] %vm289, %v273
  %310 = vst.msk [vmem:[%s288 + $0x148] sm:$0xff] %vm289, %v274
  %311 = vst.msk [vmem:[%s288 + $0x150] sm:$0xff] %vm289, %v275
  %312 = vst.msk [vmem:[%s288 + $0x168] sm:$0xff] %vm289, %v276
  %313 = vst.msk [vmem:[%s288 + $0x170] sm:$0xff] %vm289, %v277
  %314 = vst.msk [vmem:[%s288 + $0x188] sm:$0xff] %vm289, %v278
  %315 = vst.msk [vmem:[%s288 + $0x190] sm:$0xff] %vm289, %v279
  %316 = vst.msk [vmem:[%s288 + $0x1a8] sm:$0xff] %vm289, %v280
  %317 = vst.msk [vmem:[%s288 + $0x1b0] sm:$0xff] %vm289, %v281
  %318 = vst.msk [vmem:[%s288 + $0x1c8] sm:$0xff] %vm289, %v282
  %319 = vst.msk [vmem:[%s288 + $0x1d0] sm:$0xff] %vm289, %v283
  %320 = vst.msk [vmem:[%s288 + $0x1e8] sm:$0xff] %vm289, %v284
  %321 = vst.msk [vmem:[%s288 + $0x1f0] sm:$0xff] %vm289, %v285
  %s322 = smul.u32 0, 32
  %s323 = scalar_lea.vmem [#allocation2], %s322
  %v324 = vld [vmem:[%s323 + $0x6] sm:$0xff]
  %v325 = vld [vmem:[%s323 + $0xe] sm:$0xff]
  %v326 = vld [vmem:[%s323 + $0x26] sm:$0xff]
  %v327 = vld [vmem:[%s323 + $0x2e] sm:$0xff]
  %v328 = vld [vmem:[%s323 + $0x46] sm:$0xff]
  %v329 = vld [vmem:[%s323 + $0x4e] sm:$0xff]
  %v330 = vld [vmem:[%s323 + $0x66] sm:$0xff]
  %v331 = vld [vmem:[%s323 + $0x6e] sm:$0xff]
  %v332 = vld [vmem:[%s323 + $0x86] sm:$0xff]
  %v333 = vld [vmem:[%s323 + $0x8e] sm:$0xff]
  %v334 = vld [vmem:[%s323 + $0xa6] sm:$0xff]
  %v335 = vld [vmem:[%s323 + $0xae] sm:$0xff]
  %v336 = vld [vmem:[%s323 + $0xc6] sm:$0xff]
  %v337 = vld [vmem:[%s323 + $0xce] sm:$0xff]
  %v338 = vld [vmem:[%s323 + $0xe6] sm:$0xff]
  %v339 = vld [vmem:[%s323 + $0xee] sm:$0xff]
  %v340 = vld [vmem:[%s323 + $0x106] sm:$0xff]
  %v341 = vld [vmem:[%s323 + $0x10e] sm:$0xff]
  %v342 = vld [vmem:[%s323 + $0x126] sm:$0xff]
  %v343 = vld [vmem:[%s323 + $0x12e] sm:$0xff]
  %v344 = vld [vmem:[%s323 + $0x146] sm:$0xff]
  %v345 = vld [vmem:[%s323 + $0x14e] sm:$0xff]
  %v346 = vld [vmem:[%s323 + $0x166] sm:$0xff]
  %v347 = vld [vmem:[%s323 + $0x16e] sm:$0xff]
  %v348 = vld [vmem:[%s323 + $0x186] sm:$0xff]
  %v349 = vld [vmem:[%s323 + $0x18e] sm:$0xff]
  %v350 = vld [vmem:[%s323 + $0x1a6] sm:$0xff]
  %v351 = vld [vmem:[%s323 + $0x1ae] sm:$0xff]
  %v352 = vld [vmem:[%s323 + $0x1c6] sm:$0xff]
  %v353 = vld [vmem:[%s323 + $0x1ce] sm:$0xff]
  %v354 = vld [vmem:[%s323 + $0x1e6] sm:$0xff]
  %v355 = vld [vmem:[%s323 + $0x1ee] sm:$0xff]
  %v356 = vld [vmem:[%s323 + $0x206] sm:$0xff]
  %v357 = vld [vmem:[%s323 + $0x20e] sm:$0xff]
  %v358 = vld [vmem:[%s323 + $0x226] sm:$0xff]
  %v359 = vld [vmem:[%s323 + $0x22e] sm:$0xff]
  %v360 = vld [vmem:[%s323 + $0x246] sm:$0xff]
  %v361 = vld [vmem:[%s323 + $0x24e] sm:$0xff]
  %v362 = vld [vmem:[%s323 + $0x266] sm:$0xff]
  %v363 = vld [vmem:[%s323 + $0x26e] sm:$0xff]
  %v364 = vlaneseq
  %v365 = vshrl.u32 %v364, 7
  %v366 = vsub.s32 0, %v365
  %v367 = vrot.slane %v236, %v366
  %v368 = vmul.f32 %v324, %v367
  %v369 = vmul.f32 %v325, %v367
  %v370 = vmul.f32 %v326, %v367
  %v371 = vmul.f32 %v327, %v367
  %v372 = vmul.f32 %v328, %v367
  %v373 = vmul.f32 %v329, %v367
  %v374 = vmul.f32 %v330, %v367
  %v375 = vmul.f32 %v331, %v367
  %v376 = vmul.f32 %v332, %v367
  %v377 = vmul.f32 %v333, %v367
  %v378 = vmul.f32 %v334, %v367
  %v379 = vmul.f32 %v335, %v367
  %v380 = vmul.f32 %v336, %v367
  %v381 = vmul.f32 %v337, %v367
  %v382 = vmul.f32 %v338, %v367
  %v383 = vmul.f32 %v339, %v367
  %v384 = vmul.f32 %v340, %v367
  %v385 = vmul.f32 %v341, %v367
  %v386 = vmul.f32 %v342, %v367
  %v387 = vmul.f32 %v343, %v367
  %v388 = vmul.f32 %v344, %v367
  %v389 = vmul.f32 %v345, %v367
  %v390 = vmul.f32 %v346, %v367
  %v391 = vmul.f32 %v347, %v367
  %v392 = vmul.f32 %v348, %v367
  %v393 = vmul.f32 %v349, %v367
  %v394 = vmul.f32 %v350, %v367
  %v395 = vmul.f32 %v351, %v367
  %v396 = vmul.f32 %v352, %v367
  %v397 = vmul.f32 %v353, %v367
  %v398 = vmul.f32 %v354, %v367
  %v399 = vmul.f32 %v355, %v367
  %v400 = vadd.f32 %v368, 0.0
  %v401 = vadd.f32 %v369, 0.0
  %v402 = vadd.f32 %v370, 0.0
  %v403 = vadd.f32 %v371, 0.0
  %v404 = vadd.f32 %v372, 0.0
  %v405 = vadd.f32 %v373, 0.0
  %v406 = vadd.f32 %v374, 0.0
  %v407 = vadd.f32 %v375, 0.0
  %v408 = vadd.f32 %v376, 0.0
  %v409 = vadd.f32 %v377, 0.0
  %v410 = vadd.f32 %v378, 0.0
  %v411 = vadd.f32 %v379, 0.0
  %v412 = vadd.f32 %v380, 0.0
  %v413 = vadd.f32 %v381, 0.0
  %v414 = vadd.f32 %v382, 0.0
  %v415 = vadd.f32 %v383, 0.0
  %v416 = vadd.f32 %v384, 0.0
  %v417 = vadd.f32 %v385, 0.0
  %v418 = vadd.f32 %v386, 0.0
  %v419 = vadd.f32 %v387, 0.0
  %v420 = vadd.f32 %v388, 0.0
  %v421 = vadd.f32 %v389, 0.0
  %v422 = vadd.f32 %v390, 0.0
  %v423 = vadd.f32 %v391, 0.0
  %v424 = vadd.f32 %v392, 0.0
  %v425 = vadd.f32 %v393, 0.0
  %v426 = vadd.f32 %v394, 0.0
  %v427 = vadd.f32 %v395, 0.0
  %v428 = vadd.f32 %v396, 0.0
  %v429 = vadd.f32 %v397, 0.0
  %v430 = vadd.f32 %v398, 0.0
  %v431 = vadd.f32 %v399, 0.0
  %v432 = vlaneseq
  %v433 = vshrl.u32 %v432, 7
  %v434 = vsub.s32 0, %v433
  %v435 = vrot.slane %v237, %v434
  %v436 = vmul.f32 %v326, %v435
  %v437 = vmul.f32 %v327, %v435
  %v438 = vmul.f32 %v328, %v435
  %v439 = vmul.f32 %v329, %v435
  %v440 = vmul.f32 %v330, %v435
  %v441 = vmul.f32 %v331, %v435
  %v442 = vmul.f32 %v332, %v435
  %v443 = vmul.f32 %v333, %v435
  %v444 = vmul.f32 %v334, %v435
  %v445 = vmul.f32 %v335, %v435
  %v446 = vmul.f32 %v336, %v435
  %v447 = vmul.f32 %v337, %v435
  %v448 = vmul.f32 %v338, %v435
  %v449 = vmul.f32 %v339, %v435
  %v450 = vmul.f32 %v340, %v435
  %v451 = vmul.f32 %v341, %v435
  %v452 = vmul.f32 %v342, %v435
  %v453 = vmul.f32 %v343, %v435
  %v454 = vmul.f32 %v344, %v435
  %v455 = vmul.f32 %v345, %v435
  %v456 = vmul.f32 %v346, %v435
  %v457 = vmul.f32 %v347, %v435
  %v458 = vmul.f32 %v348, %v435
  %v459 = vmul.f32 %v349, %v435
  %v460 = vmul.f32 %v350, %v435
  %v461 = vmul.f32 %v351, %v435
  %v462 = vmul.f32 %v352, %v435
  %v463 = vmul.f32 %v353, %v435
  %v464 = vmul.f32 %v354, %v435
  %v465 = vmul.f32 %v355, %v435
  %v466 = vmul.f32 %v356, %v435
  %v467 = vmul.f32 %v357, %v435
  %v468 = vadd.f32 %v400, %v436
  %v469 = vadd.f32 %v401, %v437
  %v470 = vadd.f32 %v402, %v438
  %v471 = vadd.f32 %v403, %v439
  %v472 = vadd.f32 %v404, %v440
  %v473 = vadd.f32 %v405, %v441
  %v474 = vadd.f32 %v406, %v442
  %v475 = vadd.f32 %v407, %v443
  %v476 = vadd.f32 %v408, %v444
  %v477 = vadd.f32 %v409, %v445
  %v478 = vadd.f32 %v410, %v446
  %v479 = vadd.f32 %v411, %v447
  %v480 = vadd.f32 %v412, %v448
  %v481 = vadd.f32 %v413, %v449
  %v482 = vadd.f32 %v414, %v450
  %v483 = vadd.f32 %v415, %v451
  %v484 = vadd.f32 %v416, %v452
  %v485 = vadd.f32 %v417, %v453
  %v486 = vadd.f32 %v418, %v454
  %v487 = vadd.f32 %v419, %v455
  %v488 = vadd.f32 %v420, %v456
  %v489 = vadd.f32 %v421, %v457
  %v490 = vadd.f32 %v422, %v458
  %v491 = vadd.f32 %v423, %v459
  %v492 = vadd.f32 %v424, %v460
  %v493 = vadd.f32 %v425, %v461
  %v494 = vadd.f32 %v426, %v462
  %v495 = vadd.f32 %v427, %v463
  %v496 = vadd.f32 %v428, %v464
  %v497 = vadd.f32 %v429, %v465
  %v498 = vadd.f32 %v430, %v466
  %v499 = vadd.f32 %v431, %v467
  %v500 = vlaneseq
  %v501 = vshrl.u32 %v500, 7
  %v502 = vsub.s32 0, %v501
  %v503 = vrot.slane %v238, %v502
  %v504 = vmul.f32 %v328, %v503
  %v505 = vmul.f32 %v329, %v503
  %v506 = vmul.f32 %v330, %v503
  %v507 = vmul.f32 %v331, %v503
  %v508 = vmul.f32 %v332, %v503
  %v509 = vmul.f32 %v333, %v503
  %v510 = vmul.f32 %v334, %v503
  %v511 = vmul.f32 %v335, %v503
  %v512 = vmul.f32 %v336, %v503
  %v513 = vmul.f32 %v337, %v503
  %v514 = vmul.f32 %v338, %v503
  %v515 = vmul.f32 %v339, %v503
  %v516 = vmul.f32 %v340, %v503
  %v517 = vmul.f32 %v341, %v503
  %v518 = vmul.f32 %v342, %v503
  %v519 = vmul.f32 %v343, %v503
  %v520 = vmul.f32 %v344, %v503
  %v521 = vmul.f32 %v345, %v503
  %v522 = vmul.f32 %v346, %v503
  %v523 = vmul.f32 %v347, %v503
  %v524 = vmul.f32 %v348, %v503
  %v525 = vmul.f32 %v349, %v503
  %v526 = vmul.f32 %v350, %v503
  %v527 = vmul.f32 %v351, %v503
  %v528 = vmul.f32 %v352, %v503
  %v529 = vmul.f32 %v353, %v503
  %v530 = vmul.f32 %v354, %v503
  %v531 = vmul.f32 %v355, %v503
  %v532 = vmul.f32 %v356, %v503
  %v533 = vmul.f32 %v357, %v503
  %v534 = vmul.f32 %v358, %v503
  %v535 = vmul.f32 %v359, %v503
  %v536 = vadd.f32 %v468, %v504
  %v537 = vadd.f32 %v469, %v505
  %v538 = vadd.f32 %v470, %v506
  %v539 = vadd.f32 %v471, %v507
  %v540 = vadd.f32 %v472, %v508
  %v541 = vadd.f32 %v473, %v509
  %v542 = vadd.f32 %v474, %v510
  %v543 = vadd.f32 %v475, %v511
  %v544 = vadd.f32 %v476, %v512
  %v545 = vadd.f32 %v477, %v513
  %v546 = vadd.f32 %v478, %v514
  %v547 = vadd.f32 %v479, %v515
  %v548 = vadd.f32 %v480, %v516
  %v549 = vadd.f32 %v481, %v517
  %v550 = vadd.f32 %v482, %v518
  %v551 = vadd.f32 %v483, %v519
  %v552 = vadd.f32 %v484, %v520
  %v553 = vadd.f32 %v485, %v521
  %v554 = vadd.f32 %v486, %v522
  %v555 = vadd.f32 %v487, %v523
  %v556 = vadd.f32 %v488, %v524
  %v557 = vadd.f32 %v489, %v525
  %v558 = vadd.f32 %v490, %v526
  %v559 = vadd.f32 %v491, %v527
  %v560 = vadd.f32 %v492, %v528
  %v561 = vadd.f32 %v493, %v529
  %v562 = vadd.f32 %v494, %v530
  %v563 = vadd.f32 %v495, %v531
  %v564 = vadd.f32 %v496, %v532
  %v565 = vadd.f32 %v497, %v533
  %v566 = vadd.f32 %v498, %v534
  %v567 = vadd.f32 %v499, %v535
  %v568 = vlaneseq
  %v569 = vshrl.u32 %v568, 7
  %v570 = vsub.s32 0, %v569
  %v571 = vrot.slane %v239, %v570
  %v572 = vmul.f32 %v330, %v571
  %v573 = vmul.f32 %v331, %v571
  %v574 = vmul.f32 %v332, %v571
  %v575 = vmul.f32 %v333, %v571
  %v576 = vmul.f32 %v334, %v571
  %v577 = vmul.f32 %v335, %v571
  %v578 = vmul.f32 %v336, %v571
  %v579 = vmul.f32 %v337, %v571
  %v580 = vmul.f32 %v338, %v571
  %v581 = vmul.f32 %v339, %v571
  %v582 = vmul.f32 %v340, %v571
  %v583 = vmul.f32 %v341, %v571
  %v584 = vmul.f32 %v342, %v571
  %v585 = vmul.f32 %v343, %v571
  %v586 = vmul.f32 %v344, %v571
  %v587 = vmul.f32 %v345, %v571
  %v588 = vmul.f32 %v346, %v571
  %v589 = vmul.f32 %v347, %v571
  %v590 = vmul.f32 %v348, %v571
  %v591 = vmul.f32 %v349, %v571
  %v592 = vmul.f32 %v350, %v571
  %v593 = vmul.f32 %v351, %v571
  %v594 = vmul.f32 %v352, %v571
  %v595 = vmul.f32 %v353, %v571
  %v596 = vmul.f32 %v354, %v571
  %v597 = vmul.f32 %v355, %v571
  %v598 = vmul.f32 %v356, %v571
  %v599 = vmul.f32 %v357, %v571
  %v600 = vmul.f32 %v358, %v571
  %v601 = vmul.f32 %v359, %v571
  %v602 = vmul.f32 %v360, %v571
  %v603 = vmul.f32 %v361, %v571
  %v604 = vadd.f32 %v536, %v572
  %v605 = vadd.f32 %v537, %v573
  %v606 = vadd.f32 %v538, %v574
  %v607 = vadd.f32 %v539, %v575
  %v608 = vadd.f32 %v540, %v576
  %v609 = vadd.f32 %v541, %v577
  %v610 = vadd.f32 %v542, %v578
  %v611 = vadd.f32 %v543, %v579
  %v612 = vadd.f32 %v544, %v580
  %v613 = vadd.f32 %v545, %v581
  %v614 = vadd.f32 %v546, %v582
  %v615 = vadd.f32 %v547, %v583
  %v616 = vadd.f32 %v548, %v584
  %v617 = vadd.f32 %v549, %v585
  %v618 = vadd.f32 %v550, %v586
  %v619 = vadd.f32 %v551, %v587
  %v620 = vadd.f32 %v552, %v588
  %v621 = vadd.f32 %v553, %v589
  %v622 = vadd.f32 %v554, %v590
  %v623 = vadd.f32 %v555, %v591
  %v624 = vadd.f32 %v556, %v592
  %v625 = vadd.f32 %v557, %v593
  %v626 = vadd.f32 %v558, %v594
  %v627 = vadd.f32 %v559, %v595
  %v628 = vadd.f32 %v560, %v596
  %v629 = vadd.f32 %v561, %v597
  %v630 = vadd.f32 %v562, %v598
  %v631 = vadd.f32 %v563, %v599
  %v632 = vadd.f32 %v564, %v600
  %v633 = vadd.f32 %v565, %v601
  %v634 = vadd.f32 %v566, %v602
  %v635 = vadd.f32 %v567, %v603
  %v636 = vlaneseq
  %v637 = vshrl.u32 %v636, 7
  %v638 = vsub.s32 0, %v637
  %v639 = vrot.slane %v240, %v638
  %v640 = vmul.f32 %v332, %v639
  %v641 = vmul.f32 %v333, %v639
  %v642 = vmul.f32 %v334, %v639
  %v643 = vmul.f32 %v335, %v639
  %v644 = vmul.f32 %v336, %v639
  %v645 = vmul.f32 %v337, %v639
  %v646 = vmul.f32 %v338, %v639
  %v647 = vmul.f32 %v339, %v639
  %v648 = vmul.f32 %v340, %v639
  %v649 = vmul.f32 %v341, %v639
  %v650 = vmul.f32 %v342, %v639
  %v651 = vmul.f32 %v343, %v639
  %v652 = vmul.f32 %v344, %v639
  %v653 = vmul.f32 %v345, %v639
  %v654 = vmul.f32 %v346, %v639
  %v655 = vmul.f32 %v347, %v639
  %v656 = vmul.f32 %v348, %v639
  %v657 = vmul.f32 %v349, %v639
  %v658 = vmul.f32 %v350, %v639
  %v659 = vmul.f32 %v351, %v639
  %v660 = vmul.f32 %v352, %v639
  %v661 = vmul.f32 %v353, %v639
  %v662 = vmul.f32 %v354, %v639
  %v663 = vmul.f32 %v355, %v639
  %v664 = vmul.f32 %v356, %v639
  %v665 = vmul.f32 %v357, %v639
  %v666 = vmul.f32 %v358, %v639
  %v667 = vmul.f32 %v359, %v639
  %v668 = vmul.f32 %v360, %v639
  %v669 = vmul.f32 %v361, %v639
  %v670 = vmul.f32 %v362, %v639
  %v671 = vmul.f32 %v363, %v639
  %v672 = vadd.f32 %v604, %v640
  %v673 = vadd.f32 %v605, %v641
  %v674 = vadd.f32 %v606, %v642
  %v675 = vadd.f32 %v607, %v643
  %v676 = vadd.f32 %v608, %v644
  %v677 = vadd.f32 %v609, %v645
  %v678 = vadd.f32 %v610, %v646
  %v679 = vadd.f32 %v611, %v647
  %v680 = vadd.f32 %v612, %v648
  %v681 = vadd.f32 %v613, %v649
  %v682 = vadd.f32 %v614, %v650
  %v683 = vadd.f32 %v615, %v651
  %v684 = vadd.f32 %v616, %v652
  %v685 = vadd.f32 %v617, %v653
  %v686 = vadd.f32 %v618, %v654
  %v687 = vadd.f32 %v619, %v655
  %v688 = vadd.f32 %v620, %v656
  %v689 = vadd.f32 %v621, %v657
  %v690 = vadd.f32 %v622, %v658
  %v691 = vadd.f32 %v623, %v659
  %v692 = vadd.f32 %v624, %v660
  %v693 = vadd.f32 %v625, %v661
  %v694 = vadd.f32 %v626, %v662
  %v695 = vadd.f32 %v627, %v663
  %v696 = vadd.f32 %v628, %v664
  %v697 = vadd.f32 %v629, %v665
  %v698 = vadd.f32 %v630, %v666
  %v699 = vadd.f32 %v631, %v667
  %v700 = vadd.f32 %v632, %v668
  %v701 = vadd.f32 %v633, %v669
  %v702 = vadd.f32 %v634, %v670
  %v703 = vadd.f32 %v635, %v671
  %v704 = vld [vmem:[%s323 + $0x7] sm:$0xff]
  %v705 = vld [vmem:[%s323 + $0xf] sm:$0xff]
  %v706 = vld [vmem:[%s323 + $0x27] sm:$0xff]
  %v707 = vld [vmem:[%s323 + $0x2f] sm:$0xff]
  %v708 = vld [vmem:[%s323 + $0x47] sm:$0xff]
  %v709 = vld [vmem:[%s323 + $0x4f] sm:$0xff]
  %v710 = vld [vmem:[%s323 + $0x67] sm:$0xff]
  %v711 = vld [vmem:[%s323 + $0x6f] sm:$0xff]
  %v712 = vld [vmem:[%s323 + $0x87] sm:$0xff]
  %v713 = vld [vmem:[%s323 + $0x8f] sm:$0xff]
  %v714 = vld [vmem:[%s323 + $0xa7] sm:$0xff]
  %v715 = vld [vmem:[%s323 + $0xaf] sm:$0xff]
  %v716 = vld [vmem:[%s323 + $0xc7] sm:$0xff]
  %v717 = vld [vmem:[%s323 + $0xcf] sm:$0xff]
  %v718 = vld [vmem:[%s323 + $0xe7] sm:$0xff]
  %v719 = vld [vmem:[%s323 + $0xef] sm:$0xff]
  %v720 = vld [vmem:[%s323 + $0x107] sm:$0xff]
  %v721 = vld [vmem:[%s323 + $0x10f] sm:$0xff]
  %v722 = vld [vmem:[%s323 + $0x127] sm:$0xff]
  %v723 = vld [vmem:[%s323 + $0x12f] sm:$0xff]
  %v724 = vld [vmem:[%s323 + $0x147] sm:$0xff]
  %v725 = vld [vmem:[%s323 + $0x14f] sm:$0xff]
  %v726 = vld [vmem:[%s323 + $0x167] sm:$0xff]
  %v727 = vld [vmem:[%s323 + $0x16f] sm:$0xff]
  %v728 = vld [vmem:[%s323 + $0x187] sm:$0xff]
  %v729 = vld [vmem:[%s323 + $0x18f] sm:$0xff]
  %v730 = vld [vmem:[%s323 + $0x1a7] sm:$0xff]
  %v731 = vld [vmem:[%s323 + $0x1af] sm:$0xff]
  %v732 = vld [vmem:[%s323 + $0x1c7] sm:$0xff]
  %v733 = vld [vmem:[%s323 + $0x1cf] sm:$0xff]
  %v734 = vld [vmem:[%s323 + $0x1e7] sm:$0xff]
  %v735 = vld [vmem:[%s323 + $0x1ef] sm:$0xff]
  %v736 = vld [vmem:[%s323 + $0x207] sm:$0xff]
  %v737 = vld [vmem:[%s323 + $0x20f] sm:$0xff]
  %v738 = vld [vmem:[%s323 + $0x227] sm:$0xff]
  %v739 = vld [vmem:[%s323 + $0x22f] sm:$0xff]
  %v740 = vld [vmem:[%s323 + $0x247] sm:$0xff]
  %v741 = vld [vmem:[%s323 + $0x24f] sm:$0xff]
  %v742 = vld [vmem:[%s323 + $0x267] sm:$0xff]
  %v743 = vld [vmem:[%s323 + $0x26f] sm:$0xff]
  %v744 = vlaneseq
  %v745 = vshrl.u32 %v744, 7
  %v746 = vsub.s32 1, %v745
  %v747 = vrot.slane %v236, %v746
  %v748 = vmul.f32 %v704, %v747
  %v749 = vmul.f32 %v705, %v747
  %v750 = vmul.f32 %v706, %v747
  %v751 = vmul.f32 %v707, %v747
  %v752 = vmul.f32 %v708, %v747
  %v753 = vmul.f32 %v709, %v747
  %v754 = vmul.f32 %v710, %v747
  %v755 = vmul.f32 %v711, %v747
  %v756 = vmul.f32 %v712, %v747
  %v757 = vmul.f32 %v713, %v747
  %v758 = vmul.f32 %v714, %v747
  %v759 = vmul.f32 %v715, %v747
  %v760 = vmul.f32 %v716, %v747
  %v761 = vmul.f32 %v717, %v747
  %v762 = vmul.f32 %v718, %v747
  %v763 = vmul.f32 %v719, %v747
  %v764 = vmul.f32 %v720, %v747
  %v765 = vmul.f32 %v721, %v747
  %v766 = vmul.f32 %v722, %v747
  %v767 = vmul.f32 %v723, %v747
  %v768 = vmul.f32 %v724, %v747
  %v769 = vmul.f32 %v725, %v747
  %v770 = vmul.f32 %v726, %v747
  %v771 = vmul.f32 %v727, %v747
  %v772 = vmul.f32 %v728, %v747
  %v773 = vmul.f32 %v729, %v747
  %v774 = vmul.f32 %v730, %v747
  %v775 = vmul.f32 %v731, %v747
  %v776 = vmul.f32 %v732, %v747
  %v777 = vmul.f32 %v733, %v747
  %v778 = vmul.f32 %v734, %v747
  %v779 = vmul.f32 %v735, %v747
  %v780 = vadd.f32 %v672, %v748
  %v781 = vadd.f32 %v673, %v749
  %v782 = vadd.f32 %v674, %v750
  %v783 = vadd.f32 %v675, %v751
  %v784 = vadd.f32 %v676, %v752
  %v785 = vadd.f32 %v677, %v753
  %v786 = vadd.f32 %v678, %v754
  %v787 = vadd.f32 %v679, %v755
  %v788 = vadd.f32 %v680, %v756
  %v789 = vadd.f32 %v681, %v757
  %v790 = vadd.f32 %v682, %v758
  %v791 = vadd.f32 %v683, %v759
  %v792 = vadd.f32 %v684, %v760
  %v793 = vadd.f32 %v685, %v761
  %v794 = vadd.f32 %v686, %v762
  %v795 = vadd.f32 %v687, %v763
  %v796 = vadd.f32 %v688, %v764
  %v797 = vadd.f32 %v689, %v765
  %v798 = vadd.f32 %v690, %v766
  %v799 = vadd.f32 %v691, %v767
  %v800 = vadd.f32 %v692, %v768
  %v801 = vadd.f32 %v693, %v769
  %v802 = vadd.f32 %v694, %v770
  %v803 = vadd.f32 %v695, %v771
  %v804 = vadd.f32 %v696, %v772
  %v805 = vadd.f32 %v697, %v773
  %v806 = vadd.f32 %v698, %v774
  %v807 = vadd.f32 %v699, %v775
  %v808 = vadd.f32 %v700, %v776
  %v809 = vadd.f32 %v701, %v777
  %v810 = vadd.f32 %v702, %v778
  %v811 = vadd.f32 %v703, %v779
  %v812 = vlaneseq
  %v813 = vshrl.u32 %v812, 7
  %v814 = vsub.s32 1, %v813
  %v815 = vrot.slane %v237, %v814
  %v816 = vmul.f32 %v706, %v815
  %v817 = vmul.f32 %v707, %v815
  %v818 = vmul.f32 %v708, %v815
  %v819 = vmul.f32 %v709, %v815
  %v820 = vmul.f32 %v710, %v815
  %v821 = vmul.f32 %v711, %v815
  %v822 = vmul.f32 %v712, %v815
  %v823 = vmul.f32 %v713, %v815
  %v824 = vmul.f32 %v714, %v815
  %v825 = vmul.f32 %v715, %v815
  %v826 = vmul.f32 %v716, %v815
  %v827 = vmul.f32 %v717, %v815
  %v828 = vmul.f32 %v718, %v815
  %v829 = vmul.f32 %v719, %v815
  %v830 = vmul.f32 %v720, %v815
  %v831 = vmul.f32 %v721, %v815
  %v832 = vmul.f32 %v722, %v815
  %v833 = vmul.f32 %v723, %v815
  %v834 = vmul.f32 %v724, %v815
  %v835 = vmul.f32 %v725, %v815
  %v836 = vmul.f32 %v726, %v815
  %v837 = vmul.f32 %v727, %v815
  %v838 = vmul.f32 %v728, %v815
  %v839 = vmul.f32 %v729, %v815
  %v840 = vmul.f32 %v730, %v815
  %v841 = vmul.f32 %v731, %v815
  %v842 = vmul.f32 %v732, %v815
  %v843 = vmul.f32 %v733, %v815
  %v844 = vmul.f32 %v734, %v815
  %v845 = vmul.f32 %v735, %v815
  %v846 = vmul.f32 %v736, %v815
  %v847 = vmul.f32 %v737, %v815
  %v848 = vadd.f32 %v780, %v816
  %v849 = vadd.f32 %v781, %v817
  %v850 = vadd.f32 %v782, %v818
  %v851 = vadd.f32 %v783, %v819
  %v852 = vadd.f32 %v784, %v820
  %v853 = vadd.f32 %v785, %v821
  %v854 = vadd.f32 %v786, %v822
  %v855 = vadd.f32 %v787, %v823
  %v856 = vadd.f32 %v788, %v824
  %v857 = vadd.f32 %v789, %v825
  %v858 = vadd.f32 %v790, %v826
  %v859 = vadd.f32 %v791, %v827
  %v860 = vadd.f32 %v792, %v828
  %v861 = vadd.f32 %v793, %v829
  %v862 = vadd.f32 %v794, %v830
  %v863 = vadd.f32 %v795, %v831
  %v864 = vadd.f32 %v796, %v832
  %v865 = vadd.f32 %v797, %v833
  %v866 = vadd.f32 %v798, %v834
  %v867 = vadd.f32 %v799, %v835
  %v868 = vadd.f32 %v800, %v836
  %v869 = vadd.f32 %v801, %v837
  %v870 = vadd.f32 %v802, %v838
  %v871 = vadd.f32 %v803, %v839
  %v872 = vadd.f32 %v804, %v840
  %v873 = vadd.f32 %v805, %v841
  %v874 = vadd.f32 %v806, %v842
  %v875 = vadd.f32 %v807, %v843
  %v876 = vadd.f32 %v808, %v844
  %v877 = vadd.f32 %v809, %v845
  %v878 = vadd.f32 %v810, %v846
  %v879 = vadd.f32 %v811, %v847
  %v880 = vlaneseq
  %v881 = vshrl.u32 %v880, 7
  %v882 = vsub.s32 1, %v881
  %v883 = vrot.slane %v238, %v882
  %v884 = vmul.f32 %v708, %v883
  %v885 = vmul.f32 %v709, %v883
  %v886 = vmul.f32 %v710, %v883
  %v887 = vmul.f32 %v711, %v883
  %v888 = vmul.f32 %v712, %v883
  %v889 = vmul.f32 %v713, %v883
  %v890 = vmul.f32 %v714, %v883
  %v891 = vmul.f32 %v715, %v883
  %v892 = vmul.f32 %v716, %v883
  %v893 = vmul.f32 %v717, %v883
  %v894 = vmul.f32 %v718, %v883
  %v895 = vmul.f32 %v719, %v883
  %v896 = vmul.f32 %v720, %v883
  %v897 = vmul.f32 %v721, %v883
  %v898 = vmul.f32 %v722, %v883
  %v899 = vmul.f32 %v723, %v883
  %v900 = vmul.f32 %v724, %v883
  %v901 = vmul.f32 %v725, %v883
  %v902 = vmul.f32 %v726, %v883
  %v903 = vmul.f32 %v727, %v883
  %v904 = vmul.f32 %v728, %v883
  %v905 = vmul.f32 %v729, %v883
  %v906 = vmul.f32 %v730, %v883
  %v907 = vmul.f32 %v731, %v883
  %v908 = vmul.f32 %v732, %v883
  %v909 = vmul.f32 %v733, %v883
  %v910 = vmul.f32 %v734, %v883
  %v911 = vmul.f32 %v735, %v883
  %v912 = vmul.f32 %v736, %v883
  %v913 = vmul.f32 %v737, %v883
  %v914 = vmul.f32 %v738, %v883
  %v915 = vmul.f32 %v739, %v883
  %v916 = vadd.f32 %v848, %v884
  %v917 = vadd.f32 %v849, %v885
  %v918 = vadd.f32 %v850, %v886
  %v919 = vadd.f32 %v851, %v887
  %v920 = vadd.f32 %v852, %v888
  %v921 = vadd.f32 %v853, %v889
  %v922 = vadd.f32 %v854, %v890
  %v923 = vadd.f32 %v855, %v891
  %v924 = vadd.f32 %v856, %v892
  %v925 = vadd.f32 %v857, %v893
  %v926 = vadd.f32 %v858, %v894
  %v927 = vadd.f32 %v859, %v895
  %v928 = vadd.f32 %v860, %v896
  %v929 = vadd.f32 %v861, %v897
  %v930 = vadd.f32 %v862, %v898
  %v931 = vadd.f32 %v863, %v899
  %v932 = vadd.f32 %v864, %v900
  %v933 = vadd.f32 %v865, %v901
  %v934 = vadd.f32 %v866, %v902
  %v935 = vadd.f32 %v867, %v903
  %v936 = vadd.f32 %v868, %v904
  %v937 = vadd.f32 %v869, %v905
  %v938 = vadd.f32 %v870, %v906
  %v939 = vadd.f32 %v871, %v907
  %v940 = vadd.f32 %v872, %v908
  %v941 = vadd.f32 %v873, %v909
  %v942 = vadd.f32 %v874, %v910
  %v943 = vadd.f32 %v875, %v911
  %v944 = vadd.f32 %v876, %v912
  %v945 = vadd.f32 %v877, %v913
  %v946 = vadd.f32 %v878, %v914
  %v947 = vadd.f32 %v879, %v915
  %v948 = vlaneseq
  %v949 = vshrl.u32 %v948, 7
  %v950 = vsub.s32 1, %v949
  %v951 = vrot.slane %v239, %v950
  %v952 = vmul.f32 %v710, %v951
  %v953 = vmul.f32 %v711, %v951
  %v954 = vmul.f32 %v712, %v951
  %v955 = vmul.f32 %v713, %v951
  %v956 = vmul.f32 %v714, %v951
  %v957 = vmul.f32 %v715, %v951
  %v958 = vmul.f32 %v716, %v951
  %v959 = vmul.f32 %v717, %v951
  %v960 = vmul.f32 %v718, %v951
  %v961 = vmul.f32 %v719, %v951
  %v962 = vmul.f32 %v720, %v951
  %v963 = vmul.f32 %v721, %v951
  %v964 = vmul.f32 %v722, %v951
  %v965 = vmul.f32 %v723, %v951
  %v966 = vmul.f32 %v724, %v951
  %v967 = vmul.f32 %v725, %v951
  %v968 = vmul.f32 %v726, %v951
  %v969 = vmul.f32 %v727, %v951
  %v970 = vmul.f32 %v728, %v951
  %v971 = vmul.f32 %v729, %v951
  %v972 = vmul.f32 %v730, %v951
  %v973 = vmul.f32 %v731, %v951
  %v974 = vmul.f32 %v732, %v951
  %v975 = vmul.f32 %v733, %v951
  %v976 = vmul.f32 %v734, %v951
  %v977 = vmul.f32 %v735, %v951
  %v978 = vmul.f32 %v736, %v951
  %v979 = vmul.f32 %v737, %v951
  %v980 = vmul.f32 %v738, %v951
  %v981 = vmul.f32 %v739, %v951
  %v982 = vmul.f32 %v740, %v951
  %v983 = vmul.f32 %v741, %v951
  %v984 = vadd.f32 %v916, %v952
  %v985 = vadd.f32 %v917, %v953
  %v986 = vadd.f32 %v918, %v954
  %v987 = vadd.f32 %v919, %v955
  %v988 = vadd.f32 %v920, %v956
  %v989 = vadd.f32 %v921, %v957
  %v990 = vadd.f32 %v922, %v958
  %v991 = vadd.f32 %v923, %v959
  %v992 = vadd.f32 %v924, %v960
  %v993 = vadd.f32 %v925, %v961
  %v994 = vadd.f32 %v926, %v962
  %v995 = vadd.f32 %v927, %v963
  %v996 = vadd.f32 %v928, %v964
  %v997 = vadd.f32 %v929, %v965
  %v998 = vadd.f32 %v930, %v966
  %v999 = vadd.f32 %v931, %v967
  %v1000 = vadd.f32 %v932, %v968
  %v1001 = vadd.f32 %v933, %v969
  %v1002 = vadd.f32 %v934, %v970
  %v1003 = vadd.f32 %v935, %v971
  %v1004 = vadd.f32 %v936, %v972
  %v1005 = vadd.f32 %v937, %v973
  %v1006 = vadd.f32 %v938, %v974
  %v1007 = vadd.f32 %v939, %v975
  %v1008 = vadd.f32 %v940, %v976
  %v1009 = vadd.f32 %v941, %v977
  %v1010 = vadd.f32 %v942, %v978
  %v1011 = vadd.f32 %v943, %v979
  %v1012 = vadd.f32 %v944, %v980
  %v1013 = vadd.f32 %v945, %v981
  %v1014 = vadd.f32 %v946, %v982
  %v1015 = vadd.f32 %v947, %v983
  %v1016 = vlaneseq
  %v1017 = vshrl.u32 %v1016, 7
  %v1018 = vsub.s32 1, %v1017
  %v1019 = vrot.slane %v240, %v1018
  %v1020 = vmul.f32 %v712, %v1019
  %v1021 = vmul.f32 %v713, %v1019
  %v1022 = vmul.f32 %v714, %v1019
  %v1023 = vmul.f32 %v715, %v1019
  %v1024 = vmul.f32 %v716, %v1019
  %v1025 = vmul.f32 %v717, %v1019
  %v1026 = vmul.f32 %v718, %v1019
  %v1027 = vmul.f32 %v719, %v1019
  %v1028 = vmul.f32 %v720, %v1019
  %v1029 = vmul.f32 %v721, %v1019
  %v1030 = vmul.f32 %v722, %v1019
  %v1031 = vmul.f32 %v723, %v1019
  %v1032 = vmul.f32 %v724, %v1019
  %v1033 = vmul.f32 %v725, %v1019
  %v1034 = vmul.f32 %v726, %v1019
  %v1035 = vmul.f32 %v727, %v1019
  %v1036 = vmul.f32 %v728, %v1019
  %v1037 = vmul.f32 %v729, %v1019
  %v1038 = vmul.f32 %v730, %v1019
  %v1039 = vmul.f32 %v731, %v1019
  %v1040 = vmul.f32 %v732, %v1019
  %v1041 = vmul.f32 %v733, %v1019
  %v1042 = vmul.f32 %v734, %v1019
  %v1043 = vmul.f32 %v735, %v1019
  %v1044 = vmul.f32 %v736, %v1019
  %v1045 = vmul.f32 %v737, %v1019
  %v1046 = vmul.f32 %v738, %v1019
  %v1047 = vmul.f32 %v739, %v1019
  %v1048 = vmul.f32 %v740, %v1019
  %v1049 = vmul.f32 %v741, %v1019
  %v1050 = vmul.f32 %v742, %v1019
  %v1051 = vmul.f32 %v743, %v1019
  %v1052 = vadd.f32 %v984, %v1020
  %v1053 = vadd.f32 %v985, %v1021
  %v1054 = vadd.f32 %v986, %v1022
  %v1055 = vadd.f32 %v987, %v1023
  %v1056 = vadd.f32 %v988, %v1024
  %v1057 = vadd.f32 %v989, %v1025
  %v1058 = vadd.f32 %v990, %v1026
  %v1059 = vadd.f32 %v991, %v1027
  %v1060 = vadd.f32 %v992, %v1028
  %v1061 = vadd.f32 %v993, %v1029
  %v1062 = vadd.f32 %v994, %v1030
  %v1063 = vadd.f32 %v995, %v1031
  %v1064 = vadd.f32 %v996, %v1032
  %v1065 = vadd.f32 %v997, %v1033
  %v1066 = vadd.f32 %v998, %v1034
  %v1067 = vadd.f32 %v999, %v1035
  %v1068 = vadd.f32 %v1000, %v1036
  %v1069 = vadd.f32 %v1001, %v1037
  %v1070 = vadd.f32 %v1002, %v1038
  %v1071 = vadd.f32 %v1003, %v1039
  %v1072 = vadd.f32 %v1004, %v1040
  %v1073 = vadd.f32 %v1005, %v1041
  %v1074 = vadd.f32 %v1006, %v1042
  %v1075 = vadd.f32 %v1007, %v1043
  %v1076 = vadd.f32 %v1008, %v1044
  %v1077 = vadd.f32 %v1009, %v1045
  %v1078 = vadd.f32 %v1010, %v1046
  %v1079 = vadd.f32 %v1011, %v1047
  %v1080 = vadd.f32 %v1012, %v1048
  %v1081 = vadd.f32 %v1013, %v1049
  %v1082 = vadd.f32 %v1014, %v1050
  %v1083 = vadd.f32 %v1015, %v1051
  %v1084 = vld [vmem:[%s323 + $0x8] sm:$0xff]
  %v1085 = vld [vmem:[%s323 + $0x10] sm:$0xff]
  %v1086 = vld [vmem:[%s323 + $0x28] sm:$0xff]
  %v1087 = vld [vmem:[%s323 + $0x30] sm:$0xff]
  %v1088 = vld [vmem:[%s323 + $0x48] sm:$0xff]
  %v1089 = vld [vmem:[%s323 + $0x50] sm:$0xff]
  %v1090 = vld [vmem:[%s323 + $0x68] sm:$0xff]
  %v1091 = vld [vmem:[%s323 + $0x70] sm:$0xff]
  %v1092 = vld [vmem:[%s323 + $0x88] sm:$0xff]
  %v1093 = vld [vmem:[%s323 + $0x90] sm:$0xff]
  %v1094 = vld [vmem:[%s323 + $0xa8] sm:$0xff]
  %v1095 = vld [vmem:[%s323 + $0xb0] sm:$0xff]
  %v1096 = vld [vmem:[%s323 + $0xc8] sm:$0xff]
  %v1097 = vld [vmem:[%s323 + $0xd0] sm:$0xff]
  %v1098 = vld [vmem:[%s323 + $0xe8] sm:$0xff]
  %v1099 = vld [vmem:[%s323 + $0xf0] sm:$0xff]
  %v1100 = vld [vmem:[%s323 + $0x108] sm:$0xff]
  %v1101 = vld [vmem:[%s323 + $0x110] sm:$0xff]
  %v1102 = vld [vmem:[%s323 + $0x128] sm:$0xff]
  %v1103 = vld [vmem:[%s323 + $0x130] sm:$0xff]
  %v1104 = vld [vmem:[%s323 + $0x148] sm:$0xff]
  %v1105 = vld [vmem:[%s323 + $0x150] sm:$0xff]
  %v1106 = vld [vmem:[%s323 + $0x168] sm:$0xff]
  %v1107 = vld [vmem:[%s323 + $0x170] sm:$0xff]
  %v1108 = vld [vmem:[%s323 + $0x188] sm:$0xff]
  %v1109 = vld [vmem:[%s323 + $0x190] sm:$0xff]
  %v1110 = vld [vmem:[%s323 + $0x1a8] sm:$0xff]
  %v1111 = vld [vmem:[%s323 + $0x1b0] sm:$0xff]
  %v1112 = vld [vmem:[%s323 + $0x1c8] sm:$0xff]
  %v1113 = vld [vmem:[%s323 + $0x1d0] sm:$0xff]
  %v1114 = vld [vmem:[%s323 + $0x1e8] sm:$0xff]
  %v1115 = vld [vmem:[%s323 + $0x1f0] sm:$0xff]
  %v1116 = vld [vmem:[%s323 + $0x208] sm:$0xff]
  %v1117 = vld [vmem:[%s323 + $0x210] sm:$0xff]
  %v1118 = vld [vmem:[%s323 + $0x228] sm:$0xff]
  %v1119 = vld [vmem:[%s323 + $0x230] sm:$0xff]
  %v1120 = vld [vmem:[%s323 + $0x248] sm:$0xff]
  %v1121 = vld [vmem:[%s323 + $0x250] sm:$0xff]
  %v1122 = vld [vmem:[%s323 + $0x268] sm:$0xff]
  %v1123 = vld [vmem:[%s323 + $0x270] sm:$0xff]
  %v1124 = vlaneseq
  %v1125 = vshrl.u32 %v1124, 7
  %v1126 = vsub.s32 2, %v1125
  %v1127 = vrot.slane %v236, %v1126
  %v1128 = vmul.f32 %v1084, %v1127
  %v1129 = vmul.f32 %v1085, %v1127
  %v1130 = vmul.f32 %v1086, %v1127
  %v1131 = vmul.f32 %v1087, %v1127
  %v1132 = vmul.f32 %v1088, %v1127
  %v1133 = vmul.f32 %v1089, %v1127
  %v1134 = vmul.f32 %v1090, %v1127
  %v1135 = vmul.f32 %v1091, %v1127
  %v1136 = vmul.f32 %v1092, %v1127
  %v1137 = vmul.f32 %v1093, %v1127
  %v1138 = vmul.f32 %v1094, %v1127
  %v1139 = vmul.f32 %v1095, %v1127
  %v1140 = vmul.f32 %v1096, %v1127
  %v1141 = vmul.f32 %v1097, %v1127
  %v1142 = vmul.f32 %v1098, %v1127
  %v1143 = vmul.f32 %v1099, %v1127
  %v1144 = vmul.f32 %v1100, %v1127
  %v1145 = vmul.f32 %v1101, %v1127
  %v1146 = vmul.f32 %v1102, %v1127
  %v1147 = vmul.f32 %v1103, %v1127
  %v1148 = vmul.f32 %v1104, %v1127
  %v1149 = vmul.f32 %v1105, %v1127
  %v1150 = vmul.f32 %v1106, %v1127
  %v1151 = vmul.f32 %v1107, %v1127
  %v1152 = vmul.f32 %v1108, %v1127
  %v1153 = vmul.f32 %v1109, %v1127
  %v1154 = vmul.f32 %v1110, %v1127
  %v1155 = vmul.f32 %v1111, %v1127
  %v1156 = vmul.f32 %v1112, %v1127
  %v1157 = vmul.f32 %v1113, %v1127
  %v1158 = vmul.f32 %v1114, %v1127
  %v1159 = vmul.f32 %v1115, %v1127
  %v1160 = vadd.f32 %v1052, %v1128
  %v1161 = vadd.f32 %v1053, %v1129
  %v1162 = vadd.f32 %v1054, %v1130
  %v1163 = vadd.f32 %v1055, %v1131
  %v1164 = vadd.f32 %v1056, %v1132
  %v1165 = vadd.f32 %v1057, %v1133
  %v1166 = vadd.f32 %v1058, %v1134
  %v1167 = vadd.f32 %v1059, %v1135
  %v1168 = vadd.f32 %v1060, %v1136
  %v1169 = vadd.f32 %v1061, %v1137
  %v1170 = vadd.f32 %v1062, %v1138
  %v1171 = vadd.f32 %v1063, %v1139
  %v1172 = vadd.f32 %v1064, %v1140
  %v1173 = vadd.f32 %v1065, %v1141
  %v1174 = vadd.f32 %v1066, %v1142
  %v1175 = vadd.f32 %v1067, %v1143
  %v1176 = vadd.f32 %v1068, %v1144
  %v1177 = vadd.f32 %v1069, %v1145
  %v1178 = vadd.f32 %v1070, %v1146
  %v1179 = vadd.f32 %v1071, %v1147
  %v1180 = vadd.f32 %v1072, %v1148
  %v1181 = vadd.f32 %v1073, %v1149
  %v1182 = vadd.f32 %v1074, %v1150
  %v1183 = vadd.f32 %v1075, %v1151
  %v1184 = vadd.f32 %v1076, %v1152
  %v1185 = vadd.f32 %v1077, %v1153
  %v1186 = vadd.f32 %v1078, %v1154
  %v1187 = vadd.f32 %v1079, %v1155
  %v1188 = vadd.f32 %v1080, %v1156
  %v1189 = vadd.f32 %v1081, %v1157
  %v1190 = vadd.f32 %v1082, %v1158
  %v1191 = vadd.f32 %v1083, %v1159
  %v1192 = vlaneseq
  %v1193 = vshrl.u32 %v1192, 7
  %v1194 = vsub.s32 2, %v1193
  %v1195 = vrot.slane %v237, %v1194
  %v1196 = vmul.f32 %v1086, %v1195
  %v1197 = vmul.f32 %v1087, %v1195
  %v1198 = vmul.f32 %v1088, %v1195
  %v1199 = vmul.f32 %v1089, %v1195
  %v1200 = vmul.f32 %v1090, %v1195
  %v1201 = vmul.f32 %v1091, %v1195
  %v1202 = vmul.f32 %v1092, %v1195
  %v1203 = vmul.f32 %v1093, %v1195
  %v1204 = vmul.f32 %v1094, %v1195
  %v1205 = vmul.f32 %v1095, %v1195
  %v1206 = vmul.f32 %v1096, %v1195
  %v1207 = vmul.f32 %v1097, %v1195
  %v1208 = vmul.f32 %v1098, %v1195
  %v1209 = vmul.f32 %v1099, %v1195
  %v1210 = vmul.f32 %v1100, %v1195
  %v1211 = vmul.f32 %v1101, %v1195
  %v1212 = vmul.f32 %v1102, %v1195
  %v1213 = vmul.f32 %v1103, %v1195
  %v1214 = vmul.f32 %v1104, %v1195
  %v1215 = vmul.f32 %v1105, %v1195
  %v1216 = vmul.f32 %v1106, %v1195
  %v1217 = vmul.f32 %v1107, %v1195
  %v1218 = vmul.f32 %v1108, %v1195
  %v1219 = vmul.f32 %v1109, %v1195
  %v1220 = vmul.f32 %v1110, %v1195
  %v1221 = vmul.f32 %v1111, %v1195
  %v1222 = vmul.f32 %v1112, %v1195
  %v1223 = vmul.f32 %v1113, %v1195
  %v1224 = vmul.f32 %v1114, %v1195
  %v1225 = vmul.f32 %v1115, %v1195
  %v1226 = vmul.f32 %v1116, %v1195
  %v1227 = vmul.f32 %v1117, %v1195
  %v1228 = vadd.f32 %v1160, %v1196
  %v1229 = vadd.f32 %v1161, %v1197
  %v1230 = vadd.f32 %v1162, %v1198
  %v1231 = vadd.f32 %v1163, %v1199
  %v1232 = vadd.f32 %v1164, %v1200
  %v1233 = vadd.f32 %v1165, %v1201
  %v1234 = vadd.f32 %v1166, %v1202
  %v1235 = vadd.f32 %v1167, %v1203
  %v1236 = vadd.f32 %v1168, %v1204
  %v1237 = vadd.f32 %v1169, %v1205
  %v1238 = vadd.f32 %v1170, %v1206
  %v1239 = vadd.f32 %v1171, %v1207
  %v1240 = vadd.f32 %v1172, %v1208
  %v1241 = vadd.f32 %v1173, %v1209
  %v1242 = vadd.f32 %v1174, %v1210
  %v1243 = vadd.f32 %v1175, %v1211
  %v1244 = vadd.f32 %v1176, %v1212
  %v1245 = vadd.f32 %v1177, %v1213
  %v1246 = vadd.f32 %v1178, %v1214
  %v1247 = vadd.f32 %v1179, %v1215
  %v1248 = vadd.f32 %v1180, %v1216
  %v1249 = vadd.f32 %v1181, %v1217
  %v1250 = vadd.f32 %v1182, %v1218
  %v1251 = vadd.f32 %v1183, %v1219
  %v1252 = vadd.f32 %v1184, %v1220
  %v1253 = vadd.f32 %v1185, %v1221
  %v1254 = vadd.f32 %v1186, %v1222
  %v1255 = vadd.f32 %v1187, %v1223
  %v1256 = vadd.f32 %v1188, %v1224
  %v1257 = vadd.f32 %v1189, %v1225
  %v1258 = vadd.f32 %v1190, %v1226
  %v1259 = vadd.f32 %v1191, %v1227
  %v1260 = vlaneseq
  %v1261 = vshrl.u32 %v1260, 7
  %v1262 = vsub.s32 2, %v1261
  %v1263 = vrot.slane %v238, %v1262
  %v1264 = vmul.f32 %v1088, %v1263
  %v1265 = vmul.f32 %v1089, %v1263
  %v1266 = vmul.f32 %v1090, %v1263
  %v1267 = vmul.f32 %v1091, %v1263
  %v1268 = vmul.f32 %v1092, %v1263
  %v1269 = vmul.f32 %v1093, %v1263
  %v1270 = vmul.f32 %v1094, %v1263
  %v1271 = vmul.f32 %v1095, %v1263
  %v1272 = vmul.f32 %v1096, %v1263
  %v1273 = vmul.f32 %v1097, %v1263
  %v1274 = vmul.f32 %v1098, %v1263
  %v1275 = vmul.f32 %v1099, %v1263
  %v1276 = vmul.f32 %v1100, %v1263
  %v1277 = vmul.f32 %v1101, %v1263
  %v1278 = vmul.f32 %v1102, %v1263
  %v1279 = vmul.f32 %v1103, %v1263
  %v1280 = vmul.f32 %v1104, %v1263
  %v1281 = vmul.f32 %v1105, %v1263
  %v1282 = vmul.f32 %v1106, %v1263
  %v1283 = vmul.f32 %v1107, %v1263
  %v1284 = vmul.f32 %v1108, %v1263
  %v1285 = vmul.f32 %v1109, %v1263
  %v1286 = vmul.f32 %v1110, %v1263
  %v1287 = vmul.f32 %v1111, %v1263
  %v1288 = vmul.f32 %v1112, %v1263
  %v1289 = vmul.f32 %v1113, %v1263
  %v1290 = vmul.f32 %v1114, %v1263
  %v1291 = vmul.f32 %v1115, %v1263
  %v1292 = vmul.f32 %v1116, %v1263
  %v1293 = vmul.f32 %v1117, %v1263
  %v1294 = vmul.f32 %v1118, %v1263
  %v1295 = vmul.f32 %v1119, %v1263
  %v1296 = vadd.f32 %v1228, %v1264
  %v1297 = vadd.f32 %v1229, %v1265
  %v1298 = vadd.f32 %v1230, %v1266
  %v1299 = vadd.f32 %v1231, %v1267
  %v1300 = vadd.f32 %v1232, %v1268
  %v1301 = vadd.f32 %v1233, %v1269
  %v1302 = vadd.f32 %v1234, %v1270
  %v1303 = vadd.f32 %v1235, %v1271
  %v1304 = vadd.f32 %v1236, %v1272
  %v1305 = vadd.f32 %v1237, %v1273
  %v1306 = vadd.f32 %v1238, %v1274
  %v1307 = vadd.f32 %v1239, %v1275
  %v1308 = vadd.f32 %v1240, %v1276
  %v1309 = vadd.f32 %v1241, %v1277
  %v1310 = vadd.f32 %v1242, %v1278
  %v1311 = vadd.f32 %v1243, %v1279
  %v1312 = vadd.f32 %v1244, %v1280
  %v1313 = vadd.f32 %v1245, %v1281
  %v1314 = vadd.f32 %v1246, %v1282
  %v1315 = vadd.f32 %v1247, %v1283
  %v1316 = vadd.f32 %v1248, %v1284
  %v1317 = vadd.f32 %v1249, %v1285
  %v1318 = vadd.f32 %v1250, %v1286
  %v1319 = vadd.f32 %v1251, %v1287
  %v1320 = vadd.f32 %v1252, %v1288
  %v1321 = vadd.f32 %v1253, %v1289
  %v1322 = vadd.f32 %v1254, %v1290
  %v1323 = vadd.f32 %v1255, %v1291
  %v1324 = vadd.f32 %v1256, %v1292
  %v1325 = vadd.f32 %v1257, %v1293
  %v1326 = vadd.f32 %v1258, %v1294
  %v1327 = vadd.f32 %v1259, %v1295
  %v1328 = vlaneseq
  %v1329 = vshrl.u32 %v1328, 7
  %v1330 = vsub.s32 2, %v1329
  %v1331 = vrot.slane %v239, %v1330
  %v1332 = vmul.f32 %v1090, %v1331
  %v1333 = vmul.f32 %v1091, %v1331
  %v1334 = vmul.f32 %v1092, %v1331
  %v1335 = vmul.f32 %v1093, %v1331
  %v1336 = vmul.f32 %v1094, %v1331
  %v1337 = vmul.f32 %v1095, %v1331
  %v1338 = vmul.f32 %v1096, %v1331
  %v1339 = vmul.f32 %v1097, %v1331
  %v1340 = vmul.f32 %v1098, %v1331
  %v1341 = vmul.f32 %v1099, %v1331
  %v1342 = vmul.f32 %v1100, %v1331
  %v1343 = vmul.f32 %v1101, %v1331
  %v1344 = vmul.f32 %v1102, %v1331
  %v1345 = vmul.f32 %v1103, %v1331
  %v1346 = vmul.f32 %v1104, %v1331
  %v1347 = vmul.f32 %v1105, %v1331
  %v1348 = vmul.f32 %v1106, %v1331
  %v1349 = vmul.f32 %v1107, %v1331
  %v1350 = vmul.f32 %v1108, %v1331
  %v1351 = vmul.f32 %v1109, %v1331
  %v1352 = vmul.f32 %v1110, %v1331
  %v1353 = vmul.f32 %v1111, %v1331
  %v1354 = vmul.f32 %v1112, %v1331
  %v1355 = vmul.f32 %v1113, %v1331
  %v1356 = vmul.f32 %v1114, %v1331
  %v1357 = vmul.f32 %v1115, %v1331
  %v1358 = vmul.f32 %v1116, %v1331
  %v1359 = vmul.f32 %v1117, %v1331
  %v1360 = vmul.f32 %v1118, %v1331
  %v1361 = vmul.f32 %v1119, %v1331
  %v1362 = vmul.f32 %v1120, %v1331
  %v1363 = vmul.f32 %v1121, %v1331
  %v1364 = vadd.f32 %v1296, %v1332
  %v1365 = vadd.f32 %v1297, %v1333
  %v1366 = vadd.f32 %v1298, %v1334
  %v1367 = vadd.f32 %v1299, %v1335
  %v1368 = vadd.f32 %v1300, %v1336
  %v1369 = vadd.f32 %v1301, %v1337
  %v1370 = vadd.f32 %v1302, %v1338
  %v1371 = vadd.f32 %v1303, %v1339
  %v1372 = vadd.f32 %v1304, %v1340
  %v1373 = vadd.f32 %v1305, %v1341
  %v1374 = vadd.f32 %v1306, %v1342
  %v1375 = vadd.f32 %v1307, %v1343
  %v1376 = vadd.f32 %v1308, %v1344
  %v1377 = vadd.f32 %v1309, %v1345
  %v1378 = vadd.f32 %v1310, %v1346
  %v1379 = vadd.f32 %v1311, %v1347
  %v1380 = vadd.f32 %v1312, %v1348
  %v1381 = vadd.f32 %v1313, %v1349
  %v1382 = vadd.f32 %v1314, %v1350
  %v1383 = vadd.f32 %v1315, %v1351
  %v1384 = vadd.f32 %v1316, %v1352
  %v1385 = vadd.f32 %v1317, %v1353
  %v1386 = vadd.f32 %v1318, %v1354
  %v1387 = vadd.f32 %v1319, %v1355
  %v1388 = vadd.f32 %v1320, %v1356
  %v1389 = vadd.f32 %v1321, %v1357
  %v1390 = vadd.f32 %v1322, %v1358
  %v1391 = vadd.f32 %v1323, %v1359
  %v1392 = vadd.f32 %v1324, %v1360
  %v1393 = vadd.f32 %v1325, %v1361
  %v1394 = vadd.f32 %v1326, %v1362
  %v1395 = vadd.f32 %v1327, %v1363
  %v1396 = vlaneseq
  %v1397 = vshrl.u32 %v1396, 7
  %v1398 = vsub.s32 2, %v1397
  %v1399 = vrot.slane %v240, %v1398
  %v1400 = vmul.f32 %v1092, %v1399
  %v1401 = vmul.f32 %v1093, %v1399
  %v1402 = vmul.f32 %v1094, %v1399
  %v1403 = vmul.f32 %v1095, %v1399
  %v1404 = vmul.f32 %v1096, %v1399
  %v1405 = vmul.f32 %v1097, %v1399
  %v1406 = vmul.f32 %v1098, %v1399
  %v1407 = vmul.f32 %v1099, %v1399
  %v1408 = vmul.f32 %v1100, %v1399
  %v1409 = vmul.f32 %v1101, %v1399
  %v1410 = vmul.f32 %v1102, %v1399
  %v1411 = vmul.f32 %v1103, %v1399
  %v1412 = vmul.f32 %v1104, %v1399
  %v1413 = vmul.f32 %v1105, %v1399
  %v1414 = vmul.f32 %v1106, %v1399
  %v1415 = vmul.f32 %v1107, %v1399
  %v1416 = vmul.f32 %v1108, %v1399
  %v1417 = vmul.f32 %v1109, %v1399
  %v1418 = vmul.f32 %v1110, %v1399
  %v1419 = vmul.f32 %v1111, %v1399
  %v1420 = vmul.f32 %v1112, %v1399
  %v1421 = vmul.f32 %v1113, %v1399
  %v1422 = vmul.f32 %v1114, %v1399
  %v1423 = vmul.f32 %v1115, %v1399
  %v1424 = vmul.f32 %v1116, %v1399
  %v1425 = vmul.f32 %v1117, %v1399
  %v1426 = vmul.f32 %v1118, %v1399
  %v1427 = vmul.f32 %v1119, %v1399
  %v1428 = vmul.f32 %v1120, %v1399
  %v1429 = vmul.f32 %v1121, %v1399
  %v1430 = vmul.f32 %v1122, %v1399
  %v1431 = vmul.f32 %v1123, %v1399
  %v1432 = vadd.f32 %v1364, %v1400
  %v1433 = vadd.f32 %v1365, %v1401
  %v1434 = vadd.f32 %v1366, %v1402
  %v1435 = vadd.f32 %v1367, %v1403
  %v1436 = vadd.f32 %v1368, %v1404
  %v1437 = vadd.f32 %v1369, %v1405
  %v1438 = vadd.f32 %v1370, %v1406
  %v1439 = vadd.f32 %v1371, %v1407
  %v1440 = vadd.f32 %v1372, %v1408
  %v1441 = vadd.f32 %v1373, %v1409
  %v1442 = vadd.f32 %v1374, %v1410
  %v1443 = vadd.f32 %v1375, %v1411
  %v1444 = vadd.f32 %v1376, %v1412
  %v1445 = vadd.f32 %v1377, %v1413
  %v1446 = vadd.f32 %v1378, %v1414
  %v1447 = vadd.f32 %v1379, %v1415
  %v1448 = vadd.f32 %v1380, %v1416
  %v1449 = vadd.f32 %v1381, %v1417
  %v1450 = vadd.f32 %v1382, %v1418
  %v1451 = vadd.f32 %v1383, %v1419
  %v1452 = vadd.f32 %v1384, %v1420
  %v1453 = vadd.f32 %v1385, %v1421
  %v1454 = vadd.f32 %v1386, %v1422
  %v1455 = vadd.f32 %v1387, %v1423
  %v1456 = vadd.f32 %v1388, %v1424
  %v1457 = vadd.f32 %v1389, %v1425
  %v1458 = vadd.f32 %v1390, %v1426
  %v1459 = vadd.f32 %v1391, %v1427
  %v1460 = vadd.f32 %v1392, %v1428
  %v1461 = vadd.f32 %v1393, %v1429
  %v1462 = vadd.f32 %v1394, %v1430
  %v1463 = vadd.f32 %v1395, %v1431
  %v1464 = vld [vmem:[%s323 + $0x9] sm:$0xff]
  %v1465 = vld [vmem:[%s323 + $0x11] sm:$0xff]
  %v1466 = vld [vmem:[%s323 + $0x29] sm:$0xff]
  %v1467 = vld [vmem:[%s323 + $0x31] sm:$0xff]
  %v1468 = vld [vmem:[%s323 + $0x49] sm:$0xff]
  %v1469 = vld [vmem:[%s323 + $0x51] sm:$0xff]
  %v1470 = vld [vmem:[%s323 + $0x69] sm:$0xff]
  %v1471 = vld [vmem:[%s323 + $0x71] sm:$0xff]
  %v1472 = vld [vmem:[%s323 + $0x89] sm:$0xff]
  %v1473 = vld [vmem:[%s323 + $0x91] sm:$0xff]
  %v1474 = vld [vmem:[%s323 + $0xa9] sm:$0xff]
  %v1475 = vld [vmem:[%s323 + $0xb1] sm:$0xff]
  %v1476 = vld [vmem:[%s323 + $0xc9] sm:$0xff]
  %v1477 = vld [vmem:[%s323 + $0xd1] sm:$0xff]
  %v1478 = vld [vmem:[%s323 + $0xe9] sm:$0xff]
  %v1479 = vld [vmem:[%s323 + $0xf1] sm:$0xff]
  %v1480 = vld [vmem:[%s323 + $0x109] sm:$0xff]
  %v1481 = vld [vmem:[%s323 + $0x111] sm:$0xff]
  %v1482 = vld [vmem:[%s323 + $0x129] sm:$0xff]
  %v1483 = vld [vmem:[%s323 + $0x131] sm:$0xff]
  %v1484 = vld [vmem:[%s323 + $0x149] sm:$0xff]
  %v1485 = vld [vmem:[%s323 + $0x151] sm:$0xff]
  %v1486 = vld [vmem:[%s323 + $0x169] sm:$0xff]
  %v1487 = vld [vmem:[%s323 + $0x171] sm:$0xff]
  %v1488 = vld [vmem:[%s323 + $0x189] sm:$0xff]
  %v1489 = vld [vmem:[%s323 + $0x191] sm:$0xff]
  %v1490 = vld [vmem:[%s323 + $0x1a9] sm:$0xff]
  %v1491 = vld [vmem:[%s323 + $0x1b1] sm:$0xff]
  %v1492 = vld [vmem:[%s323 + $0x1c9] sm:$0xff]
  %v1493 = vld [vmem:[%s323 + $0x1d1] sm:$0xff]
  %v1494 = vld [vmem:[%s323 + $0x1e9] sm:$0xff]
  %v1495 = vld [vmem:[%s323 + $0x1f1] sm:$0xff]
  %v1496 = vld [vmem:[%s323 + $0x209] sm:$0xff]
  %v1497 = vld [vmem:[%s323 + $0x211] sm:$0xff]
  %v1498 = vld [vmem:[%s323 + $0x229] sm:$0xff]
  %v1499 = vld [vmem:[%s323 + $0x231] sm:$0xff]
  %v1500 = vld [vmem:[%s323 + $0x249] sm:$0xff]
  %v1501 = vld [vmem:[%s323 + $0x251] sm:$0xff]
  %v1502 = vld [vmem:[%s323 + $0x269] sm:$0xff]
  %v1503 = vld [vmem:[%s323 + $0x271] sm:$0xff]
  %v1504 = vlaneseq
  %v1505 = vshrl.u32 %v1504, 7
  %v1506 = vsub.s32 3, %v1505
  %v1507 = vrot.slane %v236, %v1506
  %v1508 = vmul.f32 %v1464, %v1507
  %v1509 = vmul.f32 %v1465, %v1507
  %v1510 = vmul.f32 %v1466, %v1507
  %v1511 = vmul.f32 %v1467, %v1507
  %v1512 = vmul.f32 %v1468, %v1507
  %v1513 = vmul.f32 %v1469, %v1507
  %v1514 = vmul.f32 %v1470, %v1507
  %v1515 = vmul.f32 %v1471, %v1507
  %v1516 = vmul.f32 %v1472, %v1507
  %v1517 = vmul.f32 %v1473, %v1507
  %v1518 = vmul.f32 %v1474, %v1507
  %v1519 = vmul.f32 %v1475, %v1507
  %v1520 = vmul.f32 %v1476, %v1507
  %v1521 = vmul.f32 %v1477, %v1507
  %v1522 = vmul.f32 %v1478, %v1507
  %v1523 = vmul.f32 %v1479, %v1507
  %v1524 = vmul.f32 %v1480, %v1507
  %v1525 = vmul.f32 %v1481, %v1507
  %v1526 = vmul.f32 %v1482, %v1507
  %v1527 = vmul.f32 %v1483, %v1507
  %v1528 = vmul.f32 %v1484, %v1507
  %v1529 = vmul.f32 %v1485, %v1507
  %v1530 = vmul.f32 %v1486, %v1507
  %v1531 = vmul.f32 %v1487, %v1507
  %v1532 = vmul.f32 %v1488, %v1507
  %v1533 = vmul.f32 %v1489, %v1507
  %v1534 = vmul.f32 %v1490, %v1507
  %v1535 = vmul.f32 %v1491, %v1507
  %v1536 = vmul.f32 %v1492, %v1507
  %v1537 = vmul.f32 %v1493, %v1507
  %v1538 = vmul.f32 %v1494, %v1507
  %v1539 = vmul.f32 %v1495, %v1507
  %v1540 = vadd.f32 %v1432, %v1508
  %v1541 = vadd.f32 %v1433, %v1509
  %v1542 = vadd.f32 %v1434, %v1510
  %v1543 = vadd.f32 %v1435, %v1511
  %v1544 = vadd.f32 %v1436, %v1512
  %v1545 = vadd.f32 %v1437, %v1513
  %v1546 = vadd.f32 %v1438, %v1514
  %v1547 = vadd.f32 %v1439, %v1515
  %v1548 = vadd.f32 %v1440, %v1516
  %v1549 = vadd.f32 %v1441, %v1517
  %v1550 = vadd.f32 %v1442, %v1518
  %v1551 = vadd.f32 %v1443, %v1519
  %v1552 = vadd.f32 %v1444, %v1520
  %v1553 = vadd.f32 %v1445, %v1521
  %v1554 = vadd.f32 %v1446, %v1522
  %v1555 = vadd.f32 %v1447, %v1523
  %v1556 = vadd.f32 %v1448, %v1524
  %v1557 = vadd.f32 %v1449, %v1525
  %v1558 = vadd.f32 %v1450, %v1526
  %v1559 = vadd.f32 %v1451, %v1527
  %v1560 = vadd.f32 %v1452, %v1528
  %v1561 = vadd.f32 %v1453, %v1529
  %v1562 = vadd.f32 %v1454, %v1530
  %v1563 = vadd.f32 %v1455, %v1531
  %v1564 = vadd.f32 %v1456, %v1532
  %v1565 = vadd.f32 %v1457, %v1533
  %v1566 = vadd.f32 %v1458, %v1534
  %v1567 = vadd.f32 %v1459, %v1535
  %v1568 = vadd.f32 %v1460, %v1536
  %v1569 = vadd.f32 %v1461, %v1537
  %v1570 = vadd.f32 %v1462, %v1538
  %v1571 = vadd.f32 %v1463, %v1539
  %v1572 = vlaneseq
  %v1573 = vshrl.u32 %v1572, 7
  %v1574 = vsub.s32 3, %v1573
  %v1575 = vrot.slane %v237, %v1574
  %v1576 = vmul.f32 %v1466, %v1575
  %v1577 = vmul.f32 %v1467, %v1575
  %v1578 = vmul.f32 %v1468, %v1575
  %v1579 = vmul.f32 %v1469, %v1575
  %v1580 = vmul.f32 %v1470, %v1575
  %v1581 = vmul.f32 %v1471, %v1575
  %v1582 = vmul.f32 %v1472, %v1575
  %v1583 = vmul.f32 %v1473, %v1575
  %v1584 = vmul.f32 %v1474, %v1575
  %v1585 = vmul.f32 %v1475, %v1575
  %v1586 = vmul.f32 %v1476, %v1575
  %v1587 = vmul.f32 %v1477, %v1575
  %v1588 = vmul.f32 %v1478, %v1575
  %v1589 = vmul.f32 %v1479, %v1575
  %v1590 = vmul.f32 %v1480, %v1575
  %v1591 = vmul.f32 %v1481, %v1575
  %v1592 = vmul.f32 %v1482, %v1575
  %v1593 = vmul.f32 %v1483, %v1575
  %v1594 = vmul.f32 %v1484, %v1575
  %v1595 = vmul.f32 %v1485, %v1575
  %v1596 = vmul.f32 %v1486, %v1575
  %v1597 = vmul.f32 %v1487, %v1575
  %v1598 = vmul.f32 %v1488, %v1575
  %v1599 = vmul.f32 %v1489, %v1575
  %v1600 = vmul.f32 %v1490, %v1575
  %v1601 = vmul.f32 %v1491, %v1575
  %v1602 = vmul.f32 %v1492, %v1575
  %v1603 = vmul.f32 %v1493, %v1575
  %v1604 = vmul.f32 %v1494, %v1575
  %v1605 = vmul.f32 %v1495, %v1575
  %v1606 = vmul.f32 %v1496, %v1575
  %v1607 = vmul.f32 %v1497, %v1575
  %v1608 = vadd.f32 %v1540, %v1576
  %v1609 = vadd.f32 %v1541, %v1577
  %v1610 = vadd.f32 %v1542, %v1578
  %v1611 = vadd.f32 %v1543, %v1579
  %v1612 = vadd.f32 %v1544, %v1580
  %v1613 = vadd.f32 %v1545, %v1581
  %v1614 = vadd.f32 %v1546, %v1582
  %v1615 = vadd.f32 %v1547, %v1583
  %v1616 = vadd.f32 %v1548, %v1584
  %v1617 = vadd.f32 %v1549, %v1585
  %v1618 = vadd.f32 %v1550, %v1586
  %v1619 = vadd.f32 %v1551, %v1587
  %v1620 = vadd.f32 %v1552, %v1588
  %v1621 = vadd.f32 %v1553, %v1589
  %v1622 = vadd.f32 %v1554, %v1590
  %v1623 = vadd.f32 %v1555, %v1591
  %v1624 = vadd.f32 %v1556, %v1592
  %v1625 = vadd.f32 %v1557, %v1593
  %v1626 = vadd.f32 %v1558, %v1594
  %v1627 = vadd.f32 %v1559, %v1595
  %v1628 = vadd.f32 %v1560, %v1596
  %v1629 = vadd.f32 %v1561, %v1597
  %v1630 = vadd.f32 %v1562, %v1598
  %v1631 = vadd.f32 %v1563, %v1599
  %v1632 = vadd.f32 %v1564, %v1600
  %v1633 = vadd.f32 %v1565, %v1601
  %v1634 = vadd.f32 %v1566, %v1602
  %v1635 = vadd.f32 %v1567, %v1603
  %v1636 = vadd.f32 %v1568, %v1604
  %v1637 = vadd.f32 %v1569, %v1605
  %v1638 = vadd.f32 %v1570, %v1606
  %v1639 = vadd.f32 %v1571, %v1607
  %v1640 = vlaneseq
  %v1641 = vshrl.u32 %v1640, 7
  %v1642 = vsub.s32 3, %v1641
  %v1643 = vrot.slane %v238, %v1642
  %v1644 = vmul.f32 %v1468, %v1643
  %v1645 = vmul.f32 %v1469, %v1643
  %v1646 = vmul.f32 %v1470, %v1643
  %v1647 = vmul.f32 %v1471, %v1643
  %v1648 = vmul.f32 %v1472, %v1643
  %v1649 = vmul.f32 %v1473, %v1643
  %v1650 = vmul.f32 %v1474, %v1643
  %v1651 = vmul.f32 %v1475, %v1643
  %v1652 = vmul.f32 %v1476, %v1643
  %v1653 = vmul.f32 %v1477, %v1643
  %v1654 = vmul.f32 %v1478, %v1643
  %v1655 = vmul.f32 %v1479, %v1643
  %v1656 = vmul.f32 %v1480, %v1643
  %v1657 = vmul.f32 %v1481, %v1643
  %v1658 = vmul.f32 %v1482, %v1643
  %v1659 = vmul.f32 %v1483, %v1643
  %v1660 = vmul.f32 %v1484, %v1643
  %v1661 = vmul.f32 %v1485, %v1643
  %v1662 = vmul.f32 %v1486, %v1643
  %v1663 = vmul.f32 %v1487, %v1643
  %v1664 = vmul.f32 %v1488, %v1643
  %v1665 = vmul.f32 %v1489, %v1643
  %v1666 = vmul.f32 %v1490, %v1643
  %v1667 = vmul.f32 %v1491, %v1643
  %v1668 = vmul.f32 %v1492, %v1643
  %v1669 = vmul.f32 %v1493, %v1643
  %v1670 = vmul.f32 %v1494, %v1643
  %v1671 = vmul.f32 %v1495, %v1643
  %v1672 = vmul.f32 %v1496, %v1643
  %v1673 = vmul.f32 %v1497, %v1643
  %v1674 = vmul.f32 %v1498, %v1643
  %v1675 = vmul.f32 %v1499, %v1643
  %v1676 = vadd.f32 %v1608, %v1644
  %v1677 = vadd.f32 %v1609, %v1645
  %v1678 = vadd.f32 %v1610, %v1646
  %v1679 = vadd.f32 %v1611, %v1647
  %v1680 = vadd.f32 %v1612, %v1648
  %v1681 = vadd.f32 %v1613, %v1649
  %v1682 = vadd.f32 %v1614, %v1650
  %v1683 = vadd.f32 %v1615, %v1651
  %v1684 = vadd.f32 %v1616, %v1652
  %v1685 = vadd.f32 %v1617, %v1653
  %v1686 = vadd.f32 %v1618, %v1654
  %v1687 = vadd.f32 %v1619, %v1655
  %v1688 = vadd.f32 %v1620, %v1656
  %v1689 = vadd.f32 %v1621, %v1657
  %v1690 = vadd.f32 %v1622, %v1658
  %v1691 = vadd.f32 %v1623, %v1659
  %v1692 = vadd.f32 %v1624, %v1660
  %v1693 = vadd.f32 %v1625, %v1661
  %v1694 = vadd.f32 %v1626, %v1662
  %v1695 = vadd.f32 %v1627, %v1663
  %v1696 = vadd.f32 %v1628, %v1664
  %v1697 = vadd.f32 %v1629, %v1665
  %v1698 = vadd.f32 %v1630, %v1666
  %v1699 = vadd.f32 %v1631, %v1667
  %v1700 = vadd.f32 %v1632, %v1668
  %v1701 = vadd.f32 %v1633, %v1669
  %v1702 = vadd.f32 %v1634, %v1670
  %v1703 = vadd.f32 %v1635, %v1671
  %v1704 = vadd.f32 %v1636, %v1672
  %v1705 = vadd.f32 %v1637, %v1673
  %v1706 = vadd.f32 %v1638, %v1674
  %v1707 = vadd.f32 %v1639, %v1675
  %v1708 = vlaneseq
  %v1709 = vshrl.u32 %v1708, 7
  %v1710 = vsub.s32 3, %v1709
  %v1711 = vrot.slane %v239, %v1710
  %v1712 = vmul.f32 %v1470, %v1711
  %v1713 = vmul.f32 %v1471, %v1711
  %v1714 = vmul.f32 %v1472, %v1711
  %v1715 = vmul.f32 %v1473, %v1711
  %v1716 = vmul.f32 %v1474, %v1711
  %v1717 = vmul.f32 %v1475, %v1711
  %v1718 = vmul.f32 %v1476, %v1711
  %v1719 = vmul.f32 %v1477, %v1711
  %v1720 = vmul.f32 %v1478, %v1711
  %v1721 = vmul.f32 %v1479, %v1711
  %v1722 = vmul.f32 %v1480, %v1711
  %v1723 = vmul.f32 %v1481, %v1711
  %v1724 = vmul.f32 %v1482, %v1711
  %v1725 = vmul.f32 %v1483, %v1711
  %v1726 = vmul.f32 %v1484, %v1711
  %v1727 = vmul.f32 %v1485, %v1711
  %v1728 = vmul.f32 %v1486, %v1711
  %v1729 = vmul.f32 %v1487, %v1711
  %v1730 = vmul.f32 %v1488, %v1711
  %v1731 = vmul.f32 %v1489, %v1711
  %v1732 = vmul.f32 %v1490, %v1711
  %v1733 = vmul.f32 %v1491, %v1711
  %v1734 = vmul.f32 %v1492, %v1711
  %v1735 = vmul.f32 %v1493, %v1711
  %v1736 = vmul.f32 %v1494, %v1711
  %v1737 = vmul.f32 %v1495, %v1711
  %v1738 = vmul.f32 %v1496, %v1711
  %v1739 = vmul.f32 %v1497, %v1711
  %v1740 = vmul.f32 %v1498, %v1711
  %v1741 = vmul.f32 %v1499, %v1711
  %v1742 = vmul.f32 %v1500, %v1711
  %v1743 = vmul.f32 %v1501, %v1711
  %v1744 = vadd.f32 %v1676, %v1712
  %v1745 = vadd.f32 %v1677, %v1713
  %v1746 = vadd.f32 %v1678, %v1714
  %v1747 = vadd.f32 %v1679, %v1715
  %v1748 = vadd.f32 %v1680, %v1716
  %v1749 = vadd.f32 %v1681, %v1717
  %v1750 = vadd.f32 %v1682, %v1718
  %v1751 = vadd.f32 %v1683, %v1719
  %v1752 = vadd.f32 %v1684, %v1720
  %v1753 = vadd.f32 %v1685, %v1721
  %v1754 = vadd.f32 %v1686, %v1722
  %v1755 = vadd.f32 %v1687, %v1723
  %v1756 = vadd.f32 %v1688, %v1724
  %v1757 = vadd.f32 %v1689, %v1725
  %v1758 = vadd.f32 %v1690, %v1726
  %v1759 = vadd.f32 %v1691, %v1727
  %v1760 = vadd.f32 %v1692, %v1728
  %v1761 = vadd.f32 %v1693, %v1729
  %v1762 = vadd.f32 %v1694, %v1730
  %v1763 = vadd.f32 %v1695, %v1731
  %v1764 = vadd.f32 %v1696, %v1732
  %v1765 = vadd.f32 %v1697, %v1733
  %v1766 = vadd.f32 %v1698, %v1734
  %v1767 = vadd.f32 %v1699, %v1735
  %v1768 = vadd.f32 %v1700, %v1736
  %v1769 = vadd.f32 %v1701, %v1737
  %v1770 = vadd.f32 %v1702, %v1738
  %v1771 = vadd.f32 %v1703, %v1739
  %v1772 = vadd.f32 %v1704, %v1740
  %v1773 = vadd.f32 %v1705, %v1741
  %v1774 = vadd.f32 %v1706, %v1742
  %v1775 = vadd.f32 %v1707, %v1743
  %v1776 = vlaneseq
  %v1777 = vshrl.u32 %v1776, 7
  %v1778 = vsub.s32 3, %v1777
  %v1779 = vrot.slane %v240, %v1778
  %v1780 = vmul.f32 %v1472, %v1779
  %v1781 = vmul.f32 %v1473, %v1779
  %v1782 = vmul.f32 %v1474, %v1779
  %v1783 = vmul.f32 %v1475, %v1779
  %v1784 = vmul.f32 %v1476, %v1779
  %v1785 = vmul.f32 %v1477, %v1779
  %v1786 = vmul.f32 %v1478, %v1779
  %v1787 = vmul.f32 %v1479, %v1779
  %v1788 = vmul.f32 %v1480, %v1779
  %v1789 = vmul.f32 %v1481, %v1779
  %v1790 = vmul.f32 %v1482, %v1779
  %v1791 = vmul.f32 %v1483, %v1779
  %v1792 = vmul.f32 %v1484, %v1779
  %v1793 = vmul.f32 %v1485, %v1779
  %v1794 = vmul.f32 %v1486, %v1779
  %v1795 = vmul.f32 %v1487, %v1779
  %v1796 = vmul.f32 %v1488, %v1779
  %v1797 = vmul.f32 %v1489, %v1779
  %v1798 = vmul.f32 %v1490, %v1779
  %v1799 = vmul.f32 %v1491, %v1779
  %v1800 = vmul.f32 %v1492, %v1779
  %v1801 = vmul.f32 %v1493, %v1779
  %v1802 = vmul.f32 %v1494, %v1779
  %v1803 = vmul.f32 %v1495, %v1779
  %v1804 = vmul.f32 %v1496, %v1779
  %v1805 = vmul.f32 %v1497, %v1779
  %v1806 = vmul.f32 %v1498, %v1779
  %v1807 = vmul.f32 %v1499, %v1779
  %v1808 = vmul.f32 %v1500, %v1779
  %v1809 = vmul.f32 %v1501, %v1779
  %v1810 = vmul.f32 %v1502, %v1779
  %v1811 = vmul.f32 %v1503, %v1779
  %v1812 = vadd.f32 %v1744, %v1780
  %v1813 = vadd.f32 %v1745, %v1781
  %v1814 = vadd.f32 %v1746, %v1782
  %v1815 = vadd.f32 %v1747, %v1783
  %v1816 = vadd.f32 %v1748, %v1784
  %v1817 = vadd.f32 %v1749, %v1785
  %v1818 = vadd.f32 %v1750, %v1786
  %v1819 = vadd.f32 %v1751, %v1787
  %v1820 = vadd.f32 %v1752, %v1788
  %v1821 = vadd.f32 %v1753, %v1789
  %v1822 = vadd.f32 %v1754, %v1790
  %v1823 = vadd.f32 %v1755, %v1791
  %v1824 = vadd.f32 %v1756, %v1792
  %v1825 = vadd.f32 %v1757, %v1793
  %v1826 = vadd.f32 %v1758, %v1794
  %v1827 = vadd.f32 %v1759, %v1795
  %v1828 = vadd.f32 %v1760, %v1796
  %v1829 = vadd.f32 %v1761, %v1797
  %v1830 = vadd.f32 %v1762, %v1798
  %v1831 = vadd.f32 %v1763, %v1799
  %v1832 = vadd.f32 %v1764, %v1800
  %v1833 = vadd.f32 %v1765, %v1801
  %v1834 = vadd.f32 %v1766, %v1802
  %v1835 = vadd.f32 %v1767, %v1803
  %v1836 = vadd.f32 %v1768, %v1804
  %v1837 = vadd.f32 %v1769, %v1805
  %v1838 = vadd.f32 %v1770, %v1806
  %v1839 = vadd.f32 %v1771, %v1807
  %v1840 = vadd.f32 %v1772, %v1808
  %v1841 = vadd.f32 %v1773, %v1809
  %v1842 = vadd.f32 %v1774, %v1810
  %v1843 = vadd.f32 %v1775, %v1811
  %v1844 = vld [vmem:[%s323 + $0xa] sm:$0xff]
  %v1845 = vld [vmem:[%s323 + $0x12] sm:$0xff]
  %v1846 = vld [vmem:[%s323 + $0x2a] sm:$0xff]
  %v1847 = vld [vmem:[%s323 + $0x32] sm:$0xff]
  %v1848 = vld [vmem:[%s323 + $0x4a] sm:$0xff]
  %v1849 = vld [vmem:[%s323 + $0x52] sm:$0xff]
  %v1850 = vld [vmem:[%s323 + $0x6a] sm:$0xff]
  %v1851 = vld [vmem:[%s323 + $0x72] sm:$0xff]
  %v1852 = vld [vmem:[%s323 + $0x8a] sm:$0xff]
  %v1853 = vld [vmem:[%s323 + $0x92] sm:$0xff]
  %v1854 = vld [vmem:[%s323 + $0xaa] sm:$0xff]
  %v1855 = vld [vmem:[%s323 + $0xb2] sm:$0xff]
  %v1856 = vld [vmem:[%s323 + $0xca] sm:$0xff]
  %v1857 = vld [vmem:[%s323 + $0xd2] sm:$0xff]
  %v1858 = vld [vmem:[%s323 + $0xea] sm:$0xff]
  %v1859 = vld [vmem:[%s323 + $0xf2] sm:$0xff]
  %v1860 = vld [vmem:[%s323 + $0x10a] sm:$0xff]
  %v1861 = vld [vmem:[%s323 + $0x112] sm:$0xff]
  %v1862 = vld [vmem:[%s323 + $0x12a] sm:$0xff]
  %v1863 = vld [vmem:[%s323 + $0x132] sm:$0xff]
  %v1864 = vld [vmem:[%s323 + $0x14a] sm:$0xff]
  %v1865 = vld [vmem:[%s323 + $0x152] sm:$0xff]
  %v1866 = vld [vmem:[%s323 + $0x16a] sm:$0xff]
  %v1867 = vld [vmem:[%s323 + $0x172] sm:$0xff]
  %v1868 = vld [vmem:[%s323 + $0x18a] sm:$0xff]
  %v1869 = vld [vmem:[%s323 + $0x192] sm:$0xff]
  %v1870 = vld [vmem:[%s323 + $0x1aa] sm:$0xff]
  %v1871 = vld [vmem:[%s323 + $0x1b2] sm:$0xff]
  %v1872 = vld [vmem:[%s323 + $0x1ca] sm:$0xff]
  %v1873 = vld [vmem:[%s323 + $0x1d2] sm:$0xff]
  %v1874 = vld [vmem:[%s323 + $0x1ea] sm:$0xff]
  %v1875 = vld [vmem:[%s323 + $0x1f2] sm:$0xff]
  %v1876 = vld [vmem:[%s323 + $0x20a] sm:$0xff]
  %v1877 = vld [vmem:[%s323 + $0x212] sm:$0xff]
  %v1878 = vld [vmem:[%s323 + $0x22a] sm:$0xff]
  %v1879 = vld [vmem:[%s323 + $0x232] sm:$0xff]
  %v1880 = vld [vmem:[%s323 + $0x24a] sm:$0xff]
  %v1881 = vld [vmem:[%s323 + $0x252] sm:$0xff]
  %v1882 = vld [vmem:[%s323 + $0x26a] sm:$0xff]
  %v1883 = vld [vmem:[%s323 + $0x272] sm:$0xff]
  %v1884 = vlaneseq
  %v1885 = vshrl.u32 %v1884, 7
  %v1886 = vsub.s32 4, %v1885
  %v1887 = vrot.slane %v236, %v1886
  %v1888 = vmul.f32 %v1844, %v1887
  %v1889 = vmul.f32 %v1845, %v1887
  %v1890 = vmul.f32 %v1846, %v1887
  %v1891 = vmul.f32 %v1847, %v1887
  %v1892 = vmul.f32 %v1848, %v1887
  %v1893 = vmul.f32 %v1849, %v1887
  %v1894 = vmul.f32 %v1850, %v1887
  %v1895 = vmul.f32 %v1851, %v1887
  %v1896 = vmul.f32 %v1852, %v1887
  %v1897 = vmul.f32 %v1853, %v1887
  %v1898 = vmul.f32 %v1854, %v1887
  %v1899 = vmul.f32 %v1855, %v1887
  %v1900 = vmul.f32 %v1856, %v1887
  %v1901 = vmul.f32 %v1857, %v1887
  %v1902 = vmul.f32 %v1858, %v1887
  %v1903 = vmul.f32 %v1859, %v1887
  %v1904 = vmul.f32 %v1860, %v1887
  %v1905 = vmul.f32 %v1861, %v1887
  %v1906 = vmul.f32 %v1862, %v1887
  %v1907 = vmul.f32 %v1863, %v1887
  %v1908 = vmul.f32 %v1864, %v1887
  %v1909 = vmul.f32 %v1865, %v1887
  %v1910 = vmul.f32 %v1866, %v1887
  %v1911 = vmul.f32 %v1867, %v1887
  %v1912 = vmul.f32 %v1868, %v1887
  %v1913 = vmul.f32 %v1869, %v1887
  %v1914 = vmul.f32 %v1870, %v1887
  %v1915 = vmul.f32 %v1871, %v1887
  %v1916 = vmul.f32 %v1872, %v1887
  %v1917 = vmul.f32 %v1873, %v1887
  %v1918 = vmul.f32 %v1874, %v1887
  %v1919 = vmul.f32 %v1875, %v1887
  %v1920 = vadd.f32 %v1812, %v1888
  %v1921 = vadd.f32 %v1813, %v1889
  %v1922 = vadd.f32 %v1814, %v1890
  %v1923 = vadd.f32 %v1815, %v1891
  %v1924 = vadd.f32 %v1816, %v1892
  %v1925 = vadd.f32 %v1817, %v1893
  %v1926 = vadd.f32 %v1818, %v1894
  %v1927 = vadd.f32 %v1819, %v1895
  %v1928 = vadd.f32 %v1820, %v1896
  %v1929 = vadd.f32 %v1821, %v1897
  %v1930 = vadd.f32 %v1822, %v1898
  %v1931 = vadd.f32 %v1823, %v1899
  %v1932 = vadd.f32 %v1824, %v1900
  %v1933 = vadd.f32 %v1825, %v1901
  %v1934 = vadd.f32 %v1826, %v1902
  %v1935 = vadd.f32 %v1827, %v1903
  %v1936 = vadd.f32 %v1828, %v1904
  %v1937 = vadd.f32 %v1829, %v1905
  %v1938 = vadd.f32 %v1830, %v1906
  %v1939 = vadd.f32 %v1831, %v1907
  %v1940 = vadd.f32 %v1832, %v1908
  %v1941 = vadd.f32 %v1833, %v1909
  %v1942 = vadd.f32 %v1834, %v1910
  %v1943 = vadd.f32 %v1835, %v1911
  %v1944 = vadd.f32 %v1836, %v1912
  %v1945 = vadd.f32 %v1837, %v1913
  %v1946 = vadd.f32 %v1838, %v1914
  %v1947 = vadd.f32 %v1839, %v1915
  %v1948 = vadd.f32 %v1840, %v1916
  %v1949 = vadd.f32 %v1841, %v1917
  %v1950 = vadd.f32 %v1842, %v1918
  %v1951 = vadd.f32 %v1843, %v1919
  %v1952 = vlaneseq
  %v1953 = vshrl.u32 %v1952, 7
  %v1954 = vsub.s32 4, %v1953
  %v1955 = vrot.slane %v237, %v1954
  %v1956 = vmul.f32 %v1846, %v1955
  %v1957 = vmul.f32 %v1847, %v1955
  %v1958 = vmul.f32 %v1848, %v1955
  %v1959 = vmul.f32 %v1849, %v1955
  %v1960 = vmul.f32 %v1850, %v1955
  %v1961 = vmul.f32 %v1851, %v1955
  %v1962 = vmul.f32 %v1852, %v1955
  %v1963 = vmul.f32 %v1853, %v1955
  %v1964 = vmul.f32 %v1854, %v1955
  %v1965 = vmul.f32 %v1855, %v1955
  %v1966 = vmul.f32 %v1856, %v1955
  %v1967 = vmul.f32 %v1857, %v1955
  %v1968 = vmul.f32 %v1858, %v1955
  %v1969 = vmul.f32 %v1859, %v1955
  %v1970 = vmul.f32 %v1860, %v1955
  %v1971 = vmul.f32 %v1861, %v1955
  %v1972 = vmul.f32 %v1862, %v1955
  %v1973 = vmul.f32 %v1863, %v1955
  %v1974 = vmul.f32 %v1864, %v1955
  %v1975 = vmul.f32 %v1865, %v1955
  %v1976 = vmul.f32 %v1866, %v1955
  %v1977 = vmul.f32 %v1867, %v1955
  %v1978 = vmul.f32 %v1868, %v1955
  %v1979 = vmul.f32 %v1869, %v1955
  %v1980 = vmul.f32 %v1870, %v1955
  %v1981 = vmul.f32 %v1871, %v1955
  %v1982 = vmul.f32 %v1872, %v1955
  %v1983 = vmul.f32 %v1873, %v1955
  %v1984 = vmul.f32 %v1874, %v1955
  %v1985 = vmul.f32 %v1875, %v1955
  %v1986 = vmul.f32 %v1876, %v1955
  %v1987 = vmul.f32 %v1877, %v1955
  %v1988 = vadd.f32 %v1920, %v1956
  %v1989 = vadd.f32 %v1921, %v1957
  %v1990 = vadd.f32 %v1922, %v1958
  %v1991 = vadd.f32 %v1923, %v1959
  %v1992 = vadd.f32 %v1924, %v1960
  %v1993 = vadd.f32 %v1925, %v1961
  %v1994 = vadd.f32 %v1926, %v1962
  %v1995 = vadd.f32 %v1927, %v1963
  %v1996 = vadd.f32 %v1928, %v1964
  %v1997 = vadd.f32 %v1929, %v1965
  %v1998 = vadd.f32 %v1930, %v1966
  %v1999 = vadd.f32 %v1931, %v1967
  %v2000 = vadd.f32 %v1932, %v1968
  %v2001 = vadd.f32 %v1933, %v1969
  %v2002 = vadd.f32 %v1934, %v1970
  %v2003 = vadd.f32 %v1935, %v1971
  %v2004 = vadd.f32 %v1936, %v1972
  %v2005 = vadd.f32 %v1937, %v1973
  %v2006 = vadd.f32 %v1938, %v1974
  %v2007 = vadd.f32 %v1939, %v1975
  %v2008 = vadd.f32 %v1940, %v1976
  %v2009 = vadd.f32 %v1941, %v1977
  %v2010 = vadd.f32 %v1942, %v1978
  %v2011 = vadd.f32 %v1943, %v1979
  %v2012 = vadd.f32 %v1944, %v1980
  %v2013 = vadd.f32 %v1945, %v1981
  %v2014 = vadd.f32 %v1946, %v1982
  %v2015 = vadd.f32 %v1947, %v1983
  %v2016 = vadd.f32 %v1948, %v1984
  %v2017 = vadd.f32 %v1949, %v1985
  %v2018 = vadd.f32 %v1950, %v1986
  %v2019 = vadd.f32 %v1951, %v1987
  %v2020 = vlaneseq
  %v2021 = vshrl.u32 %v2020, 7
  %v2022 = vsub.s32 4, %v2021
  %v2023 = vrot.slane %v238, %v2022
  %v2024 = vmul.f32 %v1848, %v2023
  %v2025 = vmul.f32 %v1849, %v2023
  %v2026 = vmul.f32 %v1850, %v2023
  %v2027 = vmul.f32 %v1851, %v2023
  %v2028 = vmul.f32 %v1852, %v2023
  %v2029 = vmul.f32 %v1853, %v2023
  %v2030 = vmul.f32 %v1854, %v2023
  %v2031 = vmul.f32 %v1855, %v2023
  %v2032 = vmul.f32 %v1856, %v2023
  %v2033 = vmul.f32 %v1857, %v2023
  %v2034 = vmul.f32 %v1858, %v2023
  %v2035 = vmul.f32 %v1859, %v2023
  %v2036 = vmul.f32 %v1860, %v2023
  %v2037 = vmul.f32 %v1861, %v2023
  %v2038 = vmul.f32 %v1862, %v2023
  %v2039 = vmul.f32 %v1863, %v2023
  %v2040 = vmul.f32 %v1864, %v2023
  %v2041 = vmul.f32 %v1865, %v2023
  %v2042 = vmul.f32 %v1866, %v2023
  %v2043 = vmul.f32 %v1867, %v2023
  %v2044 = vmul.f32 %v1868, %v2023
  %v2045 = vmul.f32 %v1869, %v2023
  %v2046 = vmul.f32 %v1870, %v2023
  %v2047 = vmul.f32 %v1871, %v2023
  %v2048 = vmul.f32 %v1872, %v2023
  %v2049 = vmul.f32 %v1873, %v2023
  %v2050 = vmul.f32 %v1874, %v2023
  %v2051 = vmul.f32 %v1875, %v2023
  %v2052 = vmul.f32 %v1876, %v2023
  %v2053 = vmul.f32 %v1877, %v2023
  %v2054 = vmul.f32 %v1878, %v2023
  %v2055 = vmul.f32 %v1879, %v2023
  %v2056 = vadd.f32 %v1988, %v2024
  %v2057 = vadd.f32 %v1989, %v2025
  %v2058 = vadd.f32 %v1990, %v2026
  %v2059 = vadd.f32 %v1991, %v2027
  %v2060 = vadd.f32 %v1992, %v2028
  %v2061 = vadd.f32 %v1993, %v2029
  %v2062 = vadd.f32 %v1994, %v2030
  %v2063 = vadd.f32 %v1995, %v2031
  %v2064 = vadd.f32 %v1996, %v2032
  %v2065 = vadd.f32 %v1997, %v2033
  %v2066 = vadd.f32 %v1998, %v2034
  %v2067 = vadd.f32 %v1999, %v2035
  %v2068 = vadd.f32 %v2000, %v2036
  %v2069 = vadd.f32 %v2001, %v2037
  %v2070 = vadd.f32 %v2002, %v2038
  %v2071 = vadd.f32 %v2003, %v2039
  %v2072 = vadd.f32 %v2004, %v2040
  %v2073 = vadd.f32 %v2005, %v2041
  %v2074 = vadd.f32 %v2006, %v2042
  %v2075 = vadd.f32 %v2007, %v2043
  %v2076 = vadd.f32 %v2008, %v2044
  %v2077 = vadd.f32 %v2009, %v2045
  %v2078 = vadd.f32 %v2010, %v2046
  %v2079 = vadd.f32 %v2011, %v2047
  %v2080 = vadd.f32 %v2012, %v2048
  %v2081 = vadd.f32 %v2013, %v2049
  %v2082 = vadd.f32 %v2014, %v2050
  %v2083 = vadd.f32 %v2015, %v2051
  %v2084 = vadd.f32 %v2016, %v2052
  %v2085 = vadd.f32 %v2017, %v2053
  %v2086 = vadd.f32 %v2018, %v2054
  %v2087 = vadd.f32 %v2019, %v2055
  %v2088 = vlaneseq
  %v2089 = vshrl.u32 %v2088, 7
  %v2090 = vsub.s32 4, %v2089
  %v2091 = vrot.slane %v239, %v2090
  %v2092 = vmul.f32 %v1850, %v2091
  %v2093 = vmul.f32 %v1851, %v2091
  %v2094 = vmul.f32 %v1852, %v2091
  %v2095 = vmul.f32 %v1853, %v2091
  %v2096 = vmul.f32 %v1854, %v2091
  %v2097 = vmul.f32 %v1855, %v2091
  %v2098 = vmul.f32 %v1856, %v2091
  %v2099 = vmul.f32 %v1857, %v2091
  %v2100 = vmul.f32 %v1858, %v2091
  %v2101 = vmul.f32 %v1859, %v2091
  %v2102 = vmul.f32 %v1860, %v2091
  %v2103 = vmul.f32 %v1861, %v2091
  %v2104 = vmul.f32 %v1862, %v2091
  %v2105 = vmul.f32 %v1863, %v2091
  %v2106 = vmul.f32 %v1864, %v2091
  %v2107 = vmul.f32 %v1865, %v2091
  %v2108 = vmul.f32 %v1866, %v2091
  %v2109 = vmul.f32 %v1867, %v2091
  %v2110 = vmul.f32 %v1868, %v2091
  %v2111 = vmul.f32 %v1869, %v2091
  %v2112 = vmul.f32 %v1870, %v2091
  %v2113 = vmul.f32 %v1871, %v2091
  %v2114 = vmul.f32 %v1872, %v2091
  %v2115 = vmul.f32 %v1873, %v2091
  %v2116 = vmul.f32 %v1874, %v2091
  %v2117 = vmul.f32 %v1875, %v2091
  %v2118 = vmul.f32 %v1876, %v2091
  %v2119 = vmul.f32 %v1877, %v2091
  %v2120 = vmul.f32 %v1878, %v2091
  %v2121 = vmul.f32 %v1879, %v2091
  %v2122 = vmul.f32 %v1880, %v2091
  %v2123 = vmul.f32 %v1881, %v2091
  %v2124 = vadd.f32 %v2056, %v2092
  %v2125 = vadd.f32 %v2057, %v2093
  %v2126 = vadd.f32 %v2058, %v2094
  %v2127 = vadd.f32 %v2059, %v2095
  %v2128 = vadd.f32 %v2060, %v2096
  %v2129 = vadd.f32 %v2061, %v2097
  %v2130 = vadd.f32 %v2062, %v2098
  %v2131 = vadd.f32 %v2063, %v2099
  %v2132 = vadd.f32 %v2064, %v2100
  %v2133 = vadd.f32 %v2065, %v2101
  %v2134 = vadd.f32 %v2066, %v2102
  %v2135 = vadd.f32 %v2067, %v2103
  %v2136 = vadd.f32 %v2068, %v2104
  %v2137 = vadd.f32 %v2069, %v2105
  %v2138 = vadd.f32 %v2070, %v2106
  %v2139 = vadd.f32 %v2071, %v2107
  %v2140 = vadd.f32 %v2072, %v2108
  %v2141 = vadd.f32 %v2073, %v2109
  %v2142 = vadd.f32 %v2074, %v2110
  %v2143 = vadd.f32 %v2075, %v2111
  %v2144 = vadd.f32 %v2076, %v2112
  %v2145 = vadd.f32 %v2077, %v2113
  %v2146 = vadd.f32 %v2078, %v2114
  %v2147 = vadd.f32 %v2079, %v2115
  %v2148 = vadd.f32 %v2080, %v2116
  %v2149 = vadd.f32 %v2081, %v2117
  %v2150 = vadd.f32 %v2082, %v2118
  %v2151 = vadd.f32 %v2083, %v2119
  %v2152 = vadd.f32 %v2084, %v2120
  %v2153 = vadd.f32 %v2085, %v2121
  %v2154 = vadd.f32 %v2086, %v2122
  %v2155 = vadd.f32 %v2087, %v2123
  %v2156 = vlaneseq
  %v2157 = vshrl.u32 %v2156, 7
  %v2158 = vsub.s32 4, %v2157
  %v2159 = vrot.slane %v240, %v2158
  %v2160 = vmul.f32 %v1852, %v2159
  %v2161 = vmul.f32 %v1853, %v2159
  %v2162 = vmul.f32 %v1854, %v2159
  %v2163 = vmul.f32 %v1855, %v2159
  %v2164 = vmul.f32 %v1856, %v2159
  %v2165 = vmul.f32 %v1857, %v2159
  %v2166 = vmul.f32 %v1858, %v2159
  %v2167 = vmul.f32 %v1859, %v2159
  %v2168 = vmul.f32 %v1860, %v2159
  %v2169 = vmul.f32 %v1861, %v2159
  %v2170 = vmul.f32 %v1862, %v2159
  %v2171 = vmul.f32 %v1863, %v2159
  %v2172 = vmul.f32 %v1864, %v2159
  %v2173 = vmul.f32 %v1865, %v2159
  %v2174 = vmul.f32 %v1866, %v2159
  %v2175 = vmul.f32 %v1867, %v2159
  %v2176 = vmul.f32 %v1868, %v2159
  %v2177 = vmul.f32 %v1869, %v2159
  %v2178 = vmul.f32 %v1870, %v2159
  %v2179 = vmul.f32 %v1871, %v2159
  %v2180 = vmul.f32 %v1872, %v2159
  %v2181 = vmul.f32 %v1873, %v2159
  %v2182 = vmul.f32 %v1874, %v2159
  %v2183 = vmul.f32 %v1875, %v2159
  %v2184 = vmul.f32 %v1876, %v2159
  %v2185 = vmul.f32 %v1877, %v2159
  %v2186 = vmul.f32 %v1878, %v2159
  %v2187 = vmul.f32 %v1879, %v2159
  %v2188 = vmul.f32 %v1880, %v2159
  %v2189 = vmul.f32 %v1881, %v2159
  %v2190 = vmul.f32 %v1882, %v2159
  %v2191 = vmul.f32 %v1883, %v2159
  %v2192 = vadd.f32 %v2124, %v2160
  %v2193 = vadd.f32 %v2125, %v2161
  %v2194 = vadd.f32 %v2126, %v2162
  %v2195 = vadd.f32 %v2127, %v2163
  %v2196 = vadd.f32 %v2128, %v2164
  %v2197 = vadd.f32 %v2129, %v2165
  %v2198 = vadd.f32 %v2130, %v2166
  %v2199 = vadd.f32 %v2131, %v2167
  %v2200 = vadd.f32 %v2132, %v2168
  %v2201 = vadd.f32 %v2133, %v2169
  %v2202 = vadd.f32 %v2134, %v2170
  %v2203 = vadd.f32 %v2135, %v2171
  %v2204 = vadd.f32 %v2136, %v2172
  %v2205 = vadd.f32 %v2137, %v2173
  %v2206 = vadd.f32 %v2138, %v2174
  %v2207 = vadd.f32 %v2139, %v2175
  %v2208 = vadd.f32 %v2140, %v2176
  %v2209 = vadd.f32 %v2141, %v2177
  %v2210 = vadd.f32 %v2142, %v2178
  %v2211 = vadd.f32 %v2143, %v2179
  %v2212 = vadd.f32 %v2144, %v2180
  %v2213 = vadd.f32 %v2145, %v2181
  %v2214 = vadd.f32 %v2146, %v2182
  %v2215 = vadd.f32 %v2147, %v2183
  %v2216 = vadd.f32 %v2148, %v2184
  %v2217 = vadd.f32 %v2149, %v2185
  %v2218 = vadd.f32 %v2150, %v2186
  %v2219 = vadd.f32 %v2151, %v2187
  %v2220 = vadd.f32 %v2152, %v2188
  %v2221 = vadd.f32 %v2153, %v2189
  %v2222 = vadd.f32 %v2154, %v2190
  %v2223 = vadd.f32 %v2155, %v2191
  %v2225 = vlaneseq
  %v2226 = vshrl.u32 %v2225, 7
  %v2227 = vsub.s32 0, %v2226
  %v2228 = vrot.slane %v249, %v2227
  %v2230 = vadd.f32 %v2192, %v2228
  %v2231 = vadd.f32 %v2193, %v2228
  %v2232 = vadd.f32 %v2194, %v2228
  %v2233 = vadd.f32 %v2195, %v2228
  %v2234 = vadd.f32 %v2196, %v2228
  %v2235 = vadd.f32 %v2197, %v2228
  %v2236 = vadd.f32 %v2198, %v2228
  %v2237 = vadd.f32 %v2199, %v2228
  %v2238 = vadd.f32 %v2200, %v2228
  %v2239 = vadd.f32 %v2201, %v2228
  %v2240 = vadd.f32 %v2202, %v2228
  %v2241 = vadd.f32 %v2203, %v2228
  %v2242 = vadd.f32 %v2204, %v2228
  %v2243 = vadd.f32 %v2205, %v2228
  %v2244 = vadd.f32 %v2206, %v2228
  %v2245 = vadd.f32 %v2207, %v2228
  %v2246 = vadd.f32 %v2208, %v2228
  %v2247 = vadd.f32 %v2209, %v2228
  %v2248 = vadd.f32 %v2210, %v2228
  %v2249 = vadd.f32 %v2211, %v2228
  %v2250 = vadd.f32 %v2212, %v2228
  %v2251 = vadd.f32 %v2213, %v2228
  %v2252 = vadd.f32 %v2214, %v2228
  %v2253 = vadd.f32 %v2215, %v2228
  %v2254 = vadd.f32 %v2216, %v2228
  %v2255 = vadd.f32 %v2217, %v2228
  %v2256 = vadd.f32 %v2218, %v2228
  %v2257 = vadd.f32 %v2219, %v2228
  %v2258 = vadd.f32 %v2220, %v2228
  %v2259 = vadd.f32 %v2221, %v2228
  %v2260 = vadd.f32 %v2222, %v2228
  %v2261 = vadd.f32 %v2223, %v2228
  %s2262 = sadd.s32 0, 9
  %s2263 = smul.u32 %s2262, 48
  %s2264 = scalar_lea.vmem [#allocation3], %s2263
  %2265 = vst.msk [vmem:[%s2264 + $0x10] sm:$0xff] %vm289, %v2230
  %2266 = vst.msk [vmem:[%s2264 + $0x18] sm:$0xff] %vm289, %v2231
  %2267 = vst.msk [vmem:[%s2264 + $0x40] sm:$0xff] %vm289, %v2232
  %2268 = vst.msk [vmem:[%s2264 + $0x48] sm:$0xff] %vm289, %v2233
  %2269 = vst.msk [vmem:[%s2264 + $0x70] sm:$0xff] %vm289, %v2234
  %2270 = vst.msk [vmem:[%s2264 + $0x78] sm:$0xff] %vm289, %v2235
  %2271 = vst.msk [vmem:[%s2264 + $0xa0] sm:$0xff] %vm289, %v2236
  %2272 = vst.msk [vmem:[%s2264 + $0xa8] sm:$0xff] %vm289, %v2237
  %2273 = vst.msk [vmem:[%s2264 + $0xd0] sm:$0xff] %vm289, %v2238
  %2274 = vst.msk [vmem:[%s2264 + $0xd8] sm:$0xff] %vm289, %v2239
  %2275 = vst.msk [vmem:[%s2264 + $0x100] sm:$0xff] %vm289, %v2240
  %2276 = vst.msk [vmem:[%s2264 + $0x108] sm:$0xff] %vm289, %v2241
  %2277 = vst.msk [vmem:[%s2264 + $0x130] sm:$0xff] %vm289, %v2242
  %2278 = vst.msk [vmem:[%s2264 + $0x138] sm:$0xff] %vm289, %v2243
  %2279 = vst.msk [vmem:[%s2264 + $0x160] sm:$0xff] %vm289, %v2244
  %2280 = vst.msk [vmem:[%s2264 + $0x168] sm:$0xff] %vm289, %v2245
  %2281 = vst.msk [vmem:[%s2264 + $0x190] sm:$0xff] %vm289, %v2246
  %2282 = vst.msk [vmem:[%s2264 + $0x198] sm:$0xff] %vm289, %v2247
  %2283 = vst.msk [vmem:[%s2264 + $0x1c0] sm:$0xff] %vm289, %v2248
  %2284 = vst.msk [vmem:[%s2264 + $0x1c8] sm:$0xff] %vm289, %v2249
  %2285 = vst.msk [vmem:[%s2264 + $0x1f0] sm:$0xff] %vm289, %v2250
  %2286 = vst.msk [vmem:[%s2264 + $0x1f8] sm:$0xff] %vm289, %v2251
  %2287 = vst.msk [vmem:[%s2264 + $0x220] sm:$0xff] %vm289, %v2252
  %2288 = vst.msk [vmem:[%s2264 + $0x228] sm:$0xff] %vm289, %v2253
  %2289 = vst.msk [vmem:[%s2264 + $0x250] sm:$0xff] %vm289, %v2254
  %2290 = vst.msk [vmem:[%s2264 + $0x258] sm:$0xff] %vm289, %v2255
  %2291 = vst.msk [vmem:[%s2264 + $0x280] sm:$0xff] %vm289, %v2256
  %2292 = vst.msk [vmem:[%s2264 + $0x288] sm:$0xff] %vm289, %v2257
  %2293 = vst.msk [vmem:[%s2264 + $0x2b0] sm:$0xff] %vm289, %v2258
  %2294 = vst.msk [vmem:[%s2264 + $0x2b8] sm:$0xff] %vm289, %v2259
  %2295 = vst.msk [vmem:[%s2264 + $0x2e0] sm:$0xff] %vm289, %v2260
  %2296 = vst.msk [vmem:[%s2264 + $0x2e8] sm:$0xff] %vm289, %v2261
  %s2297 = smul.u32 0, 48
  %s2298 = scalar_lea.vmem [#allocation3], %s2297
  %v2299 = vld [vmem:[%s2298 + $0x7] sm:$0xff]
  %v2300 = vld [vmem:[%s2298 + $0xf] sm:$0xff]
  %v2301 = vld [vmem:[%s2298 + $0x37] sm:$0xff]
  %v2302 = vld [vmem:[%s2298 + $0x3f] sm:$0xff]
  %v2303 = vld [vmem:[%s2298 + $0x67] sm:$0xff]
  %v2304 = vld [vmem:[%s2298 + $0x6f] sm:$0xff]
  %v2305 = vld [vmem:[%s2298 + $0x97] sm:$0xff]
  %v2306 = vld [vmem:[%s2298 + $0x9f] sm:$0xff]
  %v2307 = vld [vmem:[%s2298 + $0xc7] sm:$0xff]
  %v2308 = vld [vmem:[%s2298 + $0xcf] sm:$0xff]
  %v2309 = vld [vmem:[%s2298 + $0xf7] sm:$0xff]
  %v2310 = vld [vmem:[%s2298 + $0xff] sm:$0xff]
  %v2311 = vld [vmem:[%s2298 + $0x127] sm:$0xff]
  %v2312 = vld [vmem:[%s2298 + $0x12f] sm:$0xff]
  %v2313 = vld [vmem:[%s2298 + $0x157] sm:$0xff]
  %v2314 = vld [vmem:[%s2298 + $0x15f] sm:$0xff]
  %v2315 = vld [vmem:[%s2298 + $0x187] sm:$0xff]
  %v2316 = vld [vmem:[%s2298 + $0x18f] sm:$0xff]
  %v2317 = vld [vmem:[%s2298 + $0x1b7] sm:$0xff]
  %v2318 = vld [vmem:[%s2298 + $0x1bf] sm:$0xff]
  %v2319 = vld [vmem:[%s2298 + $0x1e7] sm:$0xff]
  %v2320 = vld [vmem:[%s2298 + $0x1ef] sm:$0xff]
  %v2321 = vld [vmem:[%s2298 + $0x217] sm:$0xff]
  %v2322 = vld [vmem:[%s2298 + $0x21f] sm:$0xff]
  %v2323 = vld [vmem:[%s2298 + $0x247] sm:$0xff]
  %v2324 = vld [vmem:[%s2298 + $0x24f] sm:$0xff]
  %v2325 = vld [vmem:[%s2298 + $0x277] sm:$0xff]
  %v2326 = vld [vmem:[%s2298 + $0x27f] sm:$0xff]
  %v2327 = vld [vmem:[%s2298 + $0x2a7] sm:$0xff]
  %v2328 = vld [vmem:[%s2298 + $0x2af] sm:$0xff]
  %v2329 = vld [vmem:[%s2298 + $0x2d7] sm:$0xff]
  %v2330 = vld [vmem:[%s2298 + $0x2df] sm:$0xff]
  %v2331 = vld [vmem:[%s2298 + $0x307] sm:$0xff]
  %v2332 = vld [vmem:[%s2298 + $0x30f] sm:$0xff]
  %v2333 = vld [vmem:[%s2298 + $0x337] sm:$0xff]
  %v2334 = vld [vmem:[%s2298 + $0x33f] sm:$0xff]
  %v2335 = vld [vmem:[%s2298 + $0x367] sm:$0xff]
  %v2336 = vld [vmem:[%s2298 + $0x36f] sm:$0xff]
  %v2337 = vld [vmem:[%s2298 + $0x397] sm:$0xff]
  %v2338 = vld [vmem:[%s2298 + $0x39f] sm:$0xff]
  %v2339 = vld [vmem:[%s2298 + $0x3c7] sm:$0xff]
  %v2340 = vld [vmem:[%s2298 + $0x3cf] sm:$0xff]
  %v2341 = vld [vmem:[%s2298 + $0x3f7] sm:$0xff]
  %v2342 = vld [vmem:[%s2298 + $0x3ff] sm:$0xff]
  %v2343 = vld [vmem:[%s2298 + $0x427] sm:$0xff]
  %v2344 = vld [vmem:[%s2298 + $0x42f] sm:$0xff]
  %v2345 = vld [vmem:[%s2298 + $0x457] sm:$0xff]
  %v2346 = vld [vmem:[%s2298 + $0x45f] sm:$0xff]
  %v2347 = vld [vmem:[%s2298 + $0x487] sm:$0xff]
  %v2348 = vld [vmem:[%s2298 + $0x48f] sm:$0xff]
  %v2349 = vld [vmem:[%s2298 + $0x4b7] sm:$0xff]
  %v2350 = vld [vmem:[%s2298 + $0x4bf] sm:$0xff]
  %v2351 = vld [vmem:[%s2298 + $0x4e7] sm:$0xff]
  %v2352 = vld [vmem:[%s2298 + $0x4ef] sm:$0xff]
  %v2353 = vld [vmem:[%s2298 + $0x517] sm:$0xff]
  %v2354 = vld [vmem:[%s2298 + $0x51f] sm:$0xff]
  %v2355 = vld [vmem:[%s2298 + $0x547] sm:$0xff]
  %v2356 = vld [vmem:[%s2298 + $0x54f] sm:$0xff]
  %v2357 = vld [vmem:[%s2298 + $0x577] sm:$0xff]
  %v2358 = vld [vmem:[%s2298 + $0x57f] sm:$0xff]
  %v2359 = vld [vmem:[%s2298 + $0x5a7] sm:$0xff]
  %v2360 = vld [vmem:[%s2298 + $0x5af] sm:$0xff]
  %v2361 = vld [vmem:[%s2298 + $0x5d7] sm:$0xff]
  %v2362 = vld [vmem:[%s2298 + $0x5df] sm:$0xff]
  %v2363 = vld [vmem:[%s2298 + $0x607] sm:$0xff]
  %v2364 = vld [vmem:[%s2298 + $0x60f] sm:$0xff]
  %v2365 = vld [vmem:[%s2298 + $0x637] sm:$0xff]
  %v2366 = vld [vmem:[%s2298 + $0x63f] sm:$0xff]
  %v2367 = vlaneseq
  %v2368 = vshrl.u32 %v2367, 7
  %v2369 = vsub.s32 0, %v2368
  %v2370 = vrot.slane %v241, %v2369
  %v2371 = vmul.f32 %v2299, %v2370
  %v2372 = vmul.f32 %v2300, %v2370
  %v2373 = vmul.f32 %v2301, %v2370
  %v2374 = vmul.f32 %v2302, %v2370
  %v2375 = vmul.f32 %v2303, %v2370
  %v2376 = vmul.f32 %v2304, %v2370
  %v2377 = vmul.f32 %v2305, %v2370
  %v2378 = vmul.f32 %v2306, %v2370
  %v2379 = vmul.f32 %v2307, %v2370
  %v2380 = vmul.f32 %v2308, %v2370
  %v2381 = vmul.f32 %v2309, %v2370
  %v2382 = vmul.f32 %v2310, %v2370
  %v2383 = vmul.f32 %v2311, %v2370
  %v2384 = vmul.f32 %v2312, %v2370
  %v2385 = vmul.f32 %v2313, %v2370
  %v2386 = vmul.f32 %v2314, %v2370
  %v2387 = vmul.f32 %v2315, %v2370
  %v2388 = vmul.f32 %v2316, %v2370
  %v2389 = vmul.f32 %v2317, %v2370
  %v2390 = vmul.f32 %v2318, %v2370
  %v2391 = vmul.f32 %v2319, %v2370
  %v2392 = vmul.f32 %v2320, %v2370
  %v2393 = vmul.f32 %v2321, %v2370
  %v2394 = vmul.f32 %v2322, %v2370
  %v2395 = vmul.f32 %v2323, %v2370
  %v2396 = vmul.f32 %v2324, %v2370
  %v2397 = vmul.f32 %v2325, %v2370
  %v2398 = vmul.f32 %v2326, %v2370
  %v2399 = vmul.f32 %v2327, %v2370
  %v2400 = vmul.f32 %v2328, %v2370
  %v2401 = vmul.f32 %v2329, %v2370
  %v2402 = vmul.f32 %v2330, %v2370
  %v2403 = vadd.f32 %v2371, 0.0
  %v2404 = vadd.f32 %v2372, 0.0
  %v2405 = vadd.f32 %v2373, 0.0
  %v2406 = vadd.f32 %v2374, 0.0
  %v2407 = vadd.f32 %v2375, 0.0
  %v2408 = vadd.f32 %v2376, 0.0
  %v2409 = vadd.f32 %v2377, 0.0
  %v2410 = vadd.f32 %v2378, 0.0
  %v2411 = vadd.f32 %v2379, 0.0
  %v2412 = vadd.f32 %v2380, 0.0
  %v2413 = vadd.f32 %v2381, 0.0
  %v2414 = vadd.f32 %v2382, 0.0
  %v2415 = vadd.f32 %v2383, 0.0
  %v2416 = vadd.f32 %v2384, 0.0
  %v2417 = vadd.f32 %v2385, 0.0
  %v2418 = vadd.f32 %v2386, 0.0
  %v2419 = vadd.f32 %v2387, 0.0
  %v2420 = vadd.f32 %v2388, 0.0
  %v2421 = vadd.f32 %v2389, 0.0
  %v2422 = vadd.f32 %v2390, 0.0
  %v2423 = vadd.f32 %v2391, 0.0
  %v2424 = vadd.f32 %v2392, 0.0
  %v2425 = vadd.f32 %v2393, 0.0
  %v2426 = vadd.f32 %v2394, 0.0
  %v2427 = vadd.f32 %v2395, 0.0
  %v2428 = vadd.f32 %v2396, 0.0
  %v2429 = vadd.f32 %v2397, 0.0
  %v2430 = vadd.f32 %v2398, 0.0
  %v2431 = vadd.f32 %v2399, 0.0
  %v2432 = vadd.f32 %v2400, 0.0
  %v2433 = vadd.f32 %v2401, 0.0
  %v2434 = vadd.f32 %v2402, 0.0
  %v2435 = vlaneseq
  %v2436 = vshrl.u32 %v2435, 7
  %v2437 = vsub.s32 0, %v2436
  %v2438 = vrot.slane %v242, %v2437
  %v2439 = vmul.f32 %v2305, %v2438
  %v2440 = vmul.f32 %v2306, %v2438
  %v2441 = vmul.f32 %v2307, %v2438
  %v2442 = vmul.f32 %v2308, %v2438
  %v2443 = vmul.f32 %v2309, %v2438
  %v2444 = vmul.f32 %v2310, %v2438
  %v2445 = vmul.f32 %v2311, %v2438
  %v2446 = vmul.f32 %v2312, %v2438
  %v2447 = vmul.f32 %v2313, %v2438
  %v2448 = vmul.f32 %v2314, %v2438
  %v2449 = vmul.f32 %v2315, %v2438
  %v2450 = vmul.f32 %v2316, %v2438
  %v2451 = vmul.f32 %v2317, %v2438
  %v2452 = vmul.f32 %v2318, %v2438
  %v2453 = vmul.f32 %v2319, %v2438
  %v2454 = vmul.f32 %v2320, %v2438
  %v2455 = vmul.f32 %v2321, %v2438
  %v2456 = vmul.f32 %v2322, %v2438
  %v2457 = vmul.f32 %v2323, %v2438
  %v2458 = vmul.f32 %v2324, %v2438
  %v2459 = vmul.f32 %v2325, %v2438
  %v2460 = vmul.f32 %v2326, %v2438
  %v2461 = vmul.f32 %v2327, %v2438
  %v2462 = vmul.f32 %v2328, %v2438
  %v2463 = vmul.f32 %v2329, %v2438
  %v2464 = vmul.f32 %v2330, %v2438
  %v2465 = vmul.f32 %v2331, %v2438
  %v2466 = vmul.f32 %v2332, %v2438
  %v2467 = vmul.f32 %v2333, %v2438
  %v2468 = vmul.f32 %v2334, %v2438
  %v2469 = vmul.f32 %v2335, %v2438
  %v2470 = vmul.f32 %v2336, %v2438
  %v2471 = vadd.f32 %v2403, %v2439
  %v2472 = vadd.f32 %v2404, %v2440
  %v2473 = vadd.f32 %v2405, %v2441
  %v2474 = vadd.f32 %v2406, %v2442
  %v2475 = vadd.f32 %v2407, %v2443
  %v2476 = vadd.f32 %v2408, %v2444
  %v2477 = vadd.f32 %v2409, %v2445
  %v2478 = vadd.f32 %v2410, %v2446
  %v2479 = vadd.f32 %v2411, %v2447
  %v2480 = vadd.f32 %v2412, %v2448
  %v2481 = vadd.f32 %v2413, %v2449
  %v2482 = vadd.f32 %v2414, %v2450
  %v2483 = vadd.f32 %v2415, %v2451
  %v2484 = vadd.f32 %v2416, %v2452
  %v2485 = vadd.f32 %v2417, %v2453
  %v2486 = vadd.f32 %v2418, %v2454
  %v2487 = vadd.f32 %v2419, %v2455
  %v2488 = vadd.f32 %v2420, %v2456
  %v2489 = vadd.f32 %v2421, %v2457
  %v2490 = vadd.f32 %v2422, %v2458
  %v2491 = vadd.f32 %v2423, %v2459
  %v2492 = vadd.f32 %v2424, %v2460
  %v2493 = vadd.f32 %v2425, %v2461
  %v2494 = vadd.f32 %v2426, %v2462
  %v2495 = vadd.f32 %v2427, %v2463
  %v2496 = vadd.f32 %v2428, %v2464
  %v2497 = vadd.f32 %v2429, %v2465
  %v2498 = vadd.f32 %v2430, %v2466
  %v2499 = vadd.f32 %v2431, %v2467
  %v2500 = vadd.f32 %v2432, %v2468
  %v2501 = vadd.f32 %v2433, %v2469
  %v2502 = vadd.f32 %v2434, %v2470
  %v2503 = vlaneseq
  %v2504 = vshrl.u32 %v2503, 7
  %v2505 = vsub.s32 0, %v2504
  %v2506 = vrot.slane %v243, %v2505
  %v2507 = vmul.f32 %v2311, %v2506
  %v2508 = vmul.f32 %v2312, %v2506
  %v2509 = vmul.f32 %v2313, %v2506
  %v2510 = vmul.f32 %v2314, %v2506
  %v2511 = vmul.f32 %v2315, %v2506
  %v2512 = vmul.f32 %v2316, %v2506
  %v2513 = vmul.f32 %v2317, %v2506
  %v2514 = vmul.f32 %v2318, %v2506
  %v2515 = vmul.f32 %v2319, %v2506
  %v2516 = vmul.f32 %v2320, %v2506
  %v2517 = vmul.f32 %v2321, %v2506
  %v2518 = vmul.f32 %v2322, %v2506
  %v2519 = vmul.f32 %v2323, %v2506
  %v2520 = vmul.f32 %v2324, %v2506
  %v2521 = vmul.f32 %v2325, %v2506
  %v2522 = vmul.f32 %v2326, %v2506
  %v2523 = vmul.f32 %v2327, %v2506
  %v2524 = vmul.f32 %v2328, %v2506
  %v2525 = vmul.f32 %v2329, %v2506
  %v2526 = vmul.f32 %v2330, %v2506
  %v2527 = vmul.f32 %v2331, %v2506
  %v2528 = vmul.f32 %v2332, %v2506
  %v2529 = vmul.f32 %v2333, %v2506
  %v2530 = vmul.f32 %v2334, %v2506
  %v2531 = vmul.f32 %v2335, %v2506
  %v2532 = vmul.f32 %v2336, %v2506
  %v2533 = vmul.f32 %v2337, %v2506
  %v2534 = vmul.f32 %v2338, %v2506
  %v2535 = vmul.f32 %v2339, %v2506
  %v2536 = vmul.f32 %v2340, %v2506
  %v2537 = vmul.f32 %v2341, %v2506
  %v2538 = vmul.f32 %v2342, %v2506
  %v2539 = vadd.f32 %v2471, %v2507
  %v2540 = vadd.f32 %v2472, %v2508
  %v2541 = vadd.f32 %v2473, %v2509
  %v2542 = vadd.f32 %v2474, %v2510
  %v2543 = vadd.f32 %v2475, %v2511
  %v2544 = vadd.f32 %v2476, %v2512
  %v2545 = vadd.f32 %v2477, %v2513
  %v2546 = vadd.f32 %v2478, %v2514
  %v2547 = vadd.f32 %v2479, %v2515
  %v2548 = vadd.f32 %v2480, %v2516
  %v2549 = vadd.f32 %v2481, %v2517
  %v2550 = vadd.f32 %v2482, %v2518
  %v2551 = vadd.f32 %v2483, %v2519
  %v2552 = vadd.f32 %v2484, %v2520
  %v2553 = vadd.f32 %v2485, %v2521
  %v2554 = vadd.f32 %v2486, %v2522
  %v2555 = vadd.f32 %v2487, %v2523
  %v2556 = vadd.f32 %v2488, %v2524
  %v2557 = vadd.f32 %v2489, %v2525
  %v2558 = vadd.f32 %v2490, %v2526
  %v2559 = vadd.f32 %v2491, %v2527
  %v2560 = vadd.f32 %v2492, %v2528
  %v2561 = vadd.f32 %v2493, %v2529
  %v2562 = vadd.f32 %v2494, %v2530
  %v2563 = vadd.f32 %v2495, %v2531
  %v2564 = vadd.f32 %v2496, %v2532
  %v2565 = vadd.f32 %v2497, %v2533
  %v2566 = vadd.f32 %v2498, %v2534
  %v2567 = vadd.f32 %v2499, %v2535
  %v2568 = vadd.f32 %v2500, %v2536
  %v2569 = vadd.f32 %v2501, %v2537
  %v2570 = vadd.f32 %v2502, %v2538
  %v2571 = vlaneseq
  %v2572 = vshrl.u32 %v2571, 7
  %v2573 = vsub.s32 0, %v2572
  %v2574 = vrot.slane %v244, %v2573
  %v2575 = vmul.f32 %v2317, %v2574
  %v2576 = vmul.f32 %v2318, %v2574
  %v2577 = vmul.f32 %v2319, %v2574
  %v2578 = vmul.f32 %v2320, %v2574
  %v2579 = vmul.f32 %v2321, %v2574
  %v2580 = vmul.f32 %v2322, %v2574
  %v2581 = vmul.f32 %v2323, %v2574
  %v2582 = vmul.f32 %v2324, %v2574
  %v2583 = vmul.f32 %v2325, %v2574
  %v2584 = vmul.f32 %v2326, %v2574
  %v2585 = vmul.f32 %v2327, %v2574
  %v2586 = vmul.f32 %v2328, %v2574
  %v2587 = vmul.f32 %v2329, %v2574
  %v2588 = vmul.f32 %v2330, %v2574
  %v2589 = vmul.f32 %v2331, %v2574
  %v2590 = vmul.f32 %v2332, %v2574
  %v2591 = vmul.f32 %v2333, %v2574
  %v2592 = vmul.f32 %v2334, %v2574
  %v2593 = vmul.f32 %v2335, %v2574
  %v2594 = vmul.f32 %v2336, %v2574
  %v2595 = vmul.f32 %v2337, %v2574
  %v2596 = vmul.f32 %v2338, %v2574
  %v2597 = vmul.f32 %v2339, %v2574
  %v2598 = vmul.f32 %v2340, %v2574
  %v2599 = vmul.f32 %v2341, %v2574
  %v2600 = vmul.f32 %v2342, %v2574
  %v2601 = vmul.f32 %v2343, %v2574
  %v2602 = vmul.f32 %v2344, %v2574
  %v2603 = vmul.f32 %v2345, %v2574
  %v2604 = vmul.f32 %v2346, %v2574
  %v2605 = vmul.f32 %v2347, %v2574
  %v2606 = vmul.f32 %v2348, %v2574
  %v2607 = vadd.f32 %v2539, %v2575
  %v2608 = vadd.f32 %v2540, %v2576
  %v2609 = vadd.f32 %v2541, %v2577
  %v2610 = vadd.f32 %v2542, %v2578
  %v2611 = vadd.f32 %v2543, %v2579
  %v2612 = vadd.f32 %v2544, %v2580
  %v2613 = vadd.f32 %v2545, %v2581
  %v2614 = vadd.f32 %v2546, %v2582
  %v2615 = vadd.f32 %v2547, %v2583
  %v2616 = vadd.f32 %v2548, %v2584
  %v2617 = vadd.f32 %v2549, %v2585
  %v2618 = vadd.f32 %v2550, %v2586
  %v2619 = vadd.f32 %v2551, %v2587
  %v2620 = vadd.f32 %v2552, %v2588
  %v2621 = vadd.f32 %v2553, %v2589
  %v2622 = vadd.f32 %v2554, %v2590
  %v2623 = vadd.f32 %v2555, %v2591
  %v2624 = vadd.f32 %v2556, %v2592
  %v2625 = vadd.f32 %v2557, %v2593
  %v2626 = vadd.f32 %v2558, %v2594
  %v2627 = vadd.f32 %v2559, %v2595
  %v2628 = vadd.f32 %v2560, %v2596
  %v2629 = vadd.f32 %v2561, %v2597
  %v2630 = vadd.f32 %v2562, %v2598
  %v2631 = vadd.f32 %v2563, %v2599
  %v2632 = vadd.f32 %v2564, %v2600
  %v2633 = vadd.f32 %v2565, %v2601
  %v2634 = vadd.f32 %v2566, %v2602
  %v2635 = vadd.f32 %v2567, %v2603
  %v2636 = vadd.f32 %v2568, %v2604
  %v2637 = vadd.f32 %v2569, %v2605
  %v2638 = vadd.f32 %v2570, %v2606
  %v2639 = vlaneseq
  %v2640 = vshrl.u32 %v2639, 7
  %v2641 = vsub.s32 0, %v2640
  %v2642 = vrot.slane %v245, %v2641
  %v2643 = vmul.f32 %v2323, %v2642
  %v2644 = vmul.f32 %v2324, %v2642
  %v2645 = vmul.f32 %v2325, %v2642
  %v2646 = vmul.f32 %v2326, %v2642
  %v2647 = vmul.f32 %v2327, %v2642
  %v2648 = vmul.f32 %v2328, %v2642
  %v2649 = vmul.f32 %v2329, %v2642
  %v2650 = vmul.f32 %v2330, %v2642
  %v2651 = vmul.f32 %v2331, %v2642
  %v2652 = vmul.f32 %v2332, %v2642
  %v2653 = vmul.f32 %v2333, %v2642
  %v2654 = vmul.f32 %v2334, %v2642
  %v2655 = vmul.f32 %v2335, %v2642
  %v2656 = vmul.f32 %v2336, %v2642
  %v2657 = vmul.f32 %v2337, %v2642
  %v2658 = vmul.f32 %v2338, %v2642
  %v2659 = vmul.f32 %v2339, %v2642
  %v2660 = vmul.f32 %v2340, %v2642
  %v2661 = vmul.f32 %v2341, %v2642
  %v2662 = vmul.f32 %v2342, %v2642
  %v2663 = vmul.f32 %v2343, %v2642
  %v2664 = vmul.f32 %v2344, %v2642
  %v2665 = vmul.f32 %v2345, %v2642
  %v2666 = vmul.f32 %v2346, %v2642
  %v2667 = vmul.f32 %v2347, %v2642
  %v2668 = vmul.f32 %v2348, %v2642
  %v2669 = vmul.f32 %v2349, %v2642
  %v2670 = vmul.f32 %v2350, %v2642
  %v2671 = vmul.f32 %v2351, %v2642
  %v2672 = vmul.f32 %v2352, %v2642
  %v2673 = vmul.f32 %v2353, %v2642
  %v2674 = vmul.f32 %v2354, %v2642
  %v2675 = vadd.f32 %v2607, %v2643
  %v2676 = vadd.f32 %v2608, %v2644
  %v2677 = vadd.f32 %v2609, %v2645
  %v2678 = vadd.f32 %v2610, %v2646
  %v2679 = vadd.f32 %v2611, %v2647
  %v2680 = vadd.f32 %v2612, %v2648
  %v2681 = vadd.f32 %v2613, %v2649
  %v2682 = vadd.f32 %v2614, %v2650
  %v2683 = vadd.f32 %v2615, %v2651
  %v2684 = vadd.f32 %v2616, %v2652
  %v2685 = vadd.f32 %v2617, %v2653
  %v2686 = vadd.f32 %v2618, %v2654
  %v2687 = vadd.f32 %v2619, %v2655
  %v2688 = vadd.f32 %v2620, %v2656
  %v2689 = vadd.f32 %v2621, %v2657
  %v2690 = vadd.f32 %v2622, %v2658
  %v2691 = vadd.f32 %v2623, %v2659
  %v2692 = vadd.f32 %v2624, %v2660
  %v2693 = vadd.f32 %v2625, %v2661
  %v2694 = vadd.f32 %v2626, %v2662
  %v2695 = vadd.f32 %v2627, %v2663
  %v2696 = vadd.f32 %v2628, %v2664
  %v2697 = vadd.f32 %v2629, %v2665
  %v2698 = vadd.f32 %v2630, %v2666
  %v2699 = vadd.f32 %v2631, %v2667
  %v2700 = vadd.f32 %v2632, %v2668
  %v2701 = vadd.f32 %v2633, %v2669
  %v2702 = vadd.f32 %v2634, %v2670
  %v2703 = vadd.f32 %v2635, %v2671
  %v2704 = vadd.f32 %v2636, %v2672
  %v2705 = vadd.f32 %v2637, %v2673
  %v2706 = vadd.f32 %v2638, %v2674
  %v2707 = vlaneseq
  %v2708 = vshrl.u32 %v2707, 7
  %v2709 = vsub.s32 0, %v2708
  %v2710 = vrot.slane %v246, %v2709
  %v2711 = vmul.f32 %v2329, %v2710
  %v2712 = vmul.f32 %v2330, %v2710
  %v2713 = vmul.f32 %v2331, %v2710
  %v2714 = vmul.f32 %v2332, %v2710
  %v2715 = vmul.f32 %v2333, %v2710
  %v2716 = vmul.f32 %v2334, %v2710
  %v2717 = vmul.f32 %v2335, %v2710
  %v2718 = vmul.f32 %v2336, %v2710
  %v2719 = vmul.f32 %v2337, %v2710
  %v2720 = vmul.f32 %v2338, %v2710
  %v2721 = vmul.f32 %v2339, %v2710
  %v2722 = vmul.f32 %v2340, %v2710
  %v2723 = vmul.f32 %v2341, %v2710
  %v2724 = vmul.f32 %v2342, %v2710
  %v2725 = vmul.f32 %v2343, %v2710
  %v2726 = vmul.f32 %v2344, %v2710
  %v2727 = vmul.f32 %v2345, %v2710
  %v2728 = vmul.f32 %v2346, %v2710
  %v2729 = vmul.f32 %v2347, %v2710
  %v2730 = vmul.f32 %v2348, %v2710
  %v2731 = vmul.f32 %v2349, %v2710
  %v2732 = vmul.f32 %v2350, %v2710
  %v2733 = vmul.f32 %v2351, %v2710
  %v2734 = vmul.f32 %v2352, %v2710
  %v2735 = vmul.f32 %v2353, %v2710
  %v2736 = vmul.f32 %v2354, %v2710
  %v2737 = vmul.f32 %v2355, %v2710
  %v2738 = vmul.f32 %v2356, %v2710
  %v2739 = vmul.f32 %v2357, %v2710
  %v2740 = vmul.f32 %v2358, %v2710
  %v2741 = vmul.f32 %v2359, %v2710
  %v2742 = vmul.f32 %v2360, %v2710
  %v2743 = vadd.f32 %v2675, %v2711
  %v2744 = vadd.f32 %v2676, %v2712
  %v2745 = vadd.f32 %v2677, %v2713
  %v2746 = vadd.f32 %v2678, %v2714
  %v2747 = vadd.f32 %v2679, %v2715
  %v2748 = vadd.f32 %v2680, %v2716
  %v2749 = vadd.f32 %v2681, %v2717
  %v2750 = vadd.f32 %v2682, %v2718
  %v2751 = vadd.f32 %v2683, %v2719
  %v2752 = vadd.f32 %v2684, %v2720
  %v2753 = vadd.f32 %v2685, %v2721
  %v2754 = vadd.f32 %v2686, %v2722
  %v2755 = vadd.f32 %v2687, %v2723
  %v2756 = vadd.f32 %v2688, %v2724
  %v2757 = vadd.f32 %v2689, %v2725
  %v2758 = vadd.f32 %v2690, %v2726
  %v2759 = vadd.f32 %v2691, %v2727
  %v2760 = vadd.f32 %v2692, %v2728
  %v2761 = vadd.f32 %v2693, %v2729
  %v2762 = vadd.f32 %v2694, %v2730
  %v2763 = vadd.f32 %v2695, %v2731
  %v2764 = vadd.f32 %v2696, %v2732
  %v2765 = vadd.f32 %v2697, %v2733
  %v2766 = vadd.f32 %v2698, %v2734
  %v2767 = vadd.f32 %v2699, %v2735
  %v2768 = vadd.f32 %v2700, %v2736
  %v2769 = vadd.f32 %v2701, %v2737
  %v2770 = vadd.f32 %v2702, %v2738
  %v2771 = vadd.f32 %v2703, %v2739
  %v2772 = vadd.f32 %v2704, %v2740
  %v2773 = vadd.f32 %v2705, %v2741
  %v2774 = vadd.f32 %v2706, %v2742
  %v2775 = vlaneseq
  %v2776 = vshrl.u32 %v2775, 7
  %v2777 = vsub.s32 0, %v2776
  %v2778 = vrot.slane %v247, %v2777
  %v2779 = vmul.f32 %v2335, %v2778
  %v2780 = vmul.f32 %v2336, %v2778
  %v2781 = vmul.f32 %v2337, %v2778
  %v2782 = vmul.f32 %v2338, %v2778
  %v2783 = vmul.f32 %v2339, %v2778
  %v2784 = vmul.f32 %v2340, %v2778
  %v2785 = vmul.f32 %v2341, %v2778
  %v2786 = vmul.f32 %v2342, %v2778
  %v2787 = vmul.f32 %v2343, %v2778
  %v2788 = vmul.f32 %v2344, %v2778
  %v2789 = vmul.f32 %v2345, %v2778
  %v2790 = vmul.f32 %v2346, %v2778
  %v2791 = vmul.f32 %v2347, %v2778
  %v2792 = vmul.f32 %v2348, %v2778
  %v2793 = vmul.f32 %v2349, %v2778
  %v2794 = vmul.f32 %v2350, %v2778
  %v2795 = vmul.f32 %v2351, %v2778
  %v2796 = vmul.f32 %v2352, %v2778
  %v2797 = vmul.f32 %v2353, %v2778
  %v2798 = vmul.f32 %v2354, %v2778
  %v2799 = vmul.f32 %v2355, %v2778
  %v2800 = vmul.f32 %v2356, %v2778
  %v2801 = vmul.f32 %v2357, %v2778
  %v2802 = vmul.f32 %v2358, %v2778
  %v2803 = vmul.f32 %v2359, %v2778
  %v2804 = vmul.f32 %v2360, %v2778
  %v2805 = vmul.f32 %v2361, %v2778
  %v2806 = vmul.f32 %v2362, %v2778
  %v2807 = vmul.f32 %v2363, %v2778
  %v2808 = vmul.f32 %v2364, %v2778
  %v2809 = vmul.f32 %v2365, %v2778
  %v2810 = vmul.f32 %v2366, %v2778
  %v2811 = vadd.f32 %v2743, %v2779
  %v2812 = vadd.f32 %v2744, %v2780
  %v2813 = vadd.f32 %v2745, %v2781
  %v2814 = vadd.f32 %v2746, %v2782
  %v2815 = vadd.f32 %v2747, %v2783
  %v2816 = vadd.f32 %v2748, %v2784
  %v2817 = vadd.f32 %v2749, %v2785
  %v2818 = vadd.f32 %v2750, %v2786
  %v2819 = vadd.f32 %v2751, %v2787
  %v2820 = vadd.f32 %v2752, %v2788
  %v2821 = vadd.f32 %v2753, %v2789
  %v2822 = vadd.f32 %v2754, %v2790
  %v2823 = vadd.f32 %v2755, %v2791
  %v2824 = vadd.f32 %v2756, %v2792
  %v2825 = vadd.f32 %v2757, %v2793
  %v2826 = vadd.f32 %v2758, %v2794
  %v2827 = vadd.f32 %v2759, %v2795
  %v2828 = vadd.f32 %v2760, %v2796
  %v2829 = vadd.f32 %v2761, %v2797
  %v2830 = vadd.f32 %v2762, %v2798
  %v2831 = vadd.f32 %v2763, %v2799
  %v2832 = vadd.f32 %v2764, %v2800
  %v2833 = vadd.f32 %v2765, %v2801
  %v2834 = vadd.f32 %v2766, %v2802
  %v2835 = vadd.f32 %v2767, %v2803
  %v2836 = vadd.f32 %v2768, %v2804
  %v2837 = vadd.f32 %v2769, %v2805
  %v2838 = vadd.f32 %v2770, %v2806
  %v2839 = vadd.f32 %v2771, %v2807
  %v2840 = vadd.f32 %v2772, %v2808
  %v2841 = vadd.f32 %v2773, %v2809
  %v2842 = vadd.f32 %v2774, %v2810
  %v2843 = vld [vmem:[%s2298 + $0xa] sm:$0xff]
  %v2844 = vld [vmem:[%s2298 + $0x12] sm:$0xff]
  %v2845 = vld [vmem:[%s2298 + $0x3a] sm:$0xff]
  %v2846 = vld [vmem:[%s2298 + $0x42] sm:$0xff]
  %v2847 = vld [vmem:[%s2298 + $0x6a] sm:$0xff]
  %v2848 = vld [vmem:[%s2298 + $0x72] sm:$0xff]
  %v2849 = vld [vmem:[%s2298 + $0x9a] sm:$0xff]
  %v2850 = vld [vmem:[%s2298 + $0xa2] sm:$0xff]
  %v2851 = vld [vmem:[%s2298 + $0xca] sm:$0xff]
  %v2852 = vld [vmem:[%s2298 + $0xd2] sm:$0xff]
  %v2853 = vld [vmem:[%s2298 + $0xfa] sm:$0xff]
  %v2854 = vld [vmem:[%s2298 + $0x102] sm:$0xff]
  %v2855 = vld [vmem:[%s2298 + $0x12a] sm:$0xff]
  %v2856 = vld [vmem:[%s2298 + $0x132] sm:$0xff]
  %v2857 = vld [vmem:[%s2298 + $0x15a] sm:$0xff]
  %v2858 = vld [vmem:[%s2298 + $0x162] sm:$0xff]
  %v2859 = vld [vmem:[%s2298 + $0x18a] sm:$0xff]
  %v2860 = vld [vmem:[%s2298 + $0x192] sm:$0xff]
  %v2861 = vld [vmem:[%s2298 + $0x1ba] sm:$0xff]
  %v2862 = vld [vmem:[%s2298 + $0x1c2] sm:$0xff]
  %v2863 = vld [vmem:[%s2298 + $0x1ea] sm:$0xff]
  %v2864 = vld [vmem:[%s2298 + $0x1f2] sm:$0xff]
  %v2865 = vld [vmem:[%s2298 + $0x21a] sm:$0xff]
  %v2866 = vld [vmem:[%s2298 + $0x222] sm:$0xff]
  %v2867 = vld [vmem:[%s2298 + $0x24a] sm:$0xff]
  %v2868 = vld [vmem:[%s2298 + $0x252] sm:$0xff]
  %v2869 = vld [vmem:[%s2298 + $0x27a] sm:$0xff]
  %v2870 = vld [vmem:[%s2298 + $0x282] sm:$0xff]
  %v2871 = vld [vmem:[%s2298 + $0x2aa] sm:$0xff]
  %v2872 = vld [vmem:[%s2298 + $0x2b2] sm:$0xff]
  %v2873 = vld [vmem:[%s2298 + $0x2da] sm:$0xff]
  %v2874 = vld [vmem:[%s2298 + $0x2e2] sm:$0xff]
  %v2875 = vld [vmem:[%s2298 + $0x30a] sm:$0xff]
  %v2876 = vld [vmem:[%s2298 + $0x312] sm:$0xff]
  %v2877 = vld [vmem:[%s2298 + $0x33a] sm:$0xff]
  %v2878 = vld [vmem:[%s2298 + $0x342] sm:$0xff]
  %v2879 = vld [vmem:[%s2298 + $0x36a] sm:$0xff]
  %v2880 = vld [vmem:[%s2298 + $0x372] sm:$0xff]
  %v2881 = vld [vmem:[%s2298 + $0x39a] sm:$0xff]
  %v2882 = vld [vmem:[%s2298 + $0x3a2] sm:$0xff]
  %v2883 = vld [vmem:[%s2298 + $0x3ca] sm:$0xff]
  %v2884 = vld [vmem:[%s2298 + $0x3d2] sm:$0xff]
  %v2885 = vld [vmem:[%s2298 + $0x3fa] sm:$0xff]
  %v2886 = vld [vmem:[%s2298 + $0x402] sm:$0xff]
  %v2887 = vld [vmem:[%s2298 + $0x42a] sm:$0xff]
  %v2888 = vld [vmem:[%s2298 + $0x432] sm:$0xff]
  %v2889 = vld [vmem:[%s2298 + $0x45a] sm:$0xff]
  %v2890 = vld [vmem:[%s2298 + $0x462] sm:$0xff]
  %v2891 = vld [vmem:[%s2298 + $0x48a] sm:$0xff]
  %v2892 = vld [vmem:[%s2298 + $0x492] sm:$0xff]
  %v2893 = vld [vmem:[%s2298 + $0x4ba] sm:$0xff]
  %v2894 = vld [vmem:[%s2298 + $0x4c2] sm:$0xff]
  %v2895 = vld [vmem:[%s2298 + $0x4ea] sm:$0xff]
  %v2896 = vld [vmem:[%s2298 + $0x4f2] sm:$0xff]
  %v2897 = vld [vmem:[%s2298 + $0x51a] sm:$0xff]
  %v2898 = vld [vmem:[%s2298 + $0x522] sm:$0xff]
  %v2899 = vld [vmem:[%s2298 + $0x54a] sm:$0xff]
  %v2900 = vld [vmem:[%s2298 + $0x552] sm:$0xff]
  %v2901 = vld [vmem:[%s2298 + $0x57a] sm:$0xff]
  %v2902 = vld [vmem:[%s2298 + $0x582] sm:$0xff]
  %v2903 = vld [vmem:[%s2298 + $0x5aa] sm:$0xff]
  %v2904 = vld [vmem:[%s2298 + $0x5b2] sm:$0xff]
  %v2905 = vld [vmem:[%s2298 + $0x5da] sm:$0xff]
  %v2906 = vld [vmem:[%s2298 + $0x5e2] sm:$0xff]
  %v2907 = vld [vmem:[%s2298 + $0x60a] sm:$0xff]
  %v2908 = vld [vmem:[%s2298 + $0x612] sm:$0xff]
  %v2909 = vld [vmem:[%s2298 + $0x63a] sm:$0xff]
  %v2910 = vld [vmem:[%s2298 + $0x642] sm:$0xff]
  %v2911 = vlaneseq
  %v2912 = vshrl.u32 %v2911, 7
  %v2913 = vsub.s32 1, %v2912
  %v2914 = vrot.slane %v241, %v2913
  %v2915 = vmul.f32 %v2843, %v2914
  %v2916 = vmul.f32 %v2844, %v2914
  %v2917 = vmul.f32 %v2845, %v2914
  %v2918 = vmul.f32 %v2846, %v2914
  %v2919 = vmul.f32 %v2847, %v2914
  %v2920 = vmul.f32 %v2848, %v2914
  %v2921 = vmul.f32 %v2849, %v2914
  %v2922 = vmul.f32 %v2850, %v2914
  %v2923 = vmul.f32 %v2851, %v2914
  %v2924 = vmul.f32 %v2852, %v2914
  %v2925 = vmul.f32 %v2853, %v2914
  %v2926 = vmul.f32 %v2854, %v2914
  %v2927 = vmul.f32 %v2855, %v2914
  %v2928 = vmul.f32 %v2856, %v2914
  %v2929 = vmul.f32 %v2857, %v2914
  %v2930 = vmul.f32 %v2858, %v2914
  %v2931 = vmul.f32 %v2859, %v2914
  %v2932 = vmul.f32 %v2860, %v2914
  %v2933 = vmul.f32 %v2861, %v2914
  %v2934 = vmul.f32 %v2862, %v2914
  %v2935 = vmul.f32 %v2863, %v2914
  %v2936 = vmul.f32 %v2864, %v2914
  %v2937 = vmul.f32 %v2865, %v2914
  %v2938 = vmul.f32 %v2866, %v2914
  %v2939 = vmul.f32 %v2867, %v2914
  %v2940 = vmul.f32 %v2868, %v2914
  %v2941 = vmul.f32 %v2869, %v2914
  %v2942 = vmul.f32 %v2870, %v2914
  %v2943 = vmul.f32 %v2871, %v2914
  %v2944 = vmul.f32 %v2872, %v2914
  %v2945 = vmul.f32 %v2873, %v2914
  %v2946 = vmul.f32 %v2874, %v2914
  %v2947 = vadd.f32 %v2811, %v2915
  %v2948 = vadd.f32 %v2812, %v2916
  %v2949 = vadd.f32 %v2813, %v2917
  %v2950 = vadd.f32 %v2814, %v2918
  %v2951 = vadd.f32 %v2815, %v2919
  %v2952 = vadd.f32 %v2816, %v2920
  %v2953 = vadd.f32 %v2817, %v2921
  %v2954 = vadd.f32 %v2818, %v2922
  %v2955 = vadd.f32 %v2819, %v2923
  %v2956 = vadd.f32 %v2820, %v2924
  %v2957 = vadd.f32 %v2821, %v2925
  %v2958 = vadd.f32 %v2822, %v2926
  %v2959 = vadd.f32 %v2823, %v2927
  %v2960 = vadd.f32 %v2824, %v2928
  %v2961 = vadd.f32 %v2825, %v2929
  %v2962 = vadd.f32 %v2826, %v2930
  %v2963 = vadd.f32 %v2827, %v2931
  %v2964 = vadd.f32 %v2828, %v2932
  %v2965 = vadd.f32 %v2829, %v2933
  %v2966 = vadd.f32 %v2830, %v2934
  %v2967 = vadd.f32 %v2831, %v2935
  %v2968 = vadd.f32 %v2832, %v2936
  %v2969 = vadd.f32 %v2833, %v2937
  %v2970 = vadd.f32 %v2834, %v2938
  %v2971 = vadd.f32 %v2835, %v2939
  %v2972 = vadd.f32 %v2836, %v2940
  %v2973 = vadd.f32 %v2837, %v2941
  %v2974 = vadd.f32 %v2838, %v2942
  %v2975 = vadd.f32 %v2839, %v2943
  %v2976 = vadd.f32 %v2840, %v2944
  %v2977 = vadd.f32 %v2841, %v2945
  %v2978 = vadd.f32 %v2842, %v2946
  %v2979 = vlaneseq
  %v2980 = vshrl.u32 %v2979, 7
  %v2981 = vsub.s32 1, %v2980
  %v2982 = vrot.slane %v242, %v2981
  %v2983 = vmul.f32 %v2849, %v2982
  %v2984 = vmul.f32 %v2850, %v2982
  %v2985 = vmul.f32 %v2851, %v2982
  %v2986 = vmul.f32 %v2852, %v2982
  %v2987 = vmul.f32 %v2853, %v2982
  %v2988 = vmul.f32 %v2854, %v2982
  %v2989 = vmul.f32 %v2855, %v2982
  %v2990 = vmul.f32 %v2856, %v2982
  %v2991 = vmul.f32 %v2857, %v2982
  %v2992 = vmul.f32 %v2858, %v2982
  %v2993 = vmul.f32 %v2859, %v2982
  %v2994 = vmul.f32 %v2860, %v2982
  %v2995 = vmul.f32 %v2861, %v2982
  %v2996 = vmul.f32 %v2862, %v2982
  %v2997 = vmul.f32 %v2863, %v2982
  %v2998 = vmul.f32 %v2864, %v2982
  %v2999 = vmul.f32 %v2865, %v2982
  %v3000 = vmul.f32 %v2866, %v2982
  %v3001 = vmul.f32 %v2867, %v2982
  %v3002 = vmul.f32 %v2868, %v2982
  %v3003 = vmul.f32 %v2869, %v2982
  %v3004 = vmul.f32 %v2870, %v2982
  %v3005 = vmul.f32 %v2871, %v2982
  %v3006 = vmul.f32 %v2872, %v2982
  %v3007 = vmul.f32 %v2873, %v2982
  %v3008 = vmul.f32 %v2874, %v2982
  %v3009 = vmul.f32 %v2875, %v2982
  %v3010 = vmul.f32 %v2876, %v2982
  %v3011 = vmul.f32 %v2877, %v2982
  %v3012 = vmul.f32 %v2878, %v2982
  %v3013 = vmul.f32 %v2879, %v2982
  %v3014 = vmul.f32 %v2880, %v2982
  %v3015 = vadd.f32 %v2947, %v2983
  %v3016 = vadd.f32 %v2948, %v2984
  %v3017 = vadd.f32 %v2949, %v2985
  %v3018 = vadd.f32 %v2950, %v2986
  %v3019 = vadd.f32 %v2951, %v2987
  %v3020 = vadd.f32 %v2952, %v2988
  %v3021 = vadd.f32 %v2953, %v2989
  %v3022 = vadd.f32 %v2954, %v2990
  %v3023 = vadd.f32 %v2955, %v2991
  %v3024 = vadd.f32 %v2956, %v2992
  %v3025 = vadd.f32 %v2957, %v2993
  %v3026 = vadd.f32 %v2958, %v2994
  %v3027 = vadd.f32 %v2959, %v2995
  %v3028 = vadd.f32 %v2960, %v2996
  %v3029 = vadd.f32 %v2961, %v2997
  %v3030 = vadd.f32 %v2962, %v2998
  %v3031 = vadd.f32 %v2963, %v2999
  %v3032 = vadd.f32 %v2964, %v3000
  %v3033 = vadd.f32 %v2965, %v3001
  %v3034 = vadd.f32 %v2966, %v3002
  %v3035 = vadd.f32 %v2967, %v3003
  %v3036 = vadd.f32 %v2968, %v3004
  %v3037 = vadd.f32 %v2969, %v3005
  %v3038 = vadd.f32 %v2970, %v3006
  %v3039 = vadd.f32 %v2971, %v3007
  %v3040 = vadd.f32 %v2972, %v3008
  %v3041 = vadd.f32 %v2973, %v3009
  %v3042 = vadd.f32 %v2974, %v3010
  %v3043 = vadd.f32 %v2975, %v3011
  %v3044 = vadd.f32 %v2976, %v3012
  %v3045 = vadd.f32 %v2977, %v3013
  %v3046 = vadd.f32 %v2978, %v3014
  %v3047 = vlaneseq
  %v3048 = vshrl.u32 %v3047, 7
  %v3049 = vsub.s32 1, %v3048
  %v3050 = vrot.slane %v243, %v3049
  %v3051 = vmul.f32 %v2855, %v3050
  %v3052 = vmul.f32 %v2856, %v3050
  %v3053 = vmul.f32 %v2857, %v3050
  %v3054 = vmul.f32 %v2858, %v3050
  %v3055 = vmul.f32 %v2859, %v3050
  %v3056 = vmul.f32 %v2860, %v3050
  %v3057 = vmul.f32 %v2861, %v3050
  %v3058 = vmul.f32 %v2862, %v3050
  %v3059 = vmul.f32 %v2863, %v3050
  %v3060 = vmul.f32 %v2864, %v3050
  %v3061 = vmul.f32 %v2865, %v3050
  %v3062 = vmul.f32 %v2866, %v3050
  %v3063 = vmul.f32 %v2867, %v3050
  %v3064 = vmul.f32 %v2868, %v3050
  %v3065 = vmul.f32 %v2869, %v3050
  %v3066 = vmul.f32 %v2870, %v3050
  %v3067 = vmul.f32 %v2871, %v3050
  %v3068 = vmul.f32 %v2872, %v3050
  %v3069 = vmul.f32 %v2873, %v3050
  %v3070 = vmul.f32 %v2874, %v3050
  %v3071 = vmul.f32 %v2875, %v3050
  %v3072 = vmul.f32 %v2876, %v3050
  %v3073 = vmul.f32 %v2877, %v3050
  %v3074 = vmul.f32 %v2878, %v3050
  %v3075 = vmul.f32 %v2879, %v3050
  %v3076 = vmul.f32 %v2880, %v3050
  %v3077 = vmul.f32 %v2881, %v3050
  %v3078 = vmul.f32 %v2882, %v3050
  %v3079 = vmul.f32 %v2883, %v3050
  %v3080 = vmul.f32 %v2884, %v3050
  %v3081 = vmul.f32 %v2885, %v3050
  %v3082 = vmul.f32 %v2886, %v3050
  %v3083 = vadd.f32 %v3015, %v3051
  %v3084 = vadd.f32 %v3016, %v3052
  %v3085 = vadd.f32 %v3017, %v3053
  %v3086 = vadd.f32 %v3018, %v3054
  %v3087 = vadd.f32 %v3019, %v3055
  %v3088 = vadd.f32 %v3020, %v3056
  %v3089 = vadd.f32 %v3021, %v3057
  %v3090 = vadd.f32 %v3022, %v3058
  %v3091 = vadd.f32 %v3023, %v3059
  %v3092 = vadd.f32 %v3024, %v3060
  %v3093 = vadd.f32 %v3025, %v3061
  %v3094 = vadd.f32 %v3026, %v3062
  %v3095 = vadd.f32 %v3027, %v3063
  %v3096 = vadd.f32 %v3028, %v3064
  %v3097 = vadd.f32 %v3029, %v3065
  %v3098 = vadd.f32 %v3030, %v3066
  %v3099 = vadd.f32 %v3031, %v3067
  %v3100 = vadd.f32 %v3032, %v3068
  %v3101 = vadd.f32 %v3033, %v3069
  %v3102 = vadd.f32 %v3034, %v3070
  %v3103 = vadd.f32 %v3035, %v3071
  %v3104 = vadd.f32 %v3036, %v3072
  %v3105 = vadd.f32 %v3037, %v3073
  %v3106 = vadd.f32 %v3038, %v3074
  %v3107 = vadd.f32 %v3039, %v3075
  %v3108 = vadd.f32 %v3040, %v3076
  %v3109 = vadd.f32 %v3041, %v3077
  %v3110 = vadd.f32 %v3042, %v3078
  %v3111 = vadd.f32 %v3043, %v3079
  %v3112 = vadd.f32 %v3044, %v3080
  %v3113 = vadd.f32 %v3045, %v3081
  %v3114 = vadd.f32 %v3046, %v3082
  %v3115 = vlaneseq
  %v3116 = vshrl.u32 %v3115, 7
  %v3117 = vsub.s32 1, %v3116
  %v3118 = vrot.slane %v244, %v3117
  %v3119 = vmul.f32 %v2861, %v3118
  %v3120 = vmul.f32 %v2862, %v3118
  %v3121 = vmul.f32 %v2863, %v3118
  %v3122 = vmul.f32 %v2864, %v3118
  %v3123 = vmul.f32 %v2865, %v3118
  %v3124 = vmul.f32 %v2866, %v3118
  %v3125 = vmul.f32 %v2867, %v3118
  %v3126 = vmul.f32 %v2868, %v3118
  %v3127 = vmul.f32 %v2869, %v3118
  %v3128 = vmul.f32 %v2870, %v3118
  %v3129 = vmul.f32 %v2871, %v3118
  %v3130 = vmul.f32 %v2872, %v3118
  %v3131 = vmul.f32 %v2873, %v3118
  %v3132 = vmul.f32 %v2874, %v3118
  %v3133 = vmul.f32 %v2875, %v3118
  %v3134 = vmul.f32 %v2876, %v3118
  %v3135 = vmul.f32 %v2877, %v3118
  %v3136 = vmul.f32 %v2878, %v3118
  %v3137 = vmul.f32 %v2879, %v3118
  %v3138 = vmul.f32 %v2880, %v3118
  %v3139 = vmul.f32 %v2881, %v3118
  %v3140 = vmul.f32 %v2882, %v3118
  %v3141 = vmul.f32 %v2883, %v3118
  %v3142 = vmul.f32 %v2884, %v3118
  %v3143 = vmul.f32 %v2885, %v3118
  %v3144 = vmul.f32 %v2886, %v3118
  %v3145 = vmul.f32 %v2887, %v3118
  %v3146 = vmul.f32 %v2888, %v3118
  %v3147 = vmul.f32 %v2889, %v3118
  %v3148 = vmul.f32 %v2890, %v3118
  %v3149 = vmul.f32 %v2891, %v3118
  %v3150 = vmul.f32 %v2892, %v3118
  %v3151 = vadd.f32 %v3083, %v3119
  %v3152 = vadd.f32 %v3084, %v3120
  %v3153 = vadd.f32 %v3085, %v3121
  %v3154 = vadd.f32 %v3086, %v3122
  %v3155 = vadd.f32 %v3087, %v3123
  %v3156 = vadd.f32 %v3088, %v3124
  %v3157 = vadd.f32 %v3089, %v3125
  %v3158 = vadd.f32 %v3090, %v3126
  %v3159 = vadd.f32 %v3091, %v3127
  %v3160 = vadd.f32 %v3092, %v3128
  %v3161 = vadd.f32 %v3093, %v3129
  %v3162 = vadd.f32 %v3094, %v3130
  %v3163 = vadd.f32 %v3095, %v3131
  %v3164 = vadd.f32 %v3096, %v3132
  %v3165 = vadd.f32 %v3097, %v3133
  %v3166 = vadd.f32 %v3098, %v3134
  %v3167 = vadd.f32 %v3099, %v3135
  %v3168 = vadd.f32 %v3100, %v3136
  %v3169 = vadd.f32 %v3101, %v3137
  %v3170 = vadd.f32 %v3102, %v3138
  %v3171 = vadd.f32 %v3103, %v3139
  %v3172 = vadd.f32 %v3104, %v3140
  %v3173 = vadd.f32 %v3105, %v3141
  %v3174 = vadd.f32 %v3106, %v3142
  %v3175 = vadd.f32 %v3107, %v3143
  %v3176 = vadd.f32 %v3108, %v3144
  %v3177 = vadd.f32 %v3109, %v3145
  %v3178 = vadd.f32 %v3110, %v3146
  %v3179 = vadd.f32 %v3111, %v3147
  %v3180 = vadd.f32 %v3112, %v3148
  %v3181 = vadd.f32 %v3113, %v3149
  %v3182 = vadd.f32 %v3114, %v3150
  %v3183 = vlaneseq
  %v3184 = vshrl.u32 %v3183, 7
  %v3185 = vsub.s32 1, %v3184
  %v3186 = vrot.slane %v245, %v3185
  %v3187 = vmul.f32 %v2867, %v3186
  %v3188 = vmul.f32 %v2868, %v3186
  %v3189 = vmul.f32 %v2869, %v3186
  %v3190 = vmul.f32 %v2870, %v3186
  %v3191 = vmul.f32 %v2871, %v3186
  %v3192 = vmul.f32 %v2872, %v3186
  %v3193 = vmul.f32 %v2873, %v3186
  %v3194 = vmul.f32 %v2874, %v3186
  %v3195 = vmul.f32 %v2875, %v3186
  %v3196 = vmul.f32 %v2876, %v3186
  %v3197 = vmul.f32 %v2877, %v3186
  %v3198 = vmul.f32 %v2878, %v3186
  %v3199 = vmul.f32 %v2879, %v3186
  %v3200 = vmul.f32 %v2880, %v3186
  %v3201 = vmul.f32 %v2881, %v3186
  %v3202 = vmul.f32 %v2882, %v3186
  %v3203 = vmul.f32 %v2883, %v3186
  %v3204 = vmul.f32 %v2884, %v3186
  %v3205 = vmul.f32 %v2885, %v3186
  %v3206 = vmul.f32 %v2886, %v3186
  %v3207 = vmul.f32 %v2887, %v3186
  %v3208 = vmul.f32 %v2888, %v3186
  %v3209 = vmul.f32 %v2889, %v3186
  %v3210 = vmul.f32 %v2890, %v3186
  %v3211 = vmul.f32 %v2891, %v3186
  %v3212 = vmul.f32 %v2892, %v3186
  %v3213 = vmul.f32 %v2893, %v3186
  %v3214 = vmul.f32 %v2894, %v3186
  %v3215 = vmul.f32 %v2895, %v3186
  %v3216 = vmul.f32 %v2896, %v3186
  %v3217 = vmul.f32 %v2897, %v3186
  %v3218 = vmul.f32 %v2898, %v3186
  %v3219 = vadd.f32 %v3151, %v3187
  %v3220 = vadd.f32 %v3152, %v3188
  %v3221 = vadd.f32 %v3153, %v3189
  %v3222 = vadd.f32 %v3154, %v3190
  %v3223 = vadd.f32 %v3155, %v3191
  %v3224 = vadd.f32 %v3156, %v3192
  %v3225 = vadd.f32 %v3157, %v3193
  %v3226 = vadd.f32 %v3158, %v3194
  %v3227 = vadd.f32 %v3159, %v3195
  %v3228 = vadd.f32 %v3160, %v3196
  %v3229 = vadd.f32 %v3161, %v3197
  %v3230 = vadd.f32 %v3162, %v3198
  %v3231 = vadd.f32 %v3163, %v3199
  %v3232 = vadd.f32 %v3164, %v3200
  %v3233 = vadd.f32 %v3165, %v3201
  %v3234 = vadd.f32 %v3166, %v3202
  %v3235 = vadd.f32 %v3167, %v3203
  %v3236 = vadd.f32 %v3168, %v3204
  %v3237 = vadd.f32 %v3169, %v3205
  %v3238 = vadd.f32 %v3170, %v3206
  %v3239 = vadd.f32 %v3171, %v3207
  %v3240 = vadd.f32 %v3172, %v3208
  %v3241 = vadd.f32 %v3173, %v3209
  %v3242 = vadd.f32 %v3174, %v3210
  %v3243 = vadd.f32 %v3175, %v3211
  %v3244 = vadd.f32 %v3176, %v3212
  %v3245 = vadd.f32 %v3177, %v3213
  %v3246 = vadd.f32 %v3178, %v3214
  %v3247 = vadd.f32 %v3179, %v3215
  %v3248 = vadd.f32 %v3180, %v3216
  %v3249 = vadd.f32 %v3181, %v3217
  %v3250 = vadd.f32 %v3182, %v3218
  %v3251 = vlaneseq
  %v3252 = vshrl.u32 %v3251, 7
  %v3253 = vsub.s32 1, %v3252
  %v3254 = vrot.slane %v246, %v3253
  %v3255 = vmul.f32 %v2873, %v3254
  %v3256 = vmul.f32 %v2874, %v3254
  %v3257 = vmul.f32 %v2875, %v3254
  %v3258 = vmul.f32 %v2876, %v3254
  %v3259 = vmul.f32 %v2877, %v3254
  %v3260 = vmul.f32 %v2878, %v3254
  %v3261 = vmul.f32 %v2879, %v3254
  %v3262 = vmul.f32 %v2880, %v3254
  %v3263 = vmul.f32 %v2881, %v3254
  %v3264 = vmul.f32 %v2882, %v3254
  %v3265 = vmul.f32 %v2883, %v3254
  %v3266 = vmul.f32 %v2884, %v3254
  %v3267 = vmul.f32 %v2885, %v3254
  %v3268 = vmul.f32 %v2886, %v3254
  %v3269 = vmul.f32 %v2887, %v3254
  %v3270 = vmul.f32 %v2888, %v3254
  %v3271 = vmul.f32 %v2889, %v3254
  %v3272 = vmul.f32 %v2890, %v3254
  %v3273 = vmul.f32 %v2891, %v3254
  %v3274 = vmul.f32 %v2892, %v3254
  %v3275 = vmul.f32 %v2893, %v3254
  %v3276 = vmul.f32 %v2894, %v3254
  %v3277 = vmul.f32 %v2895, %v3254
  %v3278 = vmul.f32 %v2896, %v3254
  %v3279 = vmul.f32 %v2897, %v3254
  %v3280 = vmul.f32 %v2898, %v3254
  %v3281 = vmul.f32 %v2899, %v3254
  %v3282 = vmul.f32 %v2900, %v3254
  %v3283 = vmul.f32 %v2901, %v3254
  %v3284 = vmul.f32 %v2902, %v3254
  %v3285 = vmul.f32 %v2903, %v3254
  %v3286 = vmul.f32 %v2904, %v3254
  %v3287 = vadd.f32 %v3219, %v3255
  %v3288 = vadd.f32 %v3220, %v3256
  %v3289 = vadd.f32 %v3221, %v3257
  %v3290 = vadd.f32 %v3222, %v3258
  %v3291 = vadd.f32 %v3223, %v3259
  %v3292 = vadd.f32 %v3224, %v3260
  %v3293 = vadd.f32 %v3225, %v3261
  %v3294 = vadd.f32 %v3226, %v3262
  %v3295 = vadd.f32 %v3227, %v3263
  %v3296 = vadd.f32 %v3228, %v3264
  %v3297 = vadd.f32 %v3229, %v3265
  %v3298 = vadd.f32 %v3230, %v3266
  %v3299 = vadd.f32 %v3231, %v3267
  %v3300 = vadd.f32 %v3232, %v3268
  %v3301 = vadd.f32 %v3233, %v3269
  %v3302 = vadd.f32 %v3234, %v3270
  %v3303 = vadd.f32 %v3235, %v3271
  %v3304 = vadd.f32 %v3236, %v3272
  %v3305 = vadd.f32 %v3237, %v3273
  %v3306 = vadd.f32 %v3238, %v3274
  %v3307 = vadd.f32 %v3239, %v3275
  %v3308 = vadd.f32 %v3240, %v3276
  %v3309 = vadd.f32 %v3241, %v3277
  %v3310 = vadd.f32 %v3242, %v3278
  %v3311 = vadd.f32 %v3243, %v3279
  %v3312 = vadd.f32 %v3244, %v3280
  %v3313 = vadd.f32 %v3245, %v3281
  %v3314 = vadd.f32 %v3246, %v3282
  %v3315 = vadd.f32 %v3247, %v3283
  %v3316 = vadd.f32 %v3248, %v3284
  %v3317 = vadd.f32 %v3249, %v3285
  %v3318 = vadd.f32 %v3250, %v3286
  %v3319 = vlaneseq
  %v3320 = vshrl.u32 %v3319, 7
  %v3321 = vsub.s32 1, %v3320
  %v3322 = vrot.slane %v247, %v3321
  %v3323 = vmul.f32 %v2879, %v3322
  %v3324 = vmul.f32 %v2880, %v3322
  %v3325 = vmul.f32 %v2881, %v3322
  %v3326 = vmul.f32 %v2882, %v3322
  %v3327 = vmul.f32 %v2883, %v3322
  %v3328 = vmul.f32 %v2884, %v3322
  %v3329 = vmul.f32 %v2885, %v3322
  %v3330 = vmul.f32 %v2886, %v3322
  %v3331 = vmul.f32 %v2887, %v3322
  %v3332 = vmul.f32 %v2888, %v3322
  %v3333 = vmul.f32 %v2889, %v3322
  %v3334 = vmul.f32 %v2890, %v3322
  %v3335 = vmul.f32 %v2891, %v3322
  %v3336 = vmul.f32 %v2892, %v3322
  %v3337 = vmul.f32 %v2893, %v3322
  %v3338 = vmul.f32 %v2894, %v3322
  %v3339 = vmul.f32 %v2895, %v3322
  %v3340 = vmul.f32 %v2896, %v3322
  %v3341 = vmul.f32 %v2897, %v3322
  %v3342 = vmul.f32 %v2898, %v3322
  %v3343 = vmul.f32 %v2899, %v3322
  %v3344 = vmul.f32 %v2900, %v3322
  %v3345 = vmul.f32 %v2901, %v3322
  %v3346 = vmul.f32 %v2902, %v3322
  %v3347 = vmul.f32 %v2903, %v3322
  %v3348 = vmul.f32 %v2904, %v3322
  %v3349 = vmul.f32 %v2905, %v3322
  %v3350 = vmul.f32 %v2906, %v3322
  %v3351 = vmul.f32 %v2907, %v3322
  %v3352 = vmul.f32 %v2908, %v3322
  %v3353 = vmul.f32 %v2909, %v3322
  %v3354 = vmul.f32 %v2910, %v3322
  %v3355 = vadd.f32 %v3287, %v3323
  %v3356 = vadd.f32 %v3288, %v3324
  %v3357 = vadd.f32 %v3289, %v3325
  %v3358 = vadd.f32 %v3290, %v3326
  %v3359 = vadd.f32 %v3291, %v3327
  %v3360 = vadd.f32 %v3292, %v3328
  %v3361 = vadd.f32 %v3293, %v3329
  %v3362 = vadd.f32 %v3294, %v3330
  %v3363 = vadd.f32 %v3295, %v3331
  %v3364 = vadd.f32 %v3296, %v3332
  %v3365 = vadd.f32 %v3297, %v3333
  %v3366 = vadd.f32 %v3298, %v3334
  %v3367 = vadd.f32 %v3299, %v3335
  %v3368 = vadd.f32 %v3300, %v3336
  %v3369 = vadd.f32 %v3301, %v3337
  %v3370 = vadd.f32 %v3302, %v3338
  %v3371 = vadd.f32 %v3303, %v3339
  %v3372 = vadd.f32 %v3304, %v3340
  %v3373 = vadd.f32 %v3305, %v3341
  %v3374 = vadd.f32 %v3306, %v3342
  %v3375 = vadd.f32 %v3307, %v3343
  %v3376 = vadd.f32 %v3308, %v3344
  %v3377 = vadd.f32 %v3309, %v3345
  %v3378 = vadd.f32 %v3310, %v3346
  %v3379 = vadd.f32 %v3311, %v3347
  %v3380 = vadd.f32 %v3312, %v3348
  %v3381 = vadd.f32 %v3313, %v3349
  %v3382 = vadd.f32 %v3314, %v3350
  %v3383 = vadd.f32 %v3315, %v3351
  %v3384 = vadd.f32 %v3316, %v3352
  %v3385 = vadd.f32 %v3317, %v3353
  %v3386 = vadd.f32 %v3318, %v3354
  %v3387 = vld [vmem:[%s2298 + $0xd] sm:$0xff]
  %v3388 = vld [vmem:[%s2298 + $0x15] sm:$0xff]
  %v3389 = vld [vmem:[%s2298 + $0x3d] sm:$0xff]
  %v3390 = vld [vmem:[%s2298 + $0x45] sm:$0xff]
  %v3391 = vld [vmem:[%s2298 + $0x6d] sm:$0xff]
  %v3392 = vld [vmem:[%s2298 + $0x75] sm:$0xff]
  %v3393 = vld [vmem:[%s2298 + $0x9d] sm:$0xff]
  %v3394 = vld [vmem:[%s2298 + $0xa5] sm:$0xff]
  %v3395 = vld [vmem:[%s2298 + $0xcd] sm:$0xff]
  %v3396 = vld [vmem:[%s2298 + $0xd5] sm:$0xff]
  %v3397 = vld [vmem:[%s2298 + $0xfd] sm:$0xff]
  %v3398 = vld [vmem:[%s2298 + $0x105] sm:$0xff]
  %v3399 = vld [vmem:[%s2298 + $0x12d] sm:$0xff]
  %v3400 = vld [vmem:[%s2298 + $0x135] sm:$0xff]
  %v3401 = vld [vmem:[%s2298 + $0x15d] sm:$0xff]
  %v3402 = vld [vmem:[%s2298 + $0x165] sm:$0xff]
  %v3403 = vld [vmem:[%s2298 + $0x18d] sm:$0xff]
  %v3404 = vld [vmem:[%s2298 + $0x195] sm:$0xff]
  %v3405 = vld [vmem:[%s2298 + $0x1bd] sm:$0xff]
  %v3406 = vld [vmem:[%s2298 + $0x1c5] sm:$0xff]
  %v3407 = vld [vmem:[%s2298 + $0x1ed] sm:$0xff]
  %v3408 = vld [vmem:[%s2298 + $0x1f5] sm:$0xff]
  %v3409 = vld [vmem:[%s2298 + $0x21d] sm:$0xff]
  %v3410 = vld [vmem:[%s2298 + $0x225] sm:$0xff]
  %v3411 = vld [vmem:[%s2298 + $0x24d] sm:$0xff]
  %v3412 = vld [vmem:[%s2298 + $0x255] sm:$0xff]
  %v3413 = vld [vmem:[%s2298 + $0x27d] sm:$0xff]
  %v3414 = vld [vmem:[%s2298 + $0x285] sm:$0xff]
  %v3415 = vld [vmem:[%s2298 + $0x2ad] sm:$0xff]
  %v3416 = vld [vmem:[%s2298 + $0x2b5] sm:$0xff]
  %v3417 = vld [vmem:[%s2298 + $0x2dd] sm:$0xff]
  %v3418 = vld [vmem:[%s2298 + $0x2e5] sm:$0xff]
  %v3419 = vld [vmem:[%s2298 + $0x30d] sm:$0xff]
  %v3420 = vld [vmem:[%s2298 + $0x315] sm:$0xff]
  %v3421 = vld [vmem:[%s2298 + $0x33d] sm:$0xff]
  %v3422 = vld [vmem:[%s2298 + $0x345] sm:$0xff]
  %v3423 = vld [vmem:[%s2298 + $0x36d] sm:$0xff]
  %v3424 = vld [vmem:[%s2298 + $0x375] sm:$0xff]
  %v3425 = vld [vmem:[%s2298 + $0x39d] sm:$0xff]
  %v3426 = vld [vmem:[%s2298 + $0x3a5] sm:$0xff]
  %v3427 = vld [vmem:[%s2298 + $0x3cd] sm:$0xff]
  %v3428 = vld [vmem:[%s2298 + $0x3d5] sm:$0xff]
  %v3429 = vld [vmem:[%s2298 + $0x3fd] sm:$0xff]
  %v3430 = vld [vmem:[%s2298 + $0x405] sm:$0xff]
  %v3431 = vld [vmem:[%s2298 + $0x42d] sm:$0xff]
  %v3432 = vld [vmem:[%s2298 + $0x435] sm:$0xff]
  %v3433 = vld [vmem:[%s2298 + $0x45d] sm:$0xff]
  %v3434 = vld [vmem:[%s2298 + $0x465] sm:$0xff]
  %v3435 = vld [vmem:[%s2298 + $0x48d] sm:$0xff]
  %v3436 = vld [vmem:[%s2298 + $0x495] sm:$0xff]
  %v3437 = vld [vmem:[%s2298 + $0x4bd] sm:$0xff]
  %v3438 = vld [vmem:[%s2298 + $0x4c5] sm:$0xff]
  %v3439 = vld [vmem:[%s2298 + $0x4ed] sm:$0xff]
  %v3440 = vld [vmem:[%s2298 + $0x4f5] sm:$0xff]
  %v3441 = vld [vmem:[%s2298 + $0x51d] sm:$0xff]
  %v3442 = vld [vmem:[%s2298 + $0x525] sm:$0xff]
  %v3443 = vld [vmem:[%s2298 + $0x54d] sm:$0xff]
  %v3444 = vld [vmem:[%s2298 + $0x555] sm:$0xff]
  %v3445 = vld [vmem:[%s2298 + $0x57d] sm:$0xff]
  %v3446 = vld [vmem:[%s2298 + $0x585] sm:$0xff]
  %v3447 = vld [vmem:[%s2298 + $0x5ad] sm:$0xff]
  %v3448 = vld [vmem:[%s2298 + $0x5b5] sm:$0xff]
  %v3449 = vld [vmem:[%s2298 + $0x5dd] sm:$0xff]
  %v3450 = vld [vmem:[%s2298 + $0x5e5] sm:$0xff]
  %v3451 = vld [vmem:[%s2298 + $0x60d] sm:$0xff]
  %v3452 = vld [vmem:[%s2298 + $0x615] sm:$0xff]
  %v3453 = vld [vmem:[%s2298 + $0x63d] sm:$0xff]
  %v3454 = vld [vmem:[%s2298 + $0x645] sm:$0xff]
  %v3455 = vlaneseq
  %v3456 = vshrl.u32 %v3455, 7
  %v3457 = vsub.s32 2, %v3456
  %v3458 = vrot.slane %v241, %v3457
  %v3459 = vmul.f32 %v3387, %v3458
  %v3460 = vmul.f32 %v3388, %v3458
  %v3461 = vmul.f32 %v3389, %v3458
  %v3462 = vmul.f32 %v3390, %v3458
  %v3463 = vmul.f32 %v3391, %v3458
  %v3464 = vmul.f32 %v3392, %v3458
  %v3465 = vmul.f32 %v3393, %v3458
  %v3466 = vmul.f32 %v3394, %v3458
  %v3467 = vmul.f32 %v3395, %v3458
  %v3468 = vmul.f32 %v3396, %v3458
  %v3469 = vmul.f32 %v3397, %v3458
  %v3470 = vmul.f32 %v3398, %v3458
  %v3471 = vmul.f32 %v3399, %v3458
  %v3472 = vmul.f32 %v3400, %v3458
  %v3473 = vmul.f32 %v3401, %v3458
  %v3474 = vmul.f32 %v3402, %v3458
  %v3475 = vmul.f32 %v3403, %v3458
  %v3476 = vmul.f32 %v3404, %v3458
  %v3477 = vmul.f32 %v3405, %v3458
  %v3478 = vmul.f32 %v3406, %v3458
  %v3479 = vmul.f32 %v3407, %v3458
  %v3480 = vmul.f32 %v3408, %v3458
  %v3481 = vmul.f32 %v3409, %v3458
  %v3482 = vmul.f32 %v3410, %v3458
  %v3483 = vmul.f32 %v3411, %v3458
  %v3484 = vmul.f32 %v3412, %v3458
  %v3485 = vmul.f32 %v3413, %v3458
  %v3486 = vmul.f32 %v3414, %v3458
  %v3487 = vmul.f32 %v3415, %v3458
  %v3488 = vmul.f32 %v3416, %v3458
  %v3489 = vmul.f32 %v3417, %v3458
  %v3490 = vmul.f32 %v3418, %v3458
  %v3491 = vadd.f32 %v3355, %v3459
  %v3492 = vadd.f32 %v3356, %v3460
  %v3493 = vadd.f32 %v3357, %v3461
  %v3494 = vadd.f32 %v3358, %v3462
  %v3495 = vadd.f32 %v3359, %v3463
  %v3496 = vadd.f32 %v3360, %v3464
  %v3497 = vadd.f32 %v3361, %v3465
  %v3498 = vadd.f32 %v3362, %v3466
  %v3499 = vadd.f32 %v3363, %v3467
  %v3500 = vadd.f32 %v3364, %v3468
  %v3501 = vadd.f32 %v3365, %v3469
  %v3502 = vadd.f32 %v3366, %v3470
  %v3503 = vadd.f32 %v3367, %v3471
  %v3504 = vadd.f32 %v3368, %v3472
  %v3505 = vadd.f32 %v3369, %v3473
  %v3506 = vadd.f32 %v3370, %v3474
  %v3507 = vadd.f32 %v3371, %v3475
  %v3508 = vadd.f32 %v3372, %v3476
  %v3509 = vadd.f32 %v3373, %v3477
  %v3510 = vadd.f32 %v3374, %v3478
  %v3511 = vadd.f32 %v3375, %v3479
  %v3512 = vadd.f32 %v3376, %v3480
  %v3513 = vadd.f32 %v3377, %v3481
  %v3514 = vadd.f32 %v3378, %v3482
  %v3515 = vadd.f32 %v3379, %v3483
  %v3516 = vadd.f32 %v3380, %v3484
  %v3517 = vadd.f32 %v3381, %v3485
  %v3518 = vadd.f32 %v3382, %v3486
  %v3519 = vadd.f32 %v3383, %v3487
  %v3520 = vadd.f32 %v3384, %v3488
  %v3521 = vadd.f32 %v3385, %v3489
  %v3522 = vadd.f32 %v3386, %v3490
  %v3523 = vlaneseq
  %v3524 = vshrl.u32 %v3523, 7
  %v3525 = vsub.s32 2, %v3524
  %v3526 = vrot.slane %v242, %v3525
  %v3527 = vmul.f32 %v3393, %v3526
  %v3528 = vmul.f32 %v3394, %v3526
  %v3529 = vmul.f32 %v3395, %v3526
  %v3530 = vmul.f32 %v3396, %v3526
  %v3531 = vmul.f32 %v3397, %v3526
  %v3532 = vmul.f32 %v3398, %v3526
  %v3533 = vmul.f32 %v3399, %v3526
  %v3534 = vmul.f32 %v3400, %v3526
  %v3535 = vmul.f32 %v3401, %v3526
  %v3536 = vmul.f32 %v3402, %v3526
  %v3537 = vmul.f32 %v3403, %v3526
  %v3538 = vmul.f32 %v3404, %v3526
  %v3539 = vmul.f32 %v3405, %v3526
  %v3540 = vmul.f32 %v3406, %v3526
  %v3541 = vmul.f32 %v3407, %v3526
  %v3542 = vmul.f32 %v3408, %v3526
  %v3543 = vmul.f32 %v3409, %v3526
  %v3544 = vmul.f32 %v3410, %v3526
  %v3545 = vmul.f32 %v3411, %v3526
  %v3546 = vmul.f32 %v3412, %v3526
  %v3547 = vmul.f32 %v3413, %v3526
  %v3548 = vmul.f32 %v3414, %v3526
  %v3549 = vmul.f32 %v3415, %v3526
  %v3550 = vmul.f32 %v3416, %v3526
  %v3551 = vmul.f32 %v3417, %v3526
  %v3552 = vmul.f32 %v3418, %v3526
  %v3553 = vmul.f32 %v3419, %v3526
  %v3554 = vmul.f32 %v3420, %v3526
  %v3555 = vmul.f32 %v3421, %v3526
  %v3556 = vmul.f32 %v3422, %v3526
  %v3557 = vmul.f32 %v3423, %v3526
  %v3558 = vmul.f32 %v3424, %v3526
  %v3559 = vadd.f32 %v3491, %v3527
  %v3560 = vadd.f32 %v3492, %v3528
  %v3561 = vadd.f32 %v3493, %v3529
  %v3562 = vadd.f32 %v3494, %v3530
  %v3563 = vadd.f32 %v3495, %v3531
  %v3564 = vadd.f32 %v3496, %v3532
  %v3565 = vadd.f32 %v3497, %v3533
  %v3566 = vadd.f32 %v3498, %v3534
  %v3567 = vadd.f32 %v3499, %v3535
  %v3568 = vadd.f32 %v3500, %v3536
  %v3569 = vadd.f32 %v3501, %v3537
  %v3570 = vadd.f32 %v3502, %v3538
  %v3571 = vadd.f32 %v3503, %v3539
  %v3572 = vadd.f32 %v3504, %v3540
  %v3573 = vadd.f32 %v3505, %v3541
  %v3574 = vadd.f32 %v3506, %v3542
  %v3575 = vadd.f32 %v3507, %v3543
  %v3576 = vadd.f32 %v3508, %v3544
  %v3577 = vadd.f32 %v3509, %v3545
  %v3578 = vadd.f32 %v3510, %v3546
  %v3579 = vadd.f32 %v3511, %v3547
  %v3580 = vadd.f32 %v3512, %v3548
  %v3581 = vadd.f32 %v3513, %v3549
  %v3582 = vadd.f32 %v3514, %v3550
  %v3583 = vadd.f32 %v3515, %v3551
  %v3584 = vadd.f32 %v3516, %v3552
  %v3585 = vadd.f32 %v3517, %v3553
  %v3586 = vadd.f32 %v3518, %v3554
  %v3587 = vadd.f32 %v3519, %v3555
  %v3588 = vadd.f32 %v3520, %v3556
  %v3589 = vadd.f32 %v3521, %v3557
  %v3590 = vadd.f32 %v3522, %v3558
  %v3591 = vlaneseq
  %v3592 = vshrl.u32 %v3591, 7
  %v3593 = vsub.s32 2, %v3592
  %v3594 = vrot.slane %v243, %v3593
  %v3595 = vmul.f32 %v3399, %v3594
  %v3596 = vmul.f32 %v3400, %v3594
  %v3597 = vmul.f32 %v3401, %v3594
  %v3598 = vmul.f32 %v3402, %v3594
  %v3599 = vmul.f32 %v3403, %v3594
  %v3600 = vmul.f32 %v3404, %v3594
  %v3601 = vmul.f32 %v3405, %v3594
  %v3602 = vmul.f32 %v3406, %v3594
  %v3603 = vmul.f32 %v3407, %v3594
  %v3604 = vmul.f32 %v3408, %v3594
  %v3605 = vmul.f32 %v3409, %v3594
  %v3606 = vmul.f32 %v3410, %v3594
  %v3607 = vmul.f32 %v3411, %v3594
  %v3608 = vmul.f32 %v3412, %v3594
  %v3609 = vmul.f32 %v3413, %v3594
  %v3610 = vmul.f32 %v3414, %v3594
  %v3611 = vmul.f32 %v3415, %v3594
  %v3612 = vmul.f32 %v3416, %v3594
  %v3613 = vmul.f32 %v3417, %v3594
  %v3614 = vmul.f32 %v3418, %v3594
  %v3615 = vmul.f32 %v3419, %v3594
  %v3616 = vmul.f32 %v3420, %v3594
  %v3617 = vmul.f32 %v3421, %v3594
  %v3618 = vmul.f32 %v3422, %v3594
  %v3619 = vmul.f32 %v3423, %v3594
  %v3620 = vmul.f32 %v3424, %v3594
  %v3621 = vmul.f32 %v3425, %v3594
  %v3622 = vmul.f32 %v3426, %v3594
  %v3623 = vmul.f32 %v3427, %v3594
  %v3624 = vmul.f32 %v3428, %v3594
  %v3625 = vmul.f32 %v3429, %v3594
  %v3626 = vmul.f32 %v3430, %v3594
  %v3627 = vadd.f32 %v3559, %v3595
  %v3628 = vadd.f32 %v3560, %v3596
  %v3629 = vadd.f32 %v3561, %v3597
  %v3630 = vadd.f32 %v3562, %v3598
  %v3631 = vadd.f32 %v3563, %v3599
  %v3632 = vadd.f32 %v3564, %v3600
  %v3633 = vadd.f32 %v3565, %v3601
  %v3634 = vadd.f32 %v3566, %v3602
  %v3635 = vadd.f32 %v3567, %v3603
  %v3636 = vadd.f32 %v3568, %v3604
  %v3637 = vadd.f32 %v3569, %v3605
  %v3638 = vadd.f32 %v3570, %v3606
  %v3639 = vadd.f32 %v3571, %v3607
  %v3640 = vadd.f32 %v3572, %v3608
  %v3641 = vadd.f32 %v3573, %v3609
  %v3642 = vadd.f32 %v3574, %v3610
  %v3643 = vadd.f32 %v3575, %v3611
  %v3644 = vadd.f32 %v3576, %v3612
  %v3645 = vadd.f32 %v3577, %v3613
  %v3646 = vadd.f32 %v3578, %v3614
  %v3647 = vadd.f32 %v3579, %v3615
  %v3648 = vadd.f32 %v3580, %v3616
  %v3649 = vadd.f32 %v3581, %v3617
  %v3650 = vadd.f32 %v3582, %v3618
  %v3651 = vadd.f32 %v3583, %v3619
  %v3652 = vadd.f32 %v3584, %v3620
  %v3653 = vadd.f32 %v3585, %v3621
  %v3654 = vadd.f32 %v3586, %v3622
  %v3655 = vadd.f32 %v3587, %v3623
  %v3656 = vadd.f32 %v3588, %v3624
  %v3657 = vadd.f32 %v3589, %v3625
  %v3658 = vadd.f32 %v3590, %v3626
  %v3659 = vlaneseq
  %v3660 = vshrl.u32 %v3659, 7
  %v3661 = vsub.s32 2, %v3660
  %v3662 = vrot.slane %v244, %v3661
  %v3663 = vmul.f32 %v3405, %v3662
  %v3664 = vmul.f32 %v3406, %v3662
  %v3665 = vmul.f32 %v3407, %v3662
  %v3666 = vmul.f32 %v3408, %v3662
  %v3667 = vmul.f32 %v3409, %v3662
  %v3668 = vmul.f32 %v3410, %v3662
  %v3669 = vmul.f32 %v3411, %v3662
  %v3670 = vmul.f32 %v3412, %v3662
  %v3671 = vmul.f32 %v3413, %v3662
  %v3672 = vmul.f32 %v3414, %v3662
  %v3673 = vmul.f32 %v3415, %v3662
  %v3674 = vmul.f32 %v3416, %v3662
  %v3675 = vmul.f32 %v3417, %v3662
  %v3676 = vmul.f32 %v3418, %v3662
  %v3677 = vmul.f32 %v3419, %v3662
  %v3678 = vmul.f32 %v3420, %v3662
  %v3679 = vmul.f32 %v3421, %v3662
  %v3680 = vmul.f32 %v3422, %v3662
  %v3681 = vmul.f32 %v3423, %v3662
  %v3682 = vmul.f32 %v3424, %v3662
  %v3683 = vmul.f32 %v3425, %v3662
  %v3684 = vmul.f32 %v3426, %v3662
  %v3685 = vmul.f32 %v3427, %v3662
  %v3686 = vmul.f32 %v3428, %v3662
  %v3687 = vmul.f32 %v3429, %v3662
  %v3688 = vmul.f32 %v3430, %v3662
  %v3689 = vmul.f32 %v3431, %v3662
  %v3690 = vmul.f32 %v3432, %v3662
  %v3691 = vmul.f32 %v3433, %v3662
  %v3692 = vmul.f32 %v3434, %v3662
  %v3693 = vmul.f32 %v3435, %v3662
  %v3694 = vmul.f32 %v3436, %v3662
  %v3695 = vadd.f32 %v3627, %v3663
  %v3696 = vadd.f32 %v3628, %v3664
  %v3697 = vadd.f32 %v3629, %v3665
  %v3698 = vadd.f32 %v3630, %v3666
  %v3699 = vadd.f32 %v3631, %v3667
  %v3700 = vadd.f32 %v3632, %v3668
  %v3701 = vadd.f32 %v3633, %v3669
  %v3702 = vadd.f32 %v3634, %v3670
  %v3703 = vadd.f32 %v3635, %v3671
  %v3704 = vadd.f32 %v3636, %v3672
  %v3705 = vadd.f32 %v3637, %v3673
  %v3706 = vadd.f32 %v3638, %v3674
  %v3707 = vadd.f32 %v3639, %v3675
  %v3708 = vadd.f32 %v3640, %v3676
  %v3709 = vadd.f32 %v3641, %v3677
  %v3710 = vadd.f32 %v3642, %v3678
  %v3711 = vadd.f32 %v3643, %v3679
  %v3712 = vadd.f32 %v3644, %v3680
  %v3713 = vadd.f32 %v3645, %v3681
  %v3714 = vadd.f32 %v3646, %v3682
  %v3715 = vadd.f32 %v3647, %v3683
  %v3716 = vadd.f32 %v3648, %v3684
  %v3717 = vadd.f32 %v3649, %v3685
  %v3718 = vadd.f32 %v3650, %v3686
  %v3719 = vadd.f32 %v3651, %v3687
  %v3720 = vadd.f32 %v3652, %v3688
  %v3721 = vadd.f32 %v3653, %v3689
  %v3722 = vadd.f32 %v3654, %v3690
  %v3723 = vadd.f32 %v3655, %v3691
  %v3724 = vadd.f32 %v3656, %v3692
  %v3725 = vadd.f32 %v3657, %v3693
  %v3726 = vadd.f32 %v3658, %v3694
  %v3727 = vlaneseq
  %v3728 = vshrl.u32 %v3727, 7
  %v3729 = vsub.s32 2, %v3728
  %v3730 = vrot.slane %v245, %v3729
  %v3731 = vmul.f32 %v3411, %v3730
  %v3732 = vmul.f32 %v3412, %v3730
  %v3733 = vmul.f32 %v3413, %v3730
  %v3734 = vmul.f32 %v3414, %v3730
  %v3735 = vmul.f32 %v3415, %v3730
  %v3736 = vmul.f32 %v3416, %v3730
  %v3737 = vmul.f32 %v3417, %v3730
  %v3738 = vmul.f32 %v3418, %v3730
  %v3739 = vmul.f32 %v3419, %v3730
  %v3740 = vmul.f32 %v3420, %v3730
  %v3741 = vmul.f32 %v3421, %v3730
  %v3742 = vmul.f32 %v3422, %v3730
  %v3743 = vmul.f32 %v3423, %v3730
  %v3744 = vmul.f32 %v3424, %v3730
  %v3745 = vmul.f32 %v3425, %v3730
  %v3746 = vmul.f32 %v3426, %v3730
  %v3747 = vmul.f32 %v3427, %v3730
  %v3748 = vmul.f32 %v3428, %v3730
  %v3749 = vmul.f32 %v3429, %v3730
  %v3750 = vmul.f32 %v3430, %v3730
  %v3751 = vmul.f32 %v3431, %v3730
  %v3752 = vmul.f32 %v3432, %v3730
  %v3753 = vmul.f32 %v3433, %v3730
  %v3754 = vmul.f32 %v3434, %v3730
  %v3755 = vmul.f32 %v3435, %v3730
  %v3756 = vmul.f32 %v3436, %v3730
  %v3757 = vmul.f32 %v3437, %v3730
  %v3758 = vmul.f32 %v3438, %v3730
  %v3759 = vmul.f32 %v3439, %v3730
  %v3760 = vmul.f32 %v3440, %v3730
  %v3761 = vmul.f32 %v3441, %v3730
  %v3762 = vmul.f32 %v3442, %v3730
  %v3763 = vadd.f32 %v3695, %v3731
  %v3764 = vadd.f32 %v3696, %v3732
  %v3765 = vadd.f32 %v3697, %v3733
  %v3766 = vadd.f32 %v3698, %v3734
  %v3767 = vadd.f32 %v3699, %v3735
  %v3768 = vadd.f32 %v3700, %v3736
  %v3769 = vadd.f32 %v3701, %v3737
  %v3770 = vadd.f32 %v3702, %v3738
  %v3771 = vadd.f32 %v3703, %v3739
  %v3772 = vadd.f32 %v3704, %v3740
  %v3773 = vadd.f32 %v3705, %v3741
  %v3774 = vadd.f32 %v3706, %v3742
  %v3775 = vadd.f32 %v3707, %v3743
  %v3776 = vadd.f32 %v3708, %v3744
  %v3777 = vadd.f32 %v3709, %v3745
  %v3778 = vadd.f32 %v3710, %v3746
  %v3779 = vadd.f32 %v3711, %v3747
  %v3780 = vadd.f32 %v3712, %v3748
  %v3781 = vadd.f32 %v3713, %v3749
  %v3782 = vadd.f32 %v3714, %v3750
  %v3783 = vadd.f32 %v3715, %v3751
  %v3784 = vadd.f32 %v3716, %v3752
  %v3785 = vadd.f32 %v3717, %v3753
  %v3786 = vadd.f32 %v3718, %v3754
  %v3787 = vadd.f32 %v3719, %v3755
  %v3788 = vadd.f32 %v3720, %v3756
  %v3789 = vadd.f32 %v3721, %v3757
  %v3790 = vadd.f32 %v3722, %v3758
  %v3791 = vadd.f32 %v3723, %v3759
  %v3792 = vadd.f32 %v3724, %v3760
  %v3793 = vadd.f32 %v3725, %v3761
  %v3794 = vadd.f32 %v3726, %v3762
  %v3795 = vlaneseq
  %v3796 = vshrl.u32 %v3795, 7
  %v3797 = vsub.s32 2, %v3796
  %v3798 = vrot.slane %v246, %v3797
  %v3799 = vmul.f32 %v3417, %v3798
  %v3800 = vmul.f32 %v3418, %v3798
  %v3801 = vmul.f32 %v3419, %v3798
  %v3802 = vmul.f32 %v3420, %v3798
  %v3803 = vmul.f32 %v3421, %v3798
  %v3804 = vmul.f32 %v3422, %v3798
  %v3805 = vmul.f32 %v3423, %v3798
  %v3806 = vmul.f32 %v3424, %v3798
  %v3807 = vmul.f32 %v3425, %v3798
  %v3808 = vmul.f32 %v3426, %v3798
  %v3809 = vmul.f32 %v3427, %v3798
  %v3810 = vmul.f32 %v3428, %v3798
  %v3811 = vmul.f32 %v3429, %v3798
  %v3812 = vmul.f32 %v3430, %v3798
  %v3813 = vmul.f32 %v3431, %v3798
  %v3814 = vmul.f32 %v3432, %v3798
  %v3815 = vmul.f32 %v3433, %v3798
  %v3816 = vmul.f32 %v3434, %v3798
  %v3817 = vmul.f32 %v3435, %v3798
  %v3818 = vmul.f32 %v3436, %v3798
  %v3819 = vmul.f32 %v3437, %v3798
  %v3820 = vmul.f32 %v3438, %v3798
  %v3821 = vmul.f32 %v3439, %v3798
  %v3822 = vmul.f32 %v3440, %v3798
  %v3823 = vmul.f32 %v3441, %v3798
  %v3824 = vmul.f32 %v3442, %v3798
  %v3825 = vmul.f32 %v3443, %v3798
  %v3826 = vmul.f32 %v3444, %v3798
  %v3827 = vmul.f32 %v3445, %v3798
  %v3828 = vmul.f32 %v3446, %v3798
  %v3829 = vmul.f32 %v3447, %v3798
  %v3830 = vmul.f32 %v3448, %v3798
  %v3831 = vadd.f32 %v3763, %v3799
  %v3832 = vadd.f32 %v3764, %v3800
  %v3833 = vadd.f32 %v3765, %v3801
  %v3834 = vadd.f32 %v3766, %v3802
  %v3835 = vadd.f32 %v3767, %v3803
  %v3836 = vadd.f32 %v3768, %v3804
  %v3837 = vadd.f32 %v3769, %v3805
  %v3838 = vadd.f32 %v3770, %v3806
  %v3839 = vadd.f32 %v3771, %v3807
  %v3840 = vadd.f32 %v3772, %v3808
  %v3841 = vadd.f32 %v3773, %v3809
  %v3842 = vadd.f32 %v3774, %v3810
  %v3843 = vadd.f32 %v3775, %v3811
  %v3844 = vadd.f32 %v3776, %v3812
  %v3845 = vadd.f32 %v3777, %v3813
  %v3846 = vadd.f32 %v3778, %v3814
  %v3847 = vadd.f32 %v3779, %v3815
  %v3848 = vadd.f32 %v3780, %v3816
  %v3849 = vadd.f32 %v3781, %v3817
  %v3850 = vadd.f32 %v3782, %v3818
  %v3851 = vadd.f32 %v3783, %v3819
  %v3852 = vadd.f32 %v3784, %v3820
  %v3853 = vadd.f32 %v3785, %v3821
  %v3854 = vadd.f32 %v3786, %v3822
  %v3855 = vadd.f32 %v3787, %v3823
  %v3856 = vadd.f32 %v3788, %v3824
  %v3857 = vadd.f32 %v3789, %v3825
  %v3858 = vadd.f32 %v3790, %v3826
  %v3859 = vadd.f32 %v3791, %v3827
  %v3860 = vadd.f32 %v3792, %v3828
  %v3861 = vadd.f32 %v3793, %v3829
  %v3862 = vadd.f32 %v3794, %v3830
  %v3863 = vlaneseq
  %v3864 = vshrl.u32 %v3863, 7
  %v3865 = vsub.s32 2, %v3864
  %v3866 = vrot.slane %v247, %v3865
  %v3867 = vmul.f32 %v3423, %v3866
  %v3868 = vmul.f32 %v3424, %v3866
  %v3869 = vmul.f32 %v3425, %v3866
  %v3870 = vmul.f32 %v3426, %v3866
  %v3871 = vmul.f32 %v3427, %v3866
  %v3872 = vmul.f32 %v3428, %v3866
  %v3873 = vmul.f32 %v3429, %v3866
  %v3874 = vmul.f32 %v3430, %v3866
  %v3875 = vmul.f32 %v3431, %v3866
  %v3876 = vmul.f32 %v3432, %v3866
  %v3877 = vmul.f32 %v3433, %v3866
  %v3878 = vmul.f32 %v3434, %v3866
  %v3879 = vmul.f32 %v3435, %v3866
  %v3880 = vmul.f32 %v3436, %v3866
  %v3881 = vmul.f32 %v3437, %v3866
  %v3882 = vmul.f32 %v3438, %v3866
  %v3883 = vmul.f32 %v3439, %v3866
  %v3884 = vmul.f32 %v3440, %v3866
  %v3885 = vmul.f32 %v3441, %v3866
  %v3886 = vmul.f32 %v3442, %v3866
  %v3887 = vmul.f32 %v3443, %v3866
  %v3888 = vmul.f32 %v3444, %v3866
  %v3889 = vmul.f32 %v3445, %v3866
  %v3890 = vmul.f32 %v3446, %v3866
  %v3891 = vmul.f32 %v3447, %v3866
  %v3892 = vmul.f32 %v3448, %v3866
  %v3893 = vmul.f32 %v3449, %v3866
  %v3894 = vmul.f32 %v3450, %v3866
  %v3895 = vmul.f32 %v3451, %v3866
  %v3896 = vmul.f32 %v3452, %v3866
  %v3897 = vmul.f32 %v3453, %v3866
  %v3898 = vmul.f32 %v3454, %v3866
  %v3899 = vadd.f32 %v3831, %v3867
  %v3900 = vadd.f32 %v3832, %v3868
  %v3901 = vadd.f32 %v3833, %v3869
  %v3902 = vadd.f32 %v3834, %v3870
  %v3903 = vadd.f32 %v3835, %v3871
  %v3904 = vadd.f32 %v3836, %v3872
  %v3905 = vadd.f32 %v3837, %v3873
  %v3906 = vadd.f32 %v3838, %v3874
  %v3907 = vadd.f32 %v3839, %v3875
  %v3908 = vadd.f32 %v3840, %v3876
  %v3909 = vadd.f32 %v3841, %v3877
  %v3910 = vadd.f32 %v3842, %v3878
  %v3911 = vadd.f32 %v3843, %v3879
  %v3912 = vadd.f32 %v3844, %v3880
  %v3913 = vadd.f32 %v3845, %v3881
  %v3914 = vadd.f32 %v3846, %v3882
  %v3915 = vadd.f32 %v3847, %v3883
  %v3916 = vadd.f32 %v3848, %v3884
  %v3917 = vadd.f32 %v3849, %v3885
  %v3918 = vadd.f32 %v3850, %v3886
  %v3919 = vadd.f32 %v3851, %v3887
  %v3920 = vadd.f32 %v3852, %v3888
  %v3921 = vadd.f32 %v3853, %v3889
  %v3922 = vadd.f32 %v3854, %v3890
  %v3923 = vadd.f32 %v3855, %v3891
  %v3924 = vadd.f32 %v3856, %v3892
  %v3925 = vadd.f32 %v3857, %v3893
  %v3926 = vadd.f32 %v3858, %v3894
  %v3927 = vadd.f32 %v3859, %v3895
  %v3928 = vadd.f32 %v3860, %v3896
  %v3929 = vadd.f32 %v3861, %v3897
  %v3930 = vadd.f32 %v3862, %v3898
  %v3931 = vld [vmem:[%s2298 + $0x10] sm:$0xff]
  %v3932 = vld [vmem:[%s2298 + $0x18] sm:$0xff]
  %v3933 = vld [vmem:[%s2298 + $0x40] sm:$0xff]
  %v3934 = vld [vmem:[%s2298 + $0x48] sm:$0xff]
  %v3935 = vld [vmem:[%s2298 + $0x70] sm:$0xff]
  %v3936 = vld [vmem:[%s2298 + $0x78] sm:$0xff]
  %v3937 = vld [vmem:[%s2298 + $0xa0] sm:$0xff]
  %v3938 = vld [vmem:[%s2298 + $0xa8] sm:$0xff]
  %v3939 = vld [vmem:[%s2298 + $0xd0] sm:$0xff]
  %v3940 = vld [vmem:[%s2298 + $0xd8] sm:$0xff]
  %v3941 = vld [vmem:[%s2298 + $0x100] sm:$0xff]
  %v3942 = vld [vmem:[%s2298 + $0x108] sm:$0xff]
  %v3943 = vld [vmem:[%s2298 + $0x130] sm:$0xff]
  %v3944 = vld [vmem:[%s2298 + $0x138] sm:$0xff]
  %v3945 = vld [vmem:[%s2298 + $0x160] sm:$0xff]
  %v3946 = vld [vmem:[%s2298 + $0x168] sm:$0xff]
  %v3947 = vld [vmem:[%s2298 + $0x190] sm:$0xff]
  %v3948 = vld [vmem:[%s2298 + $0x198] sm:$0xff]
  %v3949 = vld [vmem:[%s2298 + $0x1c0] sm:$0xff]
  %v3950 = vld [vmem:[%s2298 + $0x1c8] sm:$0xff]
  %v3951 = vld [vmem:[%s2298 + $0x1f0] sm:$0xff]
  %v3952 = vld [vmem:[%s2298 + $0x1f8] sm:$0xff]
  %v3953 = vld [vmem:[%s2298 + $0x220] sm:$0xff]
  %v3954 = vld [vmem:[%s2298 + $0x228] sm:$0xff]
  %v3955 = vld [vmem:[%s2298 + $0x250] sm:$0xff]
  %v3956 = vld [vmem:[%s2298 + $0x258] sm:$0xff]
  %v3957 = vld [vmem:[%s2298 + $0x280] sm:$0xff]
  %v3958 = vld [vmem:[%s2298 + $0x288] sm:$0xff]
  %v3959 = vld [vmem:[%s2298 + $0x2b0] sm:$0xff]
  %v3960 = vld [vmem:[%s2298 + $0x2b8] sm:$0xff]
  %v3961 = vld [vmem:[%s2298 + $0x2e0] sm:$0xff]
  %v3962 = vld [vmem:[%s2298 + $0x2e8] sm:$0xff]
  %v3963 = vld [vmem:[%s2298 + $0x310] sm:$0xff]
  %v3964 = vld [vmem:[%s2298 + $0x318] sm:$0xff]
  %v3965 = vld [vmem:[%s2298 + $0x340] sm:$0xff]
  %v3966 = vld [vmem:[%s2298 + $0x348] sm:$0xff]
  %v3967 = vld [vmem:[%s2298 + $0x370] sm:$0xff]
  %v3968 = vld [vmem:[%s2298 + $0x378] sm:$0xff]
  %v3969 = vld [vmem:[%s2298 + $0x3a0] sm:$0xff]
  %v3970 = vld [vmem:[%s2298 + $0x3a8] sm:$0xff]
  %v3971 = vld [vmem:[%s2298 + $0x3d0] sm:$0xff]
  %v3972 = vld [vmem:[%s2298 + $0x3d8] sm:$0xff]
  %v3973 = vld [vmem:[%s2298 + $0x400] sm:$0xff]
  %v3974 = vld [vmem:[%s2298 + $0x408] sm:$0xff]
  %v3975 = vld [vmem:[%s2298 + $0x430] sm:$0xff]
  %v3976 = vld [vmem:[%s2298 + $0x438] sm:$0xff]
  %v3977 = vld [vmem:[%s2298 + $0x460] sm:$0xff]
  %v3978 = vld [vmem:[%s2298 + $0x468] sm:$0xff]
  %v3979 = vld [vmem:[%s2298 + $0x490] sm:$0xff]
  %v3980 = vld [vmem:[%s2298 + $0x498] sm:$0xff]
  %v3981 = vld [vmem:[%s2298 + $0x4c0] sm:$0xff]
  %v3982 = vld [vmem:[%s2298 + $0x4c8] sm:$0xff]
  %v3983 = vld [vmem:[%s2298 + $0x4f0] sm:$0xff]
  %v3984 = vld [vmem:[%s2298 + $0x4f8] sm:$0xff]
  %v3985 = vld [vmem:[%s2298 + $0x520] sm:$0xff]
  %v3986 = vld [vmem:[%s2298 + $0x528] sm:$0xff]
  %v3987 = vld [vmem:[%s2298 + $0x550] sm:$0xff]
  %v3988 = vld [vmem:[%s2298 + $0x558] sm:$0xff]
  %v3989 = vld [vmem:[%s2298 + $0x580] sm:$0xff]
  %v3990 = vld [vmem:[%s2298 + $0x588] sm:$0xff]
  %v3991 = vld [vmem:[%s2298 + $0x5b0] sm:$0xff]
  %v3992 = vld [vmem:[%s2298 + $0x5b8] sm:$0xff]
  %v3993 = vld [vmem:[%s2298 + $0x5e0] sm:$0xff]
  %v3994 = vld [vmem:[%s2298 + $0x5e8] sm:$0xff]
  %v3995 = vld [vmem:[%s2298 + $0x610] sm:$0xff]
  %v3996 = vld [vmem:[%s2298 + $0x618] sm:$0xff]
  %v3997 = vld [vmem:[%s2298 + $0x640] sm:$0xff]
  %v3998 = vld [vmem:[%s2298 + $0x648] sm:$0xff]
  %v3999 = vlaneseq
  %v4000 = vshrl.u32 %v3999, 7
  %v4001 = vsub.s32 3, %v4000
  %v4002 = vrot.slane %v241, %v4001
  %v4003 = vmul.f32 %v3931, %v4002
  %v4004 = vmul.f32 %v3932, %v4002
  %v4005 = vmul.f32 %v3933, %v4002
  %v4006 = vmul.f32 %v3934, %v4002
  %v4007 = vmul.f32 %v3935, %v4002
  %v4008 = vmul.f32 %v3936, %v4002
  %v4009 = vmul.f32 %v3937, %v4002
  %v4010 = vmul.f32 %v3938, %v4002
  %v4011 = vmul.f32 %v3939, %v4002
  %v4012 = vmul.f32 %v3940, %v4002
  %v4013 = vmul.f32 %v3941, %v4002
  %v4014 = vmul.f32 %v3942, %v4002
  %v4015 = vmul.f32 %v3943, %v4002
  %v4016 = vmul.f32 %v3944, %v4002
  %v4017 = vmul.f32 %v3945, %v4002
  %v4018 = vmul.f32 %v3946, %v4002
  %v4019 = vmul.f32 %v3947, %v4002
  %v4020 = vmul.f32 %v3948, %v4002
  %v4021 = vmul.f32 %v3949, %v4002
  %v4022 = vmul.f32 %v3950, %v4002
  %v4023 = vmul.f32 %v3951, %v4002
  %v4024 = vmul.f32 %v3952, %v4002
  %v4025 = vmul.f32 %v3953, %v4002
  %v4026 = vmul.f32 %v3954, %v4002
  %v4027 = vmul.f32 %v3955, %v4002
  %v4028 = vmul.f32 %v3956, %v4002
  %v4029 = vmul.f32 %v3957, %v4002
  %v4030 = vmul.f32 %v3958, %v4002
  %v4031 = vmul.f32 %v3959, %v4002
  %v4032 = vmul.f32 %v3960, %v4002
  %v4033 = vmul.f32 %v3961, %v4002
  %v4034 = vmul.f32 %v3962, %v4002
  %v4035 = vadd.f32 %v3899, %v4003
  %v4036 = vadd.f32 %v3900, %v4004
  %v4037 = vadd.f32 %v3901, %v4005
  %v4038 = vadd.f32 %v3902, %v4006
  %v4039 = vadd.f32 %v3903, %v4007
  %v4040 = vadd.f32 %v3904, %v4008
  %v4041 = vadd.f32 %v3905, %v4009
  %v4042 = vadd.f32 %v3906, %v4010
  %v4043 = vadd.f32 %v3907, %v4011
  %v4044 = vadd.f32 %v3908, %v4012
  %v4045 = vadd.f32 %v3909, %v4013
  %v4046 = vadd.f32 %v3910, %v4014
  %v4047 = vadd.f32 %v3911, %v4015
  %v4048 = vadd.f32 %v3912, %v4016
  %v4049 = vadd.f32 %v3913, %v4017
  %v4050 = vadd.f32 %v3914, %v4018
  %v4051 = vadd.f32 %v3915, %v4019
  %v4052 = vadd.f32 %v3916, %v4020
  %v4053 = vadd.f32 %v3917, %v4021
  %v4054 = vadd.f32 %v3918, %v4022
  %v4055 = vadd.f32 %v3919, %v4023
  %v4056 = vadd.f32 %v3920, %v4024
  %v4057 = vadd.f32 %v3921, %v4025
  %v4058 = vadd.f32 %v3922, %v4026
  %v4059 = vadd.f32 %v3923, %v4027
  %v4060 = vadd.f32 %v3924, %v4028
  %v4061 = vadd.f32 %v3925, %v4029
  %v4062 = vadd.f32 %v3926, %v4030
  %v4063 = vadd.f32 %v3927, %v4031
  %v4064 = vadd.f32 %v3928, %v4032
  %v4065 = vadd.f32 %v3929, %v4033
  %v4066 = vadd.f32 %v3930, %v4034
  %v4067 = vlaneseq
  %v4068 = vshrl.u32 %v4067, 7
  %v4069 = vsub.s32 3, %v4068
  %v4070 = vrot.slane %v242, %v4069
  %v4071 = vmul.f32 %v3937, %v4070
  %v4072 = vmul.f32 %v3938, %v4070
  %v4073 = vmul.f32 %v3939, %v4070
  %v4074 = vmul.f32 %v3940, %v4070
  %v4075 = vmul.f32 %v3941, %v4070
  %v4076 = vmul.f32 %v3942, %v4070
  %v4077 = vmul.f32 %v3943, %v4070
  %v4078 = vmul.f32 %v3944, %v4070
  %v4079 = vmul.f32 %v3945, %v4070
  %v4080 = vmul.f32 %v3946, %v4070
  %v4081 = vmul.f32 %v3947, %v4070
  %v4082 = vmul.f32 %v3948, %v4070
  %v4083 = vmul.f32 %v3949, %v4070
  %v4084 = vmul.f32 %v3950, %v4070
  %v4085 = vmul.f32 %v3951, %v4070
  %v4086 = vmul.f32 %v3952, %v4070
  %v4087 = vmul.f32 %v3953, %v4070
  %v4088 = vmul.f32 %v3954, %v4070
  %v4089 = vmul.f32 %v3955, %v4070
  %v4090 = vmul.f32 %v3956, %v4070
  %v4091 = vmul.f32 %v3957, %v4070
  %v4092 = vmul.f32 %v3958, %v4070
  %v4093 = vmul.f32 %v3959, %v4070
  %v4094 = vmul.f32 %v3960, %v4070
  %v4095 = vmul.f32 %v3961, %v4070
  %v4096 = vmul.f32 %v3962, %v4070
  %v4097 = vmul.f32 %v3963, %v4070
  %v4098 = vmul.f32 %v3964, %v4070
  %v4099 = vmul.f32 %v3965, %v4070
  %v4100 = vmul.f32 %v3966, %v4070
  %v4101 = vmul.f32 %v3967, %v4070
  %v4102 = vmul.f32 %v3968, %v4070
  %v4103 = vadd.f32 %v4035, %v4071
  %v4104 = vadd.f32 %v4036, %v4072
  %v4105 = vadd.f32 %v4037, %v4073
  %v4106 = vadd.f32 %v4038, %v4074
  %v4107 = vadd.f32 %v4039, %v4075
  %v4108 = vadd.f32 %v4040, %v4076
  %v4109 = vadd.f32 %v4041, %v4077
  %v4110 = vadd.f32 %v4042, %v4078
  %v4111 = vadd.f32 %v4043, %v4079
  %v4112 = vadd.f32 %v4044, %v4080
  %v4113 = vadd.f32 %v4045, %v4081
  %v4114 = vadd.f32 %v4046, %v4082
  %v4115 = vadd.f32 %v4047, %v4083
  %v4116 = vadd.f32 %v4048, %v4084
  %v4117 = vadd.f32 %v4049, %v4085
  %v4118 = vadd.f32 %v4050, %v4086
  %v4119 = vadd.f32 %v4051, %v4087
  %v4120 = vadd.f32 %v4052, %v4088
  %v4121 = vadd.f32 %v4053, %v4089
  %v4122 = vadd.f32 %v4054, %v4090
  %v4123 = vadd.f32 %v4055, %v4091
  %v4124 = vadd.f32 %v4056, %v4092
  %v4125 = vadd.f32 %v4057, %v4093
  %v4126 = vadd.f32 %v4058, %v4094
  %v4127 = vadd.f32 %v4059, %v4095
  %v4128 = vadd.f32 %v4060, %v4096
  %v4129 = vadd.f32 %v4061, %v4097
  %v4130 = vadd.f32 %v4062, %v4098
  %v4131 = vadd.f32 %v4063, %v4099
  %v4132 = vadd.f32 %v4064, %v4100
  %v4133 = vadd.f32 %v4065, %v4101
  %v4134 = vadd.f32 %v4066, %v4102
  %v4135 = vlaneseq
  %v4136 = vshrl.u32 %v4135, 7
  %v4137 = vsub.s32 3, %v4136
  %v4138 = vrot.slane %v243, %v4137
  %v4139 = vmul.f32 %v3943, %v4138
  %v4140 = vmul.f32 %v3944, %v4138
  %v4141 = vmul.f32 %v3945, %v4138
  %v4142 = vmul.f32 %v3946, %v4138
  %v4143 = vmul.f32 %v3947, %v4138
  %v4144 = vmul.f32 %v3948, %v4138
  %v4145 = vmul.f32 %v3949, %v4138
  %v4146 = vmul.f32 %v3950, %v4138
  %v4147 = vmul.f32 %v3951, %v4138
  %v4148 = vmul.f32 %v3952, %v4138
  %v4149 = vmul.f32 %v3953, %v4138
  %v4150 = vmul.f32 %v3954, %v4138
  %v4151 = vmul.f32 %v3955, %v4138
  %v4152 = vmul.f32 %v3956, %v4138
  %v4153 = vmul.f32 %v3957, %v4138
  %v4154 = vmul.f32 %v3958, %v4138
  %v4155 = vmul.f32 %v3959, %v4138
  %v4156 = vmul.f32 %v3960, %v4138
  %v4157 = vmul.f32 %v3961, %v4138
  %v4158 = vmul.f32 %v3962, %v4138
  %v4159 = vmul.f32 %v3963, %v4138
  %v4160 = vmul.f32 %v3964, %v4138
  %v4161 = vmul.f32 %v3965, %v4138
  %v4162 = vmul.f32 %v3966, %v4138
  %v4163 = vmul.f32 %v3967, %v4138
  %v4164 = vmul.f32 %v3968, %v4138
  %v4165 = vmul.f32 %v3969, %v4138
  %v4166 = vmul.f32 %v3970, %v4138
  %v4167 = vmul.f32 %v3971, %v4138
  %v4168 = vmul.f32 %v3972, %v4138
  %v4169 = vmul.f32 %v3973, %v4138
  %v4170 = vmul.f32 %v3974, %v4138
  %v4171 = vadd.f32 %v4103, %v4139
  %v4172 = vadd.f32 %v4104, %v4140
  %v4173 = vadd.f32 %v4105, %v4141
  %v4174 = vadd.f32 %v4106, %v4142
  %v4175 = vadd.f32 %v4107, %v4143
  %v4176 = vadd.f32 %v4108, %v4144
  %v4177 = vadd.f32 %v4109, %v4145
  %v4178 = vadd.f32 %v4110, %v4146
  %v4179 = vadd.f32 %v4111, %v4147
  %v4180 = vadd.f32 %v4112, %v4148
  %v4181 = vadd.f32 %v4113, %v4149
  %v4182 = vadd.f32 %v4114, %v4150
  %v4183 = vadd.f32 %v4115, %v4151
  %v4184 = vadd.f32 %v4116, %v4152
  %v4185 = vadd.f32 %v4117, %v4153
  %v4186 = vadd.f32 %v4118, %v4154
  %v4187 = vadd.f32 %v4119, %v4155
  %v4188 = vadd.f32 %v4120, %v4156
  %v4189 = vadd.f32 %v4121, %v4157
  %v4190 = vadd.f32 %v4122, %v4158
  %v4191 = vadd.f32 %v4123, %v4159
  %v4192 = vadd.f32 %v4124, %v4160
  %v4193 = vadd.f32 %v4125, %v4161
  %v4194 = vadd.f32 %v4126, %v4162
  %v4195 = vadd.f32 %v4127, %v4163
  %v4196 = vadd.f32 %v4128, %v4164
  %v4197 = vadd.f32 %v4129, %v4165
  %v4198 = vadd.f32 %v4130, %v4166
  %v4199 = vadd.f32 %v4131, %v4167
  %v4200 = vadd.f32 %v4132, %v4168
  %v4201 = vadd.f32 %v4133, %v4169
  %v4202 = vadd.f32 %v4134, %v4170
  %v4203 = vlaneseq
  %v4204 = vshrl.u32 %v4203, 7
  %v4205 = vsub.s32 3, %v4204
  %v4206 = vrot.slane %v244, %v4205
  %v4207 = vmul.f32 %v3949, %v4206
  %v4208 = vmul.f32 %v3950, %v4206
  %v4209 = vmul.f32 %v3951, %v4206
  %v4210 = vmul.f32 %v3952, %v4206
  %v4211 = vmul.f32 %v3953, %v4206
  %v4212 = vmul.f32 %v3954, %v4206
  %v4213 = vmul.f32 %v3955, %v4206
  %v4214 = vmul.f32 %v3956, %v4206
  %v4215 = vmul.f32 %v3957, %v4206
  %v4216 = vmul.f32 %v3958, %v4206
  %v4217 = vmul.f32 %v3959, %v4206
  %v4218 = vmul.f32 %v3960, %v4206
  %v4219 = vmul.f32 %v3961, %v4206
  %v4220 = vmul.f32 %v3962, %v4206
  %v4221 = vmul.f32 %v3963, %v4206
  %v4222 = vmul.f32 %v3964, %v4206
  %v4223 = vmul.f32 %v3965, %v4206
  %v4224 = vmul.f32 %v3966, %v4206
  %v4225 = vmul.f32 %v3967, %v4206
  %v4226 = vmul.f32 %v3968, %v4206
  %v4227 = vmul.f32 %v3969, %v4206
  %v4228 = vmul.f32 %v3970, %v4206
  %v4229 = vmul.f32 %v3971, %v4206
  %v4230 = vmul.f32 %v3972, %v4206
  %v4231 = vmul.f32 %v3973, %v4206
  %v4232 = vmul.f32 %v3974, %v4206
  %v4233 = vmul.f32 %v3975, %v4206
  %v4234 = vmul.f32 %v3976, %v4206
  %v4235 = vmul.f32 %v3977, %v4206
  %v4236 = vmul.f32 %v3978, %v4206
  %v4237 = vmul.f32 %v3979, %v4206
  %v4238 = vmul.f32 %v3980, %v4206
  %v4239 = vadd.f32 %v4171, %v4207
  %v4240 = vadd.f32 %v4172, %v4208
  %v4241 = vadd.f32 %v4173, %v4209
  %v4242 = vadd.f32 %v4174, %v4210
  %v4243 = vadd.f32 %v4175, %v4211
  %v4244 = vadd.f32 %v4176, %v4212
  %v4245 = vadd.f32 %v4177, %v4213
  %v4246 = vadd.f32 %v4178, %v4214
  %v4247 = vadd.f32 %v4179, %v4215
  %v4248 = vadd.f32 %v4180, %v4216
  %v4249 = vadd.f32 %v4181, %v4217
  %v4250 = vadd.f32 %v4182, %v4218
  %v4251 = vadd.f32 %v4183, %v4219
  %v4252 = vadd.f32 %v4184, %v4220
  %v4253 = vadd.f32 %v4185, %v4221
  %v4254 = vadd.f32 %v4186, %v4222
  %v4255 = vadd.f32 %v4187, %v4223
  %v4256 = vadd.f32 %v4188, %v4224
  %v4257 = vadd.f32 %v4189, %v4225
  %v4258 = vadd.f32 %v4190, %v4226
  %v4259 = vadd.f32 %v4191, %v4227
  %v4260 = vadd.f32 %v4192, %v4228
  %v4261 = vadd.f32 %v4193, %v4229
  %v4262 = vadd.f32 %v4194, %v4230
  %v4263 = vadd.f32 %v4195, %v4231
  %v4264 = vadd.f32 %v4196, %v4232
  %v4265 = vadd.f32 %v4197, %v4233
  %v4266 = vadd.f32 %v4198, %v4234
  %v4267 = vadd.f32 %v4199, %v4235
  %v4268 = vadd.f32 %v4200, %v4236
  %v4269 = vadd.f32 %v4201, %v4237
  %v4270 = vadd.f32 %v4202, %v4238
  %v4271 = vlaneseq
  %v4272 = vshrl.u32 %v4271, 7
  %v4273 = vsub.s32 3, %v4272
  %v4274 = vrot.slane %v245, %v4273
  %v4275 = vmul.f32 %v3955, %v4274
  %v4276 = vmul.f32 %v3956, %v4274
  %v4277 = vmul.f32 %v3957, %v4274
  %v4278 = vmul.f32 %v3958, %v4274
  %v4279 = vmul.f32 %v3959, %v4274
  %v4280 = vmul.f32 %v3960, %v4274
  %v4281 = vmul.f32 %v3961, %v4274
  %v4282 = vmul.f32 %v3962, %v4274
  %v4283 = vmul.f32 %v3963, %v4274
  %v4284 = vmul.f32 %v3964, %v4274
  %v4285 = vmul.f32 %v3965, %v4274
  %v4286 = vmul.f32 %v3966, %v4274
  %v4287 = vmul.f32 %v3967, %v4274
  %v4288 = vmul.f32 %v3968, %v4274
  %v4289 = vmul.f32 %v3969, %v4274
  %v4290 = vmul.f32 %v3970, %v4274
  %v4291 = vmul.f32 %v3971, %v4274
  %v4292 = vmul.f32 %v3972, %v4274
  %v4293 = vmul.f32 %v3973, %v4274
  %v4294 = vmul.f32 %v3974, %v4274
  %v4295 = vmul.f32 %v3975, %v4274
  %v4296 = vmul.f32 %v3976, %v4274
  %v4297 = vmul.f32 %v3977, %v4274
  %v4298 = vmul.f32 %v3978, %v4274
  %v4299 = vmul.f32 %v3979, %v4274
  %v4300 = vmul.f32 %v3980, %v4274
  %v4301 = vmul.f32 %v3981, %v4274
  %v4302 = vmul.f32 %v3982, %v4274
  %v4303 = vmul.f32 %v3983, %v4274
  %v4304 = vmul.f32 %v3984, %v4274
  %v4305 = vmul.f32 %v3985, %v4274
  %v4306 = vmul.f32 %v3986, %v4274
  %v4307 = vadd.f32 %v4239, %v4275
  %v4308 = vadd.f32 %v4240, %v4276
  %v4309 = vadd.f32 %v4241, %v4277
  %v4310 = vadd.f32 %v4242, %v4278
  %v4311 = vadd.f32 %v4243, %v4279
  %v4312 = vadd.f32 %v4244, %v4280
  %v4313 = vadd.f32 %v4245, %v4281
  %v4314 = vadd.f32 %v4246, %v4282
  %v4315 = vadd.f32 %v4247, %v4283
  %v4316 = vadd.f32 %v4248, %v4284
  %v4317 = vadd.f32 %v4249, %v4285
  %v4318 = vadd.f32 %v4250, %v4286
  %v4319 = vadd.f32 %v4251, %v4287
  %v4320 = vadd.f32 %v4252, %v4288
  %v4321 = vadd.f32 %v4253, %v4289
  %v4322 = vadd.f32 %v4254, %v4290
  %v4323 = vadd.f32 %v4255, %v4291
  %v4324 = vadd.f32 %v4256, %v4292
  %v4325 = vadd.f32 %v4257, %v4293
  %v4326 = vadd.f32 %v4258, %v4294
  %v4327 = vadd.f32 %v4259, %v4295
  %v4328 = vadd.f32 %v4260, %v4296
  %v4329 = vadd.f32 %v4261, %v4297
  %v4330 = vadd.f32 %v4262, %v4298
  %v4331 = vadd.f32 %v4263, %v4299
  %v4332 = vadd.f32 %v4264, %v4300
  %v4333 = vadd.f32 %v4265, %v4301
  %v4334 = vadd.f32 %v4266, %v4302
  %v4335 = vadd.f32 %v4267, %v4303
  %v4336 = vadd.f32 %v4268, %v4304
  %v4337 = vadd.f32 %v4269, %v4305
  %v4338 = vadd.f32 %v4270, %v4306
  %v4339 = vlaneseq
  %v4340 = vshrl.u32 %v4339, 7
  %v4341 = vsub.s32 3, %v4340
  %v4342 = vrot.slane %v246, %v4341
  %v4343 = vmul.f32 %v3961, %v4342
  %v4344 = vmul.f32 %v3962, %v4342
  %v4345 = vmul.f32 %v3963, %v4342
  %v4346 = vmul.f32 %v3964, %v4342
  %v4347 = vmul.f32 %v3965, %v4342
  %v4348 = vmul.f32 %v3966, %v4342
  %v4349 = vmul.f32 %v3967, %v4342
  %v4350 = vmul.f32 %v3968, %v4342
  %v4351 = vmul.f32 %v3969, %v4342
  %v4352 = vmul.f32 %v3970, %v4342
  %v4353 = vmul.f32 %v3971, %v4342
  %v4354 = vmul.f32 %v3972, %v4342
  %v4355 = vmul.f32 %v3973, %v4342
  %v4356 = vmul.f32 %v3974, %v4342
  %v4357 = vmul.f32 %v3975, %v4342
  %v4358 = vmul.f32 %v3976, %v4342
  %v4359 = vmul.f32 %v3977, %v4342
  %v4360 = vmul.f32 %v3978, %v4342
  %v4361 = vmul.f32 %v3979, %v4342
  %v4362 = vmul.f32 %v3980, %v4342
  %v4363 = vmul.f32 %v3981, %v4342
  %v4364 = vmul.f32 %v3982, %v4342
  %v4365 = vmul.f32 %v3983, %v4342
  %v4366 = vmul.f32 %v3984, %v4342
  %v4367 = vmul.f32 %v3985, %v4342
  %v4368 = vmul.f32 %v3986, %v4342
  %v4369 = vmul.f32 %v3987, %v4342
  %v4370 = vmul.f32 %v3988, %v4342
  %v4371 = vmul.f32 %v3989, %v4342
  %v4372 = vmul.f32 %v3990, %v4342
  %v4373 = vmul.f32 %v3991, %v4342
  %v4374 = vmul.f32 %v3992, %v4342
  %v4375 = vadd.f32 %v4307, %v4343
  %v4376 = vadd.f32 %v4308, %v4344
  %v4377 = vadd.f32 %v4309, %v4345
  %v4378 = vadd.f32 %v4310, %v4346
  %v4379 = vadd.f32 %v4311, %v4347
  %v4380 = vadd.f32 %v4312, %v4348
  %v4381 = vadd.f32 %v4313, %v4349
  %v4382 = vadd.f32 %v4314, %v4350
  %v4383 = vadd.f32 %v4315, %v4351
  %v4384 = vadd.f32 %v4316, %v4352
  %v4385 = vadd.f32 %v4317, %v4353
  %v4386 = vadd.f32 %v4318, %v4354
  %v4387 = vadd.f32 %v4319, %v4355
  %v4388 = vadd.f32 %v4320, %v4356
  %v4389 = vadd.f32 %v4321, %v4357
  %v4390 = vadd.f32 %v4322, %v4358
  %v4391 = vadd.f32 %v4323, %v4359
  %v4392 = vadd.f32 %v4324, %v4360
  %v4393 = vadd.f32 %v4325, %v4361
  %v4394 = vadd.f32 %v4326, %v4362
  %v4395 = vadd.f32 %v4327, %v4363
  %v4396 = vadd.f32 %v4328, %v4364
  %v4397 = vadd.f32 %v4329, %v4365
  %v4398 = vadd.f32 %v4330, %v4366
  %v4399 = vadd.f32 %v4331, %v4367
  %v4400 = vadd.f32 %v4332, %v4368
  %v4401 = vadd.f32 %v4333, %v4369
  %v4402 = vadd.f32 %v4334, %v4370
  %v4403 = vadd.f32 %v4335, %v4371
  %v4404 = vadd.f32 %v4336, %v4372
  %v4405 = vadd.f32 %v4337, %v4373
  %v4406 = vadd.f32 %v4338, %v4374
  %v4407 = vlaneseq
  %v4408 = vshrl.u32 %v4407, 7
  %v4409 = vsub.s32 3, %v4408
  %v4410 = vrot.slane %v247, %v4409
  %v4411 = vmul.f32 %v3967, %v4410
  %v4412 = vmul.f32 %v3968, %v4410
  %v4413 = vmul.f32 %v3969, %v4410
  %v4414 = vmul.f32 %v3970, %v4410
  %v4415 = vmul.f32 %v3971, %v4410
  %v4416 = vmul.f32 %v3972, %v4410
  %v4417 = vmul.f32 %v3973, %v4410
  %v4418 = vmul.f32 %v3974, %v4410
  %v4419 = vmul.f32 %v3975, %v4410
  %v4420 = vmul.f32 %v3976, %v4410
  %v4421 = vmul.f32 %v3977, %v4410
  %v4422 = vmul.f32 %v3978, %v4410
  %v4423 = vmul.f32 %v3979, %v4410
  %v4424 = vmul.f32 %v3980, %v4410
  %v4425 = vmul.f32 %v3981, %v4410
  %v4426 = vmul.f32 %v3982, %v4410
  %v4427 = vmul.f32 %v3983, %v4410
  %v4428 = vmul.f32 %v3984, %v4410
  %v4429 = vmul.f32 %v3985, %v4410
  %v4430 = vmul.f32 %v3986, %v4410
  %v4431 = vmul.f32 %v3987, %v4410
  %v4432 = vmul.f32 %v3988, %v4410
  %v4433 = vmul.f32 %v3989, %v4410
  %v4434 = vmul.f32 %v3990, %v4410
  %v4435 = vmul.f32 %v3991, %v4410
  %v4436 = vmul.f32 %v3992, %v4410
  %v4437 = vmul.f32 %v3993, %v4410
  %v4438 = vmul.f32 %v3994, %v4410
  %v4439 = vmul.f32 %v3995, %v4410
  %v4440 = vmul.f32 %v3996, %v4410
  %v4441 = vmul.f32 %v3997, %v4410
  %v4442 = vmul.f32 %v3998, %v4410
  %v4443 = vadd.f32 %v4375, %v4411
  %v4444 = vadd.f32 %v4376, %v4412
  %v4445 = vadd.f32 %v4377, %v4413
  %v4446 = vadd.f32 %v4378, %v4414
  %v4447 = vadd.f32 %v4379, %v4415
  %v4448 = vadd.f32 %v4380, %v4416
  %v4449 = vadd.f32 %v4381, %v4417
  %v4450 = vadd.f32 %v4382, %v4418
  %v4451 = vadd.f32 %v4383, %v4419
  %v4452 = vadd.f32 %v4384, %v4420
  %v4453 = vadd.f32 %v4385, %v4421
  %v4454 = vadd.f32 %v4386, %v4422
  %v4455 = vadd.f32 %v4387, %v4423
  %v4456 = vadd.f32 %v4388, %v4424
  %v4457 = vadd.f32 %v4389, %v4425
  %v4458 = vadd.f32 %v4390, %v4426
  %v4459 = vadd.f32 %v4391, %v4427
  %v4460 = vadd.f32 %v4392, %v4428
  %v4461 = vadd.f32 %v4393, %v4429
  %v4462 = vadd.f32 %v4394, %v4430
  %v4463 = vadd.f32 %v4395, %v4431
  %v4464 = vadd.f32 %v4396, %v4432
  %v4465 = vadd.f32 %v4397, %v4433
  %v4466 = vadd.f32 %v4398, %v4434
  %v4467 = vadd.f32 %v4399, %v4435
  %v4468 = vadd.f32 %v4400, %v4436
  %v4469 = vadd.f32 %v4401, %v4437
  %v4470 = vadd.f32 %v4402, %v4438
  %v4471 = vadd.f32 %v4403, %v4439
  %v4472 = vadd.f32 %v4404, %v4440
  %v4473 = vadd.f32 %v4405, %v4441
  %v4474 = vadd.f32 %v4406, %v4442
  %v4475 = vld [vmem:[%s2298 + $0x13] sm:$0xff]
  %v4476 = vld [vmem:[%s2298 + $0x1b] sm:$0xff]
  %v4477 = vld [vmem:[%s2298 + $0x43] sm:$0xff]
  %v4478 = vld [vmem:[%s2298 + $0x4b] sm:$0xff]
  %v4479 = vld [vmem:[%s2298 + $0x73] sm:$0xff]
  %v4480 = vld [vmem:[%s2298 + $0x7b] sm:$0xff]
  %v4481 = vld [vmem:[%s2298 + $0xa3] sm:$0xff]
  %v4482 = vld [vmem:[%s2298 + $0xab] sm:$0xff]
  %v4483 = vld [vmem:[%s2298 + $0xd3] sm:$0xff]
  %v4484 = vld [vmem:[%s2298 + $0xdb] sm:$0xff]
  %v4485 = vld [vmem:[%s2298 + $0x103] sm:$0xff]
  %v4486 = vld [vmem:[%s2298 + $0x10b] sm:$0xff]
  %v4487 = vld [vmem:[%s2298 + $0x133] sm:$0xff]
  %v4488 = vld [vmem:[%s2298 + $0x13b] sm:$0xff]
  %v4489 = vld [vmem:[%s2298 + $0x163] sm:$0xff]
  %v4490 = vld [vmem:[%s2298 + $0x16b] sm:$0xff]
  %v4491 = vld [vmem:[%s2298 + $0x193] sm:$0xff]
  %v4492 = vld [vmem:[%s2298 + $0x19b] sm:$0xff]
  %v4493 = vld [vmem:[%s2298 + $0x1c3] sm:$0xff]
  %v4494 = vld [vmem:[%s2298 + $0x1cb] sm:$0xff]
  %v4495 = vld [vmem:[%s2298 + $0x1f3] sm:$0xff]
  %v4496 = vld [vmem:[%s2298 + $0x1fb] sm:$0xff]
  %v4497 = vld [vmem:[%s2298 + $0x223] sm:$0xff]
  %v4498 = vld [vmem:[%s2298 + $0x22b] sm:$0xff]
  %v4499 = vld [vmem:[%s2298 + $0x253] sm:$0xff]
  %v4500 = vld [vmem:[%s2298 + $0x25b] sm:$0xff]
  %v4501 = vld [vmem:[%s2298 + $0x283] sm:$0xff]
  %v4502 = vld [vmem:[%s2298 + $0x28b] sm:$0xff]
  %v4503 = vld [vmem:[%s2298 + $0x2b3] sm:$0xff]
  %v4504 = vld [vmem:[%s2298 + $0x2bb] sm:$0xff]
  %v4505 = vld [vmem:[%s2298 + $0x2e3] sm:$0xff]
  %v4506 = vld [vmem:[%s2298 + $0x2eb] sm:$0xff]
  %v4507 = vld [vmem:[%s2298 + $0x313] sm:$0xff]
  %v4508 = vld [vmem:[%s2298 + $0x31b] sm:$0xff]
  %v4509 = vld [vmem:[%s2298 + $0x343] sm:$0xff]
  %v4510 = vld [vmem:[%s2298 + $0x34b] sm:$0xff]
  %v4511 = vld [vmem:[%s2298 + $0x373] sm:$0xff]
  %v4512 = vld [vmem:[%s2298 + $0x37b] sm:$0xff]
  %v4513 = vld [vmem:[%s2298 + $0x3a3] sm:$0xff]
  %v4514 = vld [vmem:[%s2298 + $0x3ab] sm:$0xff]
  %v4515 = vld [vmem:[%s2298 + $0x3d3] sm:$0xff]
  %v4516 = vld [vmem:[%s2298 + $0x3db] sm:$0xff]
  %v4517 = vld [vmem:[%s2298 + $0x403] sm:$0xff]
  %v4518 = vld [vmem:[%s2298 + $0x40b] sm:$0xff]
  %v4519 = vld [vmem:[%s2298 + $0x433] sm:$0xff]
  %v4520 = vld [vmem:[%s2298 + $0x43b] sm:$0xff]
  %v4521 = vld [vmem:[%s2298 + $0x463] sm:$0xff]
  %v4522 = vld [vmem:[%s2298 + $0x46b] sm:$0xff]
  %v4523 = vld [vmem:[%s2298 + $0x493] sm:$0xff]
  %v4524 = vld [vmem:[%s2298 + $0x49b] sm:$0xff]
  %v4525 = vld [vmem:[%s2298 + $0x4c3] sm:$0xff]
  %v4526 = vld [vmem:[%s2298 + $0x4cb] sm:$0xff]
  %v4527 = vld [vmem:[%s2298 + $0x4f3] sm:$0xff]
  %v4528 = vld [vmem:[%s2298 + $0x4fb] sm:$0xff]
  %v4529 = vld [vmem:[%s2298 + $0x523] sm:$0xff]
  %v4530 = vld [vmem:[%s2298 + $0x52b] sm:$0xff]
  %v4531 = vld [vmem:[%s2298 + $0x553] sm:$0xff]
  %v4532 = vld [vmem:[%s2298 + $0x55b] sm:$0xff]
  %v4533 = vld [vmem:[%s2298 + $0x583] sm:$0xff]
  %v4534 = vld [vmem:[%s2298 + $0x58b] sm:$0xff]
  %v4535 = vld [vmem:[%s2298 + $0x5b3] sm:$0xff]
  %v4536 = vld [vmem:[%s2298 + $0x5bb] sm:$0xff]
  %v4537 = vld [vmem:[%s2298 + $0x5e3] sm:$0xff]
  %v4538 = vld [vmem:[%s2298 + $0x5eb] sm:$0xff]
  %v4539 = vld [vmem:[%s2298 + $0x613] sm:$0xff]
  %v4540 = vld [vmem:[%s2298 + $0x61b] sm:$0xff]
  %v4541 = vld [vmem:[%s2298 + $0x643] sm:$0xff]
  %v4542 = vld [vmem:[%s2298 + $0x64b] sm:$0xff]
  %v4543 = vlaneseq
  %v4544 = vshrl.u32 %v4543, 7
  %v4545 = vsub.s32 4, %v4544
  %v4546 = vrot.slane %v241, %v4545
  %v4547 = vmul.f32 %v4475, %v4546
  %v4548 = vmul.f32 %v4476, %v4546
  %v4549 = vmul.f32 %v4477, %v4546
  %v4550 = vmul.f32 %v4478, %v4546
  %v4551 = vmul.f32 %v4479, %v4546
  %v4552 = vmul.f32 %v4480, %v4546
  %v4553 = vmul.f32 %v4481, %v4546
  %v4554 = vmul.f32 %v4482, %v4546
  %v4555 = vmul.f32 %v4483, %v4546
  %v4556 = vmul.f32 %v4484, %v4546
  %v4557 = vmul.f32 %v4485, %v4546
  %v4558 = vmul.f32 %v4486, %v4546
  %v4559 = vmul.f32 %v4487, %v4546
  %v4560 = vmul.f32 %v4488, %v4546
  %v4561 = vmul.f32 %v4489, %v4546
  %v4562 = vmul.f32 %v4490, %v4546
  %v4563 = vmul.f32 %v4491, %v4546
  %v4564 = vmul.f32 %v4492, %v4546
  %v4565 = vmul.f32 %v4493, %v4546
  %v4566 = vmul.f32 %v4494, %v4546
  %v4567 = vmul.f32 %v4495, %v4546
  %v4568 = vmul.f32 %v4496, %v4546
  %v4569 = vmul.f32 %v4497, %v4546
  %v4570 = vmul.f32 %v4498, %v4546
  %v4571 = vmul.f32 %v4499, %v4546
  %v4572 = vmul.f32 %v4500, %v4546
  %v4573 = vmul.f32 %v4501, %v4546
  %v4574 = vmul.f32 %v4502, %v4546
  %v4575 = vmul.f32 %v4503, %v4546
  %v4576 = vmul.f32 %v4504, %v4546
  %v4577 = vmul.f32 %v4505, %v4546
  %v4578 = vmul.f32 %v4506, %v4546
  %v4579 = vadd.f32 %v4443, %v4547
  %v4580 = vadd.f32 %v4444, %v4548
  %v4581 = vadd.f32 %v4445, %v4549
  %v4582 = vadd.f32 %v4446, %v4550
  %v4583 = vadd.f32 %v4447, %v4551
  %v4584 = vadd.f32 %v4448, %v4552
  %v4585 = vadd.f32 %v4449, %v4553
  %v4586 = vadd.f32 %v4450, %v4554
  %v4587 = vadd.f32 %v4451, %v4555
  %v4588 = vadd.f32 %v4452, %v4556
  %v4589 = vadd.f32 %v4453, %v4557
  %v4590 = vadd.f32 %v4454, %v4558
  %v4591 = vadd.f32 %v4455, %v4559
  %v4592 = vadd.f32 %v4456, %v4560
  %v4593 = vadd.f32 %v4457, %v4561
  %v4594 = vadd.f32 %v4458, %v4562
  %v4595 = vadd.f32 %v4459, %v4563
  %v4596 = vadd.f32 %v4460, %v4564
  %v4597 = vadd.f32 %v4461, %v4565
  %v4598 = vadd.f32 %v4462, %v4566
  %v4599 = vadd.f32 %v4463, %v4567
  %v4600 = vadd.f32 %v4464, %v4568
  %v4601 = vadd.f32 %v4465, %v4569
  %v4602 = vadd.f32 %v4466, %v4570
  %v4603 = vadd.f32 %v4467, %v4571
  %v4604 = vadd.f32 %v4468, %v4572
  %v4605 = vadd.f32 %v4469, %v4573
  %v4606 = vadd.f32 %v4470, %v4574
  %v4607 = vadd.f32 %v4471, %v4575
  %v4608 = vadd.f32 %v4472, %v4576
  %v4609 = vadd.f32 %v4473, %v4577
  %v4610 = vadd.f32 %v4474, %v4578
  %v4611 = vlaneseq
  %v4612 = vshrl.u32 %v4611, 7
  %v4613 = vsub.s32 4, %v4612
  %v4614 = vrot.slane %v242, %v4613
  %v4615 = vmul.f32 %v4481, %v4614
  %v4616 = vmul.f32 %v4482, %v4614
  %v4617 = vmul.f32 %v4483, %v4614
  %v4618 = vmul.f32 %v4484, %v4614
  %v4619 = vmul.f32 %v4485, %v4614
  %v4620 = vmul.f32 %v4486, %v4614
  %v4621 = vmul.f32 %v4487, %v4614
  %v4622 = vmul.f32 %v4488, %v4614
  %v4623 = vmul.f32 %v4489, %v4614
  %v4624 = vmul.f32 %v4490, %v4614
  %v4625 = vmul.f32 %v4491, %v4614
  %v4626 = vmul.f32 %v4492, %v4614
  %v4627 = vmul.f32 %v4493, %v4614
  %v4628 = vmul.f32 %v4494, %v4614
  %v4629 = vmul.f32 %v4495, %v4614
  %v4630 = vmul.f32 %v4496, %v4614
  %v4631 = vmul.f32 %v4497, %v4614
  %v4632 = vmul.f32 %v4498, %v4614
  %v4633 = vmul.f32 %v4499, %v4614
  %v4634 = vmul.f32 %v4500, %v4614
  %v4635 = vmul.f32 %v4501, %v4614
  %v4636 = vmul.f32 %v4502, %v4614
  %v4637 = vmul.f32 %v4503, %v4614
  %v4638 = vmul.f32 %v4504, %v4614
  %v4639 = vmul.f32 %v4505, %v4614
  %v4640 = vmul.f32 %v4506, %v4614
  %v4641 = vmul.f32 %v4507, %v4614
  %v4642 = vmul.f32 %v4508, %v4614
  %v4643 = vmul.f32 %v4509, %v4614
  %v4644 = vmul.f32 %v4510, %v4614
  %v4645 = vmul.f32 %v4511, %v4614
  %v4646 = vmul.f32 %v4512, %v4614
  %v4647 = vadd.f32 %v4579, %v4615
  %v4648 = vadd.f32 %v4580, %v4616
  %v4649 = vadd.f32 %v4581, %v4617
  %v4650 = vadd.f32 %v4582, %v4618
  %v4651 = vadd.f32 %v4583, %v4619
  %v4652 = vadd.f32 %v4584, %v4620
  %v4653 = vadd.f32 %v4585, %v4621
  %v4654 = vadd.f32 %v4586, %v4622
  %v4655 = vadd.f32 %v4587, %v4623
  %v4656 = vadd.f32 %v4588, %v4624
  %v4657 = vadd.f32 %v4589, %v4625
  %v4658 = vadd.f32 %v4590, %v4626
  %v4659 = vadd.f32 %v4591, %v4627
  %v4660 = vadd.f32 %v4592, %v4628
  %v4661 = vadd.f32 %v4593, %v4629
  %v4662 = vadd.f32 %v4594, %v4630
  %v4663 = vadd.f32 %v4595, %v4631
  %v4664 = vadd.f32 %v4596, %v4632
  %v4665 = vadd.f32 %v4597, %v4633
  %v4666 = vadd.f32 %v4598, %v4634
  %v4667 = vadd.f32 %v4599, %v4635
  %v4668 = vadd.f32 %v4600, %v4636
  %v4669 = vadd.f32 %v4601, %v4637
  %v4670 = vadd.f32 %v4602, %v4638
  %v4671 = vadd.f32 %v4603, %v4639
  %v4672 = vadd.f32 %v4604, %v4640
  %v4673 = vadd.f32 %v4605, %v4641
  %v4674 = vadd.f32 %v4606, %v4642
  %v4675 = vadd.f32 %v4607, %v4643
  %v4676 = vadd.f32 %v4608, %v4644
  %v4677 = vadd.f32 %v4609, %v4645
  %v4678 = vadd.f32 %v4610, %v4646
  %v4679 = vlaneseq
  %v4680 = vshrl.u32 %v4679, 7
  %v4681 = vsub.s32 4, %v4680
  %v4682 = vrot.slane %v243, %v4681
  %v4683 = vmul.f32 %v4487, %v4682
  %v4684 = vmul.f32 %v4488, %v4682
  %v4685 = vmul.f32 %v4489, %v4682
  %v4686 = vmul.f32 %v4490, %v4682
  %v4687 = vmul.f32 %v4491, %v4682
  %v4688 = vmul.f32 %v4492, %v4682
  %v4689 = vmul.f32 %v4493, %v4682
  %v4690 = vmul.f32 %v4494, %v4682
  %v4691 = vmul.f32 %v4495, %v4682
  %v4692 = vmul.f32 %v4496, %v4682
  %v4693 = vmul.f32 %v4497, %v4682
  %v4694 = vmul.f32 %v4498, %v4682
  %v4695 = vmul.f32 %v4499, %v4682
  %v4696 = vmul.f32 %v4500, %v4682
  %v4697 = vmul.f32 %v4501, %v4682
  %v4698 = vmul.f32 %v4502, %v4682
  %v4699 = vmul.f32 %v4503, %v4682
  %v4700 = vmul.f32 %v4504, %v4682
  %v4701 = vmul.f32 %v4505, %v4682
  %v4702 = vmul.f32 %v4506, %v4682
  %v4703 = vmul.f32 %v4507, %v4682
  %v4704 = vmul.f32 %v4508, %v4682
  %v4705 = vmul.f32 %v4509, %v4682
  %v4706 = vmul.f32 %v4510, %v4682
  %v4707 = vmul.f32 %v4511, %v4682
  %v4708 = vmul.f32 %v4512, %v4682
  %v4709 = vmul.f32 %v4513, %v4682
  %v4710 = vmul.f32 %v4514, %v4682
  %v4711 = vmul.f32 %v4515, %v4682
  %v4712 = vmul.f32 %v4516, %v4682
  %v4713 = vmul.f32 %v4517, %v4682
  %v4714 = vmul.f32 %v4518, %v4682
  %v4715 = vadd.f32 %v4647, %v4683
  %v4716 = vadd.f32 %v4648, %v4684
  %v4717 = vadd.f32 %v4649, %v4685
  %v4718 = vadd.f32 %v4650, %v4686
  %v4719 = vadd.f32 %v4651, %v4687
  %v4720 = vadd.f32 %v4652, %v4688
  %v4721 = vadd.f32 %v4653, %v4689
  %v4722 = vadd.f32 %v4654, %v4690
  %v4723 = vadd.f32 %v4655, %v4691
  %v4724 = vadd.f32 %v4656, %v4692
  %v4725 = vadd.f32 %v4657, %v4693
  %v4726 = vadd.f32 %v4658, %v4694
  %v4727 = vadd.f32 %v4659, %v4695
  %v4728 = vadd.f32 %v4660, %v4696
  %v4729 = vadd.f32 %v4661, %v4697
  %v4730 = vadd.f32 %v4662, %v4698
  %v4731 = vadd.f32 %v4663, %v4699
  %v4732 = vadd.f32 %v4664, %v4700
  %v4733 = vadd.f32 %v4665, %v4701
  %v4734 = vadd.f32 %v4666, %v4702
  %v4735 = vadd.f32 %v4667, %v4703
  %v4736 = vadd.f32 %v4668, %v4704
  %v4737 = vadd.f32 %v4669, %v4705
  %v4738 = vadd.f32 %v4670, %v4706
  %v4739 = vadd.f32 %v4671, %v4707
  %v4740 = vadd.f32 %v4672, %v4708
  %v4741 = vadd.f32 %v4673, %v4709
  %v4742 = vadd.f32 %v4674, %v4710
  %v4743 = vadd.f32 %v4675, %v4711
  %v4744 = vadd.f32 %v4676, %v4712
  %v4745 = vadd.f32 %v4677, %v4713
  %v4746 = vadd.f32 %v4678, %v4714
  %v4747 = vlaneseq
  %v4748 = vshrl.u32 %v4747, 7
  %v4749 = vsub.s32 4, %v4748
  %v4750 = vrot.slane %v244, %v4749
  %v4751 = vmul.f32 %v4493, %v4750
  %v4752 = vmul.f32 %v4494, %v4750
  %v4753 = vmul.f32 %v4495, %v4750
  %v4754 = vmul.f32 %v4496, %v4750
  %v4755 = vmul.f32 %v4497, %v4750
  %v4756 = vmul.f32 %v4498, %v4750
  %v4757 = vmul.f32 %v4499, %v4750
  %v4758 = vmul.f32 %v4500, %v4750
  %v4759 = vmul.f32 %v4501, %v4750
  %v4760 = vmul.f32 %v4502, %v4750
  %v4761 = vmul.f32 %v4503, %v4750
  %v4762 = vmul.f32 %v4504, %v4750
  %v4763 = vmul.f32 %v4505, %v4750
  %v4764 = vmul.f32 %v4506, %v4750
  %v4765 = vmul.f32 %v4507, %v4750
  %v4766 = vmul.f32 %v4508, %v4750
  %v4767 = vmul.f32 %v4509, %v4750
  %v4768 = vmul.f32 %v4510, %v4750
  %v4769 = vmul.f32 %v4511, %v4750
  %v4770 = vmul.f32 %v4512, %v4750
  %v4771 = vmul.f32 %v4513, %v4750
  %v4772 = vmul.f32 %v4514, %v4750
  %v4773 = vmul.f32 %v4515, %v4750
  %v4774 = vmul.f32 %v4516, %v4750
  %v4775 = vmul.f32 %v4517, %v4750
  %v4776 = vmul.f32 %v4518, %v4750
  %v4777 = vmul.f32 %v4519, %v4750
  %v4778 = vmul.f32 %v4520, %v4750
  %v4779 = vmul.f32 %v4521, %v4750
  %v4780 = vmul.f32 %v4522, %v4750
  %v4781 = vmul.f32 %v4523, %v4750
  %v4782 = vmul.f32 %v4524, %v4750
  %v4783 = vadd.f32 %v4715, %v4751
  %v4784 = vadd.f32 %v4716, %v4752
  %v4785 = vadd.f32 %v4717, %v4753
  %v4786 = vadd.f32 %v4718, %v4754
  %v4787 = vadd.f32 %v4719, %v4755
  %v4788 = vadd.f32 %v4720, %v4756
  %v4789 = vadd.f32 %v4721, %v4757
  %v4790 = vadd.f32 %v4722, %v4758
  %v4791 = vadd.f32 %v4723, %v4759
  %v4792 = vadd.f32 %v4724, %v4760
  %v4793 = vadd.f32 %v4725, %v4761
  %v4794 = vadd.f32 %v4726, %v4762
  %v4795 = vadd.f32 %v4727, %v4763
  %v4796 = vadd.f32 %v4728, %v4764
  %v4797 = vadd.f32 %v4729, %v4765
  %v4798 = vadd.f32 %v4730, %v4766
  %v4799 = vadd.f32 %v4731, %v4767
  %v4800 = vadd.f32 %v4732, %v4768
  %v4801 = vadd.f32 %v4733, %v4769
  %v4802 = vadd.f32 %v4734, %v4770
  %v4803 = vadd.f32 %v4735, %v4771
  %v4804 = vadd.f32 %v4736, %v4772
  %v4805 = vadd.f32 %v4737, %v4773
  %v4806 = vadd.f32 %v4738, %v4774
  %v4807 = vadd.f32 %v4739, %v4775
  %v4808 = vadd.f32 %v4740, %v4776
  %v4809 = vadd.f32 %v4741, %v4777
  %v4810 = vadd.f32 %v4742, %v4778
  %v4811 = vadd.f32 %v4743, %v4779
  %v4812 = vadd.f32 %v4744, %v4780
  %v4813 = vadd.f32 %v4745, %v4781
  %v4814 = vadd.f32 %v4746, %v4782
  %v4815 = vlaneseq
  %v4816 = vshrl.u32 %v4815, 7
  %v4817 = vsub.s32 4, %v4816
  %v4818 = vrot.slane %v245, %v4817
  %v4819 = vmul.f32 %v4499, %v4818
  %v4820 = vmul.f32 %v4500, %v4818
  %v4821 = vmul.f32 %v4501, %v4818
  %v4822 = vmul.f32 %v4502, %v4818
  %v4823 = vmul.f32 %v4503, %v4818
  %v4824 = vmul.f32 %v4504, %v4818
  %v4825 = vmul.f32 %v4505, %v4818
  %v4826 = vmul.f32 %v4506, %v4818
  %v4827 = vmul.f32 %v4507, %v4818
  %v4828 = vmul.f32 %v4508, %v4818
  %v4829 = vmul.f32 %v4509, %v4818
  %v4830 = vmul.f32 %v4510, %v4818
  %v4831 = vmul.f32 %v4511, %v4818
  %v4832 = vmul.f32 %v4512, %v4818
  %v4833 = vmul.f32 %v4513, %v4818
  %v4834 = vmul.f32 %v4514, %v4818
  %v4835 = vmul.f32 %v4515, %v4818
  %v4836 = vmul.f32 %v4516, %v4818
  %v4837 = vmul.f32 %v4517, %v4818
  %v4838 = vmul.f32 %v4518, %v4818
  %v4839 = vmul.f32 %v4519, %v4818
  %v4840 = vmul.f32 %v4520, %v4818
  %v4841 = vmul.f32 %v4521, %v4818
  %v4842 = vmul.f32 %v4522, %v4818
  %v4843 = vmul.f32 %v4523, %v4818
  %v4844 = vmul.f32 %v4524, %v4818
  %v4845 = vmul.f32 %v4525, %v4818
  %v4846 = vmul.f32 %v4526, %v4818
  %v4847 = vmul.f32 %v4527, %v4818
  %v4848 = vmul.f32 %v4528, %v4818
  %v4849 = vmul.f32 %v4529, %v4818
  %v4850 = vmul.f32 %v4530, %v4818
  %v4851 = vadd.f32 %v4783, %v4819
  %v4852 = vadd.f32 %v4784, %v4820
  %v4853 = vadd.f32 %v4785, %v4821
  %v4854 = vadd.f32 %v4786, %v4822
  %v4855 = vadd.f32 %v4787, %v4823
  %v4856 = vadd.f32 %v4788, %v4824
  %v4857 = vadd.f32 %v4789, %v4825
  %v4858 = vadd.f32 %v4790, %v4826
  %v4859 = vadd.f32 %v4791, %v4827
  %v4860 = vadd.f32 %v4792, %v4828
  %v4861 = vadd.f32 %v4793, %v4829
  %v4862 = vadd.f32 %v4794, %v4830
  %v4863 = vadd.f32 %v4795, %v4831
  %v4864 = vadd.f32 %v4796, %v4832
  %v4865 = vadd.f32 %v4797, %v4833
  %v4866 = vadd.f32 %v4798, %v4834
  %v4867 = vadd.f32 %v4799, %v4835
  %v4868 = vadd.f32 %v4800, %v4836
  %v4869 = vadd.f32 %v4801, %v4837
  %v4870 = vadd.f32 %v4802, %v4838
  %v4871 = vadd.f32 %v4803, %v4839
  %v4872 = vadd.f32 %v4804, %v4840
  %v4873 = vadd.f32 %v4805, %v4841
  %v4874 = vadd.f32 %v4806, %v4842
  %v4875 = vadd.f32 %v4807, %v4843
  %v4876 = vadd.f32 %v4808, %v4844
  %v4877 = vadd.f32 %v4809, %v4845
  %v4878 = vadd.f32 %v4810, %v4846
  %v4879 = vadd.f32 %v4811, %v4847
  %v4880 = vadd.f32 %v4812, %v4848
  %v4881 = vadd.f32 %v4813, %v4849
  %v4882 = vadd.f32 %v4814, %v4850
  %v4883 = vlaneseq
  %v4884 = vshrl.u32 %v4883, 7
  %v4885 = vsub.s32 4, %v4884
  %v4886 = vrot.slane %v246, %v4885
  %v4887 = vmul.f32 %v4505, %v4886
  %v4888 = vmul.f32 %v4506, %v4886
  %v4889 = vmul.f32 %v4507, %v4886
  %v4890 = vmul.f32 %v4508, %v4886
  %v4891 = vmul.f32 %v4509, %v4886
  %v4892 = vmul.f32 %v4510, %v4886
  %v4893 = vmul.f32 %v4511, %v4886
  %v4894 = vmul.f32 %v4512, %v4886
  %v4895 = vmul.f32 %v4513, %v4886
  %v4896 = vmul.f32 %v4514, %v4886
  %v4897 = vmul.f32 %v4515, %v4886
  %v4898 = vmul.f32 %v4516, %v4886
  %v4899 = vmul.f32 %v4517, %v4886
  %v4900 = vmul.f32 %v4518, %v4886
  %v4901 = vmul.f32 %v4519, %v4886
  %v4902 = vmul.f32 %v4520, %v4886
  %v4903 = vmul.f32 %v4521, %v4886
  %v4904 = vmul.f32 %v4522, %v4886
  %v4905 = vmul.f32 %v4523, %v4886
  %v4906 = vmul.f32 %v4524, %v4886
  %v4907 = vmul.f32 %v4525, %v4886
  %v4908 = vmul.f32 %v4526, %v4886
  %v4909 = vmul.f32 %v4527, %v4886
  %v4910 = vmul.f32 %v4528, %v4886
  %v4911 = vmul.f32 %v4529, %v4886
  %v4912 = vmul.f32 %v4530, %v4886
  %v4913 = vmul.f32 %v4531, %v4886
  %v4914 = vmul.f32 %v4532, %v4886
  %v4915 = vmul.f32 %v4533, %v4886
  %v4916 = vmul.f32 %v4534, %v4886
  %v4917 = vmul.f32 %v4535, %v4886
  %v4918 = vmul.f32 %v4536, %v4886
  %v4919 = vadd.f32 %v4851, %v4887
  %v4920 = vadd.f32 %v4852, %v4888
  %v4921 = vadd.f32 %v4853, %v4889
  %v4922 = vadd.f32 %v4854, %v4890
  %v4923 = vadd.f32 %v4855, %v4891
  %v4924 = vadd.f32 %v4856, %v4892
  %v4925 = vadd.f32 %v4857, %v4893
  %v4926 = vadd.f32 %v4858, %v4894
  %v4927 = vadd.f32 %v4859, %v4895
  %v4928 = vadd.f32 %v4860, %v4896
  %v4929 = vadd.f32 %v4861, %v4897
  %v4930 = vadd.f32 %v4862, %v4898
  %v4931 = vadd.f32 %v4863, %v4899
  %v4932 = vadd.f32 %v4864, %v4900
  %v4933 = vadd.f32 %v4865, %v4901
  %v4934 = vadd.f32 %v4866, %v4902
  %v4935 = vadd.f32 %v4867, %v4903
  %v4936 = vadd.f32 %v4868, %v4904
  %v4937 = vadd.f32 %v4869, %v4905
  %v4938 = vadd.f32 %v4870, %v4906
  %v4939 = vadd.f32 %v4871, %v4907
  %v4940 = vadd.f32 %v4872, %v4908
  %v4941 = vadd.f32 %v4873, %v4909
  %v4942 = vadd.f32 %v4874, %v4910
  %v4943 = vadd.f32 %v4875, %v4911
  %v4944 = vadd.f32 %v4876, %v4912
  %v4945 = vadd.f32 %v4877, %v4913
  %v4946 = vadd.f32 %v4878, %v4914
  %v4947 = vadd.f32 %v4879, %v4915
  %v4948 = vadd.f32 %v4880, %v4916
  %v4949 = vadd.f32 %v4881, %v4917
  %v4950 = vadd.f32 %v4882, %v4918
  %v4951 = vlaneseq
  %v4952 = vshrl.u32 %v4951, 7
  %v4953 = vsub.s32 4, %v4952
  %v4954 = vrot.slane %v247, %v4953
  %v4955 = vmul.f32 %v4511, %v4954
  %v4956 = vmul.f32 %v4512, %v4954
  %v4957 = vmul.f32 %v4513, %v4954
  %v4958 = vmul.f32 %v4514, %v4954
  %v4959 = vmul.f32 %v4515, %v4954
  %v4960 = vmul.f32 %v4516, %v4954
  %v4961 = vmul.f32 %v4517, %v4954
  %v4962 = vmul.f32 %v4518, %v4954
  %v4963 = vmul.f32 %v4519, %v4954
  %v4964 = vmul.f32 %v4520, %v4954
  %v4965 = vmul.f32 %v4521, %v4954
  %v4966 = vmul.f32 %v4522, %v4954
  %v4967 = vmul.f32 %v4523, %v4954
  %v4968 = vmul.f32 %v4524, %v4954
  %v4969 = vmul.f32 %v4525, %v4954
  %v4970 = vmul.f32 %v4526, %v4954
  %v4971 = vmul.f32 %v4527, %v4954
  %v4972 = vmul.f32 %v4528, %v4954
  %v4973 = vmul.f32 %v4529, %v4954
  %v4974 = vmul.f32 %v4530, %v4954
  %v4975 = vmul.f32 %v4531, %v4954
  %v4976 = vmul.f32 %v4532, %v4954
  %v4977 = vmul.f32 %v4533, %v4954
  %v4978 = vmul.f32 %v4534, %v4954
  %v4979 = vmul.f32 %v4535, %v4954
  %v4980 = vmul.f32 %v4536, %v4954
  %v4981 = vmul.f32 %v4537, %v4954
  %v4982 = vmul.f32 %v4538, %v4954
  %v4983 = vmul.f32 %v4539, %v4954
  %v4984 = vmul.f32 %v4540, %v4954
  %v4985 = vmul.f32 %v4541, %v4954
  %v4986 = vmul.f32 %v4542, %v4954
  %v4987 = vadd.f32 %v4919, %v4955
  %v4988 = vadd.f32 %v4920, %v4956
  %v4989 = vadd.f32 %v4921, %v4957
  %v4990 = vadd.f32 %v4922, %v4958
  %v4991 = vadd.f32 %v4923, %v4959
  %v4992 = vadd.f32 %v4924, %v4960
  %v4993 = vadd.f32 %v4925, %v4961
  %v4994 = vadd.f32 %v4926, %v4962
  %v4995 = vadd.f32 %v4927, %v4963
  %v4996 = vadd.f32 %v4928, %v4964
  %v4997 = vadd.f32 %v4929, %v4965
  %v4998 = vadd.f32 %v4930, %v4966
  %v4999 = vadd.f32 %v4931, %v4967
  %v5000 = vadd.f32 %v4932, %v4968
  %v5001 = vadd.f32 %v4933, %v4969
  %v5002 = vadd.f32 %v4934, %v4970
  %v5003 = vadd.f32 %v4935, %v4971
  %v5004 = vadd.f32 %v4936, %v4972
  %v5005 = vadd.f32 %v4937, %v4973
  %v5006 = vadd.f32 %v4938, %v4974
  %v5007 = vadd.f32 %v4939, %v4975
  %v5008 = vadd.f32 %v4940, %v4976
  %v5009 = vadd.f32 %v4941, %v4977
  %v5010 = vadd.f32 %v4942, %v4978
  %v5011 = vadd.f32 %v4943, %v4979
  %v5012 = vadd.f32 %v4944, %v4980
  %v5013 = vadd.f32 %v4945, %v4981
  %v5014 = vadd.f32 %v4946, %v4982
  %v5015 = vadd.f32 %v4947, %v4983
  %v5016 = vadd.f32 %v4948, %v4984
  %v5017 = vadd.f32 %v4949, %v4985
  %v5018 = vadd.f32 %v4950, %v4986
  %v5019 = vld [vmem:[%s2298 + $0x16] sm:$0xff]
  %v5020 = vld [vmem:[%s2298 + $0x1e] sm:$0xff]
  %v5021 = vld [vmem:[%s2298 + $0x46] sm:$0xff]
  %v5022 = vld [vmem:[%s2298 + $0x4e] sm:$0xff]
  %v5023 = vld [vmem:[%s2298 + $0x76] sm:$0xff]
  %v5024 = vld [vmem:[%s2298 + $0x7e] sm:$0xff]
  %v5025 = vld [vmem:[%s2298 + $0xa6] sm:$0xff]
  %v5026 = vld [vmem:[%s2298 + $0xae] sm:$0xff]
  %v5027 = vld [vmem:[%s2298 + $0xd6] sm:$0xff]
  %v5028 = vld [vmem:[%s2298 + $0xde] sm:$0xff]
  %v5029 = vld [vmem:[%s2298 + $0x106] sm:$0xff]
  %v5030 = vld [vmem:[%s2298 + $0x10e] sm:$0xff]
  %v5031 = vld [vmem:[%s2298 + $0x136] sm:$0xff]
  %v5032 = vld [vmem:[%s2298 + $0x13e] sm:$0xff]
  %v5033 = vld [vmem:[%s2298 + $0x166] sm:$0xff]
  %v5034 = vld [vmem:[%s2298 + $0x16e] sm:$0xff]
  %v5035 = vld [vmem:[%s2298 + $0x196] sm:$0xff]
  %v5036 = vld [vmem:[%s2298 + $0x19e] sm:$0xff]
  %v5037 = vld [vmem:[%s2298 + $0x1c6] sm:$0xff]
  %v5038 = vld [vmem:[%s2298 + $0x1ce] sm:$0xff]
  %v5039 = vld [vmem:[%s2298 + $0x1f6] sm:$0xff]
  %v5040 = vld [vmem:[%s2298 + $0x1fe] sm:$0xff]
  %v5041 = vld [vmem:[%s2298 + $0x226] sm:$0xff]
  %v5042 = vld [vmem:[%s2298 + $0x22e] sm:$0xff]
  %v5043 = vld [vmem:[%s2298 + $0x256] sm:$0xff]
  %v5044 = vld [vmem:[%s2298 + $0x25e] sm:$0xff]
  %v5045 = vld [vmem:[%s2298 + $0x286] sm:$0xff]
  %v5046 = vld [vmem:[%s2298 + $0x28e] sm:$0xff]
  %v5047 = vld [vmem:[%s2298 + $0x2b6] sm:$0xff]
  %v5048 = vld [vmem:[%s2298 + $0x2be] sm:$0xff]
  %v5049 = vld [vmem:[%s2298 + $0x2e6] sm:$0xff]
  %v5050 = vld [vmem:[%s2298 + $0x2ee] sm:$0xff]
  %v5051 = vld [vmem:[%s2298 + $0x316] sm:$0xff]
  %v5052 = vld [vmem:[%s2298 + $0x31e] sm:$0xff]
  %v5053 = vld [vmem:[%s2298 + $0x346] sm:$0xff]
  %v5054 = vld [vmem:[%s2298 + $0x34e] sm:$0xff]
  %v5055 = vld [vmem:[%s2298 + $0x376] sm:$0xff]
  %v5056 = vld [vmem:[%s2298 + $0x37e] sm:$0xff]
  %v5057 = vld [vmem:[%s2298 + $0x3a6] sm:$0xff]
  %v5058 = vld [vmem:[%s2298 + $0x3ae] sm:$0xff]
  %v5059 = vld [vmem:[%s2298 + $0x3d6] sm:$0xff]
  %v5060 = vld [vmem:[%s2298 + $0x3de] sm:$0xff]
  %v5061 = vld [vmem:[%s2298 + $0x406] sm:$0xff]
  %v5062 = vld [vmem:[%s2298 + $0x40e] sm:$0xff]
  %v5063 = vld [vmem:[%s2298 + $0x436] sm:$0xff]
  %v5064 = vld [vmem:[%s2298 + $0x43e] sm:$0xff]
  %v5065 = vld [vmem:[%s2298 + $0x466] sm:$0xff]
  %v5066 = vld [vmem:[%s2298 + $0x46e] sm:$0xff]
  %v5067 = vld [vmem:[%s2298 + $0x496] sm:$0xff]
  %v5068 = vld [vmem:[%s2298 + $0x49e] sm:$0xff]
  %v5069 = vld [vmem:[%s2298 + $0x4c6] sm:$0xff]
  %v5070 = vld [vmem:[%s2298 + $0x4ce] sm:$0xff]
  %v5071 = vld [vmem:[%s2298 + $0x4f6] sm:$0xff]
  %v5072 = vld [vmem:[%s2298 + $0x4fe] sm:$0xff]
  %v5073 = vld [vmem:[%s2298 + $0x526] sm:$0xff]
  %v5074 = vld [vmem:[%s2298 + $0x52e] sm:$0xff]
  %v5075 = vld [vmem:[%s2298 + $0x556] sm:$0xff]
  %v5076 = vld [vmem:[%s2298 + $0x55e] sm:$0xff]
  %v5077 = vld [vmem:[%s2298 + $0x586] sm:$0xff]
  %v5078 = vld [vmem:[%s2298 + $0x58e] sm:$0xff]
  %v5079 = vld [vmem:[%s2298 + $0x5b6] sm:$0xff]
  %v5080 = vld [vmem:[%s2298 + $0x5be] sm:$0xff]
  %v5081 = vld [vmem:[%s2298 + $0x5e6] sm:$0xff]
  %v5082 = vld [vmem:[%s2298 + $0x5ee] sm:$0xff]
  %v5083 = vld [vmem:[%s2298 + $0x616] sm:$0xff]
  %v5084 = vld [vmem:[%s2298 + $0x61e] sm:$0xff]
  %v5085 = vld [vmem:[%s2298 + $0x646] sm:$0xff]
  %v5086 = vld [vmem:[%s2298 + $0x64e] sm:$0xff]
  %v5087 = vlaneseq
  %v5088 = vshrl.u32 %v5087, 7
  %v5089 = vsub.s32 5, %v5088
  %v5090 = vrot.slane %v241, %v5089
  %v5091 = vmul.f32 %v5019, %v5090
  %v5092 = vmul.f32 %v5020, %v5090
  %v5093 = vmul.f32 %v5021, %v5090
  %v5094 = vmul.f32 %v5022, %v5090
  %v5095 = vmul.f32 %v5023, %v5090
  %v5096 = vmul.f32 %v5024, %v5090
  %v5097 = vmul.f32 %v5025, %v5090
  %v5098 = vmul.f32 %v5026, %v5090
  %v5099 = vmul.f32 %v5027, %v5090
  %v5100 = vmul.f32 %v5028, %v5090
  %v5101 = vmul.f32 %v5029, %v5090
  %v5102 = vmul.f32 %v5030, %v5090
  %v5103 = vmul.f32 %v5031, %v5090
  %v5104 = vmul.f32 %v5032, %v5090
  %v5105 = vmul.f32 %v5033, %v5090
  %v5106 = vmul.f32 %v5034, %v5090
  %v5107 = vmul.f32 %v5035, %v5090
  %v5108 = vmul.f32 %v5036, %v5090
  %v5109 = vmul.f32 %v5037, %v5090
  %v5110 = vmul.f32 %v5038, %v5090
  %v5111 = vmul.f32 %v5039, %v5090
  %v5112 = vmul.f32 %v5040, %v5090
  %v5113 = vmul.f32 %v5041, %v5090
  %v5114 = vmul.f32 %v5042, %v5090
  %v5115 = vmul.f32 %v5043, %v5090
  %v5116 = vmul.f32 %v5044, %v5090
  %v5117 = vmul.f32 %v5045, %v5090
  %v5118 = vmul.f32 %v5046, %v5090
  %v5119 = vmul.f32 %v5047, %v5090
  %v5120 = vmul.f32 %v5048, %v5090
  %v5121 = vmul.f32 %v5049, %v5090
  %v5122 = vmul.f32 %v5050, %v5090
  %v5123 = vadd.f32 %v4987, %v5091
  %v5124 = vadd.f32 %v4988, %v5092
  %v5125 = vadd.f32 %v4989, %v5093
  %v5126 = vadd.f32 %v4990, %v5094
  %v5127 = vadd.f32 %v4991, %v5095
  %v5128 = vadd.f32 %v4992, %v5096
  %v5129 = vadd.f32 %v4993, %v5097
  %v5130 = vadd.f32 %v4994, %v5098
  %v5131 = vadd.f32 %v4995, %v5099
  %v5132 = vadd.f32 %v4996, %v5100
  %v5133 = vadd.f32 %v4997, %v5101
  %v5134 = vadd.f32 %v4998, %v5102
  %v5135 = vadd.f32 %v4999, %v5103
  %v5136 = vadd.f32 %v5000, %v5104
  %v5137 = vadd.f32 %v5001, %v5105
  %v5138 = vadd.f32 %v5002, %v5106
  %v5139 = vadd.f32 %v5003, %v5107
  %v5140 = vadd.f32 %v5004, %v5108
  %v5141 = vadd.f32 %v5005, %v5109
  %v5142 = vadd.f32 %v5006, %v5110
  %v5143 = vadd.f32 %v5007, %v5111
  %v5144 = vadd.f32 %v5008, %v5112
  %v5145 = vadd.f32 %v5009, %v5113
  %v5146 = vadd.f32 %v5010, %v5114
  %v5147 = vadd.f32 %v5011, %v5115
  %v5148 = vadd.f32 %v5012, %v5116
  %v5149 = vadd.f32 %v5013, %v5117
  %v5150 = vadd.f32 %v5014, %v5118
  %v5151 = vadd.f32 %v5015, %v5119
  %v5152 = vadd.f32 %v5016, %v5120
  %v5153 = vadd.f32 %v5017, %v5121
  %v5154 = vadd.f32 %v5018, %v5122
  %v5155 = vlaneseq
  %v5156 = vshrl.u32 %v5155, 7
  %v5157 = vsub.s32 5, %v5156
  %v5158 = vrot.slane %v242, %v5157
  %v5159 = vmul.f32 %v5025, %v5158
  %v5160 = vmul.f32 %v5026, %v5158
  %v5161 = vmul.f32 %v5027, %v5158
  %v5162 = vmul.f32 %v5028, %v5158
  %v5163 = vmul.f32 %v5029, %v5158
  %v5164 = vmul.f32 %v5030, %v5158
  %v5165 = vmul.f32 %v5031, %v5158
  %v5166 = vmul.f32 %v5032, %v5158
  %v5167 = vmul.f32 %v5033, %v5158
  %v5168 = vmul.f32 %v5034, %v5158
  %v5169 = vmul.f32 %v5035, %v5158
  %v5170 = vmul.f32 %v5036, %v5158
  %v5171 = vmul.f32 %v5037, %v5158
  %v5172 = vmul.f32 %v5038, %v5158
  %v5173 = vmul.f32 %v5039, %v5158
  %v5174 = vmul.f32 %v5040, %v5158
  %v5175 = vmul.f32 %v5041, %v5158
  %v5176 = vmul.f32 %v5042, %v5158
  %v5177 = vmul.f32 %v5043, %v5158
  %v5178 = vmul.f32 %v5044, %v5158
  %v5179 = vmul.f32 %v5045, %v5158
  %v5180 = vmul.f32 %v5046, %v5158
  %v5181 = vmul.f32 %v5047, %v5158
  %v5182 = vmul.f32 %v5048, %v5158
  %v5183 = vmul.f32 %v5049, %v5158
  %v5184 = vmul.f32 %v5050, %v5158
  %v5185 = vmul.f32 %v5051, %v5158
  %v5186 = vmul.f32 %v5052, %v5158
  %v5187 = vmul.f32 %v5053, %v5158
  %v5188 = vmul.f32 %v5054, %v5158
  %v5189 = vmul.f32 %v5055, %v5158
  %v5190 = vmul.f32 %v5056, %v5158
  %v5191 = vadd.f32 %v5123, %v5159
  %v5192 = vadd.f32 %v5124, %v5160
  %v5193 = vadd.f32 %v5125, %v5161
  %v5194 = vadd.f32 %v5126, %v5162
  %v5195 = vadd.f32 %v5127, %v5163
  %v5196 = vadd.f32 %v5128, %v5164
  %v5197 = vadd.f32 %v5129, %v5165
  %v5198 = vadd.f32 %v5130, %v5166
  %v5199 = vadd.f32 %v5131, %v5167
  %v5200 = vadd.f32 %v5132, %v5168
  %v5201 = vadd.f32 %v5133, %v5169
  %v5202 = vadd.f32 %v5134, %v5170
  %v5203 = vadd.f32 %v5135, %v5171
  %v5204 = vadd.f32 %v5136, %v5172
  %v5205 = vadd.f32 %v5137, %v5173
  %v5206 = vadd.f32 %v5138, %v5174
  %v5207 = vadd.f32 %v5139, %v5175
  %v5208 = vadd.f32 %v5140, %v5176
  %v5209 = vadd.f32 %v5141, %v5177
  %v5210 = vadd.f32 %v5142, %v5178
  %v5211 = vadd.f32 %v5143, %v5179
  %v5212 = vadd.f32 %v5144, %v5180
  %v5213 = vadd.f32 %v5145, %v5181
  %v5214 = vadd.f32 %v5146, %v5182
  %v5215 = vadd.f32 %v5147, %v5183
  %v5216 = vadd.f32 %v5148, %v5184
  %v5217 = vadd.f32 %v5149, %v5185
  %v5218 = vadd.f32 %v5150, %v5186
  %v5219 = vadd.f32 %v5151, %v5187
  %v5220 = vadd.f32 %v5152, %v5188
  %v5221 = vadd.f32 %v5153, %v5189
  %v5222 = vadd.f32 %v5154, %v5190
  %v5223 = vlaneseq
  %v5224 = vshrl.u32 %v5223, 7
  %v5225 = vsub.s32 5, %v5224
  %v5226 = vrot.slane %v243, %v5225
  %v5227 = vmul.f32 %v5031, %v5226
  %v5228 = vmul.f32 %v5032, %v5226
  %v5229 = vmul.f32 %v5033, %v5226
  %v5230 = vmul.f32 %v5034, %v5226
  %v5231 = vmul.f32 %v5035, %v5226
  %v5232 = vmul.f32 %v5036, %v5226
  %v5233 = vmul.f32 %v5037, %v5226
  %v5234 = vmul.f32 %v5038, %v5226
  %v5235 = vmul.f32 %v5039, %v5226
  %v5236 = vmul.f32 %v5040, %v5226
  %v5237 = vmul.f32 %v5041, %v5226
  %v5238 = vmul.f32 %v5042, %v5226
  %v5239 = vmul.f32 %v5043, %v5226
  %v5240 = vmul.f32 %v5044, %v5226
  %v5241 = vmul.f32 %v5045, %v5226
  %v5242 = vmul.f32 %v5046, %v5226
  %v5243 = vmul.f32 %v5047, %v5226
  %v5244 = vmul.f32 %v5048, %v5226
  %v5245 = vmul.f32 %v5049, %v5226
  %v5246 = vmul.f32 %v5050, %v5226
  %v5247 = vmul.f32 %v5051, %v5226
  %v5248 = vmul.f32 %v5052, %v5226
  %v5249 = vmul.f32 %v5053, %v5226
  %v5250 = vmul.f32 %v5054, %v5226
  %v5251 = vmul.f32 %v5055, %v5226
  %v5252 = vmul.f32 %v5056, %v5226
  %v5253 = vmul.f32 %v5057, %v5226
  %v5254 = vmul.f32 %v5058, %v5226
  %v5255 = vmul.f32 %v5059, %v5226
  %v5256 = vmul.f32 %v5060, %v5226
  %v5257 = vmul.f32 %v5061, %v5226
  %v5258 = vmul.f32 %v5062, %v5226
  %v5259 = vadd.f32 %v5191, %v5227
  %v5260 = vadd.f32 %v5192, %v5228
  %v5261 = vadd.f32 %v5193, %v5229
  %v5262 = vadd.f32 %v5194, %v5230
  %v5263 = vadd.f32 %v5195, %v5231
  %v5264 = vadd.f32 %v5196, %v5232
  %v5265 = vadd.f32 %v5197, %v5233
  %v5266 = vadd.f32 %v5198, %v5234
  %v5267 = vadd.f32 %v5199, %v5235
  %v5268 = vadd.f32 %v5200, %v5236
  %v5269 = vadd.f32 %v5201, %v5237
  %v5270 = vadd.f32 %v5202, %v5238
  %v5271 = vadd.f32 %v5203, %v5239
  %v5272 = vadd.f32 %v5204, %v5240
  %v5273 = vadd.f32 %v5205, %v5241
  %v5274 = vadd.f32 %v5206, %v5242
  %v5275 = vadd.f32 %v5207, %v5243
  %v5276 = vadd.f32 %v5208, %v5244
  %v5277 = vadd.f32 %v5209, %v5245
  %v5278 = vadd.f32 %v5210, %v5246
  %v5279 = vadd.f32 %v5211, %v5247
  %v5280 = vadd.f32 %v5212, %v5248
  %v5281 = vadd.f32 %v5213, %v5249
  %v5282 = vadd.f32 %v5214, %v5250
  %v5283 = vadd.f32 %v5215, %v5251
  %v5284 = vadd.f32 %v5216, %v5252
  %v5285 = vadd.f32 %v5217, %v5253
  %v5286 = vadd.f32 %v5218, %v5254
  %v5287 = vadd.f32 %v5219, %v5255
  %v5288 = vadd.f32 %v5220, %v5256
  %v5289 = vadd.f32 %v5221, %v5257
  %v5290 = vadd.f32 %v5222, %v5258
  %v5291 = vlaneseq
  %v5292 = vshrl.u32 %v5291, 7
  %v5293 = vsub.s32 5, %v5292
  %v5294 = vrot.slane %v244, %v5293
  %v5295 = vmul.f32 %v5037, %v5294
  %v5296 = vmul.f32 %v5038, %v5294
  %v5297 = vmul.f32 %v5039, %v5294
  %v5298 = vmul.f32 %v5040, %v5294
  %v5299 = vmul.f32 %v5041, %v5294
  %v5300 = vmul.f32 %v5042, %v5294
  %v5301 = vmul.f32 %v5043, %v5294
  %v5302 = vmul.f32 %v5044, %v5294
  %v5303 = vmul.f32 %v5045, %v5294
  %v5304 = vmul.f32 %v5046, %v5294
  %v5305 = vmul.f32 %v5047, %v5294
  %v5306 = vmul.f32 %v5048, %v5294
  %v5307 = vmul.f32 %v5049, %v5294
  %v5308 = vmul.f32 %v5050, %v5294
  %v5309 = vmul.f32 %v5051, %v5294
  %v5310 = vmul.f32 %v5052, %v5294
  %v5311 = vmul.f32 %v5053, %v5294
  %v5312 = vmul.f32 %v5054, %v5294
  %v5313 = vmul.f32 %v5055, %v5294
  %v5314 = vmul.f32 %v5056, %v5294
  %v5315 = vmul.f32 %v5057, %v5294
  %v5316 = vmul.f32 %v5058, %v5294
  %v5317 = vmul.f32 %v5059, %v5294
  %v5318 = vmul.f32 %v5060, %v5294
  %v5319 = vmul.f32 %v5061, %v5294
  %v5320 = vmul.f32 %v5062, %v5294
  %v5321 = vmul.f32 %v5063, %v5294
  %v5322 = vmul.f32 %v5064, %v5294
  %v5323 = vmul.f32 %v5065, %v5294
  %v5324 = vmul.f32 %v5066, %v5294
  %v5325 = vmul.f32 %v5067, %v5294
  %v5326 = vmul.f32 %v5068, %v5294
  %v5327 = vadd.f32 %v5259, %v5295
  %v5328 = vadd.f32 %v5260, %v5296
  %v5329 = vadd.f32 %v5261, %v5297
  %v5330 = vadd.f32 %v5262, %v5298
  %v5331 = vadd.f32 %v5263, %v5299
  %v5332 = vadd.f32 %v5264, %v5300
  %v5333 = vadd.f32 %v5265, %v5301
  %v5334 = vadd.f32 %v5266, %v5302
  %v5335 = vadd.f32 %v5267, %v5303
  %v5336 = vadd.f32 %v5268, %v5304
  %v5337 = vadd.f32 %v5269, %v5305
  %v5338 = vadd.f32 %v5270, %v5306
  %v5339 = vadd.f32 %v5271, %v5307
  %v5340 = vadd.f32 %v5272, %v5308
  %v5341 = vadd.f32 %v5273, %v5309
  %v5342 = vadd.f32 %v5274, %v5310
  %v5343 = vadd.f32 %v5275, %v5311
  %v5344 = vadd.f32 %v5276, %v5312
  %v5345 = vadd.f32 %v5277, %v5313
  %v5346 = vadd.f32 %v5278, %v5314
  %v5347 = vadd.f32 %v5279, %v5315
  %v5348 = vadd.f32 %v5280, %v5316
  %v5349 = vadd.f32 %v5281, %v5317
  %v5350 = vadd.f32 %v5282, %v5318
  %v5351 = vadd.f32 %v5283, %v5319
  %v5352 = vadd.f32 %v5284, %v5320
  %v5353 = vadd.f32 %v5285, %v5321
  %v5354 = vadd.f32 %v5286, %v5322
  %v5355 = vadd.f32 %v5287, %v5323
  %v5356 = vadd.f32 %v5288, %v5324
  %v5357 = vadd.f32 %v5289, %v5325
  %v5358 = vadd.f32 %v5290, %v5326
  %v5359 = vlaneseq
  %v5360 = vshrl.u32 %v5359, 7
  %v5361 = vsub.s32 5, %v5360
  %v5362 = vrot.slane %v245, %v5361
  %v5363 = vmul.f32 %v5043, %v5362
  %v5364 = vmul.f32 %v5044, %v5362
  %v5365 = vmul.f32 %v5045, %v5362
  %v5366 = vmul.f32 %v5046, %v5362
  %v5367 = vmul.f32 %v5047, %v5362
  %v5368 = vmul.f32 %v5048, %v5362
  %v5369 = vmul.f32 %v5049, %v5362
  %v5370 = vmul.f32 %v5050, %v5362
  %v5371 = vmul.f32 %v5051, %v5362
  %v5372 = vmul.f32 %v5052, %v5362
  %v5373 = vmul.f32 %v5053, %v5362
  %v5374 = vmul.f32 %v5054, %v5362
  %v5375 = vmul.f32 %v5055, %v5362
  %v5376 = vmul.f32 %v5056, %v5362
  %v5377 = vmul.f32 %v5057, %v5362
  %v5378 = vmul.f32 %v5058, %v5362
  %v5379 = vmul.f32 %v5059, %v5362
  %v5380 = vmul.f32 %v5060, %v5362
  %v5381 = vmul.f32 %v5061, %v5362
  %v5382 = vmul.f32 %v5062, %v5362
  %v5383 = vmul.f32 %v5063, %v5362
  %v5384 = vmul.f32 %v5064, %v5362
  %v5385 = vmul.f32 %v5065, %v5362
  %v5386 = vmul.f32 %v5066, %v5362
  %v5387 = vmul.f32 %v5067, %v5362
  %v5388 = vmul.f32 %v5068, %v5362
  %v5389 = vmul.f32 %v5069, %v5362
  %v5390 = vmul.f32 %v5070, %v5362
  %v5391 = vmul.f32 %v5071, %v5362
  %v5392 = vmul.f32 %v5072, %v5362
  %v5393 = vmul.f32 %v5073, %v5362
  %v5394 = vmul.f32 %v5074, %v5362
  %v5395 = vadd.f32 %v5327, %v5363
  %v5396 = vadd.f32 %v5328, %v5364
  %v5397 = vadd.f32 %v5329, %v5365
  %v5398 = vadd.f32 %v5330, %v5366
  %v5399 = vadd.f32 %v5331, %v5367
  %v5400 = vadd.f32 %v5332, %v5368
  %v5401 = vadd.f32 %v5333, %v5369
  %v5402 = vadd.f32 %v5334, %v5370
  %v5403 = vadd.f32 %v5335, %v5371
  %v5404 = vadd.f32 %v5336, %v5372
  %v5405 = vadd.f32 %v5337, %v5373
  %v5406 = vadd.f32 %v5338, %v5374
  %v5407 = vadd.f32 %v5339, %v5375
  %v5408 = vadd.f32 %v5340, %v5376
  %v5409 = vadd.f32 %v5341, %v5377
  %v5410 = vadd.f32 %v5342, %v5378
  %v5411 = vadd.f32 %v5343, %v5379
  %v5412 = vadd.f32 %v5344, %v5380
  %v5413 = vadd.f32 %v5345, %v5381
  %v5414 = vadd.f32 %v5346, %v5382
  %v5415 = vadd.f32 %v5347, %v5383
  %v5416 = vadd.f32 %v5348, %v5384
  %v5417 = vadd.f32 %v5349, %v5385
  %v5418 = vadd.f32 %v5350, %v5386
  %v5419 = vadd.f32 %v5351, %v5387
  %v5420 = vadd.f32 %v5352, %v5388
  %v5421 = vadd.f32 %v5353, %v5389
  %v5422 = vadd.f32 %v5354, %v5390
  %v5423 = vadd.f32 %v5355, %v5391
  %v5424 = vadd.f32 %v5356, %v5392
  %v5425 = vadd.f32 %v5357, %v5393
  %v5426 = vadd.f32 %v5358, %v5394
  %v5427 = vlaneseq
  %v5428 = vshrl.u32 %v5427, 7
  %v5429 = vsub.s32 5, %v5428
  %v5430 = vrot.slane %v246, %v5429
  %v5431 = vmul.f32 %v5049, %v5430
  %v5432 = vmul.f32 %v5050, %v5430
  %v5433 = vmul.f32 %v5051, %v5430
  %v5434 = vmul.f32 %v5052, %v5430
  %v5435 = vmul.f32 %v5053, %v5430
  %v5436 = vmul.f32 %v5054, %v5430
  %v5437 = vmul.f32 %v5055, %v5430
  %v5438 = vmul.f32 %v5056, %v5430
  %v5439 = vmul.f32 %v5057, %v5430
  %v5440 = vmul.f32 %v5058, %v5430
  %v5441 = vmul.f32 %v5059, %v5430
  %v5442 = vmul.f32 %v5060, %v5430
  %v5443 = vmul.f32 %v5061, %v5430
  %v5444 = vmul.f32 %v5062, %v5430
  %v5445 = vmul.f32 %v5063, %v5430
  %v5446 = vmul.f32 %v5064, %v5430
  %v5447 = vmul.f32 %v5065, %v5430
  %v5448 = vmul.f32 %v5066, %v5430
  %v5449 = vmul.f32 %v5067, %v5430
  %v5450 = vmul.f32 %v5068, %v5430
  %v5451 = vmul.f32 %v5069, %v5430
  %v5452 = vmul.f32 %v5070, %v5430
  %v5453 = vmul.f32 %v5071, %v5430
  %v5454 = vmul.f32 %v5072, %v5430
  %v5455 = vmul.f32 %v5073, %v5430
  %v5456 = vmul.f32 %v5074, %v5430
  %v5457 = vmul.f32 %v5075, %v5430
  %v5458 = vmul.f32 %v5076, %v5430
  %v5459 = vmul.f32 %v5077, %v5430
  %v5460 = vmul.f32 %v5078, %v5430
  %v5461 = vmul.f32 %v5079, %v5430
  %v5462 = vmul.f32 %v5080, %v5430
  %v5463 = vadd.f32 %v5395, %v5431
  %v5464 = vadd.f32 %v5396, %v5432
  %v5465 = vadd.f32 %v5397, %v5433
  %v5466 = vadd.f32 %v5398, %v5434
  %v5467 = vadd.f32 %v5399, %v5435
  %v5468 = vadd.f32 %v5400, %v5436
  %v5469 = vadd.f32 %v5401, %v5437
  %v5470 = vadd.f32 %v5402, %v5438
  %v5471 = vadd.f32 %v5403, %v5439
  %v5472 = vadd.f32 %v5404, %v5440
  %v5473 = vadd.f32 %v5405, %v5441
  %v5474 = vadd.f32 %v5406, %v5442
  %v5475 = vadd.f32 %v5407, %v5443
  %v5476 = vadd.f32 %v5408, %v5444
  %v5477 = vadd.f32 %v5409, %v5445
  %v5478 = vadd.f32 %v5410, %v5446
  %v5479 = vadd.f32 %v5411, %v5447
  %v5480 = vadd.f32 %v5412, %v5448
  %v5481 = vadd.f32 %v5413, %v5449
  %v5482 = vadd.f32 %v5414, %v5450
  %v5483 = vadd.f32 %v5415, %v5451
  %v5484 = vadd.f32 %v5416, %v5452
  %v5485 = vadd.f32 %v5417, %v5453
  %v5486 = vadd.f32 %v5418, %v5454
  %v5487 = vadd.f32 %v5419, %v5455
  %v5488 = vadd.f32 %v5420, %v5456
  %v5489 = vadd.f32 %v5421, %v5457
  %v5490 = vadd.f32 %v5422, %v5458
  %v5491 = vadd.f32 %v5423, %v5459
  %v5492 = vadd.f32 %v5424, %v5460
  %v5493 = vadd.f32 %v5425, %v5461
  %v5494 = vadd.f32 %v5426, %v5462
  %v5495 = vlaneseq
  %v5496 = vshrl.u32 %v5495, 7
  %v5497 = vsub.s32 5, %v5496
  %v5498 = vrot.slane %v247, %v5497
  %v5499 = vmul.f32 %v5055, %v5498
  %v5500 = vmul.f32 %v5056, %v5498
  %v5501 = vmul.f32 %v5057, %v5498
  %v5502 = vmul.f32 %v5058, %v5498
  %v5503 = vmul.f32 %v5059, %v5498
  %v5504 = vmul.f32 %v5060, %v5498
  %v5505 = vmul.f32 %v5061, %v5498
  %v5506 = vmul.f32 %v5062, %v5498
  %v5507 = vmul.f32 %v5063, %v5498
  %v5508 = vmul.f32 %v5064, %v5498
  %v5509 = vmul.f32 %v5065, %v5498
  %v5510 = vmul.f32 %v5066, %v5498
  %v5511 = vmul.f32 %v5067, %v5498
  %v5512 = vmul.f32 %v5068, %v5498
  %v5513 = vmul.f32 %v5069, %v5498
  %v5514 = vmul.f32 %v5070, %v5498
  %v5515 = vmul.f32 %v5071, %v5498
  %v5516 = vmul.f32 %v5072, %v5498
  %v5517 = vmul.f32 %v5073, %v5498
  %v5518 = vmul.f32 %v5074, %v5498
  %v5519 = vmul.f32 %v5075, %v5498
  %v5520 = vmul.f32 %v5076, %v5498
  %v5521 = vmul.f32 %v5077, %v5498
  %v5522 = vmul.f32 %v5078, %v5498
  %v5523 = vmul.f32 %v5079, %v5498
  %v5524 = vmul.f32 %v5080, %v5498
  %v5525 = vmul.f32 %v5081, %v5498
  %v5526 = vmul.f32 %v5082, %v5498
  %v5527 = vmul.f32 %v5083, %v5498
  %v5528 = vmul.f32 %v5084, %v5498
  %v5529 = vmul.f32 %v5085, %v5498
  %v5530 = vmul.f32 %v5086, %v5498
  %v5531 = vadd.f32 %v5463, %v5499
  %v5532 = vadd.f32 %v5464, %v5500
  %v5533 = vadd.f32 %v5465, %v5501
  %v5534 = vadd.f32 %v5466, %v5502
  %v5535 = vadd.f32 %v5467, %v5503
  %v5536 = vadd.f32 %v5468, %v5504
  %v5537 = vadd.f32 %v5469, %v5505
  %v5538 = vadd.f32 %v5470, %v5506
  %v5539 = vadd.f32 %v5471, %v5507
  %v5540 = vadd.f32 %v5472, %v5508
  %v5541 = vadd.f32 %v5473, %v5509
  %v5542 = vadd.f32 %v5474, %v5510
  %v5543 = vadd.f32 %v5475, %v5511
  %v5544 = vadd.f32 %v5476, %v5512
  %v5545 = vadd.f32 %v5477, %v5513
  %v5546 = vadd.f32 %v5478, %v5514
  %v5547 = vadd.f32 %v5479, %v5515
  %v5548 = vadd.f32 %v5480, %v5516
  %v5549 = vadd.f32 %v5481, %v5517
  %v5550 = vadd.f32 %v5482, %v5518
  %v5551 = vadd.f32 %v5483, %v5519
  %v5552 = vadd.f32 %v5484, %v5520
  %v5553 = vadd.f32 %v5485, %v5521
  %v5554 = vadd.f32 %v5486, %v5522
  %v5555 = vadd.f32 %v5487, %v5523
  %v5556 = vadd.f32 %v5488, %v5524
  %v5557 = vadd.f32 %v5489, %v5525
  %v5558 = vadd.f32 %v5490, %v5526
  %v5559 = vadd.f32 %v5491, %v5527
  %v5560 = vadd.f32 %v5492, %v5528
  %v5561 = vadd.f32 %v5493, %v5529
  %v5562 = vadd.f32 %v5494, %v5530
  %v5563 = vld [vmem:[%s2298 + $0x19] sm:$0xff]
  %v5564 = vld [vmem:[%s2298 + $0x21] sm:$0xff]
  %v5565 = vld [vmem:[%s2298 + $0x49] sm:$0xff]
  %v5566 = vld [vmem:[%s2298 + $0x51] sm:$0xff]
  %v5567 = vld [vmem:[%s2298 + $0x79] sm:$0xff]
  %v5568 = vld [vmem:[%s2298 + $0x81] sm:$0xff]
  %v5569 = vld [vmem:[%s2298 + $0xa9] sm:$0xff]
  %v5570 = vld [vmem:[%s2298 + $0xb1] sm:$0xff]
  %v5571 = vld [vmem:[%s2298 + $0xd9] sm:$0xff]
  %v5572 = vld [vmem:[%s2298 + $0xe1] sm:$0xff]
  %v5573 = vld [vmem:[%s2298 + $0x109] sm:$0xff]
  %v5574 = vld [vmem:[%s2298 + $0x111] sm:$0xff]
  %v5575 = vld [vmem:[%s2298 + $0x139] sm:$0xff]
  %v5576 = vld [vmem:[%s2298 + $0x141] sm:$0xff]
  %v5577 = vld [vmem:[%s2298 + $0x169] sm:$0xff]
  %v5578 = vld [vmem:[%s2298 + $0x171] sm:$0xff]
  %v5579 = vld [vmem:[%s2298 + $0x199] sm:$0xff]
  %v5580 = vld [vmem:[%s2298 + $0x1a1] sm:$0xff]
  %v5581 = vld [vmem:[%s2298 + $0x1c9] sm:$0xff]
  %v5582 = vld [vmem:[%s2298 + $0x1d1] sm:$0xff]
  %v5583 = vld [vmem:[%s2298 + $0x1f9] sm:$0xff]
  %v5584 = vld [vmem:[%s2298 + $0x201] sm:$0xff]
  %v5585 = vld [vmem:[%s2298 + $0x229] sm:$0xff]
  %v5586 = vld [vmem:[%s2298 + $0x231] sm:$0xff]
  %v5587 = vld [vmem:[%s2298 + $0x259] sm:$0xff]
  %v5588 = vld [vmem:[%s2298 + $0x261] sm:$0xff]
  %v5589 = vld [vmem:[%s2298 + $0x289] sm:$0xff]
  %v5590 = vld [vmem:[%s2298 + $0x291] sm:$0xff]
  %v5591 = vld [vmem:[%s2298 + $0x2b9] sm:$0xff]
  %v5592 = vld [vmem:[%s2298 + $0x2c1] sm:$0xff]
  %v5593 = vld [vmem:[%s2298 + $0x2e9] sm:$0xff]
  %v5594 = vld [vmem:[%s2298 + $0x2f1] sm:$0xff]
  %v5595 = vld [vmem:[%s2298 + $0x319] sm:$0xff]
  %v5596 = vld [vmem:[%s2298 + $0x321] sm:$0xff]
  %v5597 = vld [vmem:[%s2298 + $0x349] sm:$0xff]
  %v5598 = vld [vmem:[%s2298 + $0x351] sm:$0xff]
  %v5599 = vld [vmem:[%s2298 + $0x379] sm:$0xff]
  %v5600 = vld [vmem:[%s2298 + $0x381] sm:$0xff]
  %v5601 = vld [vmem:[%s2298 + $0x3a9] sm:$0xff]
  %v5602 = vld [vmem:[%s2298 + $0x3b1] sm:$0xff]
  %v5603 = vld [vmem:[%s2298 + $0x3d9] sm:$0xff]
  %v5604 = vld [vmem:[%s2298 + $0x3e1] sm:$0xff]
  %v5605 = vld [vmem:[%s2298 + $0x409] sm:$0xff]
  %v5606 = vld [vmem:[%s2298 + $0x411] sm:$0xff]
  %v5607 = vld [vmem:[%s2298 + $0x439] sm:$0xff]
  %v5608 = vld [vmem:[%s2298 + $0x441] sm:$0xff]
  %v5609 = vld [vmem:[%s2298 + $0x469] sm:$0xff]
  %v5610 = vld [vmem:[%s2298 + $0x471] sm:$0xff]
  %v5611 = vld [vmem:[%s2298 + $0x499] sm:$0xff]
  %v5612 = vld [vmem:[%s2298 + $0x4a1] sm:$0xff]
  %v5613 = vld [vmem:[%s2298 + $0x4c9] sm:$0xff]
  %v5614 = vld [vmem:[%s2298 + $0x4d1] sm:$0xff]
  %v5615 = vld [vmem:[%s2298 + $0x4f9] sm:$0xff]
  %v5616 = vld [vmem:[%s2298 + $0x501] sm:$0xff]
  %v5617 = vld [vmem:[%s2298 + $0x529] sm:$0xff]
  %v5618 = vld [vmem:[%s2298 + $0x531] sm:$0xff]
  %v5619 = vld [vmem:[%s2298 + $0x559] sm:$0xff]
  %v5620 = vld [vmem:[%s2298 + $0x561] sm:$0xff]
  %v5621 = vld [vmem:[%s2298 + $0x589] sm:$0xff]
  %v5622 = vld [vmem:[%s2298 + $0x591] sm:$0xff]
  %v5623 = vld [vmem:[%s2298 + $0x5b9] sm:$0xff]
  %v5624 = vld [vmem:[%s2298 + $0x5c1] sm:$0xff]
  %v5625 = vld [vmem:[%s2298 + $0x5e9] sm:$0xff]
  %v5626 = vld [vmem:[%s2298 + $0x5f1] sm:$0xff]
  %v5627 = vld [vmem:[%s2298 + $0x619] sm:$0xff]
  %v5628 = vld [vmem:[%s2298 + $0x621] sm:$0xff]
  %v5629 = vld [vmem:[%s2298 + $0x649] sm:$0xff]
  %v5630 = vld [vmem:[%s2298 + $0x651] sm:$0xff]
  %v5631 = vlaneseq
  %v5632 = vshrl.u32 %v5631, 7
  %v5633 = vsub.s32 6, %v5632
  %v5634 = vrot.slane %v241, %v5633
  %v5635 = vmul.f32 %v5563, %v5634
  %v5636 = vmul.f32 %v5564, %v5634
  %v5637 = vmul.f32 %v5565, %v5634
  %v5638 = vmul.f32 %v5566, %v5634
  %v5639 = vmul.f32 %v5567, %v5634
  %v5640 = vmul.f32 %v5568, %v5634
  %v5641 = vmul.f32 %v5569, %v5634
  %v5642 = vmul.f32 %v5570, %v5634
  %v5643 = vmul.f32 %v5571, %v5634
  %v5644 = vmul.f32 %v5572, %v5634
  %v5645 = vmul.f32 %v5573, %v5634
  %v5646 = vmul.f32 %v5574, %v5634
  %v5647 = vmul.f32 %v5575, %v5634
  %v5648 = vmul.f32 %v5576, %v5634
  %v5649 = vmul.f32 %v5577, %v5634
  %v5650 = vmul.f32 %v5578, %v5634
  %v5651 = vmul.f32 %v5579, %v5634
  %v5652 = vmul.f32 %v5580, %v5634
  %v5653 = vmul.f32 %v5581, %v5634
  %v5654 = vmul.f32 %v5582, %v5634
  %v5655 = vmul.f32 %v5583, %v5634
  %v5656 = vmul.f32 %v5584, %v5634
  %v5657 = vmul.f32 %v5585, %v5634
  %v5658 = vmul.f32 %v5586, %v5634
  %v5659 = vmul.f32 %v5587, %v5634
  %v5660 = vmul.f32 %v5588, %v5634
  %v5661 = vmul.f32 %v5589, %v5634
  %v5662 = vmul.f32 %v5590, %v5634
  %v5663 = vmul.f32 %v5591, %v5634
  %v5664 = vmul.f32 %v5592, %v5634
  %v5665 = vmul.f32 %v5593, %v5634
  %v5666 = vmul.f32 %v5594, %v5634
  %v5667 = vadd.f32 %v5531, %v5635
  %v5668 = vadd.f32 %v5532, %v5636
  %v5669 = vadd.f32 %v5533, %v5637
  %v5670 = vadd.f32 %v5534, %v5638
  %v5671 = vadd.f32 %v5535, %v5639
  %v5672 = vadd.f32 %v5536, %v5640
  %v5673 = vadd.f32 %v5537, %v5641
  %v5674 = vadd.f32 %v5538, %v5642
  %v5675 = vadd.f32 %v5539, %v5643
  %v5676 = vadd.f32 %v5540, %v5644
  %v5677 = vadd.f32 %v5541, %v5645
  %v5678 = vadd.f32 %v5542, %v5646
  %v5679 = vadd.f32 %v5543, %v5647
  %v5680 = vadd.f32 %v5544, %v5648
  %v5681 = vadd.f32 %v5545, %v5649
  %v5682 = vadd.f32 %v5546, %v5650
  %v5683 = vadd.f32 %v5547, %v5651
  %v5684 = vadd.f32 %v5548, %v5652
  %v5685 = vadd.f32 %v5549, %v5653
  %v5686 = vadd.f32 %v5550, %v5654
  %v5687 = vadd.f32 %v5551, %v5655
  %v5688 = vadd.f32 %v5552, %v5656
  %v5689 = vadd.f32 %v5553, %v5657
  %v5690 = vadd.f32 %v5554, %v5658
  %v5691 = vadd.f32 %v5555, %v5659
  %v5692 = vadd.f32 %v5556, %v5660
  %v5693 = vadd.f32 %v5557, %v5661
  %v5694 = vadd.f32 %v5558, %v5662
  %v5695 = vadd.f32 %v5559, %v5663
  %v5696 = vadd.f32 %v5560, %v5664
  %v5697 = vadd.f32 %v5561, %v5665
  %v5698 = vadd.f32 %v5562, %v5666
  %v5699 = vlaneseq
  %v5700 = vshrl.u32 %v5699, 7
  %v5701 = vsub.s32 6, %v5700
  %v5702 = vrot.slane %v242, %v5701
  %v5703 = vmul.f32 %v5569, %v5702
  %v5704 = vmul.f32 %v5570, %v5702
  %v5705 = vmul.f32 %v5571, %v5702
  %v5706 = vmul.f32 %v5572, %v5702
  %v5707 = vmul.f32 %v5573, %v5702
  %v5708 = vmul.f32 %v5574, %v5702
  %v5709 = vmul.f32 %v5575, %v5702
  %v5710 = vmul.f32 %v5576, %v5702
  %v5711 = vmul.f32 %v5577, %v5702
  %v5712 = vmul.f32 %v5578, %v5702
  %v5713 = vmul.f32 %v5579, %v5702
  %v5714 = vmul.f32 %v5580, %v5702
  %v5715 = vmul.f32 %v5581, %v5702
  %v5716 = vmul.f32 %v5582, %v5702
  %v5717 = vmul.f32 %v5583, %v5702
  %v5718 = vmul.f32 %v5584, %v5702
  %v5719 = vmul.f32 %v5585, %v5702
  %v5720 = vmul.f32 %v5586, %v5702
  %v5721 = vmul.f32 %v5587, %v5702
  %v5722 = vmul.f32 %v5588, %v5702
  %v5723 = vmul.f32 %v5589, %v5702
  %v5724 = vmul.f32 %v5590, %v5702
  %v5725 = vmul.f32 %v5591, %v5702
  %v5726 = vmul.f32 %v5592, %v5702
  %v5727 = vmul.f32 %v5593, %v5702
  %v5728 = vmul.f32 %v5594, %v5702
  %v5729 = vmul.f32 %v5595, %v5702
  %v5730 = vmul.f32 %v5596, %v5702
  %v5731 = vmul.f32 %v5597, %v5702
  %v5732 = vmul.f32 %v5598, %v5702
  %v5733 = vmul.f32 %v5599, %v5702
  %v5734 = vmul.f32 %v5600, %v5702
  %v5735 = vadd.f32 %v5667, %v5703
  %v5736 = vadd.f32 %v5668, %v5704
  %v5737 = vadd.f32 %v5669, %v5705
  %v5738 = vadd.f32 %v5670, %v5706
  %v5739 = vadd.f32 %v5671, %v5707
  %v5740 = vadd.f32 %v5672, %v5708
  %v5741 = vadd.f32 %v5673, %v5709
  %v5742 = vadd.f32 %v5674, %v5710
  %v5743 = vadd.f32 %v5675, %v5711
  %v5744 = vadd.f32 %v5676, %v5712
  %v5745 = vadd.f32 %v5677, %v5713
  %v5746 = vadd.f32 %v5678, %v5714
  %v5747 = vadd.f32 %v5679, %v5715
  %v5748 = vadd.f32 %v5680, %v5716
  %v5749 = vadd.f32 %v5681, %v5717
  %v5750 = vadd.f32 %v5682, %v5718
  %v5751 = vadd.f32 %v5683, %v5719
  %v5752 = vadd.f32 %v5684, %v5720
  %v5753 = vadd.f32 %v5685, %v5721
  %v5754 = vadd.f32 %v5686, %v5722
  %v5755 = vadd.f32 %v5687, %v5723
  %v5756 = vadd.f32 %v5688, %v5724
  %v5757 = vadd.f32 %v5689, %v5725
  %v5758 = vadd.f32 %v5690, %v5726
  %v5759 = vadd.f32 %v5691, %v5727
  %v5760 = vadd.f32 %v5692, %v5728
  %v5761 = vadd.f32 %v5693, %v5729
  %v5762 = vadd.f32 %v5694, %v5730
  %v5763 = vadd.f32 %v5695, %v5731
  %v5764 = vadd.f32 %v5696, %v5732
  %v5765 = vadd.f32 %v5697, %v5733
  %v5766 = vadd.f32 %v5698, %v5734
  %v5767 = vlaneseq
  %v5768 = vshrl.u32 %v5767, 7
  %v5769 = vsub.s32 6, %v5768
  %v5770 = vrot.slane %v243, %v5769
  %v5771 = vmul.f32 %v5575, %v5770
  %v5772 = vmul.f32 %v5576, %v5770
  %v5773 = vmul.f32 %v5577, %v5770
  %v5774 = vmul.f32 %v5578, %v5770
  %v5775 = vmul.f32 %v5579, %v5770
  %v5776 = vmul.f32 %v5580, %v5770
  %v5777 = vmul.f32 %v5581, %v5770
  %v5778 = vmul.f32 %v5582, %v5770
  %v5779 = vmul.f32 %v5583, %v5770
  %v5780 = vmul.f32 %v5584, %v5770
  %v5781 = vmul.f32 %v5585, %v5770
  %v5782 = vmul.f32 %v5586, %v5770
  %v5783 = vmul.f32 %v5587, %v5770
  %v5784 = vmul.f32 %v5588, %v5770
  %v5785 = vmul.f32 %v5589, %v5770
  %v5786 = vmul.f32 %v5590, %v5770
  %v5787 = vmul.f32 %v5591, %v5770
  %v5788 = vmul.f32 %v5592, %v5770
  %v5789 = vmul.f32 %v5593, %v5770
  %v5790 = vmul.f32 %v5594, %v5770
  %v5791 = vmul.f32 %v5595, %v5770
  %v5792 = vmul.f32 %v5596, %v5770
  %v5793 = vmul.f32 %v5597, %v5770
  %v5794 = vmul.f32 %v5598, %v5770
  %v5795 = vmul.f32 %v5599, %v5770
  %v5796 = vmul.f32 %v5600, %v5770
  %v5797 = vmul.f32 %v5601, %v5770
  %v5798 = vmul.f32 %v5602, %v5770
  %v5799 = vmul.f32 %v5603, %v5770
  %v5800 = vmul.f32 %v5604, %v5770
  %v5801 = vmul.f32 %v5605, %v5770
  %v5802 = vmul.f32 %v5606, %v5770
  %v5803 = vadd.f32 %v5735, %v5771
  %v5804 = vadd.f32 %v5736, %v5772
  %v5805 = vadd.f32 %v5737, %v5773
  %v5806 = vadd.f32 %v5738, %v5774
  %v5807 = vadd.f32 %v5739, %v5775
  %v5808 = vadd.f32 %v5740, %v5776
  %v5809 = vadd.f32 %v5741, %v5777
  %v5810 = vadd.f32 %v5742, %v5778
  %v5811 = vadd.f32 %v5743, %v5779
  %v5812 = vadd.f32 %v5744, %v5780
  %v5813 = vadd.f32 %v5745, %v5781
  %v5814 = vadd.f32 %v5746, %v5782
  %v5815 = vadd.f32 %v5747, %v5783
  %v5816 = vadd.f32 %v5748, %v5784
  %v5817 = vadd.f32 %v5749, %v5785
  %v5818 = vadd.f32 %v5750, %v5786
  %v5819 = vadd.f32 %v5751, %v5787
  %v5820 = vadd.f32 %v5752, %v5788
  %v5821 = vadd.f32 %v5753, %v5789
  %v5822 = vadd.f32 %v5754, %v5790
  %v5823 = vadd.f32 %v5755, %v5791
  %v5824 = vadd.f32 %v5756, %v5792
  %v5825 = vadd.f32 %v5757, %v5793
  %v5826 = vadd.f32 %v5758, %v5794
  %v5827 = vadd.f32 %v5759, %v5795
  %v5828 = vadd.f32 %v5760, %v5796
  %v5829 = vadd.f32 %v5761, %v5797
  %v5830 = vadd.f32 %v5762, %v5798
  %v5831 = vadd.f32 %v5763, %v5799
  %v5832 = vadd.f32 %v5764, %v5800
  %v5833 = vadd.f32 %v5765, %v5801
  %v5834 = vadd.f32 %v5766, %v5802
  %v5835 = vlaneseq
  %v5836 = vshrl.u32 %v5835, 7
  %v5837 = vsub.s32 6, %v5836
  %v5838 = vrot.slane %v244, %v5837
  %v5839 = vmul.f32 %v5581, %v5838
  %v5840 = vmul.f32 %v5582, %v5838
  %v5841 = vmul.f32 %v5583, %v5838
  %v5842 = vmul.f32 %v5584, %v5838
  %v5843 = vmul.f32 %v5585, %v5838
  %v5844 = vmul.f32 %v5586, %v5838
  %v5845 = vmul.f32 %v5587, %v5838
  %v5846 = vmul.f32 %v5588, %v5838
  %v5847 = vmul.f32 %v5589, %v5838
  %v5848 = vmul.f32 %v5590, %v5838
  %v5849 = vmul.f32 %v5591, %v5838
  %v5850 = vmul.f32 %v5592, %v5838
  %v5851 = vmul.f32 %v5593, %v5838
  %v5852 = vmul.f32 %v5594, %v5838
  %v5853 = vmul.f32 %v5595, %v5838
  %v5854 = vmul.f32 %v5596, %v5838
  %v5855 = vmul.f32 %v5597, %v5838
  %v5856 = vmul.f32 %v5598, %v5838
  %v5857 = vmul.f32 %v5599, %v5838
  %v5858 = vmul.f32 %v5600, %v5838
  %v5859 = vmul.f32 %v5601, %v5838
  %v5860 = vmul.f32 %v5602, %v5838
  %v5861 = vmul.f32 %v5603, %v5838
  %v5862 = vmul.f32 %v5604, %v5838
  %v5863 = vmul.f32 %v5605, %v5838
  %v5864 = vmul.f32 %v5606, %v5838
  %v5865 = vmul.f32 %v5607, %v5838
  %v5866 = vmul.f32 %v5608, %v5838
  %v5867 = vmul.f32 %v5609, %v5838
  %v5868 = vmul.f32 %v5610, %v5838
  %v5869 = vmul.f32 %v5611, %v5838
  %v5870 = vmul.f32 %v5612, %v5838
  %v5871 = vadd.f32 %v5803, %v5839
  %v5872 = vadd.f32 %v5804, %v5840
  %v5873 = vadd.f32 %v5805, %v5841
  %v5874 = vadd.f32 %v5806, %v5842
  %v5875 = vadd.f32 %v5807, %v5843
  %v5876 = vadd.f32 %v5808, %v5844
  %v5877 = vadd.f32 %v5809, %v5845
  %v5878 = vadd.f32 %v5810, %v5846
  %v5879 = vadd.f32 %v5811, %v5847
  %v5880 = vadd.f32 %v5812, %v5848
  %v5881 = vadd.f32 %v5813, %v5849
  %v5882 = vadd.f32 %v5814, %v5850
  %v5883 = vadd.f32 %v5815, %v5851
  %v5884 = vadd.f32 %v5816, %v5852
  %v5885 = vadd.f32 %v5817, %v5853
  %v5886 = vadd.f32 %v5818, %v5854
  %v5887 = vadd.f32 %v5819, %v5855
  %v5888 = vadd.f32 %v5820, %v5856
  %v5889 = vadd.f32 %v5821, %v5857
  %v5890 = vadd.f32 %v5822, %v5858
  %v5891 = vadd.f32 %v5823, %v5859
  %v5892 = vadd.f32 %v5824, %v5860
  %v5893 = vadd.f32 %v5825, %v5861
  %v5894 = vadd.f32 %v5826, %v5862
  %v5895 = vadd.f32 %v5827, %v5863
  %v5896 = vadd.f32 %v5828, %v5864
  %v5897 = vadd.f32 %v5829, %v5865
  %v5898 = vadd.f32 %v5830, %v5866
  %v5899 = vadd.f32 %v5831, %v5867
  %v5900 = vadd.f32 %v5832, %v5868
  %v5901 = vadd.f32 %v5833, %v5869
  %v5902 = vadd.f32 %v5834, %v5870
  %v5903 = vlaneseq
  %v5904 = vshrl.u32 %v5903, 7
  %v5905 = vsub.s32 6, %v5904
  %v5906 = vrot.slane %v245, %v5905
  %v5907 = vmul.f32 %v5587, %v5906
  %v5908 = vmul.f32 %v5588, %v5906
  %v5909 = vmul.f32 %v5589, %v5906
  %v5910 = vmul.f32 %v5590, %v5906
  %v5911 = vmul.f32 %v5591, %v5906
  %v5912 = vmul.f32 %v5592, %v5906
  %v5913 = vmul.f32 %v5593, %v5906
  %v5914 = vmul.f32 %v5594, %v5906
  %v5915 = vmul.f32 %v5595, %v5906
  %v5916 = vmul.f32 %v5596, %v5906
  %v5917 = vmul.f32 %v5597, %v5906
  %v5918 = vmul.f32 %v5598, %v5906
  %v5919 = vmul.f32 %v5599, %v5906
  %v5920 = vmul.f32 %v5600, %v5906
  %v5921 = vmul.f32 %v5601, %v5906
  %v5922 = vmul.f32 %v5602, %v5906
  %v5923 = vmul.f32 %v5603, %v5906
  %v5924 = vmul.f32 %v5604, %v5906
  %v5925 = vmul.f32 %v5605, %v5906
  %v5926 = vmul.f32 %v5606, %v5906
  %v5927 = vmul.f32 %v5607, %v5906
  %v5928 = vmul.f32 %v5608, %v5906
  %v5929 = vmul.f32 %v5609, %v5906
  %v5930 = vmul.f32 %v5610, %v5906
  %v5931 = vmul.f32 %v5611, %v5906
  %v5932 = vmul.f32 %v5612, %v5906
  %v5933 = vmul.f32 %v5613, %v5906
  %v5934 = vmul.f32 %v5614, %v5906
  %v5935 = vmul.f32 %v5615, %v5906
  %v5936 = vmul.f32 %v5616, %v5906
  %v5937 = vmul.f32 %v5617, %v5906
  %v5938 = vmul.f32 %v5618, %v5906
  %v5939 = vadd.f32 %v5871, %v5907
  %v5940 = vadd.f32 %v5872, %v5908
  %v5941 = vadd.f32 %v5873, %v5909
  %v5942 = vadd.f32 %v5874, %v5910
  %v5943 = vadd.f32 %v5875, %v5911
  %v5944 = vadd.f32 %v5876, %v5912
  %v5945 = vadd.f32 %v5877, %v5913
  %v5946 = vadd.f32 %v5878, %v5914
  %v5947 = vadd.f32 %v5879, %v5915
  %v5948 = vadd.f32 %v5880, %v5916
  %v5949 = vadd.f32 %v5881, %v5917
  %v5950 = vadd.f32 %v5882, %v5918
  %v5951 = vadd.f32 %v5883, %v5919
  %v5952 = vadd.f32 %v5884, %v5920
  %v5953 = vadd.f32 %v5885, %v5921
  %v5954 = vadd.f32 %v5886, %v5922
  %v5955 = vadd.f32 %v5887, %v5923
  %v5956 = vadd.f32 %v5888, %v5924
  %v5957 = vadd.f32 %v5889, %v5925
  %v5958 = vadd.f32 %v5890, %v5926
  %v5959 = vadd.f32 %v5891, %v5927
  %v5960 = vadd.f32 %v5892, %v5928
  %v5961 = vadd.f32 %v5893, %v5929
  %v5962 = vadd.f32 %v5894, %v5930
  %v5963 = vadd.f32 %v5895, %v5931
  %v5964 = vadd.f32 %v5896, %v5932
  %v5965 = vadd.f32 %v5897, %v5933
  %v5966 = vadd.f32 %v5898, %v5934
  %v5967 = vadd.f32 %v5899, %v5935
  %v5968 = vadd.f32 %v5900, %v5936
  %v5969 = vadd.f32 %v5901, %v5937
  %v5970 = vadd.f32 %v5902, %v5938
  %v5971 = vlaneseq
  %v5972 = vshrl.u32 %v5971, 7
  %v5973 = vsub.s32 6, %v5972
  %v5974 = vrot.slane %v246, %v5973
  %v5975 = vmul.f32 %v5593, %v5974
  %v5976 = vmul.f32 %v5594, %v5974
  %v5977 = vmul.f32 %v5595, %v5974
  %v5978 = vmul.f32 %v5596, %v5974
  %v5979 = vmul.f32 %v5597, %v5974
  %v5980 = vmul.f32 %v5598, %v5974
  %v5981 = vmul.f32 %v5599, %v5974
  %v5982 = vmul.f32 %v5600, %v5974
  %v5983 = vmul.f32 %v5601, %v5974
  %v5984 = vmul.f32 %v5602, %v5974
  %v5985 = vmul.f32 %v5603, %v5974
  %v5986 = vmul.f32 %v5604, %v5974
  %v5987 = vmul.f32 %v5605, %v5974
  %v5988 = vmul.f32 %v5606, %v5974
  %v5989 = vmul.f32 %v5607, %v5974
  %v5990 = vmul.f32 %v5608, %v5974
  %v5991 = vmul.f32 %v5609, %v5974
  %v5992 = vmul.f32 %v5610, %v5974
  %v5993 = vmul.f32 %v5611, %v5974
  %v5994 = vmul.f32 %v5612, %v5974
  %v5995 = vmul.f32 %v5613, %v5974
  %v5996 = vmul.f32 %v5614, %v5974
  %v5997 = vmul.f32 %v5615, %v5974
  %v5998 = vmul.f32 %v5616, %v5974
  %v5999 = vmul.f32 %v5617, %v5974
  %v6000 = vmul.f32 %v5618, %v5974
  %v6001 = vmul.f32 %v5619, %v5974
  %v6002 = vmul.f32 %v5620, %v5974
  %v6003 = vmul.f32 %v5621, %v5974
  %v6004 = vmul.f32 %v5622, %v5974
  %v6005 = vmul.f32 %v5623, %v5974
  %v6006 = vmul.f32 %v5624, %v5974
  %v6007 = vadd.f32 %v5939, %v5975
  %v6008 = vadd.f32 %v5940, %v5976
  %v6009 = vadd.f32 %v5941, %v5977
  %v6010 = vadd.f32 %v5942, %v5978
  %v6011 = vadd.f32 %v5943, %v5979
  %v6012 = vadd.f32 %v5944, %v5980
  %v6013 = vadd.f32 %v5945, %v5981
  %v6014 = vadd.f32 %v5946, %v5982
  %v6015 = vadd.f32 %v5947, %v5983
  %v6016 = vadd.f32 %v5948, %v5984
  %v6017 = vadd.f32 %v5949, %v5985
  %v6018 = vadd.f32 %v5950, %v5986
  %v6019 = vadd.f32 %v5951, %v5987
  %v6020 = vadd.f32 %v5952, %v5988
  %v6021 = vadd.f32 %v5953, %v5989
  %v6022 = vadd.f32 %v5954, %v5990
  %v6023 = vadd.f32 %v5955, %v5991
  %v6024 = vadd.f32 %v5956, %v5992
  %v6025 = vadd.f32 %v5957, %v5993
  %v6026 = vadd.f32 %v5958, %v5994
  %v6027 = vadd.f32 %v5959, %v5995
  %v6028 = vadd.f32 %v5960, %v5996
  %v6029 = vadd.f32 %v5961, %v5997
  %v6030 = vadd.f32 %v5962, %v5998
  %v6031 = vadd.f32 %v5963, %v5999
  %v6032 = vadd.f32 %v5964, %v6000
  %v6033 = vadd.f32 %v5965, %v6001
  %v6034 = vadd.f32 %v5966, %v6002
  %v6035 = vadd.f32 %v5967, %v6003
  %v6036 = vadd.f32 %v5968, %v6004
  %v6037 = vadd.f32 %v5969, %v6005
  %v6038 = vadd.f32 %v5970, %v6006
  %v6039 = vlaneseq
  %v6040 = vshrl.u32 %v6039, 7
  %v6041 = vsub.s32 6, %v6040
  %v6042 = vrot.slane %v247, %v6041
  %v6043 = vmul.f32 %v5599, %v6042
  %v6044 = vmul.f32 %v5600, %v6042
  %v6045 = vmul.f32 %v5601, %v6042
  %v6046 = vmul.f32 %v5602, %v6042
  %v6047 = vmul.f32 %v5603, %v6042
  %v6048 = vmul.f32 %v5604, %v6042
  %v6049 = vmul.f32 %v5605, %v6042
  %v6050 = vmul.f32 %v5606, %v6042
  %v6051 = vmul.f32 %v5607, %v6042
  %v6052 = vmul.f32 %v5608, %v6042
  %v6053 = vmul.f32 %v5609, %v6042
  %v6054 = vmul.f32 %v5610, %v6042
  %v6055 = vmul.f32 %v5611, %v6042
  %v6056 = vmul.f32 %v5612, %v6042
  %v6057 = vmul.f32 %v5613, %v6042
  %v6058 = vmul.f32 %v5614, %v6042
  %v6059 = vmul.f32 %v5615, %v6042
  %v6060 = vmul.f32 %v5616, %v6042
  %v6061 = vmul.f32 %v5617, %v6042
  %v6062 = vmul.f32 %v5618, %v6042
  %v6063 = vmul.f32 %v5619, %v6042
  %v6064 = vmul.f32 %v5620, %v6042
  %v6065 = vmul.f32 %v5621, %v6042
  %v6066 = vmul.f32 %v5622, %v6042
  %v6067 = vmul.f32 %v5623, %v6042
  %v6068 = vmul.f32 %v5624, %v6042
  %v6069 = vmul.f32 %v5625, %v6042
  %v6070 = vmul.f32 %v5626, %v6042
  %v6071 = vmul.f32 %v5627, %v6042
  %v6072 = vmul.f32 %v5628, %v6042
  %v6073 = vmul.f32 %v5629, %v6042
  %v6074 = vmul.f32 %v5630, %v6042
  %v6075 = vadd.f32 %v6007, %v6043
  %v6076 = vadd.f32 %v6008, %v6044
  %v6077 = vadd.f32 %v6009, %v6045
  %v6078 = vadd.f32 %v6010, %v6046
  %v6079 = vadd.f32 %v6011, %v6047
  %v6080 = vadd.f32 %v6012, %v6048
  %v6081 = vadd.f32 %v6013, %v6049
  %v6082 = vadd.f32 %v6014, %v6050
  %v6083 = vadd.f32 %v6015, %v6051
  %v6084 = vadd.f32 %v6016, %v6052
  %v6085 = vadd.f32 %v6017, %v6053
  %v6086 = vadd.f32 %v6018, %v6054
  %v6087 = vadd.f32 %v6019, %v6055
  %v6088 = vadd.f32 %v6020, %v6056
  %v6089 = vadd.f32 %v6021, %v6057
  %v6090 = vadd.f32 %v6022, %v6058
  %v6091 = vadd.f32 %v6023, %v6059
  %v6092 = vadd.f32 %v6024, %v6060
  %v6093 = vadd.f32 %v6025, %v6061
  %v6094 = vadd.f32 %v6026, %v6062
  %v6095 = vadd.f32 %v6027, %v6063
  %v6096 = vadd.f32 %v6028, %v6064
  %v6097 = vadd.f32 %v6029, %v6065
  %v6098 = vadd.f32 %v6030, %v6066
  %v6099 = vadd.f32 %v6031, %v6067
  %v6100 = vadd.f32 %v6032, %v6068
  %v6101 = vadd.f32 %v6033, %v6069
  %v6102 = vadd.f32 %v6034, %v6070
  %v6103 = vadd.f32 %v6035, %v6071
  %v6104 = vadd.f32 %v6036, %v6072
  %v6105 = vadd.f32 %v6037, %v6073
  %v6106 = vadd.f32 %v6038, %v6074
  %v6108 = vlaneseq
  %v6109 = vshrl.u32 %v6108, 7
  %v6110 = vsub.s32 0, %v6109
  %v6111 = vrot.slane %v250, %v6110
  %v6113 = vadd.f32 %v6075, %v6111
  %v6114 = vadd.f32 %v6076, %v6111
  %v6115 = vadd.f32 %v6077, %v6111
  %v6116 = vadd.f32 %v6078, %v6111
  %v6117 = vadd.f32 %v6079, %v6111
  %v6118 = vadd.f32 %v6080, %v6111
  %v6119 = vadd.f32 %v6081, %v6111
  %v6120 = vadd.f32 %v6082, %v6111
  %v6121 = vadd.f32 %v6083, %v6111
  %v6122 = vadd.f32 %v6084, %v6111
  %v6123 = vadd.f32 %v6085, %v6111
  %v6124 = vadd.f32 %v6086, %v6111
  %v6125 = vadd.f32 %v6087, %v6111
  %v6126 = vadd.f32 %v6088, %v6111
  %v6127 = vadd.f32 %v6089, %v6111
  %v6128 = vadd.f32 %v6090, %v6111
  %v6129 = vadd.f32 %v6091, %v6111
  %v6130 = vadd.f32 %v6092, %v6111
  %v6131 = vadd.f32 %v6093, %v6111
  %v6132 = vadd.f32 %v6094, %v6111
  %v6133 = vadd.f32 %v6095, %v6111
  %v6134 = vadd.f32 %v6096, %v6111
  %v6135 = vadd.f32 %v6097, %v6111
  %v6136 = vadd.f32 %v6098, %v6111
  %v6137 = vadd.f32 %v6099, %v6111
  %v6138 = vadd.f32 %v6100, %v6111
  %v6139 = vadd.f32 %v6101, %v6111
  %v6140 = vadd.f32 %v6102, %v6111
  %v6141 = vadd.f32 %v6103, %v6111
  %v6142 = vadd.f32 %v6104, %v6111
  %v6143 = vadd.f32 %v6105, %v6111
  %v6144 = vadd.f32 %v6106, %v6111
  %v6146 = vsel %vm289, %v6113, 0
  %v6149 = vsel %vm289, %v6114, 0
  %v6152 = vsel %vm289, %v6115, 0
  %v6155 = vsel %vm289, %v6116, 0
  %v6158 = vsel %vm289, %v6117, 0
  %v6161 = vsel %vm289, %v6118, 0
  %v6164 = vsel %vm289, %v6119, 0
  %v6167 = vsel %vm289, %v6120, 0
  %v6170 = vsel %vm289, %v6121, 0
  %v6173 = vsel %vm289, %v6122, 0
  %v6176 = vsel %vm289, %v6123, 0
  %v6179 = vsel %vm289, %v6124, 0
  %v6182 = vsel %vm289, %v6125, 0
  %v6185 = vsel %vm289, %v6126, 0
  %v6188 = vsel %vm289, %v6127, 0
  %v6191 = vsel %vm289, %v6128, 0
  %v6194 = vsel %vm289, %v6129, 0
  %v6197 = vsel %vm289, %v6130, 0
  %v6200 = vsel %vm289, %v6131, 0
  %v6203 = vsel %vm289, %v6132, 0
  %v6206 = vsel %vm289, %v6133, 0
  %v6209 = vsel %vm289, %v6134, 0
  %v6212 = vsel %vm289, %v6135, 0
  %v6215 = vsel %vm289, %v6136, 0
  %v6218 = vsel %vm289, %v6137, 0
  %v6221 = vsel %vm289, %v6138, 0
  %v6224 = vsel %vm289, %v6139, 0
  %v6227 = vsel %vm289, %v6140, 0
  %v6230 = vsel %vm289, %v6141, 0
  %v6233 = vsel %vm289, %v6142, 0
  %v6236 = vsel %vm289, %v6143, 0
  %v6239 = vsel %vm289, %v6144, 0
  %6241 = vmatprep.subr.mxu0 0.0
  %6242 = vmatpush1.msra.mxu0 0.0
  %6243 = vmatprep.subr.mxu0 0.0
  %6244 = vmatpush1.msra.mxu0 0.0
  %6245 = vmatprep.subr.mxu0 0.0
  %6246 = vmatpush1.msra.mxu0 0.0
  %6247 = vmatprep.subr.mxu0 0.0
  %6248 = vmatpush1.msra.mxu0 0.0
  %6249 = vmatprep.subr.mxu0 0.0
  %6250 = vmatpush1.msra.mxu0 0.0
  %6251 = vmatprep.subr.mxu0 0.0
  %6252 = vmatpush1.msra.mxu0 0.0
  %6253 = vmatprep.subr.mxu0 0.0
  %6254 = vmatpush1.msra.mxu0 0.0
  %6255 = vmatprep.subr.mxu0 0.0
  %6256 = vmatpush1.msra.mxu0 0.0
  %6257 = vmatprep.subr.mxu0 0.0
  %6258 = vmatpush1.msra.mxu0 0.0
  %6259 = vmatprep.subr.mxu0 0.0
  %6260 = vmatpush1.msra.mxu0 0.0
  %6261 = vmatprep.subr.mxu0 0.0
  %6262 = vmatpush1.msra.mxu0 0.0
  %6263 = vmatprep.subr.mxu0 0.0
  %6264 = vmatpush1.msra.mxu0 0.0
  %6265 = vmatprep.subr.mxu0 0.0
  %6266 = vmatpush1.msra.mxu0 0.0
  %6267 = vmatprep.subr.mxu0 0.0
  %6268 = vmatpush1.msra.mxu0 0.0
  %6269 = vmatprep.subr.mxu0 0.0
  %6270 = vmatpush1.msra.mxu0 0.0
  %6271 = vmatprep.subr.mxu0 0.0
  %6272 = vmatpush1.msra.mxu0 %v248
  %6273 = vmatprep.subr.mxu0 0.0
  %6274 = vmatpush2.msra.mxu0 0.0
  %6275 = vmatprep.subr.mxu0 0.0
  %6276 = vmatpush2.msra.mxu0 0.0
  %6277 = vmatprep.subr.mxu0 0.0
  %6278 = vmatpush2.msra.mxu0 0.0
  %6279 = vmatprep.subr.mxu0 0.0
  %6280 = vmatpush2.msra.mxu0 0.0
  %6281 = vmatprep.subr.mxu0 0.0
  %6282 = vmatpush2.msra.mxu0 0.0
  %6283 = vmatprep.subr.mxu0 0.0
  %6284 = vmatpush2.msra.mxu0 0.0
  %6285 = vmatprep.subr.mxu0 0.0
  %6286 = vmatpush2.msra.mxu0 0.0
  %6287 = vmatprep.subr.mxu0 0.0
  %6288 = vmatpush2.msra.mxu0 0.0
  %6289 = vmatprep.subr.mxu0 0.0
  %6290 = vmatpush2.msra.mxu0 0.0
  %6291 = vmatprep.subr.mxu0 0.0
  %6292 = vmatpush2.msra.mxu0 0.0
  %6293 = vmatprep.subr.mxu0 0.0
  %6294 = vmatpush2.msra.mxu0 0.0
  %6295 = vmatprep.subr.mxu0 0.0
  %6296 = vmatpush2.msra.mxu0 0.0
  %6297 = vmatprep.subr.mxu0 0.0
  %6298 = vmatpush2.msra.mxu0 0.0
  %6299 = vmatprep.subr.mxu0 0.0
  %6300 = vmatpush2.msra.mxu0 0.0
  %6301 = vmatprep.subr.mxu0 0.0
  %6302 = vmatpush2.msra.mxu0 0.0
  %6303 = vmatprep.subr.mxu0 0.0
  %6304 = vmatpush2.msra.mxu0 0.0
  %6305 = vmatprep.mubr.f32.mxu0 0.0
  %6306 = vmatmul.mubr.f32.gmra.mxu0 %v6146
  %v6307 = vpop.f32.mrf.mxu0
  %v6308 = vadd.f32 0.0, %v6307
  %v6309 = vpop.f32.mrf.mxu0
  %6310 = vmatprep.mubr.f32.mxu0 0.0
  %6311 = vmatmul.mubr.f32.gmra.mxu0 %v6149
  %v6312 = vpop.f32.mrf.mxu0
  %v6313 = vadd.f32 0.0, %v6312
  %v6314 = vpop.f32.mrf.mxu0
  %6315 = vmatprep.mubr.f32.mxu0 0.0
  %6316 = vmatmul.mubr.f32.gmra.mxu0 %v6152
  %v6317 = vpop.f32.mrf.mxu0
  %v6318 = vadd.f32 0.0, %v6317
  %v6319 = vpop.f32.mrf.mxu0
  %6320 = vmatprep.mubr.f32.mxu0 0.0
  %6321 = vmatmul.mubr.f32.gmra.mxu0 %v6155
  %v6322 = vpop.f32.mrf.mxu0
  %v6323 = vadd.f32 0.0, %v6322
  %v6324 = vpop.f32.mrf.mxu0
  %6325 = vmatprep.mubr.f32.mxu0 0.0
  %6326 = vmatmul.mubr.f32.gmra.mxu0 %v6158
  %v6327 = vpop.f32.mrf.mxu0
  %v6328 = vadd.f32 0.0, %v6327
  %v6329 = vpop.f32.mrf.mxu0
  %6330 = vmatprep.mubr.f32.mxu0 0.0
  %6331 = vmatmul.mubr.f32.gmra.mxu0 %v6161
  %v6332 = vpop.f32.mrf.mxu0
  %v6333 = vadd.f32 0.0, %v6332
  %v6334 = vpop.f32.mrf.mxu0
  %6335 = vmatprep.mubr.f32.mxu0 0.0
  %6336 = vmatmul.mubr.f32.gmra.mxu0 %v6164
  %v6337 = vpop.f32.mrf.mxu0
  %v6338 = vadd.f32 0.0, %v6337
  %v6339 = vpop.f32.mrf.mxu0
  %6340 = vmatprep.mubr.f32.mxu0 0.0
  %6341 = vmatmul.mubr.f32.gmra.mxu0 %v6167
  %v6342 = vpop.f32.mrf.mxu0
  %v6343 = vadd.f32 0.0, %v6342
  %v6344 = vpop.f32.mrf.mxu0
  %6345 = vmatprep.mubr.f32.mxu0 0.0
  %6346 = vmatmul.mubr.f32.gmra.mxu0 %v6170
  %v6347 = vpop.f32.mrf.mxu0
  %v6348 = vadd.f32 0.0, %v6347
  %v6349 = vpop.f32.mrf.mxu0
  %6350 = vmatprep.mubr.f32.mxu0 0.0
  %6351 = vmatmul.mubr.f32.gmra.mxu0 %v6173
  %v6352 = vpop.f32.mrf.mxu0
  %v6353 = vadd.f32 0.0, %v6352
  %v6354 = vpop.f32.mrf.mxu0
  %6355 = vmatprep.mubr.f32.mxu0 0.0
  %6356 = vmatmul.mubr.f32.gmra.mxu0 %v6176
  %v6357 = vpop.f32.mrf.mxu0
  %v6358 = vadd.f32 0.0, %v6357
  %v6359 = vpop.f32.mrf.mxu0
  %6360 = vmatprep.mubr.f32.mxu0 0.0
  %6361 = vmatmul.mubr.f32.gmra.mxu0 %v6179
  %v6362 = vpop.f32.mrf.mxu0
  %v6363 = vadd.f32 0.0, %v6362
  %v6364 = vpop.f32.mrf.mxu0
  %6365 = vmatprep.mubr.f32.mxu0 0.0
  %6366 = vmatmul.mubr.f32.gmra.mxu0 %v6182
  %v6367 = vpop.f32.mrf.mxu0
  %v6368 = vadd.f32 0.0, %v6367
  %v6369 = vpop.f32.mrf.mxu0
  %6370 = vmatprep.mubr.f32.mxu0 0.0
  %6371 = vmatmul.mubr.f32.gmra.mxu0 %v6185
  %v6372 = vpop.f32.mrf.mxu0
  %v6373 = vadd.f32 0.0, %v6372
  %v6374 = vpop.f32.mrf.mxu0
  %6375 = vmatprep.mubr.f32.mxu0 0.0
  %6376 = vmatmul.mubr.f32.gmra.mxu0 %v6188
  %v6377 = vpop.f32.mrf.mxu0
  %v6378 = vadd.f32 0.0, %v6377
  %v6379 = vpop.f32.mrf.mxu0
  %6380 = vmatprep.mubr.f32.mxu0 0.0
  %6381 = vmatmul.mubr.f32.gmra.mxu0 %v6191
  %v6382 = vpop.f32.mrf.mxu0
  %v6383 = vadd.f32 0.0, %v6382
  %v6384 = vpop.f32.mrf.mxu0
  %6385 = vmatprep.mubr.f32.mxu0 0.0
  %6386 = vmatmul.mubr.f32.gmra.mxu0 %v6194
  %v6387 = vpop.f32.mrf.mxu0
  %v6388 = vadd.f32 0.0, %v6387
  %v6389 = vpop.f32.mrf.mxu0
  %6390 = vmatprep.mubr.f32.mxu0 0.0
  %6391 = vmatmul.mubr.f32.gmra.mxu0 %v6197
  %v6392 = vpop.f32.mrf.mxu0
  %v6393 = vadd.f32 0.0, %v6392
  %v6394 = vpop.f32.mrf.mxu0
  %6395 = vmatprep.mubr.f32.mxu0 0.0
  %6396 = vmatmul.mubr.f32.gmra.mxu0 %v6200
  %v6397 = vpop.f32.mrf.mxu0
  %v6398 = vadd.f32 0.0, %v6397
  %v6399 = vpop.f32.mrf.mxu0
  %6400 = vmatprep.mubr.f32.mxu0 0.0
  %6401 = vmatmul.mubr.f32.gmra.mxu0 %v6203
  %v6402 = vpop.f32.mrf.mxu0
  %v6403 = vadd.f32 0.0, %v6402
  %v6404 = vpop.f32.mrf.mxu0
  %6405 = vmatprep.mubr.f32.mxu0 0.0
  %6406 = vmatmul.mubr.f32.gmra.mxu0 %v6206
  %v6407 = vpop.f32.mrf.mxu0
  %v6408 = vadd.f32 0.0, %v6407
  %v6409 = vpop.f32.mrf.mxu0
  %6410 = vmatprep.mubr.f32.mxu0 0.0
  %6411 = vmatmul.mubr.f32.gmra.mxu0 %v6209
  %v6412 = vpop.f32.mrf.mxu0
  %v6413 = vadd.f32 0.0, %v6412
  %v6414 = vpop.f32.mrf.mxu0
  %6415 = vmatprep.mubr.f32.mxu0 0.0
  %6416 = vmatmul.mubr.f32.gmra.mxu0 %v6212
  %v6417 = vpop.f32.mrf.mxu0
  %v6418 = vadd.f32 0.0, %v6417
  %v6419 = vpop.f32.mrf.mxu0
  %6420 = vmatprep.mubr.f32.mxu0 0.0
  %6421 = vmatmul.mubr.f32.gmra.mxu0 %v6215
  %v6422 = vpop.f32.mrf.mxu0
  %v6423 = vadd.f32 0.0, %v6422
  %v6424 = vpop.f32.mrf.mxu0
  %6425 = vmatprep.mubr.f32.mxu0 0.0
  %6426 = vmatmul.mubr.f32.gmra.mxu0 %v6218
  %v6427 = vpop.f32.mrf.mxu0
  %v6428 = vadd.f32 0.0, %v6427
  %v6429 = vpop.f32.mrf.mxu0
  %6430 = vmatprep.mubr.f32.mxu0 0.0
  %6431 = vmatmul.mubr.f32.gmra.mxu0 %v6221
  %v6432 = vpop.f32.mrf.mxu0
  %v6433 = vadd.f32 0.0, %v6432
  %v6434 = vpop.f32.mrf.mxu0
  %6435 = vmatprep.mubr.f32.mxu0 0.0
  %6436 = vmatmul.mubr.f32.gmra.mxu0 %v6224
  %v6437 = vpop.f32.mrf.mxu0
  %v6438 = vadd.f32 0.0, %v6437
  %v6439 = vpop.f32.mrf.mxu0
  %6440 = vmatprep.mubr.f32.mxu0 0.0
  %6441 = vmatmul.mubr.f32.gmra.mxu0 %v6227
  %v6442 = vpop.f32.mrf.mxu0
  %v6443 = vadd.f32 0.0, %v6442
  %v6444 = vpop.f32.mrf.mxu0
  %6445 = vmatprep.mubr.f32.mxu0 0.0
  %6446 = vmatmul.mubr.f32.gmra.mxu0 %v6230
  %v6447 = vpop.f32.mrf.mxu0
  %v6448 = vadd.f32 0.0, %v6447
  %v6449 = vpop.f32.mrf.mxu0
  %6450 = vmatprep.mubr.f32.mxu0 0.0
  %6451 = vmatmul.mubr.f32.gmra.mxu0 %v6233
  %v6452 = vpop.f32.mrf.mxu0
  %v6453 = vadd.f32 0.0, %v6452
  %v6454 = vpop.f32.mrf.mxu0
  %6455 = vmatprep.mubr.f32.mxu0 0.0
  %6456 = vmatmul.mubr.f32.gmra.mxu0 %v6236
  %v6457 = vpop.f32.mrf.mxu0
  %v6458 = vadd.f32 0.0, %v6457
  %v6459 = vpop.f32.mrf.mxu0
  %6460 = vmatprep.mubr.f32.mxu0 0.0
  %6461 = vmatmul.mubr.f32.gmra.mxu0 %v6239
  %v6462 = vpop.f32.mrf.mxu0
  %v6463 = vadd.f32 0.0, %v6462
  %v6464 = vpop.f32.mrf.mxu0
  %6465 = vdwg.mxu0
  %v6467 = vlaneseq
  %v6468 = vshrl.u32 %v6467, 7
  %v6469 = vsub.s32 0, %v6468
  %v6470 = vrot.slane %v251, %v6469
  %v6472 = vadd.f32 %v6308, %v6470
  %v6473 = vadd.f32 %v6313, %v6470
  %v6474 = vadd.f32 %v6318, %v6470
  %v6475 = vadd.f32 %v6323, %v6470
  %v6476 = vadd.f32 %v6328, %v6470
  %v6477 = vadd.f32 %v6333, %v6470
  %v6478 = vadd.f32 %v6338, %v6470
  %v6479 = vadd.f32 %v6343, %v6470
  %v6480 = vadd.f32 %v6348, %v6470
  %v6481 = vadd.f32 %v6353, %v6470
  %v6482 = vadd.f32 %v6358, %v6470
  %v6483 = vadd.f32 %v6363, %v6470
  %v6484 = vadd.f32 %v6368, %v6470
  %v6485 = vadd.f32 %v6373, %v6470
  %v6486 = vadd.f32 %v6378, %v6470
  %v6487 = vadd.f32 %v6383, %v6470
  %v6488 = vadd.f32 %v6388, %v6470
  %v6489 = vadd.f32 %v6393, %v6470
  %v6490 = vadd.f32 %v6398, %v6470
  %v6491 = vadd.f32 %v6403, %v6470
  %v6492 = vadd.f32 %v6408, %v6470
  %v6493 = vadd.f32 %v6413, %v6470
  %v6494 = vadd.f32 %v6418, %v6470
  %v6495 = vadd.f32 %v6423, %v6470
  %v6496 = vadd.f32 %v6428, %v6470
  %v6497 = vadd.f32 %v6433, %v6470
  %v6498 = vadd.f32 %v6438, %v6470
  %v6499 = vadd.f32 %v6443, %v6470
  %v6500 = vadd.f32 %v6448, %v6470
  %v6501 = vadd.f32 %v6453, %v6470
  %v6502 = vadd.f32 %v6458, %v6470
  %v6503 = vadd.f32 %v6463, %v6470
  %v6504 = vld [vmem:[%s253] sm:$0xff]
  %v6505 = vld [vmem:[%s253 + $0x8] sm:$0xff]
  %v6506 = vld [vmem:[%s253 + $0x10] sm:$0xff]
  %v6507 = vld [vmem:[%s253 + $0x18] sm:$0xff]
  %v6508 = vld [vmem:[%s253 + $0x20] sm:$0xff]
  %v6509 = vld [vmem:[%s253 + $0x28] sm:$0xff]
  %v6510 = vld [vmem:[%s253 + $0x30] sm:$0xff]
  %v6511 = vld [vmem:[%s253 + $0x38] sm:$0xff]
  %v6512 = vld [vmem:[%s253 + $0x40] sm:$0xff]
  %v6513 = vld [vmem:[%s253 + $0x48] sm:$0xff]
  %v6514 = vld [vmem:[%s253 + $0x50] sm:$0xff]
  %v6515 = vld [vmem:[%s253 + $0x58] sm:$0xff]
  %v6516 = vld [vmem:[%s253 + $0x60] sm:$0xff]
  %v6517 = vld [vmem:[%s253 + $0x68] sm:$0xff]
  %v6518 = vld [vmem:[%s253 + $0x70] sm:$0xff]
  %v6519 = vld [vmem:[%s253 + $0x78] sm:$0xff]
  %v6520 = vld [vmem:[%s253 + $0x80] sm:$0xff]
  %v6521 = vld [vmem:[%s253 + $0x88] sm:$0xff]
  %v6522 = vld [vmem:[%s253 + $0x90] sm:$0xff]
  %v6523 = vld [vmem:[%s253 + $0x98] sm:$0xff]
  %v6524 = vld [vmem:[%s253 + $0xa0] sm:$0xff]
  %v6525 = vld [vmem:[%s253 + $0xa8] sm:$0xff]
  %v6526 = vld [vmem:[%s253 + $0xb0] sm:$0xff]
  %v6527 = vld [vmem:[%s253 + $0xb8] sm:$0xff]
  %v6528 = vld [vmem:[%s253 + $0xc0] sm:$0xff]
  %v6529 = vld [vmem:[%s253 + $0xc8] sm:$0xff]
  %v6530 = vld [vmem:[%s253 + $0xd0] sm:$0xff]
  %v6531 = vld [vmem:[%s253 + $0xd8] sm:$0xff]
  %v6532 = vld [vmem:[%s253 + $0xe0] sm:$0xff]
  %v6533 = vld [vmem:[%s253 + $0xe8] sm:$0xff]
  %v6534 = vld [vmem:[%s253 + $0xf0] sm:$0xff]
  %v6535 = vld [vmem:[%s253 + $0xf8] sm:$0xff]
  %v6536 = vmul.f32 %v6504, %v6472
  %v6537 = vmul.f32 %v6505, %v6473
  %v6538 = vmul.f32 %v6506, %v6474
  %v6539 = vmul.f32 %v6507, %v6475
  %v6540 = vmul.f32 %v6508, %v6476
  %v6541 = vmul.f32 %v6509, %v6477
  %v6542 = vmul.f32 %v6510, %v6478
  %v6543 = vmul.f32 %v6511, %v6479
  %v6544 = vmul.f32 %v6512, %v6480
  %v6545 = vmul.f32 %v6513, %v6481
  %v6546 = vmul.f32 %v6514, %v6482
  %v6547 = vmul.f32 %v6515, %v6483
  %v6548 = vmul.f32 %v6516, %v6484
  %v6549 = vmul.f32 %v6517, %v6485
  %v6550 = vmul.f32 %v6518, %v6486
  %v6551 = vmul.f32 %v6519, %v6487
  %v6552 = vmul.f32 %v6520, %v6488
  %v6553 = vmul.f32 %v6521, %v6489
  %v6554 = vmul.f32 %v6522, %v6490
  %v6555 = vmul.f32 %v6523, %v6491
  %v6556 = vmul.f32 %v6524, %v6492
  %v6557 = vmul.f32 %v6525, %v6493
  %v6558 = vmul.f32 %v6526, %v6494
  %v6559 = vmul.f32 %v6527, %v6495
  %v6560 = vmul.f32 %v6528, %v6496
  %v6561 = vmul.f32 %v6529, %v6497
  %v6562 = vmul.f32 %v6530, %v6498
  %v6563 = vmul.f32 %v6531, %v6499
  %v6564 = vmul.f32 %v6532, %v6500
  %v6565 = vmul.f32 %v6533, %v6501
  %v6566 = vmul.f32 %v6534, %v6502
  %v6567 = vmul.f32 %v6535, %v6503
  %s6568 = scalar_lea.vmem %s7, %s252
  %6569 = vst.msk [vmem:[%s6568] sm:$0xff] %vm289, %v6536
  %6570 = vst.msk [vmem:[%s6568 + $0x8] sm:$0xff] %vm289, %v6537
  %6571 = vst.msk [vmem:[%s6568 + $0x10] sm:$0xff] %vm289, %v6538
  %6572 = vst.msk [vmem:[%s6568 + $0x18] sm:$0xff] %vm289, %v6539
  %6573 = vst.msk [vmem:[%s6568 + $0x20] sm:$0xff] %vm289, %v6540
  %6574 = vst.msk [vmem:[%s6568 + $0x28] sm:$0xff] %vm289, %v6541
  %6575 = vst.msk [vmem:[%s6568 + $0x30] sm:$0xff] %vm289, %v6542
  %6576 = vst.msk [vmem:[%s6568 + $0x38] sm:$0xff] %vm289, %v6543
  %6577 = vst.msk [vmem:[%s6568 + $0x40] sm:$0xff] %vm289, %v6544
  %6578 = vst.msk [vmem:[%s6568 + $0x48] sm:$0xff] %vm289, %v6545
  %6579 = vst.msk [vmem:[%s6568 + $0x50] sm:$0xff] %vm289, %v6546
  %6580 = vst.msk [vmem:[%s6568 + $0x58] sm:$0xff] %vm289, %v6547
  %6581 = vst.msk [vmem:[%s6568 + $0x60] sm:$0xff] %vm289, %v6548
  %6582 = vst.msk [vmem:[%s6568 + $0x68] sm:$0xff] %vm289, %v6549
  %6583 = vst.msk [vmem:[%s6568 + $0x70] sm:$0xff] %vm289, %v6550
  %6584 = vst.msk [vmem:[%s6568 + $0x78] sm:$0xff] %vm289, %v6551
  %6585 = vst.msk [vmem:[%s6568 + $0x80] sm:$0xff] %vm289, %v6552
  %6586 = vst.msk [vmem:[%s6568 + $0x88] sm:$0xff] %vm289, %v6553
  %6587 = vst.msk [vmem:[%s6568 + $0x90] sm:$0xff] %vm289, %v6554
  %6588 = vst.msk [vmem:[%s6568 + $0x98] sm:$0xff] %vm289, %v6555
  %6589 = vst.msk [vmem:[%s6568 + $0xa0] sm:$0xff] %vm289, %v6556
  %6590 = vst.msk [vmem:[%s6568 + $0xa8] sm:$0xff] %vm289, %v6557
  %6591 = vst.msk [vmem:[%s6568 + $0xb0] sm:$0xff] %vm289, %v6558
  %6592 = vst.msk [vmem:[%s6568 + $0xb8] sm:$0xff] %vm289, %v6559
  %6593 = vst.msk [vmem:[%s6568 + $0xc0] sm:$0xff] %vm289, %v6560
  %6594 = vst.msk [vmem:[%s6568 + $0xc8] sm:$0xff] %vm289, %v6561
  %6595 = vst.msk [vmem:[%s6568 + $0xd0] sm:$0xff] %vm289, %v6562
  %6596 = vst.msk [vmem:[%s6568 + $0xd8] sm:$0xff] %vm289, %v6563
  %6597 = vst.msk [vmem:[%s6568 + $0xe0] sm:$0xff] %vm289, %v6564
  %6598 = vst.msk [vmem:[%s6568 + $0xe8] sm:$0xff] %vm289, %v6565
  %6599 = vst.msk [vmem:[%s6568 + $0xf0] sm:$0xff] %vm289, %v6566
  %6600 = vst.msk [vmem:[%s6568 + $0xf8] sm:$0xff] %vm289, %v6567
  // Predicated region
  $region34: #{tpu_custom_call.1} parent=0 // pred_check
    _
  $region35: #{tpu_custom_call.1} parent=0 // pred_check_branch
    %6602 = sbr.rel (0) target = $region37
  $region36: #{tpu_custom_call.1} parent=0 // pred_region
    _
  $region37: #{tpu_custom_call.1} parent=0 // pred_fallthru
    _
  // Predicated region
  $region38: #{tpu_custom_call.1} parent=0 // pred_check
    _
  $region39: #{tpu_custom_call.1} parent=0 // pred_check_branch
    %6604 = sbr.rel (0) target = $region41
  $region40: #{tpu_custom_call.1} parent=0 // pred_region
    _
  $region41: #{tpu_custom_call.1} parent=0 // pred_fallthru
    _

</llo_original>
